<compile_context>
chip_gen: v7x
topology: tpu7x:2x2x1
jax: 0.10.0
libtpu: 0.0.40
codegen_flags: <defaults>
</compile_context>

<pallas_src>
import math

import numpy as np
import jax
import jax.numpy as jnp
from jax.experimental import pallas as pl
from jax.experimental.pallas import tpu as pltpu

H_IN, H1, H2, H3 = 16, 14, 12, 8      # input / conv1 / conv2 / conv3 heights


# ---------------------------------------------------------------------------
# Single fused kernel
# ---------------------------------------------------------------------------
def _convnet_kernel(x_ref, m1_ref, b1_ref, m2_ref, b2_ref, m3_ref, b3_ref,
                    w1_ref, fb1_ref, w2_ref, fb2_ref,
                    o_ref, a1_ref, a2_ref, a3_ref):
    """Activations are h-major 2-D slabs: row = h*B + b, lane = w*C + c (padded
    to a multiple of 128).  Each VALID conv is then one batch-collapsed MXU dot
    against a banded weight matrix whose KH taps are stacked along K."""
    B = x_ref.shape[0] // H_IN

    # --- conv1 + sigmoid: 3 taps, K=16 each (input too narrow to stack) -----
    z1 = jnp.dot(x_ref[pl.ds(0, H1 * B), :], m1_ref[0],
                 preferred_element_type=jnp.float32)
    for i in range(1, 3):
        z1 = z1 + jnp.dot(x_ref[pl.ds(i * B, H1 * B), :], m1_ref[i],
                          preferred_element_type=jnp.float32)
    z1 = z1 + b1_ref[...]
    a1_ref[...] = 1.0 / (1.0 + jnp.exp(-z1))          # exact sigmoid (EUP exp)

    # --- conv2 + relu: 3 taps stacked along K (3*128 = 384), one MXU dot ----
    t2 = jnp.concatenate([a1_ref[pl.ds(i * B, H2 * B), :] for i in range(3)],
                         axis=1)                                   # (12B, 384)
    z2 = jnp.dot(t2, m2_ref[...], preferred_element_type=jnp.float32)
    a2_ref[...] = jnp.maximum(z2 + b2_ref[...], 0.0)               # (12B, 256)

    # --- conv3 + relu: 5 taps stacked along K (5*256 = 1280), one MXU dot ---
    t3 = jnp.concatenate([a2_ref[pl.ds(i * B, H3 * B), :] for i in range(5)],
                         axis=1)                                   # (8B, 1280)
    z3 = jnp.dot(t3, m3_ref[...], preferred_element_type=jnp.float32)
    a3_ref[...] = jnp.maximum(z3 + b3_ref[...], 0.0)               # (8B, 128)

    # --- fc1 + relu: contract the 8 h-rows against the (8,128,2048) weight ---
    acc = jnp.dot(a3_ref[pl.ds(0, B), :].astype(jnp.bfloat16), w1_ref[0],
                  preferred_element_type=jnp.float32)
    for h in range(1, H3):
        acc = acc + jnp.dot(a3_ref[pl.ds(h * B, B), :].astype(jnp.bfloat16),
                            w1_ref[h], preferred_element_type=jnp.float32)
    h1 = jnp.maximum(acc + fb1_ref[...], 0.0)                      # (B, 2048)

    # --- fc2 + log_softmax (output padded to 128 lanes, pad bias = -1e30) ---
    logits = jnp.dot(h1.astype(jnp.bfloat16), w2_ref[...],
                     preferred_element_type=jnp.float32) + fb2_ref[...]
    m = jnp.max(logits, axis=-1, keepdims=True)
    s = logits - m
    lse = jnp.log(jnp.sum(jnp.exp(s), axis=-1, keepdims=True))
    o_ref[...] = s - lse                                           # (B, 128)


# TODO(synk): for deployment batch sizes >> 2, add a "parallel" batch grid axis
# (per-tile BlockSpecs) so v7x's second TensorCore gets work; at B=2 the model
# is weight-DMA-bound and a second core would only duplicate the weight fetch.
def convnet_fused(x_hb, m1, b1, m2, b2, m3, b3, w1, fb1, w2, fb2):
    B = x_hb.shape[0] // H_IN
    args = (x_hb, m1, b1, m2, b2, m3, b3, w1, fb1, w2, fb2)
    vmem = pl.BlockSpec(memory_space=pltpu.MemorySpace.VMEM)
    flops = 2 * B * (H1 * 14 * 8 * 1 * 9 + H2 * 12 * 16 * 8 * 9
                     + H3 * 8 * 16 * 16 * 25 + 1024 * 2048 + 2048 * 128)
    bytes_accessed = int(sum(a.size * a.dtype.itemsize for a in args)
                         + B * 128 * 4)
    return pl.pallas_call(
        _convnet_kernel,
        out_shape=jax.ShapeDtypeStruct((B, 128), jnp.float32),
        in_specs=[vmem] * len(args),
        out_specs=vmem,
        scratch_shapes=[pltpu.VMEM((H1 * B, 128), jnp.float32),   # conv1 act
                        pltpu.VMEM((H2 * B, 256), jnp.float32),   # conv2 act
                        pltpu.VMEM((H3 * B, 128), jnp.float32)],  # conv3 act
        compiler_params=pltpu.CompilerParams(
            vmem_limit_bytes=24 * 1024 * 1024),   # footprint ~5.6 MiB: headroom
        cost_estimate=pl.CostEstimate(flops=flops,
                                      transcendentals=B * (H1 * 128 + 130),
                                      bytes_accessed=bytes_accessed),
    )(*args)


# ---------------------------------------------------------------------------
# Parameters: PyTorch-layout init + one-time kernel-friendly repack
# ---------------------------------------------------------------------------
def init_params(key, init=1):
    def uniform(k, shape, lo, hi):
        return jax.random.uniform(k, shape, jnp.float32, lo, hi)

    def conv_range(cout, ksz):
        fan = cout * ksz * ksz
        ranges = {1: (-ksz / math.sqrt(fan), ksz / math.sqrt(fan)),
                  2: (-2.0, 2.0),
                  3: (-0.04, 0.07)}
        return ranges[init]

    keys = jax.random.split(key, 8)
    params = {}
    for (name, cout, cin, ksz, k) in [("conv1", 8, 1, 3, keys[0]),
                                      ("conv2", 16, 8, 3, keys[1]),
                                      ("conv3", 16, 16, 5, keys[2])]:
        lo, hi = conv_range(cout, ksz)
        params[name + "_w"] = uniform(k, (cout, cin, ksz, ksz), lo, hi)
        params[name + "_b"] = jnp.full((cout,), 0.1, jnp.float32)
    for (name, fout, fin, kw_key, kb_key) in [("fc1", 2048, 1024, keys[3], keys[4]),
                                              ("fc2", 10, 2048, keys[5], keys[6])]:
        bound = 1.0 / math.sqrt(fin)
        params[name + "_w"] = uniform(kw_key, (fout, fin), -bound, bound)
        params[name + "_b"] = uniform(kb_key, (fout,), -bound, bound)
    return params


def _banded_conv_mat(w, win, in_pad, out_pad, stack_taps):
    """Banded matrix for a VALID conv on h-major rows.
    Input lane (x+j)*Cin+ci (zero-padded to in_pad), output lane x*Cout+co
    (zero-padded to out_pad).  Taps either stacked along K -> (KH*in_pad,
    out_pad) or kept separate -> (KH, in_pad, out_pad)."""
    cout, cin, kh, kw = w.shape
    wout = win - kw + 1
    m = np.zeros((kh, in_pad, out_pad), np.float32)
    for i in range(kh):
        for j in range(kw):
            blk = w[:, :, i, j].T                              # (Cin, Cout)
            for x in range(wout):
                m[i, (x + j) * cin:(x + j + 1) * cin,
                     x * cout:(x + 1) * cout] = blk
    if stack_taps:
        m = m.reshape(kh * in_pad, out_pad)
    return m, wout


def _tiled_bias(b, wout, out_pad):
    t = np.tile(np.asarray(b, np.float32), wout)
    return np.pad(t, (0, out_pad - t.size))[None, :]


def prepare_params(params):
    """One-time host-side repack: banded conv matrices (taps stacked along K,
    lanes padded to 128/256), tiled biases, permuted/transposed bf16 fc1 split
    into 8 h-blocks, fc2 padded to 128 lane-dense output columns."""
    prep = {}
    m1, w1o = _banded_conv_mat(np.asarray(params["conv1_w"], np.float32),
                               win=16, in_pad=16, out_pad=128, stack_taps=False)
    prep["conv1_m"] = jnp.asarray(m1)                            # (3, 16, 128)
    prep["conv1_b"] = jnp.asarray(_tiled_bias(params["conv1_b"], w1o, 128))
    m2, w2o = _banded_conv_mat(np.asarray(params["conv2_w"], np.float32),
                               win=14, in_pad=128, out_pad=256, stack_taps=True)
    prep["conv2_m"] = jnp.asarray(m2)                            # (384, 256)
    prep["conv2_b"] = jnp.asarray(_tiled_bias(params["conv2_b"], w2o, 256))
    m3, w3o = _banded_conv_mat(np.asarray(params["conv3_w"], np.float32),
                               win=12, in_pad=256, out_pad=128, stack_taps=True)
    prep["conv3_m"] = jnp.asarray(m3)                            # (1280, 128)
    prep["conv3_b"] = jnp.asarray(_tiled_bias(params["conv3_b"], w3o, 128))

    # fc1: map torch (C,H,W)-flatten order to the kernel's h-major (H, W*C)
    # layout, transpose to (in, out), split the H dim, cast to bf16 once.
    hh, ww, cc = np.meshgrid(np.arange(8), np.arange(8), np.arange(16),
                             indexing="ij")
    perm = (cc * 64 + hh * 8 + ww).reshape(-1)   # pos h*128+w*16+c -> torch idx
    w1 = np.asarray(params["fc1_w"], np.float32)                 # (2048, 1024)
    prep["fc1_w"] = jnp.asarray(w1[:, perm].T.reshape(8, 128, 2048)
                                ).astype(jnp.bfloat16)           # (8,128,2048)
    prep["fc1_b"] = jnp.asarray(np.asarray(params["fc1_b"], np.float32)[None, :])

    # fc2: transpose, zero-pad 10 -> 128 output lanes; padded bias lanes get
    # -1e30 so they vanish under log_softmax (sliced off in the wrapper).
    w2 = np.asarray(params["fc2_w"], np.float32)                 # (10, 2048)
    w2p = np.zeros((2048, 128), np.float32)
    w2p[:, :10] = w2.T
    prep["fc2_w"] = jnp.asarray(w2p).astype(jnp.bfloat16)        # (2048, 128)
    b2p = np.full((1, 128), -1e30, np.float32)
    b2p[0, :10] = np.asarray(params["fc2_b"], np.float32)
    prep["fc2_b"] = jnp.asarray(b2p)
    return prep


# ---------------------------------------------------------------------------
# Forward pass
# ---------------------------------------------------------------------------
def convnet_forward(prep, x_nchw):
    B = x_nchw.shape[0]
    # (B,1,16,16) -> h-major rows (row = h*B + b), 16 input lanes.
    x_hb = x_nchw.reshape(B, H_IN, H_IN).transpose(1, 0, 2).reshape(H_IN * B, H_IN)
    out = convnet_fused(x_hb,
                        prep["conv1_m"], prep["conv1_b"],
                        prep["conv2_m"], prep["conv2_b"],
                        prep["conv3_m"], prep["conv3_b"],
                        prep["fc1_w"], prep["fc1_b"],
                        prep["fc2_w"], prep["fc2_b"])             # (B, 128)
    return out[:, :10]


def convnet_reference(params, x_nchw):
    """Pure-JAX reference (uses the original PyTorch-layout params)."""
    def conv(x, w, b):
        y = jax.lax.conv_general_dilated(
            x, w, (1, 1), "VALID", dimension_numbers=("NCHW", "OIHW", "NCHW"))
        return y + b.reshape(1, -1, 1, 1)

    x = jax.nn.sigmoid(conv(x_nchw, params["conv1_w"], params["conv1_b"]))
    x = jnp.maximum(conv(x, params["conv2_w"], params["conv2_b"]), 0.0)
    x = jnp.maximum(conv(x, params["conv3_w"], params["conv3_b"]), 0.0)
    x = x.reshape(x.shape[0], -1)
    x = jnp.maximum(x @ params["fc1_w"].T + params["fc1_b"], 0.0)
    x = x @ params["fc2_w"].T + params["fc2_b"]
    return jax.nn.log_softmax(x, axis=-1)


if __name__ == "__main__":
    key = jax.random.PRNGKey(0)
    pkey, xkey = jax.random.split(key)
    params = init_params(pkey, init=1)
    prep = prepare_params(params)                 # one-time repack (host side)
    x = jax.random.normal(xkey, (2, 1, 16, 16), jnp.float32)   # NCHW as in PyTorch

    out = jax.jit(convnet_forward)(prep, x)
    out = jax.block_until_ready(out)

    assert out.shape == (2, 10)
    # rows of log_softmax must exponentiate-sum to 1
    assert jnp.allclose(jnp.sum(jnp.exp(out), axis=1), 1.0, atol=1e-3)
    ref = convnet_reference(params, x)
    err = float(jnp.max(jnp.abs(out - ref)))
    assert jnp.allclose(out, ref, atol=5e-2, rtol=0.0), err   # bf16 fc weights only
    print("KERNEL_OK")
</pallas_src>

<mosaic_0001>
module attributes {stable_mosaic.version = 11 : i64} {
  func.func @_convnet_kernel(%arg0: memref<32x16xf32, #tpu.memory_space<vmem>>, %arg1: memref<3x16x128xf32, #tpu.memory_space<vmem>>, %arg2: memref<1x128xf32, #tpu.memory_space<vmem>>, %arg3: memref<384x256xf32, #tpu.memory_space<vmem>>, %arg4: memref<1x256xf32, #tpu.memory_space<vmem>>, %arg5: memref<1280x128xf32, #tpu.memory_space<vmem>>, %arg6: memref<1x128xf32, #tpu.memory_space<vmem>>, %arg7: memref<8x128x2048xbf16, #tpu.memory_space<vmem>>, %arg8: memref<1x2048xf32, #tpu.memory_space<vmem>>, %arg9: memref<2048x128xbf16, #tpu.memory_space<vmem>>, %arg10: memref<1x128xf32, #tpu.memory_space<vmem>>, %arg11: memref<2x128xf32, #tpu.memory_space<vmem>>, %arg12: memref<28x128xf32, #tpu.memory_space<vmem>>, %arg13: memref<24x256xf32, #tpu.memory_space<vmem>>, %arg14: memref<16x128xf32, #tpu.memory_space<vmem>>) attributes {dimension_semantics = [], scalar_prefetch = 0 : i64, scratch_operands = 3 : i64, tpu.core_type = #tpu.core_type<tc>} {
    %c0 = arith.constant 0 : index
    %c0_0 = arith.constant 0 : index
    %0 = vector.load %arg0[%c0, %c0_0] : memref<32x16xf32, #tpu.memory_space<vmem>>, vector<28x16xf32>
    %c0_1 = arith.constant 0 : index
    %c0_2 = arith.constant 0 : index
    %c0_3 = arith.constant 0 : index
    %1 = vector.load %arg1[%c0_1, %c0_2, %c0_3] : memref<3x16x128xf32, #tpu.memory_space<vmem>>, vector<1x16x128xf32>
    %2 = vector.shape_cast %1 : vector<1x16x128xf32> to vector<16x128xf32>
    %cst = arith.constant dense<0.000000e+00> : vector<28x128xf32>
    %3 = tpu.matmul %0, %2, %cst {dimension_numbers = #tpu.dot_dimension_numbers<[1], [0], [0], [1], [0, 0, 1, 1], [], []>} : vector<28x16xf32>, vector<16x128xf32>, vector<28x128xf32> -> vector<28x128xf32>
    %c2 = arith.constant 2 : index
    %c0_4 = arith.constant 0 : index
    %4 = vector.load %arg0[%c2, %c0_4] : memref<32x16xf32, #tpu.memory_space<vmem>>, vector<28x16xf32>
    %c1 = arith.constant 1 : index
    %c0_5 = arith.constant 0 : index
    %c0_6 = arith.constant 0 : index
    %5 = vector.load %arg1[%c1, %c0_5, %c0_6] : memref<3x16x128xf32, #tpu.memory_space<vmem>>, vector<1x16x128xf32>
    %6 = vector.shape_cast %5 : vector<1x16x128xf32> to vector<16x128xf32>
    %cst_7 = arith.constant dense<0.000000e+00> : vector<28x128xf32>
    %7 = tpu.matmul %4, %6, %cst_7 {dimension_numbers = #tpu.dot_dimension_numbers<[1], [0], [0], [1], [0, 0, 1, 1], [], []>} : vector<28x16xf32>, vector<16x128xf32>, vector<28x128xf32> -> vector<28x128xf32>
    %8 = arith.addf %3, %7 : vector<28x128xf32>
    %c4 = arith.constant 4 : index
    %c0_8 = arith.constant 0 : index
    %9 = vector.load %arg0[%c4, %c0_8] : memref<32x16xf32, #tpu.memory_space<vmem>>, vector<28x16xf32>
    %c2_9 = arith.constant 2 : index
    %c0_10 = arith.constant 0 : index
    %c0_11 = arith.constant 0 : index
    %10 = vector.load %arg1[%c2_9, %c0_10, %c0_11] : memref<3x16x128xf32, #tpu.memory_space<vmem>>, vector<1x16x128xf32>
    %11 = vector.shape_cast %10 : vector<1x16x128xf32> to vector<16x128xf32>
    %cst_12 = arith.constant dense<0.000000e+00> : vector<28x128xf32>
    %12 = tpu.matmul %9, %11, %cst_12 {dimension_numbers = #tpu.dot_dimension_numbers<[1], [0], [0], [1], [0, 0, 1, 1], [], []>} : vector<28x16xf32>, vector<16x128xf32>, vector<28x128xf32> -> vector<28x128xf32>
    %13 = arith.addf %8, %12 : vector<28x128xf32>
    %c0_13 = arith.constant 0 : index
    %c0_14 = arith.constant 0 : index
    %14 = vector.load %arg2[%c0_13, %c0_14] : memref<1x128xf32, #tpu.memory_space<vmem>>, vector<1x128xf32>
    %15 = vector.broadcast %14 : vector<1x128xf32> to vector<28x128xf32>
    %16 = arith.addf %13, %15 : vector<28x128xf32>
    %cst_15 = arith.constant 0.000000e+00 : f32
    %17 = vector.broadcast %cst_15 : f32 to vector<28x128xf32>
    %18 = arith.subf %17, %16 : vector<28x128xf32>
    %19 = math.exp %18 : vector<28x128xf32>
    %cst_16 = arith.constant 1.000000e+00 : f32
    %20 = vector.broadcast %cst_16 : f32 to vector<28x128xf32>
    %21 = arith.addf %20, %19 : vector<28x128xf32>
    %cst_17 = arith.constant 1.000000e+00 : f32
    %22 = vector.broadcast %cst_17 : f32 to vector<28x128xf32>
    %23 = arith.divf %22, %21 : vector<28x128xf32>
    %c0_18 = arith.constant 0 : index
    %c0_19 = arith.constant 0 : index
    %24 = vector.load %arg12[%c0_18, %c0_19] : memref<28x128xf32, #tpu.memory_space<vmem>>, vector<28x128xf32>
    tpu.vector_store %arg12[%c0_18, %c0_19], %23 {strides = array<i32>} : memref<28x128xf32, #tpu.memory_space<vmem>>, vector<28x128xf32>,
    %c0_20 = arith.constant 0 : index
    %c0_21 = arith.constant 0 : index
    %25 = vector.load %arg12[%c0_20, %c0_21] : memref<28x128xf32, #tpu.memory_space<vmem>>, vector<24x128xf32>
    %c2_22 = arith.constant 2 : index
    %c0_23 = arith.constant 0 : index
    %26 = vector.load %arg12[%c2_22, %c0_23] : memref<28x128xf32, #tpu.memory_space<vmem>>, vector<24x128xf32>
    %c4_24 = arith.constant 4 : index
    %c0_25 = arith.constant 0 : index
    %27 = vector.load %arg12[%c4_24, %c0_25] : memref<28x128xf32, #tpu.memory_space<vmem>>, vector<24x128xf32>
    %28 = tpu.concatenate %25, %26, %27 in 1 : vector<24x128xf32>, vector<24x128xf32>, vector<24x128xf32> -> vector<24x384xf32>
    %c0_26 = arith.constant 0 : index
    %c0_27 = arith.constant 0 : index
    %29 = vector.load %arg3[%c0_26, %c0_27] : memref<384x256xf32, #tpu.memory_space<vmem>>, vector<384x256xf32>
    %cst_28 = arith.constant dense<0.000000e+00> : vector<24x256xf32>
    %30 = tpu.matmul %28, %29, %cst_28 {dimension_numbers = #tpu.dot_dimension_numbers<[1], [0], [0], [1], [0, 0, 1, 1], [], []>} : vector<24x384xf32>, vector<384x256xf32>, vector<24x256xf32> -> vector<24x256xf32>
    %c0_29 = arith.constant 0 : index
    %c0_30 = arith.constant 0 : index
    %31 = vector.load %arg4[%c0_29, %c0_30] : memref<1x256xf32, #tpu.memory_space<vmem>>, vector<1x256xf32>
    %32 = vector.broadcast %31 : vector<1x256xf32> to vector<24x256xf32>
    %33 = arith.addf %30, %32 : vector<24x256xf32>
    %cst_31 = arith.constant 0.000000e+00 : f32
    %34 = vector.broadcast %cst_31 : f32 to vector<24x256xf32>
    %35 = arith.maximumf %33, %34 : vector<24x256xf32>
    %c0_32 = arith.constant 0 : index
    %c0_33 = arith.constant 0 : index
    %36 = vector.load %arg13[%c0_32, %c0_33] : memref<24x256xf32, #tpu.memory_space<vmem>>, vector<24x256xf32>
    tpu.vector_store %arg13[%c0_32, %c0_33], %35 {strides = array<i32>} : memref<24x256xf32, #tpu.memory_space<vmem>>, vector<24x256xf32>,
    %c0_34 = arith.constant 0 : index
    %c0_35 = arith.constant 0 : index
    %37 = vector.load %arg13[%c0_34, %c0_35] : memref<24x256xf32, #tpu.memory_space<vmem>>, vector<16x256xf32>
    %c2_36 = arith.constant 2 : index
    %c0_37 = arith.constant 0 : index
    %38 = vector.load %arg13[%c2_36, %c0_37] : memref<24x256xf32, #tpu.memory_space<vmem>>, vector<16x256xf32>
    %c4_38 = arith.constant 4 : index
    %c0_39 = arith.constant 0 : index
    %39 = vector.load %arg13[%c4_38, %c0_39] : memref<24x256xf32, #tpu.memory_space<vmem>>, vector<16x256xf32>
    %c6 = arith.constant 6 : index
    %c0_40 = arith.constant 0 : index
    %40 = vector.load %arg13[%c6, %c0_40] : memref<24x256xf32, #tpu.memory_space<vmem>>, vector<16x256xf32>
    %c8 = arith.constant 8 : index
    %c0_41 = arith.constant 0 : index
    %41 = vector.load %arg13[%c8, %c0_41] : memref<24x256xf32, #tpu.memory_space<vmem>>, vector<16x256xf32>
    %42 = tpu.concatenate %37, %38, %39, %40, %41 in 1 : vector<16x256xf32>, vector<16x256xf32>, vector<16x256xf32>, vector<16x256xf32>, vector<16x256xf32> -> vector<16x1280xf32>
    %c0_42 = arith.constant 0 : index
    %c0_43 = arith.constant 0 : index
    %43 = vector.load %arg5[%c0_42, %c0_43] : memref<1280x128xf32, #tpu.memory_space<vmem>>, vector<1280x128xf32>
    %cst_44 = arith.constant dense<0.000000e+00> : vector<16x128xf32>
    %44 = tpu.matmul %42, %43, %cst_44 {dimension_numbers = #tpu.dot_dimension_numbers<[1], [0], [0], [1], [0, 0, 1, 1], [], []>} : vector<16x1280xf32>, vector<1280x128xf32>, vector<16x128xf32> -> vector<16x128xf32>
    %c0_45 = arith.constant 0 : index
    %c0_46 = arith.constant 0 : index
    %45 = vector.load %arg6[%c0_45, %c0_46] : memref<1x128xf32, #tpu.memory_space<vmem>>, vector<1x128xf32>
    %46 = vector.broadcast %45 : vector<1x128xf32> to vector<16x128xf32>
    %47 = arith.addf %44, %46 : vector<16x128xf32>
    %cst_47 = arith.constant 0.000000e+00 : f32
    %48 = vector.broadcast %cst_47 : f32 to vector<16x128xf32>
    %49 = arith.maximumf %47, %48 : vector<16x128xf32>
    %c0_48 = arith.constant 0 : index
    %c0_49 = arith.constant 0 : index
    %50 = vector.load %arg14[%c0_48, %c0_49] : memref<16x128xf32, #tpu.memory_space<vmem>>, vector<16x128xf32>
    tpu.vector_store %arg14[%c0_48, %c0_49], %49 {strides = array<i32>} : memref<16x128xf32, #tpu.memory_space<vmem>>, vector<16x128xf32>,
    %c0_50 = arith.constant 0 : index
    %c0_51 = arith.constant 0 : index
    %51 = vector.load %arg14[%c0_50, %c0_51] : memref<16x128xf32, #tpu.memory_space<vmem>>, vector<2x128xf32>
    %52 = arith.truncf %51 : vector<2x128xf32> to vector<2x128xbf16>
    %c0_52 = arith.constant 0 : index
    %c0_53 = arith.constant 0 : index
    %c0_54 = arith.constant 0 : index
    %53 = vector.load %arg7[%c0_52, %c0_53, %c0_54] : memref<8x128x2048xbf16, #tpu.memory_space<vmem>>, vector<1x128x2048xbf16>
    %54 = vector.shape_cast %53 : vector<1x128x2048xbf16> to vector<128x2048xbf16>
    %cst_55 = arith.constant dense<0.000000e+00> : vector<2x2048xf32>
    %55 = tpu.matmul %52, %54, %cst_55 {dimension_numbers = #tpu.dot_dimension_numbers<[1], [0], [0], [1], [0, 0, 1, 1], [], []>} : vector<2x128xbf16>, vector<128x2048xbf16>, vector<2x2048xf32> -> vector<2x2048xf32>
    %c2_56 = arith.constant 2 : index
    %c0_57 = arith.constant 0 : index
    %56 = vector.load %arg14[%c2_56, %c0_57] : memref<16x128xf32, #tpu.memory_space<vmem>>, vector<2x128xf32>
    %57 = arith.truncf %56 : vector<2x128xf32> to vector<2x128xbf16>
    %c1_58 = arith.constant 1 : index
    %c0_59 = arith.constant 0 : index
    %c0_60 = arith.constant 0 : index
    %58 = vector.load %arg7[%c1_58, %c0_59, %c0_60] : memref<8x128x2048xbf16, #tpu.memory_space<vmem>>, vector<1x128x2048xbf16>
    %59 = vector.shape_cast %58 : vector<1x128x2048xbf16> to vector<128x2048xbf16>
    %cst_61 = arith.constant dense<0.000000e+00> : vector<2x2048xf32>
    %60 = tpu.matmul %57, %59, %cst_61 {dimension_numbers = #tpu.dot_dimension_numbers<[1], [0], [0], [1], [0, 0, 1, 1], [], []>} : vector<2x128xbf16>, vector<128x2048xbf16>, vector<2x2048xf32> -> vector<2x2048xf32>
    %61 = arith.addf %55, %60 : vector<2x2048xf32>
    %c4_62 = arith.constant 4 : index
    %c0_63 = arith.constant 0 : index
    %62 = vector.load %arg14[%c4_62, %c0_63] : memref<16x128xf32, #tpu.memory_space<vmem>>, vector<2x128xf32>
    %63 = arith.truncf %62 : vector<2x128xf32> to vector<2x128xbf16>
    %c2_64 = arith.constant 2 : index
    %c0_65 = arith.constant 0 : index
    %c0_66 = arith.constant 0 : index
    %64 = vector.load %arg7[%c2_64, %c0_65, %c0_66] : memref<8x128x2048xbf16, #tpu.memory_space<vmem>>, vector<1x128x2048xbf16>
    %65 = vector.shape_cast %64 : vector<1x128x2048xbf16> to vector<128x2048xbf16>
    %cst_67 = arith.constant dense<0.000000e+00> : vector<2x2048xf32>
    %66 = tpu.matmul %63, %65, %cst_67 {dimension_numbers = #tpu.dot_dimension_numbers<[1], [0], [0], [1], [0, 0, 1, 1], [], []>} : vector<2x128xbf16>, vector<128x2048xbf16>, vector<2x2048xf32> -> vector<2x2048xf32>
    %67 = arith.addf %61, %66 : vector<2x2048xf32>
    %c6_68 = arith.constant 6 : index
    %c0_69 = arith.constant 0 : index
    %68 = vector.load %arg14[%c6_68, %c0_69] : memref<16x128xf32, #tpu.memory_space<vmem>>, vector<2x128xf32>
    %69 = arith.truncf %68 : vector<2x128xf32> to vector<2x128xbf16>
    %c3 = arith.constant 3 : index
    %c0_70 = arith.constant 0 : index
    %c0_71 = arith.constant 0 : index
    %70 = vector.load %arg7[%c3, %c0_70, %c0_71] : memref<8x128x2048xbf16, #tpu.memory_space<vmem>>, vector<1x128x2048xbf16>
    %71 = vector.shape_cast %70 : vector<1x128x2048xbf16> to vector<128x2048xbf16>
    %cst_72 = arith.constant dense<0.000000e+00> : vector<2x2048xf32>
    %72 = tpu.matmul %69, %71, %cst_72 {dimension_numbers = #tpu.dot_dimension_numbers<[1], [0], [0], [1], [0, 0, 1, 1], [], []>} : vector<2x128xbf16>, vector<128x2048xbf16>, vector<2x2048xf32> -> vector<2x2048xf32>
    %73 = arith.addf %67, %72 : vector<2x2048xf32>
    %c8_73 = arith.constant 8 : index
    %c0_74 = arith.constant 0 : index
    %74 = vector.load %arg14[%c8_73, %c0_74] : memref<16x128xf32, #tpu.memory_space<vmem>>, vector<2x128xf32>
    %75 = arith.truncf %74 : vector<2x128xf32> to vector<2x128xbf16>
    %c4_75 = arith.constant 4 : index
    %c0_76 = arith.constant 0 : index
    %c0_77 = arith.constant 0 : index
    %76 = vector.load %arg7[%c4_75, %c0_76, %c0_77] : memref<8x128x2048xbf16, #tpu.memory_space<vmem>>, vector<1x128x2048xbf16>
    %77 = vector.shape_cast %76 : vector<1x128x2048xbf16> to vector<128x2048xbf16>
    %cst_78 = arith.constant dense<0.000000e+00> : vector<2x2048xf32>
    %78 = tpu.matmul %75, %77, %cst_78 {dimension_numbers = #tpu.dot_dimension_numbers<[1], [0], [0], [1], [0, 0, 1, 1], [], []>} : vector<2x128xbf16>, vector<128x2048xbf16>, vector<2x2048xf32> -> vector<2x2048xf32>
    %79 = arith.addf %73, %78 : vector<2x2048xf32>
    %c10 = arith.constant 10 : index
    %c0_79 = arith.constant 0 : index
    %80 = vector.load %arg14[%c10, %c0_79] : memref<16x128xf32, #tpu.memory_space<vmem>>, vector<2x128xf32>
    %81 = arith.truncf %80 : vector<2x128xf32> to vector<2x128xbf16>
    %c5 = arith.constant 5 : index
    %c0_80 = arith.constant 0 : index
    %c0_81 = arith.constant 0 : index
    %82 = vector.load %arg7[%c5, %c0_80, %c0_81] : memref<8x128x2048xbf16, #tpu.memory_space<vmem>>, vector<1x128x2048xbf16>
    %83 = vector.shape_cast %82 : vector<1x128x2048xbf16> to vector<128x2048xbf16>
    %cst_82 = arith.constant dense<0.000000e+00> : vector<2x2048xf32>
    %84 = tpu.matmul %81, %83, %cst_82 {dimension_numbers = #tpu.dot_dimension_numbers<[1], [0], [0], [1], [0, 0, 1, 1], [], []>} : vector<2x128xbf16>, vector<128x2048xbf16>, vector<2x2048xf32> -> vector<2x2048xf32>
    %85 = arith.addf %79, %84 : vector<2x2048xf32>
    %c12 = arith.constant 12 : index
    %c0_83 = arith.constant 0 : index
    %86 = vector.load %arg14[%c12, %c0_83] : memref<16x128xf32, #tpu.memory_space<vmem>>, vector<2x128xf32>
    %87 = arith.truncf %86 : vector<2x128xf32> to vector<2x128xbf16>
    %c6_84 = arith.constant 6 : index
    %c0_85 = arith.constant 0 : index
    %c0_86 = arith.constant 0 : index
    %88 = vector.load %arg7[%c6_84, %c0_85, %c0_86] : memref<8x128x2048xbf16, #tpu.memory_space<vmem>>, vector<1x128x2048xbf16>
    %89 = vector.shape_cast %88 : vector<1x128x2048xbf16> to vector<128x2048xbf16>
    %cst_87 = arith.constant dense<0.000000e+00> : vector<2x2048xf32>
    %90 = tpu.matmul %87, %89, %cst_87 {dimension_numbers = #tpu.dot_dimension_numbers<[1], [0], [0], [1], [0, 0, 1, 1], [], []>} : vector<2x128xbf16>, vector<128x2048xbf16>, vector<2x2048xf32> -> vector<2x2048xf32>
    %91 = arith.addf %85, %90 : vector<2x2048xf32>
    %c14 = arith.constant 14 : index
    %c0_88 = arith.constant 0 : index
    %92 = vector.load %arg14[%c14, %c0_88] : memref<16x128xf32, #tpu.memory_space<vmem>>, vector<2x128xf32>
    %93 = arith.truncf %92 : vector<2x128xf32> to vector<2x128xbf16>
    %c7 = arith.constant 7 : index
    %c0_89 = arith.constant 0 : index
    %c0_90 = arith.constant 0 : index
    %94 = vector.load %arg7[%c7, %c0_89, %c0_90] : memref<8x128x2048xbf16, #tpu.memory_space<vmem>>, vector<1x128x2048xbf16>
    %95 = vector.shape_cast %94 : vector<1x128x2048xbf16> to vector<128x2048xbf16>
    %cst_91 = arith.constant dense<0.000000e+00> : vector<2x2048xf32>
    %96 = tpu.matmul %93, %95, %cst_91 {dimension_numbers = #tpu.dot_dimension_numbers<[1], [0], [0], [1], [0, 0, 1, 1], [], []>} : vector<2x128xbf16>, vector<128x2048xbf16>, vector<2x2048xf32> -> vector<2x2048xf32>
    %97 = arith.addf %91, %96 : vector<2x2048xf32>
    %c0_92 = arith.constant 0 : index
    %c0_93 = arith.constant 0 : index
    %98 = vector.load %arg8[%c0_92, %c0_93] : memref<1x2048xf32, #tpu.memory_space<vmem>>, vector<1x2048xf32>
    %99 = vector.broadcast %98 : vector<1x2048xf32> to vector<2x2048xf32>
    %100 = arith.addf %97, %99 : vector<2x2048xf32>
    %cst_94 = arith.constant 0.000000e+00 : f32
    %101 = vector.broadcast %cst_94 : f32 to vector<2x2048xf32>
    %102 = arith.maximumf %100, %101 : vector<2x2048xf32>
    %103 = arith.truncf %102 : vector<2x2048xf32> to vector<2x2048xbf16>
    %c0_95 = arith.constant 0 : index
    %c0_96 = arith.constant 0 : index
    %104 = vector.load %arg9[%c0_95, %c0_96] : memref<2048x128xbf16, #tpu.memory_space<vmem>>, vector<2048x128xbf16>
    %cst_97 = arith.constant dense<0.000000e+00> : vector<2x128xf32>
    %105 = tpu.matmul %103, %104, %cst_97 {dimension_numbers = #tpu.dot_dimension_numbers<[1], [0], [0], [1], [0, 0, 1, 1], [], []>} : vector<2x2048xbf16>, vector<2048x128xbf16>, vector<2x128xf32> -> vector<2x128xf32>
    %c0_98 = arith.constant 0 : index
    %c0_99 = arith.constant 0 : index
    %106 = vector.load %arg10[%c0_98, %c0_99] : memref<1x128xf32, #tpu.memory_space<vmem>>, vector<1x128xf32>
    %107 = vector.broadcast %106 : vector<1x128xf32> to vector<2x128xf32>
    %108 = arith.addf %105, %107 : vector<2x128xf32>
    %cst_100 = arith.constant dense<0xFF800000> : vector<2xf32>
    %109 = vector.multi_reduction <maximumf>, %108, %cst_100 [1] : vector<2x128xf32> to vector<2xf32>
    %110 = vector.shape_cast %109 : vector<2xf32> to vector<2x1xf32>
    %111 = vector.broadcast %110 : vector<2x1xf32> to vector<2x128xf32>
    %112 = arith.subf %108, %111 : vector<2x128xf32>
    %113 = math.exp %112 : vector<2x128xf32>
    %cst_101 = arith.constant dense<0.000000e+00> : vector<2xf32>
    %114 = vector.multi_reduction <add>, %113, %cst_101 [1] : vector<2x128xf32> to vector<2xf32>
    %115 = vector.shape_cast %114 : vector<2xf32> to vector<2x1xf32>
    %116 = math.log %115 : vector<2x1xf32>
    %117 = vector.broadcast %116 : vector<2x1xf32> to vector<2x128xf32>
    %118 = arith.subf %112, %117 : vector<2x128xf32>
    %c0_102 = arith.constant 0 : index
    %c0_103 = arith.constant 0 : index
    %119 = vector.load %arg11[%c0_102, %c0_103] : memref<2x128xf32, #tpu.memory_space<vmem>>, vector<2x128xf32>
    tpu.vector_store %arg11[%c0_102, %c0_103], %118 {strides = array<i32>} : memref<2x128xf32, #tpu.memory_space<vmem>>, vector<2x128xf32>,
    return
  }
}

</mosaic_0001>

<llo_original>
// kernel: convnet_forward.1
$region0: #{convnet_forward.1}
  #allocation0 [shape = 'u32[]', space=smem, size = 0x4, offset = 0x4, fixed_abs, tag = 'smem constant byte address 0x4 - core index']
  #allocation1 [shape = 'u32[144,128]{1,0:T(1,128)}', space=vmem, size = 0x12000, scoped, tag = 'internal scratch']
  #allocation2 [shape = 'f32[28,128]{1,0:T(8,128)}', space=vmem, size = 0x4000, scoped, tag = 'scratch operand']
  #allocation3 [shape = 'f32[24,256]{1,0:T(8,128)}', space=vmem, size = 0x6000, scoped, tag = 'scratch operand']
  #allocation4 [shape = 'f32[16,128]{1,0:T(8,128)}', space=vmem, size = 0x2000, scoped, tag = 'scratch operand']
  %s0 = inlined_call_operand.vmem [shape: f32[32,16], index: 0, kind: input, shape index: {}]
  %s1 = inlined_call_operand.hbm [shape: f32[3,16,128], index: 1, kind: input, shape index: {}]
  %s2 = inlined_call_operand.hbm [shape: f32[1,128], index: 2, kind: input, shape index: {}]
  %s3 = inlined_call_operand.hbm [shape: f32[384,256], index: 3, kind: input, shape index: {}]
  %s4 = inlined_call_operand.hbm [shape: f32[1,256], index: 4, kind: input, shape index: {}]
  %s5 = inlined_call_operand.hbm [shape: f32[1280,128], index: 5, kind: input, shape index: {}]
  %s6 = inlined_call_operand.hbm [shape: f32[1,128], index: 6, kind: input, shape index: {}]
  %s7 = inlined_call_operand.hbm [shape: bf16[8,128,2048], index: 7, kind: input, shape index: {}]
  %s8 = inlined_call_operand.hbm [shape: f32[1,2048], index: 8, kind: input, shape index: {}]
  %s9 = inlined_call_operand.hbm [shape: bf16[2048,128], index: 9, kind: input, shape index: {}]
  %s10 = inlined_call_operand.hbm [shape: f32[1,128], index: 10, kind: input, shape index: {}]
  %s11 = inlined_call_operand.hbm [shape: f32[2,128], index: 11, kind: output, shape index: {}]
  %s12 = sld [smem:[#allocation0]]
  $region94: #{convnet_forward.1} parent=0
    _
  %s14 = ssub.s32 1, %s12
  %s15 = scalar_select 0, %s14, %s12
  $region1: #{convnet_forward.1} parent=0
    #allocation5 [shape = 'u8[24576]{0}', space=vmem, size = 0x6000, scoped, tag = 'input window, operand 1, single buffered']
    #allocation6 [shape = 's32[1]{0}', space=sflag, size = 0x4, scoped, tag = 'scoped memory for convnet_forward.1']
    #allocation7 [shape = 's32[1]{0}', space=sflag, size = 0x4, scoped, tag = 'scoped memory for convnet_forward.1']
    #allocation8 [shape = 'u8[512]{0}', space=vmem, size = 0x400, scoped, tag = 'input window, operand 2, single buffered']
    #allocation9 [shape = 's32[1]{0}', space=sflag, size = 0x4, scoped, tag = 'scoped memory for convnet_forward.1']
    #allocation10 [shape = 'u8[393216]{0}', space=vmem, size = 0x60000, scoped, tag = 'input window, operand 3, single buffered']
    #allocation11 [shape = 'u8[1024]{0}', space=vmem, size = 0x400, scoped, tag = 'input window, operand 4, single buffered']
    #allocation12 [shape = 's32[1]{0}', space=sflag, size = 0x4, scoped, tag = 'scoped memory for convnet_forward.1']
    #allocation13 [shape = 'u8[655360]{0}', space=vmem, size = 0xa0000, scoped, tag = 'input window, operand 5, single buffered']
    #allocation14 [shape = 'u8[512]{0}', space=vmem, size = 0x400, scoped, tag = 'input window, operand 6, single buffered']
    #allocation15 [shape = 's32[1]{0}', space=sflag, size = 0x4, scoped, tag = 'scoped memory for convnet_forward.1']
    #allocation16 [shape = 'u8[4194304]{0}', space=vmem, size = 0x400000, scoped, tag = 'input window, operand 7, single buffered']
    #allocation17 [shape = 'u8[8192]{0}', space=vmem, size = 0x2000, scoped, tag = 'input window, operand 8, single buffered']
    #allocation18 [shape = 's32[1]{0}', space=sflag, size = 0x4, scoped, tag = 'scoped memory for convnet_forward.1']
    #allocation19 [shape = 'u8[524288]{0}', space=vmem, size = 0x80000, scoped, tag = 'input window, operand 9, single buffered']
    #allocation20 [shape = 'u8[512]{0}', space=vmem, size = 0x400, scoped, tag = 'input window, operand 10, single buffered']
    #allocation21 [shape = 's32[1]{0}', space=sflag, size = 0x4, scoped, tag = 'scoped memory for convnet_forward.1']
    #allocation22 [shape = 'u8[1024]{0}', space=vmem, size = 0x400, scoped, tag = 'output window, operand 0, single buffered']
    %16 = vsyncpa [#allocation6], 0
    %17 = vsyncpa [#allocation9], 0
    %18 = vsyncpa [#allocation12], 0
    %19 = vsyncpa [#allocation15], 0
    %20 = vsyncpa [#allocation18], 0
    %21 = vsyncpa [#allocation21], 0
    %22 = vsyncpa [#allocation7], 0
    // Predicated region
    $region2: #{convnet_forward.1} parent=1 // pred_check
      _
    $region3: #{convnet_forward.1} parent=1 // pred_check_branch
      %24 = sbr.rel (0) target = $region5
    $region4: #{convnet_forward.1} parent=1 // pred_region
      _
    $region5: #{convnet_forward.1} parent=1 // pred_fallthru
      _
    // Predicated region
    $region6: #{convnet_forward.1} parent=1 // pred_check
      _
    $region7: #{convnet_forward.1} parent=1 // pred_check_branch
      %26 = sbr.rel (0) target = $region9
    $region8: #{convnet_forward.1} parent=1 // pred_region
      %s28 = ssub.s32 768, 768
      %29 = vsyncadd [#allocation6], %s28
      %s30 = sshll.u32 [#allocation5], 4
      %s31 = int_to_ptr.vmem [resolvable:$true] %s30
      %36 = dma.hbm_to_vmem [thread:$0]  %s1, 768, %s31, [#allocation6], 128, 128, 8
    $region9: #{convnet_forward.1} parent=1 // pred_fallthru
      _
    // Predicated region
    $region10: #{convnet_forward.1} parent=1 // pred_check
      _
    $region11: #{convnet_forward.1} parent=1 // pred_check_branch
      %38 = sbr.rel (0) target = $region13
    $region12: #{convnet_forward.1} parent=1 // pred_region
      %s40 = ssub.s32 16, 16
      %41 = vsyncadd [#allocation9], %s40
      %s43 = sshll.u32 [#allocation8], 4
      %s44 = int_to_ptr.vmem [resolvable:$true] %s43
      %46 = dma.hbm_to_vmem [thread:$0]  %s2, 16, %s44, [#allocation9]
    $region13: #{convnet_forward.1} parent=1 // pred_fallthru
      _
    // Predicated region
    $region14: #{convnet_forward.1} parent=1 // pred_check
      _
    $region15: #{convnet_forward.1} parent=1 // pred_check_branch
      %48 = sbr.rel (0) target = $region17
    $region16: #{convnet_forward.1} parent=1 // pred_region
      %s50 = ssub.s32 12288, 12288
      %51 = vsyncadd [#allocation9], %s50
      %s52 = sshll.u32 [#allocation10], 4
      %s53 = int_to_ptr.vmem [resolvable:$true] %s52
      %58 = dma.hbm_to_vmem [thread:$0]  %s3, 12288, %s53, [#allocation9], 256, 256, 16
    $region17: #{convnet_forward.1} parent=1 // pred_fallthru
      _
    // Predicated region
    $region18: #{convnet_forward.1} parent=1 // pred_check
      _
    $region19: #{convnet_forward.1} parent=1 // pred_check_branch
      %60 = sbr.rel (0) target = $region21
    $region20: #{convnet_forward.1} parent=1 // pred_region
      %s62 = ssub.s32 32, 32
      %63 = vsyncadd [#allocation12], %s62
      %s65 = sshll.u32 [#allocation11], 4
      %s66 = int_to_ptr.vmem [resolvable:$true] %s65
      %68 = dma.hbm_to_vmem [thread:$0]  %s4, 32, %s66, [#allocation12]
    $region21: #{convnet_forward.1} parent=1 // pred_fallthru
      _
    // Predicated region
    $region22: #{convnet_forward.1} parent=1 // pred_check
      _
    $region23: #{convnet_forward.1} parent=1 // pred_check_branch
      %70 = sbr.rel (0) target = $region25
    $region24: #{convnet_forward.1} parent=1 // pred_region
      %s72 = ssub.s32 20480, 20480
      %73 = vsyncadd [#allocation12], %s72
      %s74 = sshll.u32 [#allocation13], 4
      %s75 = int_to_ptr.vmem [resolvable:$true] %s74
      %80 = dma.hbm_to_vmem [thread:$0]  %s5, 20480, %s75, [#allocation12], 128, 128, 8
    $region25: #{convnet_forward.1} parent=1 // pred_fallthru
      _
    // Predicated region
    $region26: #{convnet_forward.1} parent=1 // pred_check
      _
    $region27: #{convnet_forward.1} parent=1 // pred_check_branch
      %82 = sbr.rel (0) target = $region29
    $region28: #{convnet_forward.1} parent=1 // pred_region
      %s84 = ssub.s32 16, 16
      %85 = vsyncadd [#allocation15], %s84
      %s87 = sshll.u32 [#allocation14], 4
      %s88 = int_to_ptr.vmem [resolvable:$true] %s87
      %90 = dma.hbm_to_vmem [thread:$0]  %s6, 16, %s88, [#allocation15]
    $region29: #{convnet_forward.1} parent=1 // pred_fallthru
      _
    // Predicated region
    $region30: #{convnet_forward.1} parent=1 // pred_check
      _
    $region31: #{convnet_forward.1} parent=1 // pred_check_branch
      %92 = sbr.rel (0) target = $region33
    $region32: #{convnet_forward.1} parent=1 // pred_region
      %s94 = ssub.s32 131072, 131072
      %95 = vsyncadd [#allocation15], %s94
      %s96 = sshll.u32 [#allocation16], 4
      %s97 = int_to_ptr.vmem [resolvable:$true] %s96
      %102 = dma.hbm_to_vmem [thread:$0]  %s7, 131072, %s97, [#allocation15], 1024, 1024, 64
    $region33: #{convnet_forward.1} parent=1 // pred_fallthru
      _
    // Predicated region
    $region34: #{convnet_forward.1} parent=1 // pred_check
      _
    $region35: #{convnet_forward.1} parent=1 // pred_check_branch
      %104 = sbr.rel (0) target = $region37
    $region36: #{convnet_forward.1} parent=1 // pred_region
      %s106 = ssub.s32 256, 256
      %107 = vsyncadd [#allocation18], %s106
      %s109 = sshll.u32 [#allocation17], 4
      %s110 = int_to_ptr.vmem [resolvable:$true] %s109
      %112 = dma.hbm_to_vmem [thread:$0]  %s8, 256, %s110, [#allocation18]
    $region37: #{convnet_forward.1} parent=1 // pred_fallthru
      _
    // Predicated region
    $region38: #{convnet_forward.1} parent=1 // pred_check
      _
    $region39: #{convnet_forward.1} parent=1 // pred_check_branch
      %114 = sbr.rel (0) target = $region41
    $region40: #{convnet_forward.1} parent=1 // pred_region
      %s116 = ssub.s32 16384, 16384
      %117 = vsyncadd [#allocation18], %s116
      %s118 = sshll.u32 [#allocation19], 4
      %s119 = int_to_ptr.vmem [resolvable:$true] %s118
      %124 = dma.hbm_to_vmem [thread:$0]  %s9, 16384, %s119, [#allocation18], 64, 64, 4
    $region41: #{convnet_forward.1} parent=1 // pred_fallthru
      _
    // Predicated region
    $region42: #{convnet_forward.1} parent=1 // pred_check
      _
    $region43: #{convnet_forward.1} parent=1 // pred_check_branch
      %126 = sbr.rel (0) target = $region45
    $region44: #{convnet_forward.1} parent=1 // pred_region
      %s128 = ssub.s32 16, 16
      %129 = vsyncadd [#allocation21], %s128
      %s131 = sshll.u32 [#allocation20], 4
      %s132 = int_to_ptr.vmem [resolvable:$true] %s131
      %134 = dma.hbm_to_vmem [thread:$0]  %s10, 16, %s132, [#allocation21]
    $region45: #{convnet_forward.1} parent=1 // pred_fallthru
      _
    // Predicated region
    $region46: #{convnet_forward.1} parent=1 // pred_check
      _
    $region47: #{convnet_forward.1} parent=1 // pred_check_branch
      %136 = sbr.rel (0) target = $region49
    $region48: #{convnet_forward.1} parent=1 // pred_region
      %137 = dma.done [#allocation6], 768
    $region49: #{convnet_forward.1} parent=1 // pred_fallthru
      _
    // Predicated region
    $region50: #{convnet_forward.1} parent=1 // pred_check
      _
    $region51: #{convnet_forward.1} parent=1 // pred_check_branch
      %139 = sbr.rel (0) target = $region53
    $region52: #{convnet_forward.1} parent=1 // pred_region
      %140 = dma.done [#allocation9], 16
    $region53: #{convnet_forward.1} parent=1 // pred_fallthru
      _
    // Predicated region
    $region54: #{convnet_forward.1} parent=1 // pred_check
      _
    $region55: #{convnet_forward.1} parent=1 // pred_check_branch
      %142 = sbr.rel (0) target = $region57
    $region56: #{convnet_forward.1} parent=1 // pred_region
      %143 = dma.done [#allocation9], 12288
    $region57: #{convnet_forward.1} parent=1 // pred_fallthru
      _
    // Predicated region
    $region58: #{convnet_forward.1} parent=1 // pred_check
      _
    $region59: #{convnet_forward.1} parent=1 // pred_check_branch
      %145 = sbr.rel (0) target = $region61
    $region60: #{convnet_forward.1} parent=1 // pred_region
      %146 = dma.done [#allocation12], 32
    $region61: #{convnet_forward.1} parent=1 // pred_fallthru
      _
    // Predicated region
    $region62: #{convnet_forward.1} parent=1 // pred_check
      _
    $region63: #{convnet_forward.1} parent=1 // pred_check_branch
      %148 = sbr.rel (0) target = $region65
    $region64: #{convnet_forward.1} parent=1 // pred_region
      %149 = dma.done [#allocation12], 20480
    $region65: #{convnet_forward.1} parent=1 // pred_fallthru
      _
    // Predicated region
    $region66: #{convnet_forward.1} parent=1 // pred_check
      _
    $region67: #{convnet_forward.1} parent=1 // pred_check_branch
      %151 = sbr.rel (0) target = $region69
    $region68: #{convnet_forward.1} parent=1 // pred_region
      %152 = dma.done [#allocation15], 16
    $region69: #{convnet_forward.1} parent=1 // pred_fallthru
      _
    // Predicated region
    $region70: #{convnet_forward.1} parent=1 // pred_check
      _
    $region71: #{convnet_forward.1} parent=1 // pred_check_branch
      %154 = sbr.rel (0) target = $region73
    $region72: #{convnet_forward.1} parent=1 // pred_region
      %155 = dma.done [#allocation15], 131072
    $region73: #{convnet_forward.1} parent=1 // pred_fallthru
      _
    // Predicated region
    $region74: #{convnet_forward.1} parent=1 // pred_check
      _
    $region75: #{convnet_forward.1} parent=1 // pred_check_branch
      %157 = sbr.rel (0) target = $region77
    $region76: #{convnet_forward.1} parent=1 // pred_region
      %158 = dma.done [#allocation18], 256
    $region77: #{convnet_forward.1} parent=1 // pred_fallthru
      _
    // Predicated region
    $region78: #{convnet_forward.1} parent=1 // pred_check
      _
    $region79: #{convnet_forward.1} parent=1 // pred_check_branch
      %160 = sbr.rel (0) target = $region81
    $region80: #{convnet_forward.1} parent=1 // pred_region
      %161 = dma.done [#allocation18], 16384
    $region81: #{convnet_forward.1} parent=1 // pred_fallthru
      _
    // Predicated region
    $region82: #{convnet_forward.1} parent=1 // pred_check
      _
    $region83: #{convnet_forward.1} parent=1 // pred_check_branch
      %163 = sbr.rel (0) target = $region85
    $region84: #{convnet_forward.1} parent=1 // pred_region
      %164 = dma.done [#allocation21], 16
    $region85: #{convnet_forward.1} parent=1 // pred_fallthru
      _
    %v166 = vld [vmem:[%s0] sm:$0xff]
    %v167 = vld [vmem:[%s0 + $0x8] sm:$0xff]
    %v168 = vld [vmem:[%s0 + $0x10] sm:$0xff]
    %v169 = vld [vmem:[%s0 + $0x18] sm:$0xf]
    %v170 = vld [vmem:[#allocation5] sm:$0xff]
    %v171 = vld [vmem:[#allocation5 + $0x8] sm:$0xff]
    %v172 = vld [vmem:[%s0 + $0x2] sm:$0xff]
    %v173 = vld [vmem:[%s0 + $0xa] sm:$0xff]
    %v174 = vld [vmem:[%s0 + $0x12] sm:$0xff]
    %v175 = vld [vmem:[%s0 + $0x1a] sm:$0xf]
    %s176 = scalar_lea.vmem [#allocation5], 16
    %v177 = vld [vmem:[%s176] sm:$0xff]
    %v178 = vld [vmem:[%s176 + $0x8] sm:$0xff]
    %vm179 = vcmask 130048
    %v181 = vsel %vm179, %v172, 0
    %v184 = vsel %vm179, %v173, 0
    %v187 = vsel %vm179, %v174, 0
    %v190 = vsel %vm179, %v175, 0
    %192 = vmatprep.subr.mxu0 0.0
    %193 = vmatpush1.msra.mxu0 %v177
    %194 = vmatprep.subr.mxu0 0.0
    %195 = vmatpush1.msra.mxu0 %v178
    %196 = vmatprep.subr.mxu0 0.0
    %197 = vmatpush1.msra.mxu0 0.0
    %198 = vmatprep.subr.mxu0 0.0
    %199 = vmatpush1.msra.mxu0 0.0
    %200 = vmatprep.subr.mxu0 0.0
    %201 = vmatpush1.msra.mxu0 0.0
    %202 = vmatprep.subr.mxu0 0.0
    %203 = vmatpush1.msra.mxu0 0.0
    %204 = vmatprep.subr.mxu0 0.0
    %205 = vmatpush1.msra.mxu0 0.0
    %206 = vmatprep.subr.mxu0 0.0
    %207 = vmatpush1.msra.mxu0 0.0
    %208 = vmatprep.subr.mxu0 0.0
    %209 = vmatpush1.msra.mxu0 0.0
    %210 = vmatprep.subr.mxu0 0.0
    %211 = vmatpush1.msra.mxu0 0.0
    %212 = vmatprep.subr.mxu0 0.0
    %213 = vmatpush1.msra.mxu0 0.0
    %214 = vmatprep.subr.mxu0 0.0
    %215 = vmatpush1.msra.mxu0 0.0
    %216 = vmatprep.subr.mxu0 0.0
    %217 = vmatpush1.msra.mxu0 0.0
    %218 = vmatprep.subr.mxu0 0.0
    %219 = vmatpush1.msra.mxu0 0.0
    %220 = vmatprep.subr.mxu0 0.0
    %221 = vmatpush1.msra.mxu0 0.0
    %222 = vmatprep.subr.mxu0 0.0
    %223 = vmatpush1.msra.mxu0 0.0
    %224 = vmatprep.subr.mxu0 0.0
    %225 = vmatpush1.msra.mxu0 0.0
    %226 = vmatprep.subr.mxu0 0.0
    %227 = vmatpush1.msra.mxu0 0.0
    %228 = vmatprep.subr.mxu0 0.0
    %229 = vmatpush1.msra.mxu0 0.0
    %230 = vmatprep.subr.mxu0 0.0
    %231 = vmatpush1.msra.mxu0 0.0
    %232 = vmatprep.subr.mxu0 0.0
    %233 = vmatpush1.msra.mxu0 0.0
    %234 = vmatprep.subr.mxu0 0.0
    %235 = vmatpush1.msra.mxu0 0.0
    %236 = vmatprep.subr.mxu0 0.0
    %237 = vmatpush1.msra.mxu0 0.0
    %238 = vmatprep.subr.mxu0 0.0
    %239 = vmatpush1.msra.mxu0 0.0
    %240 = vmatprep.subr.mxu0 0.0
    %241 = vmatpush1.msra.mxu0 0.0
    %242 = vmatprep.subr.mxu0 0.0
    %243 = vmatpush1.msra.mxu0 0.0
    %244 = vmatprep.subr.mxu0 0.0
    %245 = vmatpush1.msra.mxu0 0.0
    %246 = vmatprep.subr.mxu0 0.0
    %247 = vmatpush1.msra.mxu0 0.0
    %248 = vmatprep.subr.mxu0 0.0
    %249 = vmatpush1.msra.mxu0 0.0
    %250 = vmatprep.subr.mxu0 0.0
    %251 = vmatpush1.msra.mxu0 0.0
    %252 = vmatprep.subr.mxu0 0.0
    %253 = vmatpush1.msra.mxu0 0.0
    %254 = vmatprep.subr.mxu0 0.0
    %255 = vmatpush1.msra.mxu0 0.0
    %256 = vmatprep.mubr.f32.mxu0 0.0
    %257 = vmatmul.mubr.f32.gmra.mrb[0].mxu0 %v181
    %v258 = vpop.f32.mrb[0].mxu0
    %v259 = vadd.f32 0.0, %v258
    %v260 = vpop.f32.mrb[0].mxu0
    %261 = vmatprep.mubr.f32.mxu0 0.0
    %262 = vmatmul.mubr.f32.gmra.mrb[0].mxu0 %v184
    %v263 = vpop.f32.mrb[0].mxu0
    %v264 = vadd.f32 0.0, %v263
    %v265 = vpop.f32.mrb[0].mxu0
    %266 = vmatprep.mubr.f32.mxu0 0.0
    %267 = vmatmul.mubr.f32.gmra.mrb[0].mxu0 %v187
    %v268 = vpop.f32.mrb[0].mxu0
    %v269 = vadd.f32 0.0, %v268
    %v270 = vpop.f32.mrb[0].mxu0
    %271 = vmatprep.mubr.f32.mxu0 0.0
    %272 = vmatmul.mubr.f32.gmra.mrb[0].mxu0 %v190
    %v273 = vpop.f32.mrb[0].mxu0
    %v274 = vadd.f32 0.0, %v273
    %v275 = vpop.f32.mrb[0].mxu0
    %276 = vdwg.mxu0
    %v278 = vsel %vm179, %v166, 0
    %v281 = vsel %vm179, %v167, 0
    %v284 = vsel %vm179, %v168, 0
    %v287 = vsel %vm179, %v169, 0
    %289 = vmatprep.subr.mxu0 0.0
    %290 = vmatpush1.msra.mxu0 %v170
    %291 = vmatprep.subr.mxu0 0.0
    %292 = vmatpush1.msra.mxu0 %v171
    %293 = vmatprep.subr.mxu0 0.0
    %294 = vmatpush1.msra.mxu0 0.0
    %295 = vmatprep.subr.mxu0 0.0
    %296 = vmatpush1.msra.mxu0 0.0
    %297 = vmatprep.subr.mxu0 0.0
    %298 = vmatpush1.msra.mxu0 0.0
    %299 = vmatprep.subr.mxu0 0.0
    %300 = vmatpush1.msra.mxu0 0.0
    %301 = vmatprep.subr.mxu0 0.0
    %302 = vmatpush1.msra.mxu0 0.0
    %303 = vmatprep.subr.mxu0 0.0
    %304 = vmatpush1.msra.mxu0 0.0
    %305 = vmatprep.subr.mxu0 0.0
    %306 = vmatpush1.msra.mxu0 0.0
    %307 = vmatprep.subr.mxu0 0.0
    %308 = vmatpush1.msra.mxu0 0.0
    %309 = vmatprep.subr.mxu0 0.0
    %310 = vmatpush1.msra.mxu0 0.0
    %311 = vmatprep.subr.mxu0 0.0
    %312 = vmatpush1.msra.mxu0 0.0
    %313 = vmatprep.subr.mxu0 0.0
    %314 = vmatpush1.msra.mxu0 0.0
    %315 = vmatprep.subr.mxu0 0.0
    %316 = vmatpush1.msra.mxu0 0.0
    %317 = vmatprep.subr.mxu0 0.0
    %318 = vmatpush1.msra.mxu0 0.0
    %319 = vmatprep.subr.mxu0 0.0
    %320 = vmatpush1.msra.mxu0 0.0
    %321 = vmatprep.subr.mxu0 0.0
    %322 = vmatpush1.msra.mxu0 0.0
    %323 = vmatprep.subr.mxu0 0.0
    %324 = vmatpush1.msra.mxu0 0.0
    %325 = vmatprep.subr.mxu0 0.0
    %326 = vmatpush1.msra.mxu0 0.0
    %327 = vmatprep.subr.mxu0 0.0
    %328 = vmatpush1.msra.mxu0 0.0
    %329 = vmatprep.subr.mxu0 0.0
    %330 = vmatpush1.msra.mxu0 0.0
    %331 = vmatprep.subr.mxu0 0.0
    %332 = vmatpush1.msra.mxu0 0.0
    %333 = vmatprep.subr.mxu0 0.0
    %334 = vmatpush1.msra.mxu0 0.0
    %335 = vmatprep.subr.mxu0 0.0
    %336 = vmatpush1.msra.mxu0 0.0
    %337 = vmatprep.subr.mxu0 0.0
    %338 = vmatpush1.msra.mxu0 0.0
    %339 = vmatprep.subr.mxu0 0.0
    %340 = vmatpush1.msra.mxu0 0.0
    %341 = vmatprep.subr.mxu0 0.0
    %342 = vmatpush1.msra.mxu0 0.0
    %343 = vmatprep.subr.mxu0 0.0
    %344 = vmatpush1.msra.mxu0 0.0
    %345 = vmatprep.subr.mxu0 0.0
    %346 = vmatpush1.msra.mxu0 0.0
    %347 = vmatprep.subr.mxu0 0.0
    %348 = vmatpush1.msra.mxu0 0.0
    %349 = vmatprep.subr.mxu0 0.0
    %350 = vmatpush1.msra.mxu0 0.0
    %351 = vmatprep.subr.mxu0 0.0
    %352 = vmatpush1.msra.mxu0 0.0
    %353 = vmatprep.mubr.f32.mxu0 0.0
    %354 = vmatmul.mubr.f32.gmra.mrb[0].mxu0 %v278
    %v355 = vpop.f32.mrb[0].mxu0
    %v356 = vadd.f32 %v259, %v355
    %v357 = vpop.f32.mrb[0].mxu0
    %358 = vmatprep.mubr.f32.mxu0 0.0
    %359 = vmatmul.mubr.f32.gmra.mrb[0].mxu0 %v281
    %v360 = vpop.f32.mrb[0].mxu0
    %v361 = vadd.f32 %v264, %v360
    %v362 = vpop.f32.mrb[0].mxu0
    %363 = vmatprep.mubr.f32.mxu0 0.0
    %364 = vmatmul.mubr.f32.gmra.mrb[0].mxu0 %v284
    %v365 = vpop.f32.mrb[0].mxu0
    %v366 = vadd.f32 %v269, %v365
    %v367 = vpop.f32.mrb[0].mxu0
    %368 = vmatprep.mubr.f32.mxu0 0.0
    %369 = vmatmul.mubr.f32.gmra.mrb[0].mxu0 %v287
    %v370 = vpop.f32.mrb[0].mxu0
    %v371 = vadd.f32 %v274, %v370
    %v372 = vpop.f32.mrb[0].mxu0
    %373 = vdwg.mxu0
    %v374 = vld [vmem:[%s0 + $0x4] sm:$0xff]
    %v375 = vld [vmem:[%s0 + $0xc] sm:$0xff]
    %v376 = vld [vmem:[%s0 + $0x14] sm:$0xff]
    %v377 = vld [vmem:[%s0 + $0x1c] sm:$0xf]
    %s378 = scalar_lea.vmem [#allocation5], 32
    %v379 = vld [vmem:[%s378] sm:$0xff]
    %v380 = vld [vmem:[%s378 + $0x8] sm:$0xff]
    %v382 = vsel %vm179, %v374, 0
    %v385 = vsel %vm179, %v375, 0
    %v388 = vsel %vm179, %v376, 0
    %v391 = vsel %vm179, %v377, 0
    %393 = vmatprep.subr.mxu0 0.0
    %394 = vmatpush1.msra.mxu0 %v379
    %395 = vmatprep.subr.mxu0 0.0
    %396 = vmatpush1.msra.mxu0 %v380
    %397 = vmatprep.subr.mxu0 0.0
    %398 = vmatpush1.msra.mxu0 0.0
    %399 = vmatprep.subr.mxu0 0.0
    %400 = vmatpush1.msra.mxu0 0.0
    %401 = vmatprep.subr.mxu0 0.0
    %402 = vmatpush1.msra.mxu0 0.0
    %403 = vmatprep.subr.mxu0 0.0
    %404 = vmatpush1.msra.mxu0 0.0
    %405 = vmatprep.subr.mxu0 0.0
    %406 = vmatpush1.msra.mxu0 0.0
    %407 = vmatprep.subr.mxu0 0.0
    %408 = vmatpush1.msra.mxu0 0.0
    %409 = vmatprep.subr.mxu0 0.0
    %410 = vmatpush1.msra.mxu0 0.0
    %411 = vmatprep.subr.mxu0 0.0
    %412 = vmatpush1.msra.mxu0 0.0
    %413 = vmatprep.subr.mxu0 0.0
    %414 = vmatpush1.msra.mxu0 0.0
    %415 = vmatprep.subr.mxu0 0.0
    %416 = vmatpush1.msra.mxu0 0.0
    %417 = vmatprep.subr.mxu0 0.0
    %418 = vmatpush1.msra.mxu0 0.0
    %419 = vmatprep.subr.mxu0 0.0
    %420 = vmatpush1.msra.mxu0 0.0
    %421 = vmatprep.subr.mxu0 0.0
    %422 = vmatpush1.msra.mxu0 0.0
    %423 = vmatprep.subr.mxu0 0.0
    %424 = vmatpush1.msra.mxu0 0.0
    %425 = vmatprep.subr.mxu0 0.0
    %426 = vmatpush1.msra.mxu0 0.0
    %427 = vmatprep.subr.mxu0 0.0
    %428 = vmatpush1.msra.mxu0 0.0
    %429 = vmatprep.subr.mxu0 0.0
    %430 = vmatpush1.msra.mxu0 0.0
    %431 = vmatprep.subr.mxu0 0.0
    %432 = vmatpush1.msra.mxu0 0.0
    %433 = vmatprep.subr.mxu0 0.0
    %434 = vmatpush1.msra.mxu0 0.0
    %435 = vmatprep.subr.mxu0 0.0
    %436 = vmatpush1.msra.mxu0 0.0
    %437 = vmatprep.subr.mxu0 0.0
    %438 = vmatpush1.msra.mxu0 0.0
    %439 = vmatprep.subr.mxu0 0.0
    %440 = vmatpush1.msra.mxu0 0.0
    %441 = vmatprep.subr.mxu0 0.0
    %442 = vmatpush1.msra.mxu0 0.0
    %443 = vmatprep.subr.mxu0 0.0
    %444 = vmatpush1.msra.mxu0 0.0
    %445 = vmatprep.subr.mxu0 0.0
    %446 = vmatpush1.msra.mxu0 0.0
    %447 = vmatprep.subr.mxu0 0.0
    %448 = vmatpush1.msra.mxu0 0.0
    %449 = vmatprep.subr.mxu0 0.0
    %450 = vmatpush1.msra.mxu0 0.0
    %451 = vmatprep.subr.mxu0 0.0
    %452 = vmatpush1.msra.mxu0 0.0
    %453 = vmatprep.subr.mxu0 0.0
    %454 = vmatpush1.msra.mxu0 0.0
    %455 = vmatprep.subr.mxu0 0.0
    %456 = vmatpush1.msra.mxu0 0.0
    %457 = vmatprep.mubr.f32.mxu0 0.0
    %458 = vmatmul.mubr.f32.gmra.mrb[0].mxu0 %v382
    %v459 = vpop.f32.mrb[0].mxu0
    %v460 = vadd.f32 0.0, %v459
    %v461 = vpop.f32.mrb[0].mxu0
    %462 = vmatprep.mubr.f32.mxu0 0.0
    %463 = vmatmul.mubr.f32.gmra.mrb[0].mxu0 %v385
    %v464 = vpop.f32.mrb[0].mxu0
    %v465 = vadd.f32 0.0, %v464
    %v466 = vpop.f32.mrb[0].mxu0
    %467 = vmatprep.mubr.f32.mxu0 0.0
    %468 = vmatmul.mubr.f32.gmra.mrb[0].mxu0 %v388
    %v469 = vpop.f32.mrb[0].mxu0
    %v470 = vadd.f32 0.0, %v469
    %v471 = vpop.f32.mrb[0].mxu0
    %472 = vmatprep.mubr.f32.mxu0 0.0
    %473 = vmatmul.mubr.f32.gmra.mrb[0].mxu0 %v391
    %v474 = vpop.f32.mrb[0].mxu0
    %v475 = vadd.f32 0.0, %v474
    %v476 = vpop.f32.mrb[0].mxu0
    %477 = vdwg.mxu0
    %v478 = vadd.f32 %v356, %v460
    %v479 = vadd.f32 %v361, %v465
    %v480 = vadd.f32 %v366, %v470
    %v481 = vadd.f32 %v371, %v475
    %v482 = vld [vmem:[#allocation8] sm:$0x1]
    %v484 = vlaneseq
    %v485 = vshrl.u32 %v484, 7
    %v486 = vsub.s32 0, %v485
    %v487 = vrot.slane %v482, %v486
    %v489 = vadd.f32 %v478, %v487
    %v490 = vadd.f32 %v479, %v487
    %v491 = vadd.f32 %v480, %v487
    %v492 = vadd.f32 %v481, %v487
    %v493 = vsub.f32 0.0, %v489
    %v494 = vsub.f32 0.0, %v490
    %v495 = vsub.f32 0.0, %v491
    %v496 = vsub.f32 0.0, %v492
    %v497 = vmul.f32 %v493, 1.442695
    %v498 = vpow.pop %v497
    %v499 = vmul.f32 %v494, 1.442695
    %v500 = vpow.pop %v499
    %v501 = vmul.f32 %v495, 1.442695
    %v502 = vpow.pop %v501
    %v503 = vmul.f32 %v496, 1.442695
    %v504 = vpow.pop %v503
    %v505 = vadd.f32 %v498, 1.0
    %v506 = vadd.f32 %v500, 1.0
    %v507 = vadd.f32 %v502, 1.0
    %v508 = vadd.f32 %v504, 1.0
    %v509 = vrcp.pop %v505
    %v510 = vmul.f32 1.0, %v509
    %v511 = vrcp.pop %v506
    %v512 = vmul.f32 1.0, %v511
    %v513 = vrcp.pop %v507
    %v514 = vmul.f32 1.0, %v513
    %v515 = vrcp.pop %v508
    %v516 = vmul.f32 1.0, %v515
    %517 = vst [vmem:[#allocation2] sm:$0xff] %v510
    %518 = vst [vmem:[#allocation2 + $0x8] sm:$0xff] %v512
    %519 = vst [vmem:[#allocation2 + $0x10] sm:$0xff] %v514
    %520 = vst [vmem:[#allocation2 + $0x18] sm:$0xf] %v516
    %v521 = vld [vmem:[#allocation2] sm:$0xff]
    %v522 = vld [vmem:[#allocation2 + $0x8] sm:$0xff]
    %v523 = vld [vmem:[#allocation2 + $0x10] sm:$0xff]
    %v524 = vld [vmem:[#allocation2 + $0x2] sm:$0xff]
    %v525 = vld [vmem:[#allocation2 + $0xa] sm:$0xff]
    %v526 = vld [vmem:[#allocation2 + $0x12] sm:$0xff]
    %v527 = vld [vmem:[#allocation2 + $0x4] sm:$0xff]
    %v528 = vld [vmem:[#allocation2 + $0xc] sm:$0xff]
    %v529 = vld [vmem:[#allocation2 + $0x14] sm:$0xff]
    %v530 = vld [vmem:[#allocation10] sm:$0xff]
    %v531 = vld [vmem:[#allocation10 + $0x8] sm:$0xff]
    %v532 = vld [vmem:[#allocation10 + $0x10] sm:$0xff]
    %v533 = vld [vmem:[#allocation10 + $0x18] sm:$0xff]
    %v534 = vld [vmem:[#allocation10 + $0x20] sm:$0xff]
    %v535 = vld [vmem:[#allocation10 + $0x28] sm:$0xff]
    %v536 = vld [vmem:[#allocation10 + $0x30] sm:$0xff]
    %v537 = vld [vmem:[#allocation10 + $0x38] sm:$0xff]
    %v538 = vld [vmem:[#allocation10 + $0x40] sm:$0xff]
    %v539 = vld [vmem:[#allocation10 + $0x48] sm:$0xff]
    %v540 = vld [vmem:[#allocation10 + $0x50] sm:$0xff]
    %v541 = vld [vmem:[#allocation10 + $0x58] sm:$0xff]
    %v542 = vld [vmem:[#allocation10 + $0x60] sm:$0xff]
    %v543 = vld [vmem:[#allocation10 + $0x68] sm:$0xff]
    %v544 = vld [vmem:[#allocation10 + $0x70] sm:$0xff]
    %v545 = vld [vmem:[#allocation10 + $0x78] sm:$0xff]
    %v546 = vld [vmem:[#allocation10 + $0x80] sm:$0xff]
    %v547 = vld [vmem:[#allocation10 + $0x88] sm:$0xff]
    %v548 = vld [vmem:[#allocation10 + $0x90] sm:$0xff]
    %v549 = vld [vmem:[#allocation10 + $0x98] sm:$0xff]
    %v550 = vld [vmem:[#allocation10 + $0xa0] sm:$0xff]
    %v551 = vld [vmem:[#allocation10 + $0xa8] sm:$0xff]
    %v552 = vld [vmem:[#allocation10 + $0xb0] sm:$0xff]
    %v553 = vld [vmem:[#allocation10 + $0xb8] sm:$0xff]
    %v554 = vld [vmem:[#allocation10 + $0xc0] sm:$0xff]
    %v555 = vld [vmem:[#allocation10 + $0xc8] sm:$0xff]
    %v556 = vld [vmem:[#allocation10 + $0xd0] sm:$0xff]
    %v557 = vld [vmem:[#allocation10 + $0xd8] sm:$0xff]
    %v558 = vld [vmem:[#allocation10 + $0xe0] sm:$0xff]
    %v559 = vld [vmem:[#allocation10 + $0xe8] sm:$0xff]
    %v560 = vld [vmem:[#allocation10 + $0xf0] sm:$0xff]
    %v561 = vld [vmem:[#allocation10 + $0xf8] sm:$0xff]
    %v562 = vld [vmem:[#allocation10 + $0x100] sm:$0xff]
    %v563 = vld [vmem:[#allocation10 + $0x108] sm:$0xff]
    %v564 = vld [vmem:[#allocation10 + $0x110] sm:$0xff]
    %v565 = vld [vmem:[#allocation10 + $0x118] sm:$0xff]
    %v566 = vld [vmem:[#allocation10 + $0x120] sm:$0xff]
    %v567 = vld [vmem:[#allocation10 + $0x128] sm:$0xff]
    %v568 = vld [vmem:[#allocation10 + $0x130] sm:$0xff]
    %v569 = vld [vmem:[#allocation10 + $0x138] sm:$0xff]
    %v570 = vld [vmem:[#allocation10 + $0x140] sm:$0xff]
    %v571 = vld [vmem:[#allocation10 + $0x148] sm:$0xff]
    %v572 = vld [vmem:[#allocation10 + $0x150] sm:$0xff]
    %v573 = vld [vmem:[#allocation10 + $0x158] sm:$0xff]
    %v574 = vld [vmem:[#allocation10 + $0x160] sm:$0xff]
    %v575 = vld [vmem:[#allocation10 + $0x168] sm:$0xff]
    %v576 = vld [vmem:[#allocation10 + $0x170] sm:$0xff]
    %v577 = vld [vmem:[#allocation10 + $0x178] sm:$0xff]
    %v578 = vld [vmem:[#allocation10 + $0x180] sm:$0xff]
    %v579 = vld [vmem:[#allocation10 + $0x188] sm:$0xff]
    %v580 = vld [vmem:[#allocation10 + $0x190] sm:$0xff]
    %v581 = vld [vmem:[#allocation10 + $0x198] sm:$0xff]
    %v582 = vld [vmem:[#allocation10 + $0x1a0] sm:$0xff]
    %v583 = vld [vmem:[#allocation10 + $0x1a8] sm:$0xff]
    %v584 = vld [vmem:[#allocation10 + $0x1b0] sm:$0xff]
    %v585 = vld [vmem:[#allocation10 + $0x1b8] sm:$0xff]
    %v586 = vld [vmem:[#allocation10 + $0x1c0] sm:$0xff]
    %v587 = vld [vmem:[#allocation10 + $0x1c8] sm:$0xff]
    %v588 = vld [vmem:[#allocation10 + $0x1d0] sm:$0xff]
    %v589 = vld [vmem:[#allocation10 + $0x1d8] sm:$0xff]
    %v590 = vld [vmem:[#allocation10 + $0x1e0] sm:$0xff]
    %v591 = vld [vmem:[#allocation10 + $0x1e8] sm:$0xff]
    %v592 = vld [vmem:[#allocation10 + $0x1f0] sm:$0xff]
    %v593 = vld [vmem:[#allocation10 + $0x1f8] sm:$0xff]
    %v594 = vld [vmem:[#allocation10 + $0x200] sm:$0xff]
    %v595 = vld [vmem:[#allocation10 + $0x208] sm:$0xff]
    %v596 = vld [vmem:[#allocation10 + $0x210] sm:$0xff]
    %v597 = vld [vmem:[#allocation10 + $0x218] sm:$0xff]
    %v598 = vld [vmem:[#allocation10 + $0x220] sm:$0xff]
    %v599 = vld [vmem:[#allocation10 + $0x228] sm:$0xff]
    %v600 = vld [vmem:[#allocation10 + $0x230] sm:$0xff]
    %v601 = vld [vmem:[#allocation10 + $0x238] sm:$0xff]
    %v602 = vld [vmem:[#allocation10 + $0x240] sm:$0xff]
    %v603 = vld [vmem:[#allocation10 + $0x248] sm:$0xff]
    %v604 = vld [vmem:[#allocation10 + $0x250] sm:$0xff]
    %v605 = vld [vmem:[#allocation10 + $0x258] sm:$0xff]
    %v606 = vld [vmem:[#allocation10 + $0x260] sm:$0xff]
    %v607 = vld [vmem:[#allocation10 + $0x268] sm:$0xff]
    %v608 = vld [vmem:[#allocation10 + $0x270] sm:$0xff]
    %v609 = vld [vmem:[#allocation10 + $0x278] sm:$0xff]
    %v610 = vld [vmem:[#allocation10 + $0x280] sm:$0xff]
    %v611 = vld [vmem:[#allocation10 + $0x288] sm:$0xff]
    %v612 = vld [vmem:[#allocation10 + $0x290] sm:$0xff]
    %v613 = vld [vmem:[#allocation10 + $0x298] sm:$0xff]
    %v614 = vld [vmem:[#allocation10 + $0x2a0] sm:$0xff]
    %v615 = vld [vmem:[#allocation10 + $0x2a8] sm:$0xff]
    %v616 = vld [vmem:[#allocation10 + $0x2b0] sm:$0xff]
    %v617 = vld [vmem:[#allocation10 + $0x2b8] sm:$0xff]
    %v618 = vld [vmem:[#allocation10 + $0x2c0] sm:$0xff]
    %v619 = vld [vmem:[#allocation10 + $0x2c8] sm:$0xff]
    %v620 = vld [vmem:[#allocation10 + $0x2d0] sm:$0xff]
    %v621 = vld [vmem:[#allocation10 + $0x2d8] sm:$0xff]
    %v622 = vld [vmem:[#allocation10 + $0x2e0] sm:$0xff]
    %v623 = vld [vmem:[#allocation10 + $0x2e8] sm:$0xff]
    %v624 = vld [vmem:[#allocation10 + $0x2f0] sm:$0xff]
    %v625 = vld [vmem:[#allocation10 + $0x2f8] sm:$0xff]
    %v626 = vld [vmem:[#allocation11] sm:$0x3]
    %v628 = vlaneseq
    %v629 = vshrl.u32 %v628, 7
    %v630 = vsub.s32 0, %v629
    %v631 = vrot.slane %v626, %v630
    %v632 = vlaneseq
    %v633 = vshrl.u32 %v632, 7
    %v634 = vsub.s32 1, %v633
    %v635 = vrot.slane %v626, %v634
    %638 = vmatprep.subr.mxu0 %v531
    %639 = vmatpush1.msra.mxu0 %v530
    %640 = vmatprep.subr.mxu0 %v533
    %641 = vmatpush1.msra.mxu0 %v532
    %642 = vmatprep.subr.mxu0 %v535
    %643 = vmatpush1.msra.mxu0 %v534
    %644 = vmatprep.subr.mxu0 %v537
    %645 = vmatpush1.msra.mxu0 %v536
    %646 = vmatprep.subr.mxu0 %v539
    %647 = vmatpush1.msra.mxu0 %v538
    %648 = vmatprep.subr.mxu0 %v541
    %649 = vmatpush1.msra.mxu0 %v540
    %650 = vmatprep.subr.mxu0 %v543
    %651 = vmatpush1.msra.mxu0 %v542
    %652 = vmatprep.subr.mxu0 %v545
    %653 = vmatpush1.msra.mxu0 %v544
    %654 = vmatprep.subr.mxu0 %v547
    %655 = vmatpush1.msra.mxu0 %v546
    %656 = vmatprep.subr.mxu0 %v549
    %657 = vmatpush1.msra.mxu0 %v548
    %658 = vmatprep.subr.mxu0 %v551
    %659 = vmatpush1.msra.mxu0 %v550
    %660 = vmatprep.subr.mxu0 %v553
    %661 = vmatpush1.msra.mxu0 %v552
    %662 = vmatprep.subr.mxu0 %v555
    %663 = vmatpush1.msra.mxu0 %v554
    %664 = vmatprep.subr.mxu0 %v557
    %665 = vmatpush1.msra.mxu0 %v556
    %666 = vmatprep.subr.mxu0 %v559
    %667 = vmatpush1.msra.mxu0 %v558
    %668 = vmatprep.subr.mxu0 %v561
    %669 = vmatpush1.msra.mxu0 %v560
    %670 = vmatprep.subr.mxu0 %v563
    %671 = vmatpush1.msra.mxu0 %v562
    %672 = vmatprep.subr.mxu0 %v565
    %673 = vmatpush1.msra.mxu0 %v564
    %674 = vmatprep.subr.mxu0 %v567
    %675 = vmatpush1.msra.mxu0 %v566
    %676 = vmatprep.subr.mxu0 %v569
    %677 = vmatpush1.msra.mxu0 %v568
    %678 = vmatprep.subr.mxu0 %v571
    %679 = vmatpush1.msra.mxu0 %v570
    %680 = vmatprep.subr.mxu0 %v573
    %681 = vmatpush1.msra.mxu0 %v572
    %682 = vmatprep.subr.mxu0 %v575
    %683 = vmatpush1.msra.mxu0 %v574
    %684 = vmatprep.subr.mxu0 %v577
    %685 = vmatpush1.msra.mxu0 %v576
    %686 = vmatprep.subr.mxu0 %v579
    %687 = vmatpush1.msra.mxu0 %v578
    %688 = vmatprep.subr.mxu0 %v581
    %689 = vmatpush1.msra.mxu0 %v580
    %690 = vmatprep.subr.mxu0 %v583
    %691 = vmatpush1.msra.mxu0 %v582
    %692 = vmatprep.subr.mxu0 %v585
    %693 = vmatpush1.msra.mxu0 %v584
    %694 = vmatprep.subr.mxu0 %v587
    %695 = vmatpush1.msra.mxu0 %v586
    %696 = vmatprep.subr.mxu0 %v589
    %697 = vmatpush1.msra.mxu0 %v588
    %698 = vmatprep.subr.mxu0 %v591
    %699 = vmatpush1.msra.mxu0 %v590
    %700 = vmatprep.subr.mxu0 %v593
    %701 = vmatpush1.msra.mxu0 %v592
    %702 = vmatprep.mubr.f32.mxu0 %v524
    %703 = vmatmul.mubr.f32.gmra.mrb[0].mxu0 %v521
    %v704 = vpop.f32.mrb[0].mxu0
    %v705 = vadd.f32 %v631, %v704
    %v706 = vpop.f32.mrb[0].mxu0
    %v707 = vadd.f32 %v635, %v706
    %708 = vmatprep.mubr.f32.mxu0 %v525
    %709 = vmatmul.mubr.f32.gmra.mrb[0].mxu0 %v522
    %v710 = vpop.f32.mrb[0].mxu0
    %v711 = vadd.f32 %v631, %v710
    %v712 = vpop.f32.mrb[0].mxu0
    %v713 = vadd.f32 %v635, %v712
    %714 = vmatprep.mubr.f32.mxu0 %v526
    %715 = vmatmul.mubr.f32.gmra.mrb[0].mxu0 %v523
    %v716 = vpop.f32.mrb[0].mxu0
    %v717 = vadd.f32 %v631, %v716
    %v718 = vpop.f32.mrb[0].mxu0
    %v719 = vadd.f32 %v635, %v718
    %720 = vdwg.mxu0
    %721 = vmatprep.subr.mxu0 %v595
    %722 = vmatpush1.msra.mxu0 %v594
    %723 = vmatprep.subr.mxu0 %v597
    %724 = vmatpush1.msra.mxu0 %v596
    %725 = vmatprep.subr.mxu0 %v599
    %726 = vmatpush1.msra.mxu0 %v598
    %727 = vmatprep.subr.mxu0 %v601
    %728 = vmatpush1.msra.mxu0 %v600
    %729 = vmatprep.subr.mxu0 %v603
    %730 = vmatpush1.msra.mxu0 %v602
    %731 = vmatprep.subr.mxu0 %v605
    %732 = vmatpush1.msra.mxu0 %v604
    %733 = vmatprep.subr.mxu0 %v607
    %734 = vmatpush1.msra.mxu0 %v606
    %735 = vmatprep.subr.mxu0 %v609
    %736 = vmatpush1.msra.mxu0 %v608
    %737 = vmatprep.subr.mxu0 %v611
    %738 = vmatpush1.msra.mxu0 %v610
    %739 = vmatprep.subr.mxu0 %v613
    %740 = vmatpush1.msra.mxu0 %v612
    %741 = vmatprep.subr.mxu0 %v615
    %742 = vmatpush1.msra.mxu0 %v614
    %743 = vmatprep.subr.mxu0 %v617
    %744 = vmatpush1.msra.mxu0 %v616
    %745 = vmatprep.subr.mxu0 %v619
    %746 = vmatpush1.msra.mxu0 %v618
    %747 = vmatprep.subr.mxu0 %v621
    %748 = vmatpush1.msra.mxu0 %v620
    %749 = vmatprep.subr.mxu0 %v623
    %750 = vmatpush1.msra.mxu0 %v622
    %751 = vmatprep.subr.mxu0 %v625
    %752 = vmatpush1.msra.mxu0 %v624
    %753 = vmatprep.subr.mxu0 0.0
    %754 = vmatpush1.msra.mxu0 0.0
    %755 = vmatprep.subr.mxu0 0.0
    %756 = vmatpush1.msra.mxu0 0.0
    %757 = vmatprep.subr.mxu0 0.0
    %758 = vmatpush1.msra.mxu0 0.0
    %759 = vmatprep.subr.mxu0 0.0
    %760 = vmatpush1.msra.mxu0 0.0
    %761 = vmatprep.subr.mxu0 0.0
    %762 = vmatpush1.msra.mxu0 0.0
    %763 = vmatprep.subr.mxu0 0.0
    %764 = vmatpush1.msra.mxu0 0.0
    %765 = vmatprep.subr.mxu0 0.0
    %766 = vmatpush1.msra.mxu0 0.0
    %767 = vmatprep.subr.mxu0 0.0
    %768 = vmatpush1.msra.mxu0 0.0
    %769 = vmatprep.subr.mxu0 0.0
    %770 = vmatpush1.msra.mxu0 0.0
    %771 = vmatprep.subr.mxu0 0.0
    %772 = vmatpush1.msra.mxu0 0.0
    %773 = vmatprep.subr.mxu0 0.0
    %774 = vmatpush1.msra.mxu0 0.0
    %775 = vmatprep.subr.mxu0 0.0
    %776 = vmatpush1.msra.mxu0 0.0
    %777 = vmatprep.subr.mxu0 0.0
    %778 = vmatpush1.msra.mxu0 0.0
    %779 = vmatprep.subr.mxu0 0.0
    %780 = vmatpush1.msra.mxu0 0.0
    %781 = vmatprep.subr.mxu0 0.0
    %782 = vmatpush1.msra.mxu0 0.0
    %783 = vmatprep.subr.mxu0 0.0
    %784 = vmatpush1.msra.mxu0 0.0
    %785 = vmatprep.mubr.f32.mxu0 0.0
    %786 = vmatmul.mubr.f32.gmra.mrb[0].mxu0 %v527
    %v787 = vpop.f32.mrb[0].mxu0
    %v788 = vadd.f32 %v705, %v787
    %v789 = vpop.f32.mrb[0].mxu0
    %v790 = vadd.f32 %v707, %v789
    %791 = vmatprep.mubr.f32.mxu0 0.0
    %792 = vmatmul.mubr.f32.gmra.mrb[0].mxu0 %v528
    %v793 = vpop.f32.mrb[0].mxu0
    %v794 = vadd.f32 %v711, %v793
    %v795 = vpop.f32.mrb[0].mxu0
    %v796 = vadd.f32 %v713, %v795
    %797 = vmatprep.mubr.f32.mxu0 0.0
    %798 = vmatmul.mubr.f32.gmra.mrb[0].mxu0 %v529
    %v799 = vpop.f32.mrb[0].mxu0
    %v800 = vadd.f32 %v717, %v799
    %v801 = vpop.f32.mrb[0].mxu0
    %v802 = vadd.f32 %v719, %v801
    %803 = vdwg.mxu0
    %v804 = vmax.f32 %v788, 0.0
    %v805 = vmax.f32 %v790, 0.0
    %v806 = vmax.f32 %v794, 0.0
    %v807 = vmax.f32 %v796, 0.0
    %v808 = vmax.f32 %v800, 0.0
    %v809 = vmax.f32 %v802, 0.0
    %810 = vst [vmem:[#allocation3] sm:$0xff] %v804
    %811 = vst [vmem:[#allocation3 + $0x8] sm:$0xff] %v805
    %812 = vst [vmem:[#allocation3 + $0x10] sm:$0xff] %v806
    %813 = vst [vmem:[#allocation3 + $0x18] sm:$0xff] %v807
    %814 = vst [vmem:[#allocation3 + $0x20] sm:$0xff] %v808
    %815 = vst [vmem:[#allocation3 + $0x28] sm:$0xff] %v809
    %v816 = vld [vmem:[#allocation3] sm:$0xff]
    %v817 = vld [vmem:[#allocation3 + $0x8] sm:$0xff]
    %v818 = vld [vmem:[#allocation3 + $0x10] sm:$0xff]
    %v819 = vld [vmem:[#allocation3 + $0x18] sm:$0xff]
    %v820 = vld [vmem:[#allocation3] sm:$0xfc]
    %v821 = vld [vmem:[#allocation3 + $0x8] sm:$0xfc]
    %v822 = vld [vmem:[#allocation3 + $0x10] sm:$0xff]
    %v823 = vld [vmem:[#allocation3 + $0x18] sm:$0xff]
    %v824 = vld [vmem:[#allocation3 + $0x20] sm:$0x3]
    %v825 = vld [vmem:[#allocation3 + $0x28] sm:$0x3]
    %v826 = vld [vmem:[#allocation3] sm:$0xf0]
    %v827 = vld [vmem:[#allocation3 + $0x8] sm:$0xf0]
    %v828 = vld [vmem:[#allocation3 + $0x20] sm:$0xf]
    %v829 = vld [vmem:[#allocation3 + $0x28] sm:$0xf]
    %v830 = vld [vmem:[#allocation3] sm:$0xc0]
    %v831 = vld [vmem:[#allocation3 + $0x8] sm:$0xc0]
    %v832 = vld [vmem:[#allocation3 + $0x20] sm:$0x3f]
    %v833 = vld [vmem:[#allocation3 + $0x28] sm:$0x3f]
    %v834 = vld [vmem:[#allocation3 + $0x20] sm:$0xff]
    %v835 = vld [vmem:[#allocation3 + $0x28] sm:$0xff]
    %vm842 = vcmask 1045504
    %v843 = vrot.slane %v820, 2
    %v844 = vrot.slane %v822, 2
    %v845 = vsel %vm842, %v843, %v844
    %v846 = vrot.slane %v821, 2
    %v847 = vrot.slane %v823, 2
    %v848 = vsel %vm842, %v846, %v847
    %v849 = vrot.slane %v824, 2
    %v850 = vsel %vm842, %v844, %v849
    %v851 = vrot.slane %v825, 2
    %v852 = vsel %vm842, %v847, %v851
    %vm861 = vcmask 1043456
    %v862 = vrot.slane %v826, 4
    %v863 = vrot.slane %v822, 4
    %v864 = vsel %vm861, %v862, %v863
    %v865 = vrot.slane %v827, 4
    %v866 = vrot.slane %v823, 4
    %v867 = vsel %vm861, %v865, %v866
    %v868 = vrot.slane %v828, 4
    %v869 = vsel %vm861, %v863, %v868
    %v870 = vrot.slane %v829, 4
    %v871 = vsel %vm861, %v866, %v870
    %vm880 = vcmask 1041408
    %v881 = vrot.slane %v830, 6
    %v882 = vrot.slane %v822, 6
    %v883 = vsel %vm880, %v881, %v882
    %v884 = vrot.slane %v831, 6
    %v885 = vrot.slane %v823, 6
    %v886 = vsel %vm880, %v884, %v885
    %v887 = vrot.slane %v832, 6
    %v888 = vsel %vm880, %v882, %v887
    %v889 = vrot.slane %v833, 6
    %v890 = vsel %vm880, %v885, %v889
    %v895 = vld [vmem:[#allocation13] sm:$0xff]
    %v896 = vld [vmem:[#allocation13 + $0x8] sm:$0xff]
    %v897 = vld [vmem:[#allocation13 + $0x10] sm:$0xff]
    %v898 = vld [vmem:[#allocation13 + $0x18] sm:$0xff]
    %v899 = vld [vmem:[#allocation13 + $0x20] sm:$0xff]
    %v900 = vld [vmem:[#allocation13 + $0x28] sm:$0xff]
    %v901 = vld [vmem:[#allocation13 + $0x30] sm:$0xff]
    %v902 = vld [vmem:[#allocation13 + $0x38] sm:$0xff]
    %v903 = vld [vmem:[#allocation13 + $0x40] sm:$0xff]
    %v904 = vld [vmem:[#allocation13 + $0x48] sm:$0xff]
    %v905 = vld [vmem:[#allocation13 + $0x50] sm:$0xff]
    %v906 = vld [vmem:[#allocation13 + $0x58] sm:$0xff]
    %v907 = vld [vmem:[#allocation13 + $0x60] sm:$0xff]
    %v908 = vld [vmem:[#allocation13 + $0x68] sm:$0xff]
    %v909 = vld [vmem:[#allocation13 + $0x70] sm:$0xff]
    %v910 = vld [vmem:[#allocation13 + $0x78] sm:$0xff]
    %v911 = vld [vmem:[#allocation13 + $0x80] sm:$0xff]
    %v912 = vld [vmem:[#allocation13 + $0x88] sm:$0xff]
    %v913 = vld [vmem:[#allocation13 + $0x90] sm:$0xff]
    %v914 = vld [vmem:[#allocation13 + $0x98] sm:$0xff]
    %v915 = vld [vmem:[#allocation13 + $0xa0] sm:$0xff]
    %v916 = vld [vmem:[#allocation13 + $0xa8] sm:$0xff]
    %v917 = vld [vmem:[#allocation13 + $0xb0] sm:$0xff]
    %v918 = vld [vmem:[#allocation13 + $0xb8] sm:$0xff]
    %v919 = vld [vmem:[#allocation13 + $0xc0] sm:$0xff]
    %v920 = vld [vmem:[#allocation13 + $0xc8] sm:$0xff]
    %v921 = vld [vmem:[#allocation13 + $0xd0] sm:$0xff]
    %v922 = vld [vmem:[#allocation13 + $0xd8] sm:$0xff]
    %v923 = vld [vmem:[#allocation13 + $0xe0] sm:$0xff]
    %v924 = vld [vmem:[#allocation13 + $0xe8] sm:$0xff]
    %v925 = vld [vmem:[#allocation13 + $0xf0] sm:$0xff]
    %v926 = vld [vmem:[#allocation13 + $0xf8] sm:$0xff]
    %v927 = vld [vmem:[#allocation13 + $0x100] sm:$0xff]
    %v928 = vld [vmem:[#allocation13 + $0x108] sm:$0xff]
    %v929 = vld [vmem:[#allocation13 + $0x110] sm:$0xff]
    %v930 = vld [vmem:[#allocation13 + $0x118] sm:$0xff]
    %v931 = vld [vmem:[#allocation13 + $0x120] sm:$0xff]
    %v932 = vld [vmem:[#allocation13 + $0x128] sm:$0xff]
    %v933 = vld [vmem:[#allocation13 + $0x130] sm:$0xff]
    %v934 = vld [vmem:[#allocation13 + $0x138] sm:$0xff]
    %v935 = vld [vmem:[#allocation13 + $0x140] sm:$0xff]
    %v936 = vld [vmem:[#allocation13 + $0x148] sm:$0xff]
    %v937 = vld [vmem:[#allocation13 + $0x150] sm:$0xff]
    %v938 = vld [vmem:[#allocation13 + $0x158] sm:$0xff]
    %v939 = vld [vmem:[#allocation13 + $0x160] sm:$0xff]
    %v940 = vld [vmem:[#allocation13 + $0x168] sm:$0xff]
    %v941 = vld [vmem:[#allocation13 + $0x170] sm:$0xff]
    %v942 = vld [vmem:[#allocation13 + $0x178] sm:$0xff]
    %v943 = vld [vmem:[#allocation13 + $0x180] sm:$0xff]
    %v944 = vld [vmem:[#allocation13 + $0x188] sm:$0xff]
    %v945 = vld [vmem:[#allocation13 + $0x190] sm:$0xff]
    %v946 = vld [vmem:[#allocation13 + $0x198] sm:$0xff]
    %v947 = vld [vmem:[#allocation13 + $0x1a0] sm:$0xff]
    %v948 = vld [vmem:[#allocation13 + $0x1a8] sm:$0xff]
    %v949 = vld [vmem:[#allocation13 + $0x1b0] sm:$0xff]
    %v950 = vld [vmem:[#allocation13 + $0x1b8] sm:$0xff]
    %v951 = vld [vmem:[#allocation13 + $0x1c0] sm:$0xff]
    %v952 = vld [vmem:[#allocation13 + $0x1c8] sm:$0xff]
    %v953 = vld [vmem:[#allocation13 + $0x1d0] sm:$0xff]
    %v954 = vld [vmem:[#allocation13 + $0x1d8] sm:$0xff]
    %v955 = vld [vmem:[#allocation13 + $0x1e0] sm:$0xff]
    %v956 = vld [vmem:[#allocation13 + $0x1e8] sm:$0xff]
    %v957 = vld [vmem:[#allocation13 + $0x1f0] sm:$0xff]
    %v958 = vld [vmem:[#allocation13 + $0x1f8] sm:$0xff]
    %v959 = vld [vmem:[#allocation13 + $0x200] sm:$0xff]
    %v960 = vld [vmem:[#allocation13 + $0x208] sm:$0xff]
    %v961 = vld [vmem:[#allocation13 + $0x210] sm:$0xff]
    %v962 = vld [vmem:[#allocation13 + $0x218] sm:$0xff]
    %v963 = vld [vmem:[#allocation13 + $0x220] sm:$0xff]
    %v964 = vld [vmem:[#allocation13 + $0x228] sm:$0xff]
    %v965 = vld [vmem:[#allocation13 + $0x230] sm:$0xff]
    %v966 = vld [vmem:[#allocation13 + $0x238] sm:$0xff]
    %v967 = vld [vmem:[#allocation13 + $0x240] sm:$0xff]
    %v968 = vld [vmem:[#allocation13 + $0x248] sm:$0xff]
    %v969 = vld [vmem:[#allocation13 + $0x250] sm:$0xff]
    %v970 = vld [vmem:[#allocation13 + $0x258] sm:$0xff]
    %v971 = vld [vmem:[#allocation13 + $0x260] sm:$0xff]
    %v972 = vld [vmem:[#allocation13 + $0x268] sm:$0xff]
    %v973 = vld [vmem:[#allocation13 + $0x270] sm:$0xff]
    %v974 = vld [vmem:[#allocation13 + $0x278] sm:$0xff]
    %v975 = vld [vmem:[#allocation13 + $0x280] sm:$0xff]
    %v976 = vld [vmem:[#allocation13 + $0x288] sm:$0xff]
    %v977 = vld [vmem:[#allocation13 + $0x290] sm:$0xff]
    %v978 = vld [vmem:[#allocation13 + $0x298] sm:$0xff]
    %v979 = vld [vmem:[#allocation13 + $0x2a0] sm:$0xff]
    %v980 = vld [vmem:[#allocation13 + $0x2a8] sm:$0xff]
    %v981 = vld [vmem:[#allocation13 + $0x2b0] sm:$0xff]
    %v982 = vld [vmem:[#allocation13 + $0x2b8] sm:$0xff]
    %v983 = vld [vmem:[#allocation13 + $0x2c0] sm:$0xff]
    %v984 = vld [vmem:[#allocation13 + $0x2c8] sm:$0xff]
    %v985 = vld [vmem:[#allocation13 + $0x2d0] sm:$0xff]
    %v986 = vld [vmem:[#allocation13 + $0x2d8] sm:$0xff]
    %v987 = vld [vmem:[#allocation13 + $0x2e0] sm:$0xff]
    %v988 = vld [vmem:[#allocation13 + $0x2e8] sm:$0xff]
    %v989 = vld [vmem:[#allocation13 + $0x2f0] sm:$0xff]
    %v990 = vld [vmem:[#allocation13 + $0x2f8] sm:$0xff]
    %v991 = vld [vmem:[#allocation13 + $0x300] sm:$0xff]
    %v992 = vld [vmem:[#allocation13 + $0x308] sm:$0xff]
    %v993 = vld [vmem:[#allocation13 + $0x310] sm:$0xff]
    %v994 = vld [vmem:[#allocation13 + $0x318] sm:$0xff]
    %v995 = vld [vmem:[#allocation13 + $0x320] sm:$0xff]
    %v996 = vld [vmem:[#allocation13 + $0x328] sm:$0xff]
    %v997 = vld [vmem:[#allocation13 + $0x330] sm:$0xff]
    %v998 = vld [vmem:[#allocation13 + $0x338] sm:$0xff]
    %v999 = vld [vmem:[#allocation13 + $0x340] sm:$0xff]
    %v1000 = vld [vmem:[#allocation13 + $0x348] sm:$0xff]
    %v1001 = vld [vmem:[#allocation13 + $0x350] sm:$0xff]
    %v1002 = vld [vmem:[#allocation13 + $0x358] sm:$0xff]
    %v1003 = vld [vmem:[#allocation13 + $0x360] sm:$0xff]
    %v1004 = vld [vmem:[#allocation13 + $0x368] sm:$0xff]
    %v1005 = vld [vmem:[#allocation13 + $0x370] sm:$0xff]
    %v1006 = vld [vmem:[#allocation13 + $0x378] sm:$0xff]
    %v1007 = vld [vmem:[#allocation13 + $0x380] sm:$0xff]
    %v1008 = vld [vmem:[#allocation13 + $0x388] sm:$0xff]
    %v1009 = vld [vmem:[#allocation13 + $0x390] sm:$0xff]
    %v1010 = vld [vmem:[#allocation13 + $0x398] sm:$0xff]
    %v1011 = vld [vmem:[#allocation13 + $0x3a0] sm:$0xff]
    %v1012 = vld [vmem:[#allocation13 + $0x3a8] sm:$0xff]
    %v1013 = vld [vmem:[#allocation13 + $0x3b0] sm:$0xff]
    %v1014 = vld [vmem:[#allocation13 + $0x3b8] sm:$0xff]
    %v1015 = vld [vmem:[#allocation13 + $0x3c0] sm:$0xff]
    %v1016 = vld [vmem:[#allocation13 + $0x3c8] sm:$0xff]
    %v1017 = vld [vmem:[#allocation13 + $0x3d0] sm:$0xff]
    %v1018 = vld [vmem:[#allocation13 + $0x3d8] sm:$0xff]
    %v1019 = vld [vmem:[#allocation13 + $0x3e0] sm:$0xff]
    %v1020 = vld [vmem:[#allocation13 + $0x3e8] sm:$0xff]
    %v1021 = vld [vmem:[#allocation13 + $0x3f0] sm:$0xff]
    %v1022 = vld [vmem:[#allocation13 + $0x3f8] sm:$0xff]
    %v1023 = vld [vmem:[#allocation13 + $0x400] sm:$0xff]
    %v1024 = vld [vmem:[#allocation13 + $0x408] sm:$0xff]
    %v1025 = vld [vmem:[#allocation13 + $0x410] sm:$0xff]
    %v1026 = vld [vmem:[#allocation13 + $0x418] sm:$0xff]
    %v1027 = vld [vmem:[#allocation13 + $0x420] sm:$0xff]
    %v1028 = vld [vmem:[#allocation13 + $0x428] sm:$0xff]
    %v1029 = vld [vmem:[#allocation13 + $0x430] sm:$0xff]
    %v1030 = vld [vmem:[#allocation13 + $0x438] sm:$0xff]
    %v1031 = vld [vmem:[#allocation13 + $0x440] sm:$0xff]
    %v1032 = vld [vmem:[#allocation13 + $0x448] sm:$0xff]
    %v1033 = vld [vmem:[#allocation13 + $0x450] sm:$0xff]
    %v1034 = vld [vmem:[#allocation13 + $0x458] sm:$0xff]
    %v1035 = vld [vmem:[#allocation13 + $0x460] sm:$0xff]
    %v1036 = vld [vmem:[#allocation13 + $0x468] sm:$0xff]
    %v1037 = vld [vmem:[#allocation13 + $0x470] sm:$0xff]
    %v1038 = vld [vmem:[#allocation13 + $0x478] sm:$0xff]
    %v1039 = vld [vmem:[#allocation13 + $0x480] sm:$0xff]
    %v1040 = vld [vmem:[#allocation13 + $0x488] sm:$0xff]
    %v1041 = vld [vmem:[#allocation13 + $0x490] sm:$0xff]
    %v1042 = vld [vmem:[#allocation13 + $0x498] sm:$0xff]
    %v1043 = vld [vmem:[#allocation13 + $0x4a0] sm:$0xff]
    %v1044 = vld [vmem:[#allocation13 + $0x4a8] sm:$0xff]
    %v1045 = vld [vmem:[#allocation13 + $0x4b0] sm:$0xff]
    %v1046 = vld [vmem:[#allocation13 + $0x4b8] sm:$0xff]
    %v1047 = vld [vmem:[#allocation13 + $0x4c0] sm:$0xff]
    %v1048 = vld [vmem:[#allocation13 + $0x4c8] sm:$0xff]
    %v1049 = vld [vmem:[#allocation13 + $0x4d0] sm:$0xff]
    %v1050 = vld [vmem:[#allocation13 + $0x4d8] sm:$0xff]
    %v1051 = vld [vmem:[#allocation13 + $0x4e0] sm:$0xff]
    %v1052 = vld [vmem:[#allocation13 + $0x4e8] sm:$0xff]
    %v1053 = vld [vmem:[#allocation13 + $0x4f0] sm:$0xff]
    %v1054 = vld [vmem:[#allocation13 + $0x4f8] sm:$0xff]
    %v1055 = vld [vmem:[#allocation14] sm:$0x1]
    %v1057 = vlaneseq
    %v1058 = vshrl.u32 %v1057, 7
    %v1059 = vsub.s32 0, %v1058
    %v1060 = vrot.slane %v1055, %v1059
    %1062 = vmatprep.subr.mxu0 0.0
    %1063 = vmatpush1.msra.mxu0 %v895
    %1064 = vmatprep.subr.mxu0 0.0
    %1065 = vmatpush1.msra.mxu0 %v896
    %1066 = vmatprep.subr.mxu0 0.0
    %1067 = vmatpush1.msra.mxu0 %v897
    %1068 = vmatprep.subr.mxu0 0.0
    %1069 = vmatpush1.msra.mxu0 %v898
    %1070 = vmatprep.subr.mxu0 0.0
    %1071 = vmatpush1.msra.mxu0 %v899
    %1072 = vmatprep.subr.mxu0 0.0
    %1073 = vmatpush1.msra.mxu0 %v900
    %1074 = vmatprep.subr.mxu0 0.0
    %1075 = vmatpush1.msra.mxu0 %v901
    %1076 = vmatprep.subr.mxu0 0.0
    %1077 = vmatpush1.msra.mxu0 %v902
    %1078 = vmatprep.subr.mxu0 0.0
    %1079 = vmatpush1.msra.mxu0 %v903
    %1080 = vmatprep.subr.mxu0 0.0
    %1081 = vmatpush1.msra.mxu0 %v904
    %1082 = vmatprep.subr.mxu0 0.0
    %1083 = vmatpush1.msra.mxu0 %v905
    %1084 = vmatprep.subr.mxu0 0.0
    %1085 = vmatpush1.msra.mxu0 %v906
    %1086 = vmatprep.subr.mxu0 0.0
    %1087 = vmatpush1.msra.mxu0 %v907
    %1088 = vmatprep.subr.mxu0 0.0
    %1089 = vmatpush1.msra.mxu0 %v908
    %1090 = vmatprep.subr.mxu0 0.0
    %1091 = vmatpush1.msra.mxu0 %v909
    %1092 = vmatprep.subr.mxu0 0.0
    %1093 = vmatpush1.msra.mxu0 %v910
    %1094 = vmatprep.subr.mxu0 0.0
    %1095 = vmatpush1.msra.mxu0 %v911
    %1096 = vmatprep.subr.mxu0 0.0
    %1097 = vmatpush1.msra.mxu0 %v912
    %1098 = vmatprep.subr.mxu0 0.0
    %1099 = vmatpush1.msra.mxu0 %v913
    %1100 = vmatprep.subr.mxu0 0.0
    %1101 = vmatpush1.msra.mxu0 %v914
    %1102 = vmatprep.subr.mxu0 0.0
    %1103 = vmatpush1.msra.mxu0 %v915
    %1104 = vmatprep.subr.mxu0 0.0
    %1105 = vmatpush1.msra.mxu0 %v916
    %1106 = vmatprep.subr.mxu0 0.0
    %1107 = vmatpush1.msra.mxu0 %v917
    %1108 = vmatprep.subr.mxu0 0.0
    %1109 = vmatpush1.msra.mxu0 %v918
    %1110 = vmatprep.subr.mxu0 0.0
    %1111 = vmatpush1.msra.mxu0 %v919
    %1112 = vmatprep.subr.mxu0 0.0
    %1113 = vmatpush1.msra.mxu0 %v920
    %1114 = vmatprep.subr.mxu0 0.0
    %1115 = vmatpush1.msra.mxu0 %v921
    %1116 = vmatprep.subr.mxu0 0.0
    %1117 = vmatpush1.msra.mxu0 %v922
    %1118 = vmatprep.subr.mxu0 0.0
    %1119 = vmatpush1.msra.mxu0 %v923
    %1120 = vmatprep.subr.mxu0 0.0
    %1121 = vmatpush1.msra.mxu0 %v924
    %1122 = vmatprep.subr.mxu0 0.0
    %1123 = vmatpush1.msra.mxu0 %v925
    %1124 = vmatprep.subr.mxu0 0.0
    %1125 = vmatpush1.msra.mxu0 %v926
    %1126 = vmatprep.mubr.f32.mxu0 %v817
    %1127 = vmatmul.mubr.f32.gmra.mrb[0].mxu0 %v816
    %v1128 = vpop.f32.mrb[0].mxu0
    %v1129 = vadd.f32 %v1060, %v1128
    %v1130 = vpop.f32.mrb[0].mxu0
    %1131 = vmatprep.mubr.f32.mxu0 %v819
    %1132 = vmatmul.mubr.f32.gmra.mrb[0].mxu0 %v818
    %v1133 = vpop.f32.mrb[0].mxu0
    %v1134 = vadd.f32 %v1060, %v1133
    %v1135 = vpop.f32.mrb[0].mxu0
    %1136 = vdwg.mxu0
    %1137 = vmatprep.subr.mxu0 0.0
    %1138 = vmatpush1.msra.mxu0 %v927
    %1139 = vmatprep.subr.mxu0 0.0
    %1140 = vmatpush1.msra.mxu0 %v928
    %1141 = vmatprep.subr.mxu0 0.0
    %1142 = vmatpush1.msra.mxu0 %v929
    %1143 = vmatprep.subr.mxu0 0.0
    %1144 = vmatpush1.msra.mxu0 %v930
    %1145 = vmatprep.subr.mxu0 0.0
    %1146 = vmatpush1.msra.mxu0 %v931
    %1147 = vmatprep.subr.mxu0 0.0
    %1148 = vmatpush1.msra.mxu0 %v932
    %1149 = vmatprep.subr.mxu0 0.0
    %1150 = vmatpush1.msra.mxu0 %v933
    %1151 = vmatprep.subr.mxu0 0.0
    %1152 = vmatpush1.msra.mxu0 %v934
    %1153 = vmatprep.subr.mxu0 0.0
    %1154 = vmatpush1.msra.mxu0 %v935
    %1155 = vmatprep.subr.mxu0 0.0
    %1156 = vmatpush1.msra.mxu0 %v936
    %1157 = vmatprep.subr.mxu0 0.0
    %1158 = vmatpush1.msra.mxu0 %v937
    %1159 = vmatprep.subr.mxu0 0.0
    %1160 = vmatpush1.msra.mxu0 %v938
    %1161 = vmatprep.subr.mxu0 0.0
    %1162 = vmatpush1.msra.mxu0 %v939
    %1163 = vmatprep.subr.mxu0 0.0
    %1164 = vmatpush1.msra.mxu0 %v940
    %1165 = vmatprep.subr.mxu0 0.0
    %1166 = vmatpush1.msra.mxu0 %v941
    %1167 = vmatprep.subr.mxu0 0.0
    %1168 = vmatpush1.msra.mxu0 %v942
    %1169 = vmatprep.subr.mxu0 0.0
    %1170 = vmatpush1.msra.mxu0 %v943
    %1171 = vmatprep.subr.mxu0 0.0
    %1172 = vmatpush1.msra.mxu0 %v944
    %1173 = vmatprep.subr.mxu0 0.0
    %1174 = vmatpush1.msra.mxu0 %v945
    %1175 = vmatprep.subr.mxu0 0.0
    %1176 = vmatpush1.msra.mxu0 %v946
    %1177 = vmatprep.subr.mxu0 0.0
    %1178 = vmatpush1.msra.mxu0 %v947
    %1179 = vmatprep.subr.mxu0 0.0
    %1180 = vmatpush1.msra.mxu0 %v948
    %1181 = vmatprep.subr.mxu0 0.0
    %1182 = vmatpush1.msra.mxu0 %v949
    %1183 = vmatprep.subr.mxu0 0.0
    %1184 = vmatpush1.msra.mxu0 %v950
    %1185 = vmatprep.subr.mxu0 0.0
    %1186 = vmatpush1.msra.mxu0 %v951
    %1187 = vmatprep.subr.mxu0 0.0
    %1188 = vmatpush1.msra.mxu0 %v952
    %1189 = vmatprep.subr.mxu0 0.0
    %1190 = vmatpush1.msra.mxu0 %v953
    %1191 = vmatprep.subr.mxu0 0.0
    %1192 = vmatpush1.msra.mxu0 %v954
    %1193 = vmatprep.subr.mxu0 0.0
    %1194 = vmatpush1.msra.mxu0 %v955
    %1195 = vmatprep.subr.mxu0 0.0
    %1196 = vmatpush1.msra.mxu0 %v956
    %1197 = vmatprep.subr.mxu0 0.0
    %1198 = vmatpush1.msra.mxu0 %v957
    %1199 = vmatprep.subr.mxu0 0.0
    %1200 = vmatpush1.msra.mxu0 %v958
    %1201 = vmatprep.mubr.f32.mxu0 %v848
    %1202 = vmatmul.mubr.f32.gmra.mrb[0].mxu0 %v845
    %v1203 = vpop.f32.mrb[0].mxu0
    %v1204 = vadd.f32 %v1129, %v1203
    %v1205 = vpop.f32.mrb[0].mxu0
    %1206 = vmatprep.mubr.f32.mxu0 %v852
    %1207 = vmatmul.mubr.f32.gmra.mrb[0].mxu0 %v850
    %v1208 = vpop.f32.mrb[0].mxu0
    %v1209 = vadd.f32 %v1134, %v1208
    %v1210 = vpop.f32.mrb[0].mxu0
    %1211 = vdwg.mxu0
    %1212 = vmatprep.subr.mxu0 0.0
    %1213 = vmatpush1.msra.mxu0 %v959
    %1214 = vmatprep.subr.mxu0 0.0
    %1215 = vmatpush1.msra.mxu0 %v960
    %1216 = vmatprep.subr.mxu0 0.0
    %1217 = vmatpush1.msra.mxu0 %v961
    %1218 = vmatprep.subr.mxu0 0.0
    %1219 = vmatpush1.msra.mxu0 %v962
    %1220 = vmatprep.subr.mxu0 0.0
    %1221 = vmatpush1.msra.mxu0 %v963
    %1222 = vmatprep.subr.mxu0 0.0
    %1223 = vmatpush1.msra.mxu0 %v964
    %1224 = vmatprep.subr.mxu0 0.0
    %1225 = vmatpush1.msra.mxu0 %v965
    %1226 = vmatprep.subr.mxu0 0.0
    %1227 = vmatpush1.msra.mxu0 %v966
    %1228 = vmatprep.subr.mxu0 0.0
    %1229 = vmatpush1.msra.mxu0 %v967
    %1230 = vmatprep.subr.mxu0 0.0
    %1231 = vmatpush1.msra.mxu0 %v968
    %1232 = vmatprep.subr.mxu0 0.0
    %1233 = vmatpush1.msra.mxu0 %v969
    %1234 = vmatprep.subr.mxu0 0.0
    %1235 = vmatpush1.msra.mxu0 %v970
    %1236 = vmatprep.subr.mxu0 0.0
    %1237 = vmatpush1.msra.mxu0 %v971
    %1238 = vmatprep.subr.mxu0 0.0
    %1239 = vmatpush1.msra.mxu0 %v972
    %1240 = vmatprep.subr.mxu0 0.0
    %1241 = vmatpush1.msra.mxu0 %v973
    %1242 = vmatprep.subr.mxu0 0.0
    %1243 = vmatpush1.msra.mxu0 %v974
    %1244 = vmatprep.subr.mxu0 0.0
    %1245 = vmatpush1.msra.mxu0 %v975
    %1246 = vmatprep.subr.mxu0 0.0
    %1247 = vmatpush1.msra.mxu0 %v976
    %1248 = vmatprep.subr.mxu0 0.0
    %1249 = vmatpush1.msra.mxu0 %v977
    %1250 = vmatprep.subr.mxu0 0.0
    %1251 = vmatpush1.msra.mxu0 %v978
    %1252 = vmatprep.subr.mxu0 0.0
    %1253 = vmatpush1.msra.mxu0 %v979
    %1254 = vmatprep.subr.mxu0 0.0
    %1255 = vmatpush1.msra.mxu0 %v980
    %1256 = vmatprep.subr.mxu0 0.0
    %1257 = vmatpush1.msra.mxu0 %v981
    %1258 = vmatprep.subr.mxu0 0.0
    %1259 = vmatpush1.msra.mxu0 %v982
    %1260 = vmatprep.subr.mxu0 0.0
    %1261 = vmatpush1.msra.mxu0 %v983
    %1262 = vmatprep.subr.mxu0 0.0
    %1263 = vmatpush1.msra.mxu0 %v984
    %1264 = vmatprep.subr.mxu0 0.0
    %1265 = vmatpush1.msra.mxu0 %v985
    %1266 = vmatprep.subr.mxu0 0.0
    %1267 = vmatpush1.msra.mxu0 %v986
    %1268 = vmatprep.subr.mxu0 0.0
    %1269 = vmatpush1.msra.mxu0 %v987
    %1270 = vmatprep.subr.mxu0 0.0
    %1271 = vmatpush1.msra.mxu0 %v988
    %1272 = vmatprep.subr.mxu0 0.0
    %1273 = vmatpush1.msra.mxu0 %v989
    %1274 = vmatprep.subr.mxu0 0.0
    %1275 = vmatpush1.msra.mxu0 %v990
    %1276 = vmatprep.mubr.f32.mxu0 %v867
    %1277 = vmatmul.mubr.f32.gmra.mrb[0].mxu0 %v864
    %v1278 = vpop.f32.mrb[0].mxu0
    %v1279 = vadd.f32 %v1204, %v1278
    %v1280 = vpop.f32.mrb[0].mxu0
    %1281 = vmatprep.mubr.f32.mxu0 %v871
    %1282 = vmatmul.mubr.f32.gmra.mrb[0].mxu0 %v869
    %v1283 = vpop.f32.mrb[0].mxu0
    %v1284 = vadd.f32 %v1209, %v1283
    %v1285 = vpop.f32.mrb[0].mxu0
    %1286 = vdwg.mxu0
    %1287 = vmatprep.subr.mxu0 0.0
    %1288 = vmatpush1.msra.mxu0 %v991
    %1289 = vmatprep.subr.mxu0 0.0
    %1290 = vmatpush1.msra.mxu0 %v992
    %1291 = vmatprep.subr.mxu0 0.0
    %1292 = vmatpush1.msra.mxu0 %v993
    %1293 = vmatprep.subr.mxu0 0.0
    %1294 = vmatpush1.msra.mxu0 %v994
    %1295 = vmatprep.subr.mxu0 0.0
    %1296 = vmatpush1.msra.mxu0 %v995
    %1297 = vmatprep.subr.mxu0 0.0
    %1298 = vmatpush1.msra.mxu0 %v996
    %1299 = vmatprep.subr.mxu0 0.0
    %1300 = vmatpush1.msra.mxu0 %v997
    %1301 = vmatprep.subr.mxu0 0.0
    %1302 = vmatpush1.msra.mxu0 %v998
    %1303 = vmatprep.subr.mxu0 0.0
    %1304 = vmatpush1.msra.mxu0 %v999
    %1305 = vmatprep.subr.mxu0 0.0
    %1306 = vmatpush1.msra.mxu0 %v1000
    %1307 = vmatprep.subr.mxu0 0.0
    %1308 = vmatpush1.msra.mxu0 %v1001
    %1309 = vmatprep.subr.mxu0 0.0
    %1310 = vmatpush1.msra.mxu0 %v1002
    %1311 = vmatprep.subr.mxu0 0.0
    %1312 = vmatpush1.msra.mxu0 %v1003
    %1313 = vmatprep.subr.mxu0 0.0
    %1314 = vmatpush1.msra.mxu0 %v1004
    %1315 = vmatprep.subr.mxu0 0.0
    %1316 = vmatpush1.msra.mxu0 %v1005
    %1317 = vmatprep.subr.mxu0 0.0
    %1318 = vmatpush1.msra.mxu0 %v1006
    %1319 = vmatprep.subr.mxu0 0.0
    %1320 = vmatpush1.msra.mxu0 %v1007
    %1321 = vmatprep.subr.mxu0 0.0
    %1322 = vmatpush1.msra.mxu0 %v1008
    %1323 = vmatprep.subr.mxu0 0.0
    %1324 = vmatpush1.msra.mxu0 %v1009
    %1325 = vmatprep.subr.mxu0 0.0
    %1326 = vmatpush1.msra.mxu0 %v1010
    %1327 = vmatprep.subr.mxu0 0.0
    %1328 = vmatpush1.msra.mxu0 %v1011
    %1329 = vmatprep.subr.mxu0 0.0
    %1330 = vmatpush1.msra.mxu0 %v1012
    %1331 = vmatprep.subr.mxu0 0.0
    %1332 = vmatpush1.msra.mxu0 %v1013
    %1333 = vmatprep.subr.mxu0 0.0
    %1334 = vmatpush1.msra.mxu0 %v1014
    %1335 = vmatprep.subr.mxu0 0.0
    %1336 = vmatpush1.msra.mxu0 %v1015
    %1337 = vmatprep.subr.mxu0 0.0
    %1338 = vmatpush1.msra.mxu0 %v1016
    %1339 = vmatprep.subr.mxu0 0.0
    %1340 = vmatpush1.msra.mxu0 %v1017
    %1341 = vmatprep.subr.mxu0 0.0
    %1342 = vmatpush1.msra.mxu0 %v1018
    %1343 = vmatprep.subr.mxu0 0.0
    %1344 = vmatpush1.msra.mxu0 %v1019
    %1345 = vmatprep.subr.mxu0 0.0
    %1346 = vmatpush1.msra.mxu0 %v1020
    %1347 = vmatprep.subr.mxu0 0.0
    %1348 = vmatpush1.msra.mxu0 %v1021
    %1349 = vmatprep.subr.mxu0 0.0
    %1350 = vmatpush1.msra.mxu0 %v1022
    %1351 = vmatprep.mubr.f32.mxu0 %v886
    %1352 = vmatmul.mubr.f32.gmra.mrb[0].mxu0 %v883
    %v1353 = vpop.f32.mrb[0].mxu0
    %v1354 = vadd.f32 %v1279, %v1353
    %v1355 = vpop.f32.mrb[0].mxu0
    %1356 = vmatprep.mubr.f32.mxu0 %v890
    %1357 = vmatmul.mubr.f32.gmra.mrb[0].mxu0 %v888
    %v1358 = vpop.f32.mrb[0].mxu0
    %v1359 = vadd.f32 %v1284, %v1358
    %v1360 = vpop.f32.mrb[0].mxu0
    %1361 = vdwg.mxu0
    %1362 = vmatprep.subr.mxu0 0.0
    %1363 = vmatpush1.msra.mxu0 %v1023
    %1364 = vmatprep.subr.mxu0 0.0
    %1365 = vmatpush1.msra.mxu0 %v1024
    %1366 = vmatprep.subr.mxu0 0.0
    %1367 = vmatpush1.msra.mxu0 %v1025
    %1368 = vmatprep.subr.mxu0 0.0
    %1369 = vmatpush1.msra.mxu0 %v1026
    %1370 = vmatprep.subr.mxu0 0.0
    %1371 = vmatpush1.msra.mxu0 %v1027
    %1372 = vmatprep.subr.mxu0 0.0
    %1373 = vmatpush1.msra.mxu0 %v1028
    %1374 = vmatprep.subr.mxu0 0.0
    %1375 = vmatpush1.msra.mxu0 %v1029
    %1376 = vmatprep.subr.mxu0 0.0
    %1377 = vmatpush1.msra.mxu0 %v1030
    %1378 = vmatprep.subr.mxu0 0.0
    %1379 = vmatpush1.msra.mxu0 %v1031
    %1380 = vmatprep.subr.mxu0 0.0
    %1381 = vmatpush1.msra.mxu0 %v1032
    %1382 = vmatprep.subr.mxu0 0.0
    %1383 = vmatpush1.msra.mxu0 %v1033
    %1384 = vmatprep.subr.mxu0 0.0
    %1385 = vmatpush1.msra.mxu0 %v1034
    %1386 = vmatprep.subr.mxu0 0.0
    %1387 = vmatpush1.msra.mxu0 %v1035
    %1388 = vmatprep.subr.mxu0 0.0
    %1389 = vmatpush1.msra.mxu0 %v1036
    %1390 = vmatprep.subr.mxu0 0.0
    %1391 = vmatpush1.msra.mxu0 %v1037
    %1392 = vmatprep.subr.mxu0 0.0
    %1393 = vmatpush1.msra.mxu0 %v1038
    %1394 = vmatprep.subr.mxu0 0.0
    %1395 = vmatpush1.msra.mxu0 %v1039
    %1396 = vmatprep.subr.mxu0 0.0
    %1397 = vmatpush1.msra.mxu0 %v1040
    %1398 = vmatprep.subr.mxu0 0.0
    %1399 = vmatpush1.msra.mxu0 %v1041
    %1400 = vmatprep.subr.mxu0 0.0
    %1401 = vmatpush1.msra.mxu0 %v1042
    %1402 = vmatprep.subr.mxu0 0.0
    %1403 = vmatpush1.msra.mxu0 %v1043
    %1404 = vmatprep.subr.mxu0 0.0
    %1405 = vmatpush1.msra.mxu0 %v1044
    %1406 = vmatprep.subr.mxu0 0.0
    %1407 = vmatpush1.msra.mxu0 %v1045
    %1408 = vmatprep.subr.mxu0 0.0
    %1409 = vmatpush1.msra.mxu0 %v1046
    %1410 = vmatprep.subr.mxu0 0.0
    %1411 = vmatpush1.msra.mxu0 %v1047
    %1412 = vmatprep.subr.mxu0 0.0
    %1413 = vmatpush1.msra.mxu0 %v1048
    %1414 = vmatprep.subr.mxu0 0.0
    %1415 = vmatpush1.msra.mxu0 %v1049
    %1416 = vmatprep.subr.mxu0 0.0
    %1417 = vmatpush1.msra.mxu0 %v1050
    %1418 = vmatprep.subr.mxu0 0.0
    %1419 = vmatpush1.msra.mxu0 %v1051
    %1420 = vmatprep.subr.mxu0 0.0
    %1421 = vmatpush1.msra.mxu0 %v1052
    %1422 = vmatprep.subr.mxu0 0.0
    %1423 = vmatpush1.msra.mxu0 %v1053
    %1424 = vmatprep.subr.mxu0 0.0
    %1425 = vmatpush1.msra.mxu0 %v1054
    %1426 = vmatprep.mubr.f32.mxu0 %v823
    %1427 = vmatmul.mubr.f32.gmra.mrb[0].mxu0 %v822
    %v1428 = vpop.f32.mrb[0].mxu0
    %v1429 = vadd.f32 %v1354, %v1428
    %v1430 = vpop.f32.mrb[0].mxu0
    %1431 = vmatprep.mubr.f32.mxu0 %v835
    %1432 = vmatmul.mubr.f32.gmra.mrb[0].mxu0 %v834
    %v1433 = vpop.f32.mrb[0].mxu0
    %v1434 = vadd.f32 %v1359, %v1433
    %v1435 = vpop.f32.mrb[0].mxu0
    %1436 = vdwg.mxu0
    %v1437 = vmax.f32 %v1429, 0.0
    %v1438 = vmax.f32 %v1434, 0.0
    %1439 = vst [vmem:[#allocation4] sm:$0xff] %v1437
    %1440 = vst [vmem:[#allocation4 + $0x8] sm:$0xff] %v1438
    %v1441 = vld [vmem:[#allocation4] sm:$0x3]
    %v1442 = vpack.c.bf16 %v1441, %v1441
    %v1443 = vld [vmem:[#allocation16] sm:$0xff]
    %v1444 = vld [vmem:[#allocation16 + $0x8] sm:$0xff]
    %v1445 = vld [vmem:[#allocation16 + $0x10] sm:$0xff]
    %v1446 = vld [vmem:[#allocation16 + $0x18] sm:$0xff]
    %v1447 = vld [vmem:[#allocation16 + $0x20] sm:$0xff]
    %v1448 = vld [vmem:[#allocation16 + $0x28] sm:$0xff]
    %v1449 = vld [vmem:[#allocation16 + $0x30] sm:$0xff]
    %v1450 = vld [vmem:[#allocation16 + $0x38] sm:$0xff]
    %v1451 = vld [vmem:[#allocation16 + $0x40] sm:$0xff]
    %v1452 = vld [vmem:[#allocation16 + $0x48] sm:$0xff]
    %v1453 = vld [vmem:[#allocation16 + $0x50] sm:$0xff]
    %v1454 = vld [vmem:[#allocation16 + $0x58] sm:$0xff]
    %v1455 = vld [vmem:[#allocation16 + $0x60] sm:$0xff]
    %v1456 = vld [vmem:[#allocation16 + $0x68] sm:$0xff]
    %v1457 = vld [vmem:[#allocation16 + $0x70] sm:$0xff]
    %v1458 = vld [vmem:[#allocation16 + $0x78] sm:$0xff]
    %v1459 = vld [vmem:[#allocation16 + $0x80] sm:$0xff]
    %v1460 = vld [vmem:[#allocation16 + $0x88] sm:$0xff]
    %v1461 = vld [vmem:[#allocation16 + $0x90] sm:$0xff]
    %v1462 = vld [vmem:[#allocation16 + $0x98] sm:$0xff]
    %v1463 = vld [vmem:[#allocation16 + $0xa0] sm:$0xff]
    %v1464 = vld [vmem:[#allocation16 + $0xa8] sm:$0xff]
    %v1465 = vld [vmem:[#allocation16 + $0xb0] sm:$0xff]
    %v1466 = vld [vmem:[#allocation16 + $0xb8] sm:$0xff]
    %v1467 = vld [vmem:[#allocation16 + $0xc0] sm:$0xff]
    %v1468 = vld [vmem:[#allocation16 + $0xc8] sm:$0xff]
    %v1469 = vld [vmem:[#allocation16 + $0xd0] sm:$0xff]
    %v1470 = vld [vmem:[#allocation16 + $0xd8] sm:$0xff]
    %v1471 = vld [vmem:[#allocation16 + $0xe0] sm:$0xff]
    %v1472 = vld [vmem:[#allocation16 + $0xe8] sm:$0xff]
    %v1473 = vld [vmem:[#allocation16 + $0xf0] sm:$0xff]
    %v1474 = vld [vmem:[#allocation16 + $0xf8] sm:$0xff]
    %v1475 = vld [vmem:[#allocation16 + $0x100] sm:$0xff]
    %v1476 = vld [vmem:[#allocation16 + $0x108] sm:$0xff]
    %v1477 = vld [vmem:[#allocation16 + $0x110] sm:$0xff]
    %v1478 = vld [vmem:[#allocation16 + $0x118] sm:$0xff]
    %v1479 = vld [vmem:[#allocation16 + $0x120] sm:$0xff]
    %v1480 = vld [vmem:[#allocation16 + $0x128] sm:$0xff]
    %v1481 = vld [vmem:[#allocation16 + $0x130] sm:$0xff]
    %v1482 = vld [vmem:[#allocation16 + $0x138] sm:$0xff]
    %v1483 = vld [vmem:[#allocation16 + $0x140] sm:$0xff]
    %v1484 = vld [vmem:[#allocation16 + $0x148] sm:$0xff]
    %v1485 = vld [vmem:[#allocation16 + $0x150] sm:$0xff]
    %v1486 = vld [vmem:[#allocation16 + $0x158] sm:$0xff]
    %v1487 = vld [vmem:[#allocation16 + $0x160] sm:$0xff]
    %v1488 = vld [vmem:[#allocation16 + $0x168] sm:$0xff]
    %v1489 = vld [vmem:[#allocation16 + $0x170] sm:$0xff]
    %v1490 = vld [vmem:[#allocation16 + $0x178] sm:$0xff]
    %v1491 = vld [vmem:[#allocation16 + $0x180] sm:$0xff]
    %v1492 = vld [vmem:[#allocation16 + $0x188] sm:$0xff]
    %v1493 = vld [vmem:[#allocation16 + $0x190] sm:$0xff]
    %v1494 = vld [vmem:[#allocation16 + $0x198] sm:$0xff]
    %v1495 = vld [vmem:[#allocation16 + $0x1a0] sm:$0xff]
    %v1496 = vld [vmem:[#allocation16 + $0x1a8] sm:$0xff]
    %v1497 = vld [vmem:[#allocation16 + $0x1b0] sm:$0xff]
    %v1498 = vld [vmem:[#allocation16 + $0x1b8] sm:$0xff]
    %v1499 = vld [vmem:[#allocation16 + $0x1c0] sm:$0xff]
    %v1500 = vld [vmem:[#allocation16 + $0x1c8] sm:$0xff]
    %v1501 = vld [vmem:[#allocation16 + $0x1d0] sm:$0xff]
    %v1502 = vld [vmem:[#allocation16 + $0x1d8] sm:$0xff]
    %v1503 = vld [vmem:[#allocation16 + $0x1e0] sm:$0xff]
    %v1504 = vld [vmem:[#allocation16 + $0x1e8] sm:$0xff]
    %v1505 = vld [vmem:[#allocation16 + $0x1f0] sm:$0xff]
    %v1506 = vld [vmem:[#allocation16 + $0x1f8] sm:$0xff]
    %v1507 = vld [vmem:[#allocation16 + $0x200] sm:$0xff]
    %v1508 = vld [vmem:[#allocation16 + $0x208] sm:$0xff]
    %v1509 = vld [vmem:[#allocation16 + $0x210] sm:$0xff]
    %v1510 = vld [vmem:[#allocation16 + $0x218] sm:$0xff]
    %v1511 = vld [vmem:[#allocation16 + $0x220] sm:$0xff]
    %v1512 = vld [vmem:[#allocation16 + $0x228] sm:$0xff]
    %v1513 = vld [vmem:[#allocation16 + $0x230] sm:$0xff]
    %v1514 = vld [vmem:[#allocation16 + $0x238] sm:$0xff]
    %v1515 = vld [vmem:[#allocation16 + $0x240] sm:$0xff]
    %v1516 = vld [vmem:[#allocation16 + $0x248] sm:$0xff]
    %v1517 = vld [vmem:[#allocation16 + $0x250] sm:$0xff]
    %v1518 = vld [vmem:[#allocation16 + $0x258] sm:$0xff]
    %v1519 = vld [vmem:[#allocation16 + $0x260] sm:$0xff]
    %v1520 = vld [vmem:[#allocation16 + $0x268] sm:$0xff]
    %v1521 = vld [vmem:[#allocation16 + $0x270] sm:$0xff]
    %v1522 = vld [vmem:[#allocation16 + $0x278] sm:$0xff]
    %v1523 = vld [vmem:[#allocation16 + $0x280] sm:$0xff]
    %v1524 = vld [vmem:[#allocation16 + $0x288] sm:$0xff]
    %v1525 = vld [vmem:[#allocation16 + $0x290] sm:$0xff]
    %v1526 = vld [vmem:[#allocation16 + $0x298] sm:$0xff]
    %v1527 = vld [vmem:[#allocation16 + $0x2a0] sm:$0xff]
    %v1528 = vld [vmem:[#allocation16 + $0x2a8] sm:$0xff]
    %v1529 = vld [vmem:[#allocation16 + $0x2b0] sm:$0xff]
    %v1530 = vld [vmem:[#allocation16 + $0x2b8] sm:$0xff]
    %v1531 = vld [vmem:[#allocation16 + $0x2c0] sm:$0xff]
    %v1532 = vld [vmem:[#allocation16 + $0x2c8] sm:$0xff]
    %v1533 = vld [vmem:[#allocation16 + $0x2d0] sm:$0xff]
    %v1534 = vld [vmem:[#allocation16 + $0x2d8] sm:$0xff]
    %v1535 = vld [vmem:[#allocation16 + $0x2e0] sm:$0xff]
    %v1536 = vld [vmem:[#allocation16 + $0x2e8] sm:$0xff]
    %v1537 = vld [vmem:[#allocation16 + $0x2f0] sm:$0xff]
    %v1538 = vld [vmem:[#allocation16 + $0x2f8] sm:$0xff]
    %v1539 = vld [vmem:[#allocation16 + $0x300] sm:$0xff]
    %v1540 = vld [vmem:[#allocation16 + $0x308] sm:$0xff]
    %v1541 = vld [vmem:[#allocation16 + $0x310] sm:$0xff]
    %v1542 = vld [vmem:[#allocation16 + $0x318] sm:$0xff]
    %v1543 = vld [vmem:[#allocation16 + $0x320] sm:$0xff]
    %v1544 = vld [vmem:[#allocation16 + $0x328] sm:$0xff]
    %v1545 = vld [vmem:[#allocation16 + $0x330] sm:$0xff]
    %v1546 = vld [vmem:[#allocation16 + $0x338] sm:$0xff]
    %v1547 = vld [vmem:[#allocation16 + $0x340] sm:$0xff]
    %v1548 = vld [vmem:[#allocation16 + $0x348] sm:$0xff]
    %v1549 = vld [vmem:[#allocation16 + $0x350] sm:$0xff]
    %v1550 = vld [vmem:[#allocation16 + $0x358] sm:$0xff]
    %v1551 = vld [vmem:[#allocation16 + $0x360] sm:$0xff]
    %v1552 = vld [vmem:[#allocation16 + $0x368] sm:$0xff]
    %v1553 = vld [vmem:[#allocation16 + $0x370] sm:$0xff]
    %v1554 = vld [vmem:[#allocation16 + $0x378] sm:$0xff]
    %v1555 = vld [vmem:[#allocation16 + $0x380] sm:$0xff]
    %v1556 = vld [vmem:[#allocation16 + $0x388] sm:$0xff]
    %v1557 = vld [vmem:[#allocation16 + $0x390] sm:$0xff]
    %v1558 = vld [vmem:[#allocation16 + $0x398] sm:$0xff]
    %v1559 = vld [vmem:[#allocation16 + $0x3a0] sm:$0xff]
    %v1560 = vld [vmem:[#allocation16 + $0x3a8] sm:$0xff]
    %v1561 = vld [vmem:[#allocation16 + $0x3b0] sm:$0xff]
    %v1562 = vld [vmem:[#allocation16 + $0x3b8] sm:$0xff]
    %v1563 = vld [vmem:[#allocation16 + $0x3c0] sm:$0xff]
    %v1564 = vld [vmem:[#allocation16 + $0x3c8] sm:$0xff]
    %v1565 = vld [vmem:[#allocation16 + $0x3d0] sm:$0xff]
    %v1566 = vld [vmem:[#allocation16 + $0x3d8] sm:$0xff]
    %v1567 = vld [vmem:[#allocation16 + $0x3e0] sm:$0xff]
    %v1568 = vld [vmem:[#allocation16 + $0x3e8] sm:$0xff]
    %v1569 = vld [vmem:[#allocation16 + $0x3f0] sm:$0xff]
    %v1570 = vld [vmem:[#allocation16 + $0x3f8] sm:$0xff]
    %v1571 = vld [vmem:[#allocation4 + $0x2] sm:$0x3]
    %v1572 = vpack.c.bf16 %v1571, %v1571
    %s1573 = scalar_lea.vmem [#allocation16], 1024
    %v1574 = vld [vmem:[%s1573] sm:$0xff]
    %v1575 = vld [vmem:[%s1573 + $0x8] sm:$0xff]
    %v1576 = vld [vmem:[%s1573 + $0x10] sm:$0xff]
    %v1577 = vld [vmem:[%s1573 + $0x18] sm:$0xff]
    %v1578 = vld [vmem:[%s1573 + $0x20] sm:$0xff]
    %v1579 = vld [vmem:[%s1573 + $0x28] sm:$0xff]
    %v1580 = vld [vmem:[%s1573 + $0x30] sm:$0xff]
    %v1581 = vld [vmem:[%s1573 + $0x38] sm:$0xff]
    %v1582 = vld [vmem:[%s1573 + $0x40] sm:$0xff]
    %v1583 = vld [vmem:[%s1573 + $0x48] sm:$0xff]
    %v1584 = vld [vmem:[%s1573 + $0x50] sm:$0xff]
    %v1585 = vld [vmem:[%s1573 + $0x58] sm:$0xff]
    %v1586 = vld [vmem:[%s1573 + $0x60] sm:$0xff]
    %v1587 = vld [vmem:[%s1573 + $0x68] sm:$0xff]
    %v1588 = vld [vmem:[%s1573 + $0x70] sm:$0xff]
    %v1589 = vld [vmem:[%s1573 + $0x78] sm:$0xff]
    %v1590 = vld [vmem:[%s1573 + $0x80] sm:$0xff]
    %v1591 = vld [vmem:[%s1573 + $0x88] sm:$0xff]
    %v1592 = vld [vmem:[%s1573 + $0x90] sm:$0xff]
    %v1593 = vld [vmem:[%s1573 + $0x98] sm:$0xff]
    %v1594 = vld [vmem:[%s1573 + $0xa0] sm:$0xff]
    %v1595 = vld [vmem:[%s1573 + $0xa8] sm:$0xff]
    %v1596 = vld [vmem:[%s1573 + $0xb0] sm:$0xff]
    %v1597 = vld [vmem:[%s1573 + $0xb8] sm:$0xff]
    %v1598 = vld [vmem:[%s1573 + $0xc0] sm:$0xff]
    %v1599 = vld [vmem:[%s1573 + $0xc8] sm:$0xff]
    %v1600 = vld [vmem:[%s1573 + $0xd0] sm:$0xff]
    %v1601 = vld [vmem:[%s1573 + $0xd8] sm:$0xff]
    %v1602 = vld [vmem:[%s1573 + $0xe0] sm:$0xff]
    %v1603 = vld [vmem:[%s1573 + $0xe8] sm:$0xff]
    %v1604 = vld [vmem:[%s1573 + $0xf0] sm:$0xff]
    %v1605 = vld [vmem:[%s1573 + $0xf8] sm:$0xff]
    %v1606 = vld [vmem:[%s1573 + $0x100] sm:$0xff]
    %v1607 = vld [vmem:[%s1573 + $0x108] sm:$0xff]
    %v1608 = vld [vmem:[%s1573 + $0x110] sm:$0xff]
    %v1609 = vld [vmem:[%s1573 + $0x118] sm:$0xff]
    %v1610 = vld [vmem:[%s1573 + $0x120] sm:$0xff]
    %v1611 = vld [vmem:[%s1573 + $0x128] sm:$0xff]
    %v1612 = vld [vmem:[%s1573 + $0x130] sm:$0xff]
    %v1613 = vld [vmem:[%s1573 + $0x138] sm:$0xff]
    %v1614 = vld [vmem:[%s1573 + $0x140] sm:$0xff]
    %v1615 = vld [vmem:[%s1573 + $0x148] sm:$0xff]
    %v1616 = vld [vmem:[%s1573 + $0x150] sm:$0xff]
    %v1617 = vld [vmem:[%s1573 + $0x158] sm:$0xff]
    %v1618 = vld [vmem:[%s1573 + $0x160] sm:$0xff]
    %v1619 = vld [vmem:[%s1573 + $0x168] sm:$0xff]
    %v1620 = vld [vmem:[%s1573 + $0x170] sm:$0xff]
    %v1621 = vld [vmem:[%s1573 + $0x178] sm:$0xff]
    %v1622 = vld [vmem:[%s1573 + $0x180] sm:$0xff]
    %v1623 = vld [vmem:[%s1573 + $0x188] sm:$0xff]
    %v1624 = vld [vmem:[%s1573 + $0x190] sm:$0xff]
    %v1625 = vld [vmem:[%s1573 + $0x198] sm:$0xff]
    %v1626 = vld [vmem:[%s1573 + $0x1a0] sm:$0xff]
    %v1627 = vld [vmem:[%s1573 + $0x1a8] sm:$0xff]
    %v1628 = vld [vmem:[%s1573 + $0x1b0] sm:$0xff]
    %v1629 = vld [vmem:[%s1573 + $0x1b8] sm:$0xff]
    %v1630 = vld [vmem:[%s1573 + $0x1c0] sm:$0xff]
    %v1631 = vld [vmem:[%s1573 + $0x1c8] sm:$0xff]
    %v1632 = vld [vmem:[%s1573 + $0x1d0] sm:$0xff]
    %v1633 = vld [vmem:[%s1573 + $0x1d8] sm:$0xff]
    %v1634 = vld [vmem:[%s1573 + $0x1e0] sm:$0xff]
    %v1635 = vld [vmem:[%s1573 + $0x1e8] sm:$0xff]
    %v1636 = vld [vmem:[%s1573 + $0x1f0] sm:$0xff]
    %v1637 = vld [vmem:[%s1573 + $0x1f8] sm:$0xff]
    %v1638 = vld [vmem:[%s1573 + $0x200] sm:$0xff]
    %v1639 = vld [vmem:[%s1573 + $0x208] sm:$0xff]
    %v1640 = vld [vmem:[%s1573 + $0x210] sm:$0xff]
    %v1641 = vld [vmem:[%s1573 + $0x218] sm:$0xff]
    %v1642 = vld [vmem:[%s1573 + $0x220] sm:$0xff]
    %v1643 = vld [vmem:[%s1573 + $0x228] sm:$0xff]
    %v1644 = vld [vmem:[%s1573 + $0x230] sm:$0xff]
    %v1645 = vld [vmem:[%s1573 + $0x238] sm:$0xff]
    %v1646 = vld [vmem:[%s1573 + $0x240] sm:$0xff]
    %v1647 = vld [vmem:[%s1573 + $0x248] sm:$0xff]
    %v1648 = vld [vmem:[%s1573 + $0x250] sm:$0xff]
    %v1649 = vld [vmem:[%s1573 + $0x258] sm:$0xff]
    %v1650 = vld [vmem:[%s1573 + $0x260] sm:$0xff]
    %v1651 = vld [vmem:[%s1573 + $0x268] sm:$0xff]
    %v1652 = vld [vmem:[%s1573 + $0x270] sm:$0xff]
    %v1653 = vld [vmem:[%s1573 + $0x278] sm:$0xff]
    %v1654 = vld [vmem:[%s1573 + $0x280] sm:$0xff]
    %v1655 = vld [vmem:[%s1573 + $0x288] sm:$0xff]
    %v1656 = vld [vmem:[%s1573 + $0x290] sm:$0xff]
    %v1657 = vld [vmem:[%s1573 + $0x298] sm:$0xff]
    %v1658 = vld [vmem:[%s1573 + $0x2a0] sm:$0xff]
    %v1659 = vld [vmem:[%s1573 + $0x2a8] sm:$0xff]
    %v1660 = vld [vmem:[%s1573 + $0x2b0] sm:$0xff]
    %v1661 = vld [vmem:[%s1573 + $0x2b8] sm:$0xff]
    %v1662 = vld [vmem:[%s1573 + $0x2c0] sm:$0xff]
    %v1663 = vld [vmem:[%s1573 + $0x2c8] sm:$0xff]
    %v1664 = vld [vmem:[%s1573 + $0x2d0] sm:$0xff]
    %v1665 = vld [vmem:[%s1573 + $0x2d8] sm:$0xff]
    %v1666 = vld [vmem:[%s1573 + $0x2e0] sm:$0xff]
    %v1667 = vld [vmem:[%s1573 + $0x2e8] sm:$0xff]
    %v1668 = vld [vmem:[%s1573 + $0x2f0] sm:$0xff]
    %v1669 = vld [vmem:[%s1573 + $0x2f8] sm:$0xff]
    %v1670 = vld [vmem:[%s1573 + $0x300] sm:$0xff]
    %v1671 = vld [vmem:[%s1573 + $0x308] sm:$0xff]
    %v1672 = vld [vmem:[%s1573 + $0x310] sm:$0xff]
    %v1673 = vld [vmem:[%s1573 + $0x318] sm:$0xff]
    %v1674 = vld [vmem:[%s1573 + $0x320] sm:$0xff]
    %v1675 = vld [vmem:[%s1573 + $0x328] sm:$0xff]
    %v1676 = vld [vmem:[%s1573 + $0x330] sm:$0xff]
    %v1677 = vld [vmem:[%s1573 + $0x338] sm:$0xff]
    %v1678 = vld [vmem:[%s1573 + $0x340] sm:$0xff]
    %v1679 = vld [vmem:[%s1573 + $0x348] sm:$0xff]
    %v1680 = vld [vmem:[%s1573 + $0x350] sm:$0xff]
    %v1681 = vld [vmem:[%s1573 + $0x358] sm:$0xff]
    %v1682 = vld [vmem:[%s1573 + $0x360] sm:$0xff]
    %v1683 = vld [vmem:[%s1573 + $0x368] sm:$0xff]
    %v1684 = vld [vmem:[%s1573 + $0x370] sm:$0xff]
    %v1685 = vld [vmem:[%s1573 + $0x378] sm:$0xff]
    %v1686 = vld [vmem:[%s1573 + $0x380] sm:$0xff]
    %v1687 = vld [vmem:[%s1573 + $0x388] sm:$0xff]
    %v1688 = vld [vmem:[%s1573 + $0x390] sm:$0xff]
    %v1689 = vld [vmem:[%s1573 + $0x398] sm:$0xff]
    %v1690 = vld [vmem:[%s1573 + $0x3a0] sm:$0xff]
    %v1691 = vld [vmem:[%s1573 + $0x3a8] sm:$0xff]
    %v1692 = vld [vmem:[%s1573 + $0x3b0] sm:$0xff]
    %v1693 = vld [vmem:[%s1573 + $0x3b8] sm:$0xff]
    %v1694 = vld [vmem:[%s1573 + $0x3c0] sm:$0xff]
    %v1695 = vld [vmem:[%s1573 + $0x3c8] sm:$0xff]
    %v1696 = vld [vmem:[%s1573 + $0x3d0] sm:$0xff]
    %v1697 = vld [vmem:[%s1573 + $0x3d8] sm:$0xff]
    %v1698 = vld [vmem:[%s1573 + $0x3e0] sm:$0xff]
    %v1699 = vld [vmem:[%s1573 + $0x3e8] sm:$0xff]
    %v1700 = vld [vmem:[%s1573 + $0x3f0] sm:$0xff]
    %v1701 = vld [vmem:[%s1573 + $0x3f8] sm:$0xff]
    %v1830 = vunpack.c.l.b16 %v1574
    %v1831 = vunpack.c.h.b16 %v1574
    %v1832 = vunpack.c.l.b16 %v1575
    %v1833 = vunpack.c.h.b16 %v1575
    %v1834 = vunpack.c.l.b16 %v1576
    %v1835 = vunpack.c.h.b16 %v1576
    %v1836 = vunpack.c.l.b16 %v1577
    %v1837 = vunpack.c.h.b16 %v1577
    %v1838 = vunpack.c.l.b16 %v1578
    %v1839 = vunpack.c.h.b16 %v1578
    %v1840 = vunpack.c.l.b16 %v1579
    %v1841 = vunpack.c.h.b16 %v1579
    %v1842 = vunpack.c.l.b16 %v1580
    %v1843 = vunpack.c.h.b16 %v1580
    %v1844 = vunpack.c.l.b16 %v1581
    %v1845 = vunpack.c.h.b16 %v1581
    %v1846 = vunpack.c.l.b16 %v1582
    %v1847 = vunpack.c.h.b16 %v1582
    %v1848 = vunpack.c.l.b16 %v1583
    %v1849 = vunpack.c.h.b16 %v1583
    %v1850 = vunpack.c.l.b16 %v1584
    %v1851 = vunpack.c.h.b16 %v1584
    %v1852 = vunpack.c.l.b16 %v1585
    %v1853 = vunpack.c.h.b16 %v1585
    %v1854 = vunpack.c.l.b16 %v1586
    %v1855 = vunpack.c.h.b16 %v1586
    %v1856 = vunpack.c.l.b16 %v1587
    %v1857 = vunpack.c.h.b16 %v1587
    %v1858 = vunpack.c.l.b16 %v1588
    %v1859 = vunpack.c.h.b16 %v1588
    %v1860 = vunpack.c.l.b16 %v1589
    %v1861 = vunpack.c.h.b16 %v1589
    %v1862 = vunpack.c.l.b16 %v1590
    %v1863 = vunpack.c.h.b16 %v1590
    %v1864 = vunpack.c.l.b16 %v1591
    %v1865 = vunpack.c.h.b16 %v1591
    %v1866 = vunpack.c.l.b16 %v1592
    %v1867 = vunpack.c.h.b16 %v1592
    %v1868 = vunpack.c.l.b16 %v1593
    %v1869 = vunpack.c.h.b16 %v1593
    %v1870 = vunpack.c.l.b16 %v1594
    %v1871 = vunpack.c.h.b16 %v1594
    %v1872 = vunpack.c.l.b16 %v1595
    %v1873 = vunpack.c.h.b16 %v1595
    %v1874 = vunpack.c.l.b16 %v1596
    %v1875 = vunpack.c.h.b16 %v1596
    %v1876 = vunpack.c.l.b16 %v1597
    %v1877 = vunpack.c.h.b16 %v1597
    %v1878 = vunpack.c.l.b16 %v1598
    %v1879 = vunpack.c.h.b16 %v1598
    %v1880 = vunpack.c.l.b16 %v1599
    %v1881 = vunpack.c.h.b16 %v1599
    %v1882 = vunpack.c.l.b16 %v1600
    %v1883 = vunpack.c.h.b16 %v1600
    %v1884 = vunpack.c.l.b16 %v1601
    %v1885 = vunpack.c.h.b16 %v1601
    %v1886 = vunpack.c.l.b16 %v1602
    %v1887 = vunpack.c.h.b16 %v1602
    %v1888 = vunpack.c.l.b16 %v1603
    %v1889 = vunpack.c.h.b16 %v1603
    %v1890 = vunpack.c.l.b16 %v1604
    %v1891 = vunpack.c.h.b16 %v1604
    %v1892 = vunpack.c.l.b16 %v1605
    %v1893 = vunpack.c.h.b16 %v1605
    %v1894 = vunpack.c.l.b16 %v1606
    %v1895 = vunpack.c.h.b16 %v1606
    %v1896 = vunpack.c.l.b16 %v1607
    %v1897 = vunpack.c.h.b16 %v1607
    %v1898 = vunpack.c.l.b16 %v1608
    %v1899 = vunpack.c.h.b16 %v1608
    %v1900 = vunpack.c.l.b16 %v1609
    %v1901 = vunpack.c.h.b16 %v1609
    %v1902 = vunpack.c.l.b16 %v1610
    %v1903 = vunpack.c.h.b16 %v1610
    %v1904 = vunpack.c.l.b16 %v1611
    %v1905 = vunpack.c.h.b16 %v1611
    %v1906 = vunpack.c.l.b16 %v1612
    %v1907 = vunpack.c.h.b16 %v1612
    %v1908 = vunpack.c.l.b16 %v1613
    %v1909 = vunpack.c.h.b16 %v1613
    %v1910 = vunpack.c.l.b16 %v1614
    %v1911 = vunpack.c.h.b16 %v1614
    %v1912 = vunpack.c.l.b16 %v1615
    %v1913 = vunpack.c.h.b16 %v1615
    %v1914 = vunpack.c.l.b16 %v1616
    %v1915 = vunpack.c.h.b16 %v1616
    %v1916 = vunpack.c.l.b16 %v1617
    %v1917 = vunpack.c.h.b16 %v1617
    %v1918 = vunpack.c.l.b16 %v1618
    %v1919 = vunpack.c.h.b16 %v1618
    %v1920 = vunpack.c.l.b16 %v1619
    %v1921 = vunpack.c.h.b16 %v1619
    %v1922 = vunpack.c.l.b16 %v1620
    %v1923 = vunpack.c.h.b16 %v1620
    %v1924 = vunpack.c.l.b16 %v1621
    %v1925 = vunpack.c.h.b16 %v1621
    %v1926 = vunpack.c.l.b16 %v1622
    %v1927 = vunpack.c.h.b16 %v1622
    %v1928 = vunpack.c.l.b16 %v1623
    %v1929 = vunpack.c.h.b16 %v1623
    %v1930 = vunpack.c.l.b16 %v1624
    %v1931 = vunpack.c.h.b16 %v1624
    %v1932 = vunpack.c.l.b16 %v1625
    %v1933 = vunpack.c.h.b16 %v1625
    %v1934 = vunpack.c.l.b16 %v1626
    %v1935 = vunpack.c.h.b16 %v1626
    %v1936 = vunpack.c.l.b16 %v1627
    %v1937 = vunpack.c.h.b16 %v1627
    %v1938 = vunpack.c.l.b16 %v1628
    %v1939 = vunpack.c.h.b16 %v1628
    %v1940 = vunpack.c.l.b16 %v1629
    %v1941 = vunpack.c.h.b16 %v1629
    %v1942 = vunpack.c.l.b16 %v1630
    %v1943 = vunpack.c.h.b16 %v1630
    %v1944 = vunpack.c.l.b16 %v1631
    %v1945 = vunpack.c.h.b16 %v1631
    %v1946 = vunpack.c.l.b16 %v1632
    %v1947 = vunpack.c.h.b16 %v1632
    %v1948 = vunpack.c.l.b16 %v1633
    %v1949 = vunpack.c.h.b16 %v1633
    %v1950 = vunpack.c.l.b16 %v1634
    %v1951 = vunpack.c.h.b16 %v1634
    %v1952 = vunpack.c.l.b16 %v1635
    %v1953 = vunpack.c.h.b16 %v1635
    %v1954 = vunpack.c.l.b16 %v1636
    %v1955 = vunpack.c.h.b16 %v1636
    %v1956 = vunpack.c.l.b16 %v1637
    %v1957 = vunpack.c.h.b16 %v1637
    %v1958 = vunpack.c.l.b16 %v1638
    %v1959 = vunpack.c.h.b16 %v1638
    %v1960 = vunpack.c.l.b16 %v1639
    %v1961 = vunpack.c.h.b16 %v1639
    %v1962 = vunpack.c.l.b16 %v1640
    %v1963 = vunpack.c.h.b16 %v1640
    %v1964 = vunpack.c.l.b16 %v1641
    %v1965 = vunpack.c.h.b16 %v1641
    %v1966 = vunpack.c.l.b16 %v1642
    %v1967 = vunpack.c.h.b16 %v1642
    %v1968 = vunpack.c.l.b16 %v1643
    %v1969 = vunpack.c.h.b16 %v1643
    %v1970 = vunpack.c.l.b16 %v1644
    %v1971 = vunpack.c.h.b16 %v1644
    %v1972 = vunpack.c.l.b16 %v1645
    %v1973 = vunpack.c.h.b16 %v1645
    %v1974 = vunpack.c.l.b16 %v1646
    %v1975 = vunpack.c.h.b16 %v1646
    %v1976 = vunpack.c.l.b16 %v1647
    %v1977 = vunpack.c.h.b16 %v1647
    %v1978 = vunpack.c.l.b16 %v1648
    %v1979 = vunpack.c.h.b16 %v1648
    %v1980 = vunpack.c.l.b16 %v1649
    %v1981 = vunpack.c.h.b16 %v1649
    %v1982 = vunpack.c.l.b16 %v1650
    %v1983 = vunpack.c.h.b16 %v1650
    %v1984 = vunpack.c.l.b16 %v1651
    %v1985 = vunpack.c.h.b16 %v1651
    %v1986 = vunpack.c.l.b16 %v1652
    %v1987 = vunpack.c.h.b16 %v1652
    %v1988 = vunpack.c.l.b16 %v1653
    %v1989 = vunpack.c.h.b16 %v1653
    %v1990 = vunpack.c.l.b16 %v1654
    %v1991 = vunpack.c.h.b16 %v1654
    %v1992 = vunpack.c.l.b16 %v1655
    %v1993 = vunpack.c.h.b16 %v1655
    %v1994 = vunpack.c.l.b16 %v1656
    %v1995 = vunpack.c.h.b16 %v1656
    %v1996 = vunpack.c.l.b16 %v1657
    %v1997 = vunpack.c.h.b16 %v1657
    %v1998 = vunpack.c.l.b16 %v1658
    %v1999 = vunpack.c.h.b16 %v1658
    %v2000 = vunpack.c.l.b16 %v1659
    %v2001 = vunpack.c.h.b16 %v1659
    %v2002 = vunpack.c.l.b16 %v1660
    %v2003 = vunpack.c.h.b16 %v1660
    %v2004 = vunpack.c.l.b16 %v1661
    %v2005 = vunpack.c.h.b16 %v1661
    %v2006 = vunpack.c.l.b16 %v1662
    %v2007 = vunpack.c.h.b16 %v1662
    %v2008 = vunpack.c.l.b16 %v1663
    %v2009 = vunpack.c.h.b16 %v1663
    %v2010 = vunpack.c.l.b16 %v1664
    %v2011 = vunpack.c.h.b16 %v1664
    %v2012 = vunpack.c.l.b16 %v1665
    %v2013 = vunpack.c.h.b16 %v1665
    %v2014 = vunpack.c.l.b16 %v1666
    %v2015 = vunpack.c.h.b16 %v1666
    %v2016 = vunpack.c.l.b16 %v1667
    %v2017 = vunpack.c.h.b16 %v1667
    %v2018 = vunpack.c.l.b16 %v1668
    %v2019 = vunpack.c.h.b16 %v1668
    %v2020 = vunpack.c.l.b16 %v1669
    %v2021 = vunpack.c.h.b16 %v1669
    %v2022 = vunpack.c.l.b16 %v1670
    %v2023 = vunpack.c.h.b16 %v1670
    %v2024 = vunpack.c.l.b16 %v1671
    %v2025 = vunpack.c.h.b16 %v1671
    %v2026 = vunpack.c.l.b16 %v1672
    %v2027 = vunpack.c.h.b16 %v1672
    %v2028 = vunpack.c.l.b16 %v1673
    %v2029 = vunpack.c.h.b16 %v1673
    %v2030 = vunpack.c.l.b16 %v1674
    %v2031 = vunpack.c.h.b16 %v1674
    %v2032 = vunpack.c.l.b16 %v1675
    %v2033 = vunpack.c.h.b16 %v1675
    %v2034 = vunpack.c.l.b16 %v1676
    %v2035 = vunpack.c.h.b16 %v1676
    %v2036 = vunpack.c.l.b16 %v1677
    %v2037 = vunpack.c.h.b16 %v1677
    %v2038 = vunpack.c.l.b16 %v1678
    %v2039 = vunpack.c.h.b16 %v1678
    %v2040 = vunpack.c.l.b16 %v1679
    %v2041 = vunpack.c.h.b16 %v1679
    %v2042 = vunpack.c.l.b16 %v1680
    %v2043 = vunpack.c.h.b16 %v1680
    %v2044 = vunpack.c.l.b16 %v1681
    %v2045 = vunpack.c.h.b16 %v1681
    %v2046 = vunpack.c.l.b16 %v1682
    %v2047 = vunpack.c.h.b16 %v1682
    %v2048 = vunpack.c.l.b16 %v1683
    %v2049 = vunpack.c.h.b16 %v1683
    %v2050 = vunpack.c.l.b16 %v1684
    %v2051 = vunpack.c.h.b16 %v1684
    %v2052 = vunpack.c.l.b16 %v1685
    %v2053 = vunpack.c.h.b16 %v1685
    %v2054 = vunpack.c.l.b16 %v1686
    %v2055 = vunpack.c.h.b16 %v1686
    %v2056 = vunpack.c.l.b16 %v1687
    %v2057 = vunpack.c.h.b16 %v1687
    %v2058 = vunpack.c.l.b16 %v1688
    %v2059 = vunpack.c.h.b16 %v1688
    %v2060 = vunpack.c.l.b16 %v1689
    %v2061 = vunpack.c.h.b16 %v1689
    %v2062 = vunpack.c.l.b16 %v1690
    %v2063 = vunpack.c.h.b16 %v1690
    %v2064 = vunpack.c.l.b16 %v1691
    %v2065 = vunpack.c.h.b16 %v1691
    %v2066 = vunpack.c.l.b16 %v1692
    %v2067 = vunpack.c.h.b16 %v1692
    %v2068 = vunpack.c.l.b16 %v1693
    %v2069 = vunpack.c.h.b16 %v1693
    %v2070 = vunpack.c.l.b16 %v1694
    %v2071 = vunpack.c.h.b16 %v1694
    %v2072 = vunpack.c.l.b16 %v1695
    %v2073 = vunpack.c.h.b16 %v1695
    %v2074 = vunpack.c.l.b16 %v1696
    %v2075 = vunpack.c.h.b16 %v1696
    %v2076 = vunpack.c.l.b16 %v1697
    %v2077 = vunpack.c.h.b16 %v1697
    %v2078 = vunpack.c.l.b16 %v1698
    %v2079 = vunpack.c.h.b16 %v1698
    %v2080 = vunpack.c.l.b16 %v1699
    %v2081 = vunpack.c.h.b16 %v1699
    %v2082 = vunpack.c.l.b16 %v1700
    %v2083 = vunpack.c.h.b16 %v1700
    %v2084 = vunpack.c.l.b16 %v1701
    %v2085 = vunpack.c.h.b16 %v1701
    %v2086 = vpack.c.b16 %v1846, %v1830
    %v2087 = vpack.c.b16 %v1847, %v1831
    %v2088 = vpack.c.b16 %v1848, %v1832
    %v2089 = vpack.c.b16 %v1849, %v1833
    %v2090 = vpack.c.b16 %v1850, %v1834
    %v2091 = vpack.c.b16 %v1851, %v1835
    %v2092 = vpack.c.b16 %v1852, %v1836
    %v2093 = vpack.c.b16 %v1853, %v1837
    %v2094 = vpack.c.b16 %v1854, %v1838
    %v2095 = vpack.c.b16 %v1855, %v1839
    %v2096 = vpack.c.b16 %v1856, %v1840
    %v2097 = vpack.c.b16 %v1857, %v1841
    %v2098 = vpack.c.b16 %v1858, %v1842
    %v2099 = vpack.c.b16 %v1859, %v1843
    %v2100 = vpack.c.b16 %v1860, %v1844
    %v2101 = vpack.c.b16 %v1861, %v1845
    %v2102 = vpack.c.b16 %v1878, %v1862
    %v2103 = vpack.c.b16 %v1879, %v1863
    %v2104 = vpack.c.b16 %v1880, %v1864
    %v2105 = vpack.c.b16 %v1881, %v1865
    %v2106 = vpack.c.b16 %v1882, %v1866
    %v2107 = vpack.c.b16 %v1883, %v1867
    %v2108 = vpack.c.b16 %v1884, %v1868
    %v2109 = vpack.c.b16 %v1885, %v1869
    %v2110 = vpack.c.b16 %v1886, %v1870
    %v2111 = vpack.c.b16 %v1887, %v1871
    %v2112 = vpack.c.b16 %v1888, %v1872
    %v2113 = vpack.c.b16 %v1889, %v1873
    %v2114 = vpack.c.b16 %v1890, %v1874
    %v2115 = vpack.c.b16 %v1891, %v1875
    %v2116 = vpack.c.b16 %v1892, %v1876
    %v2117 = vpack.c.b16 %v1893, %v1877
    %v2118 = vpack.c.b16 %v1910, %v1894
    %v2119 = vpack.c.b16 %v1911, %v1895
    %v2120 = vpack.c.b16 %v1912, %v1896
    %v2121 = vpack.c.b16 %v1913, %v1897
    %v2122 = vpack.c.b16 %v1914, %v1898
    %v2123 = vpack.c.b16 %v1915, %v1899
    %v2124 = vpack.c.b16 %v1916, %v1900
    %v2125 = vpack.c.b16 %v1917, %v1901
    %v2126 = vpack.c.b16 %v1918, %v1902
    %v2127 = vpack.c.b16 %v1919, %v1903
    %v2128 = vpack.c.b16 %v1920, %v1904
    %v2129 = vpack.c.b16 %v1921, %v1905
    %v2130 = vpack.c.b16 %v1922, %v1906
    %v2131 = vpack.c.b16 %v1923, %v1907
    %v2132 = vpack.c.b16 %v1924, %v1908
    %v2133 = vpack.c.b16 %v1925, %v1909
    %v2134 = vpack.c.b16 %v1942, %v1926
    %v2135 = vpack.c.b16 %v1943, %v1927
    %v2136 = vpack.c.b16 %v1944, %v1928
    %v2137 = vpack.c.b16 %v1945, %v1929
    %v2138 = vpack.c.b16 %v1946, %v1930
    %v2139 = vpack.c.b16 %v1947, %v1931
    %v2140 = vpack.c.b16 %v1948, %v1932
    %v2141 = vpack.c.b16 %v1949, %v1933
    %v2142 = vpack.c.b16 %v1950, %v1934
    %v2143 = vpack.c.b16 %v1951, %v1935
    %v2144 = vpack.c.b16 %v1952, %v1936
    %v2145 = vpack.c.b16 %v1953, %v1937
    %v2146 = vpack.c.b16 %v1954, %v1938
    %v2147 = vpack.c.b16 %v1955, %v1939
    %v2148 = vpack.c.b16 %v1956, %v1940
    %v2149 = vpack.c.b16 %v1957, %v1941
    %v2150 = vpack.c.b16 %v1974, %v1958
    %v2151 = vpack.c.b16 %v1975, %v1959
    %v2152 = vpack.c.b16 %v1976, %v1960
    %v2153 = vpack.c.b16 %v1977, %v1961
    %v2154 = vpack.c.b16 %v1978, %v1962
    %v2155 = vpack.c.b16 %v1979, %v1963
    %v2156 = vpack.c.b16 %v1980, %v1964
    %v2157 = vpack.c.b16 %v1981, %v1965
    %v2158 = vpack.c.b16 %v1982, %v1966
    %v2159 = vpack.c.b16 %v1983, %v1967
    %v2160 = vpack.c.b16 %v1984, %v1968
    %v2161 = vpack.c.b16 %v1985, %v1969
    %v2162 = vpack.c.b16 %v1986, %v1970
    %v2163 = vpack.c.b16 %v1987, %v1971
    %v2164 = vpack.c.b16 %v1988, %v1972
    %v2165 = vpack.c.b16 %v1989, %v1973
    %v2166 = vpack.c.b16 %v2006, %v1990
    %v2167 = vpack.c.b16 %v2007, %v1991
    %v2168 = vpack.c.b16 %v2008, %v1992
    %v2169 = vpack.c.b16 %v2009, %v1993
    %v2170 = vpack.c.b16 %v2010, %v1994
    %v2171 = vpack.c.b16 %v2011, %v1995
    %v2172 = vpack.c.b16 %v2012, %v1996
    %v2173 = vpack.c.b16 %v2013, %v1997
    %v2174 = vpack.c.b16 %v2014, %v1998
    %v2175 = vpack.c.b16 %v2015, %v1999
    %v2176 = vpack.c.b16 %v2016, %v2000
    %v2177 = vpack.c.b16 %v2017, %v2001
    %v2178 = vpack.c.b16 %v2018, %v2002
    %v2179 = vpack.c.b16 %v2019, %v2003
    %v2180 = vpack.c.b16 %v2020, %v2004
    %v2181 = vpack.c.b16 %v2021, %v2005
    %v2182 = vpack.c.b16 %v2038, %v2022
    %v2183 = vpack.c.b16 %v2039, %v2023
    %v2184 = vpack.c.b16 %v2040, %v2024
    %v2185 = vpack.c.b16 %v2041, %v2025
    %v2186 = vpack.c.b16 %v2042, %v2026
    %v2187 = vpack.c.b16 %v2043, %v2027
    %v2188 = vpack.c.b16 %v2044, %v2028
    %v2189 = vpack.c.b16 %v2045, %v2029
    %v2190 = vpack.c.b16 %v2046, %v2030
    %v2191 = vpack.c.b16 %v2047, %v2031
    %v2192 = vpack.c.b16 %v2048, %v2032
    %v2193 = vpack.c.b16 %v2049, %v2033
    %v2194 = vpack.c.b16 %v2050, %v2034
    %v2195 = vpack.c.b16 %v2051, %v2035
    %v2196 = vpack.c.b16 %v2052, %v2036
    %v2197 = vpack.c.b16 %v2053, %v2037
    %v2198 = vpack.c.b16 %v2070, %v2054
    %v2199 = vpack.c.b16 %v2071, %v2055
    %v2200 = vpack.c.b16 %v2072, %v2056
    %v2201 = vpack.c.b16 %v2073, %v2057
    %v2202 = vpack.c.b16 %v2074, %v2058
    %v2203 = vpack.c.b16 %v2075, %v2059
    %v2204 = vpack.c.b16 %v2076, %v2060
    %v2205 = vpack.c.b16 %v2077, %v2061
    %v2206 = vpack.c.b16 %v2078, %v2062
    %v2207 = vpack.c.b16 %v2079, %v2063
    %v2208 = vpack.c.b16 %v2080, %v2064
    %v2209 = vpack.c.b16 %v2081, %v2065
    %v2210 = vpack.c.b16 %v2082, %v2066
    %v2211 = vpack.c.b16 %v2083, %v2067
    %v2212 = vpack.c.b16 %v2084, %v2068
    %v2213 = vpack.c.b16 %v2085, %v2069
    %2342 = vmatprep.subr.bf16.mxu0 %v2087
    %2343 = vmatpush1.bf16.msra.mxu0 %v2086
    %2344 = vmatprep.subr.bf16.mxu0 %v2103
    %2345 = vmatpush1.bf16.msra.mxu0 %v2102
    %2346 = vmatprep.subr.bf16.mxu0 %v2119
    %2347 = vmatpush1.bf16.msra.mxu0 %v2118
    %2348 = vmatprep.subr.bf16.mxu0 %v2135
    %2349 = vmatpush1.bf16.msra.mxu0 %v2134
    %2350 = vmatprep.subr.bf16.mxu0 %v2151
    %2351 = vmatpush1.bf16.msra.mxu0 %v2150
    %2352 = vmatprep.subr.bf16.mxu0 %v2167
    %2353 = vmatpush1.bf16.msra.mxu0 %v2166
    %2354 = vmatprep.subr.bf16.mxu0 %v2183
    %2355 = vmatpush1.bf16.msra.mxu0 %v2182
    %2356 = vmatprep.subr.bf16.mxu0 %v2199
    %2357 = vmatpush1.bf16.msra.mxu0 %v2198
    %2358 = vmatprep.subr.bf16.mxu0 0
    %2359 = vmatpush1.bf16.msra.mxu0 0
    %2360 = vmatprep.subr.bf16.mxu0 0
    %2361 = vmatpush1.bf16.msra.mxu0 0
    %2362 = vmatprep.subr.bf16.mxu0 0
    %2363 = vmatpush1.bf16.msra.mxu0 0
    %2364 = vmatprep.subr.bf16.mxu0 0
    %2365 = vmatpush1.bf16.msra.mxu0 0
    %2366 = vmatprep.subr.bf16.mxu0 0
    %2367 = vmatpush1.bf16.msra.mxu0 0
    %2368 = vmatprep.subr.bf16.mxu0 0
    %2369 = vmatpush1.bf16.msra.mxu0 0
    %2370 = vmatprep.subr.bf16.mxu0 0
    %2371 = vmatpush1.bf16.msra.mxu0 0
    %2372 = vmatprep.subr.bf16.mxu0 0
    %2373 = vmatpush1.bf16.msra.mxu0 0
    %2374 = vmatprep.mubr.bf16.mxu0 0
    %2375 = vmatmul.mubr.bf16.gmra.mrb[0].mxu0 %v1572
    %v2376 = vpop.f32.mrb[0].mxu0
    %v2377 = vadd.f32 0.0, %v2376
    %v2378 = vpop.f32.mrb[0].mxu0
    %v2379 = vadd.f32 0.0, %v2378
    %v2380 = vpop.f32.mrb[0].mxu0
    %v2381 = vpop.f32.mrb[0].mxu0
    %2382 = vdwg.mxu0
    %2383 = vmatprep.subr.bf16.mxu0 %v2089
    %2384 = vmatpush1.bf16.msra.mxu0 %v2088
    %2385 = vmatprep.subr.bf16.mxu0 %v2105
    %2386 = vmatpush1.bf16.msra.mxu0 %v2104
    %2387 = vmatprep.subr.bf16.mxu0 %v2121
    %2388 = vmatpush1.bf16.msra.mxu0 %v2120
    %2389 = vmatprep.subr.bf16.mxu0 %v2137
    %2390 = vmatpush1.bf16.msra.mxu0 %v2136
    %2391 = vmatprep.subr.bf16.mxu0 %v2153
    %2392 = vmatpush1.bf16.msra.mxu0 %v2152
    %2393 = vmatprep.subr.bf16.mxu0 %v2169
    %2394 = vmatpush1.bf16.msra.mxu0 %v2168
    %2395 = vmatprep.subr.bf16.mxu0 %v2185
    %2396 = vmatpush1.bf16.msra.mxu0 %v2184
    %2397 = vmatprep.subr.bf16.mxu0 %v2201
    %2398 = vmatpush1.bf16.msra.mxu0 %v2200
    %2399 = vmatprep.subr.bf16.mxu0 0
    %2400 = vmatpush1.bf16.msra.mxu0 0
    %2401 = vmatprep.subr.bf16.mxu0 0
    %2402 = vmatpush1.bf16.msra.mxu0 0
    %2403 = vmatprep.subr.bf16.mxu0 0
    %2404 = vmatpush1.bf16.msra.mxu0 0
    %2405 = vmatprep.subr.bf16.mxu0 0
    %2406 = vmatpush1.bf16.msra.mxu0 0
    %2407 = vmatprep.subr.bf16.mxu0 0
    %2408 = vmatpush1.bf16.msra.mxu0 0
    %2409 = vmatprep.subr.bf16.mxu0 0
    %2410 = vmatpush1.bf16.msra.mxu0 0
    %2411 = vmatprep.subr.bf16.mxu0 0
    %2412 = vmatpush1.bf16.msra.mxu0 0
    %2413 = vmatprep.subr.bf16.mxu0 0
    %2414 = vmatpush1.bf16.msra.mxu0 0
    %2415 = vmatprep.mubr.bf16.mxu0 0
    %2416 = vmatmul.mubr.bf16.gmra.mrb[0].mxu0 %v1572
    %v2417 = vpop.f32.mrb[0].mxu0
    %v2418 = vadd.f32 0.0, %v2417
    %v2419 = vpop.f32.mrb[0].mxu0
    %v2420 = vadd.f32 0.0, %v2419
    %v2421 = vpop.f32.mrb[0].mxu0
    %v2422 = vpop.f32.mrb[0].mxu0
    %2423 = vdwg.mxu0
    %2424 = vmatprep.subr.bf16.mxu0 %v2091
    %2425 = vmatpush1.bf16.msra.mxu0 %v2090
    %2426 = vmatprep.subr.bf16.mxu0 %v2107
    %2427 = vmatpush1.bf16.msra.mxu0 %v2106
    %2428 = vmatprep.subr.bf16.mxu0 %v2123
    %2429 = vmatpush1.bf16.msra.mxu0 %v2122
    %2430 = vmatprep.subr.bf16.mxu0 %v2139
    %2431 = vmatpush1.bf16.msra.mxu0 %v2138
    %2432 = vmatprep.subr.bf16.mxu0 %v2155
    %2433 = vmatpush1.bf16.msra.mxu0 %v2154
    %2434 = vmatprep.subr.bf16.mxu0 %v2171
    %2435 = vmatpush1.bf16.msra.mxu0 %v2170
    %2436 = vmatprep.subr.bf16.mxu0 %v2187
    %2437 = vmatpush1.bf16.msra.mxu0 %v2186
    %2438 = vmatprep.subr.bf16.mxu0 %v2203
    %2439 = vmatpush1.bf16.msra.mxu0 %v2202
    %2440 = vmatprep.subr.bf16.mxu0 0
    %2441 = vmatpush1.bf16.msra.mxu0 0
    %2442 = vmatprep.subr.bf16.mxu0 0
    %2443 = vmatpush1.bf16.msra.mxu0 0
    %2444 = vmatprep.subr.bf16.mxu0 0
    %2445 = vmatpush1.bf16.msra.mxu0 0
    %2446 = vmatprep.subr.bf16.mxu0 0
    %2447 = vmatpush1.bf16.msra.mxu0 0
    %2448 = vmatprep.subr.bf16.mxu0 0
    %2449 = vmatpush1.bf16.msra.mxu0 0
    %2450 = vmatprep.subr.bf16.mxu0 0
    %2451 = vmatpush1.bf16.msra.mxu0 0
    %2452 = vmatprep.subr.bf16.mxu0 0
    %2453 = vmatpush1.bf16.msra.mxu0 0
    %2454 = vmatprep.subr.bf16.mxu0 0
    %2455 = vmatpush1.bf16.msra.mxu0 0
    %2456 = vmatprep.mubr.bf16.mxu0 0
    %2457 = vmatmul.mubr.bf16.gmra.mrb[0].mxu0 %v1572
    %v2458 = vpop.f32.mrb[0].mxu0
    %v2459 = vadd.f32 0.0, %v2458
    %v2460 = vpop.f32.mrb[0].mxu0
    %v2461 = vadd.f32 0.0, %v2460
    %v2462 = vpop.f32.mrb[0].mxu0
    %v2463 = vpop.f32.mrb[0].mxu0
    %2464 = vdwg.mxu0
    %2465 = vmatprep.subr.bf16.mxu0 %v2093
    %2466 = vmatpush1.bf16.msra.mxu0 %v2092
    %2467 = vmatprep.subr.bf16.mxu0 %v2109
    %2468 = vmatpush1.bf16.msra.mxu0 %v2108
    %2469 = vmatprep.subr.bf16.mxu0 %v2125
    %2470 = vmatpush1.bf16.msra.mxu0 %v2124
    %2471 = vmatprep.subr.bf16.mxu0 %v2141
    %2472 = vmatpush1.bf16.msra.mxu0 %v2140
    %2473 = vmatprep.subr.bf16.mxu0 %v2157
    %2474 = vmatpush1.bf16.msra.mxu0 %v2156
    %2475 = vmatprep.subr.bf16.mxu0 %v2173
    %2476 = vmatpush1.bf16.msra.mxu0 %v2172
    %2477 = vmatprep.subr.bf16.mxu0 %v2189
    %2478 = vmatpush1.bf16.msra.mxu0 %v2188
    %2479 = vmatprep.subr.bf16.mxu0 %v2205
    %2480 = vmatpush1.bf16.msra.mxu0 %v2204
    %2481 = vmatprep.subr.bf16.mxu0 0
    %2482 = vmatpush1.bf16.msra.mxu0 0
    %2483 = vmatprep.subr.bf16.mxu0 0
    %2484 = vmatpush1.bf16.msra.mxu0 0
    %2485 = vmatprep.subr.bf16.mxu0 0
    %2486 = vmatpush1.bf16.msra.mxu0 0
    %2487 = vmatprep.subr.bf16.mxu0 0
    %2488 = vmatpush1.bf16.msra.mxu0 0
    %2489 = vmatprep.subr.bf16.mxu0 0
    %2490 = vmatpush1.bf16.msra.mxu0 0
    %2491 = vmatprep.subr.bf16.mxu0 0
    %2492 = vmatpush1.bf16.msra.mxu0 0
    %2493 = vmatprep.subr.bf16.mxu0 0
    %2494 = vmatpush1.bf16.msra.mxu0 0
    %2495 = vmatprep.subr.bf16.mxu0 0
    %2496 = vmatpush1.bf16.msra.mxu0 0
    %2497 = vmatprep.mubr.bf16.mxu0 0
    %2498 = vmatmul.mubr.bf16.gmra.mrb[0].mxu0 %v1572
    %v2499 = vpop.f32.mrb[0].mxu0
    %v2500 = vadd.f32 0.0, %v2499
    %v2501 = vpop.f32.mrb[0].mxu0
    %v2502 = vadd.f32 0.0, %v2501
    %v2503 = vpop.f32.mrb[0].mxu0
    %v2504 = vpop.f32.mrb[0].mxu0
    %2505 = vdwg.mxu0
    %2506 = vmatprep.subr.bf16.mxu0 %v2095
    %2507 = vmatpush1.bf16.msra.mxu0 %v2094
    %2508 = vmatprep.subr.bf16.mxu0 %v2111
    %2509 = vmatpush1.bf16.msra.mxu0 %v2110
    %2510 = vmatprep.subr.bf16.mxu0 %v2127
    %2511 = vmatpush1.bf16.msra.mxu0 %v2126
    %2512 = vmatprep.subr.bf16.mxu0 %v2143
    %2513 = vmatpush1.bf16.msra.mxu0 %v2142
    %2514 = vmatprep.subr.bf16.mxu0 %v2159
    %2515 = vmatpush1.bf16.msra.mxu0 %v2158
    %2516 = vmatprep.subr.bf16.mxu0 %v2175
    %2517 = vmatpush1.bf16.msra.mxu0 %v2174
    %2518 = vmatprep.subr.bf16.mxu0 %v2191
    %2519 = vmatpush1.bf16.msra.mxu0 %v2190
    %2520 = vmatprep.subr.bf16.mxu0 %v2207
    %2521 = vmatpush1.bf16.msra.mxu0 %v2206
    %2522 = vmatprep.subr.bf16.mxu0 0
    %2523 = vmatpush1.bf16.msra.mxu0 0
    %2524 = vmatprep.subr.bf16.mxu0 0
    %2525 = vmatpush1.bf16.msra.mxu0 0
    %2526 = vmatprep.subr.bf16.mxu0 0
    %2527 = vmatpush1.bf16.msra.mxu0 0
    %2528 = vmatprep.subr.bf16.mxu0 0
    %2529 = vmatpush1.bf16.msra.mxu0 0
    %2530 = vmatprep.subr.bf16.mxu0 0
    %2531 = vmatpush1.bf16.msra.mxu0 0
    %2532 = vmatprep.subr.bf16.mxu0 0
    %2533 = vmatpush1.bf16.msra.mxu0 0
    %2534 = vmatprep.subr.bf16.mxu0 0
    %2535 = vmatpush1.bf16.msra.mxu0 0
    %2536 = vmatprep.subr.bf16.mxu0 0
    %2537 = vmatpush1.bf16.msra.mxu0 0
    %2538 = vmatprep.mubr.bf16.mxu0 0
    %2539 = vmatmul.mubr.bf16.gmra.mrb[0].mxu0 %v1572
    %v2540 = vpop.f32.mrb[0].mxu0
    %v2541 = vadd.f32 0.0, %v2540
    %v2542 = vpop.f32.mrb[0].mxu0
    %v2543 = vadd.f32 0.0, %v2542
    %v2544 = vpop.f32.mrb[0].mxu0
    %v2545 = vpop.f32.mrb[0].mxu0
    %2546 = vdwg.mxu0
    %2547 = vmatprep.subr.bf16.mxu0 %v2097
    %2548 = vmatpush1.bf16.msra.mxu0 %v2096
    %2549 = vmatprep.subr.bf16.mxu0 %v2113
    %2550 = vmatpush1.bf16.msra.mxu0 %v2112
    %2551 = vmatprep.subr.bf16.mxu0 %v2129
    %2552 = vmatpush1.bf16.msra.mxu0 %v2128
    %2553 = vmatprep.subr.bf16.mxu0 %v2145
    %2554 = vmatpush1.bf16.msra.mxu0 %v2144
    %2555 = vmatprep.subr.bf16.mxu0 %v2161
    %2556 = vmatpush1.bf16.msra.mxu0 %v2160
    %2557 = vmatprep.subr.bf16.mxu0 %v2177
    %2558 = vmatpush1.bf16.msra.mxu0 %v2176
    %2559 = vmatprep.subr.bf16.mxu0 %v2193
    %2560 = vmatpush1.bf16.msra.mxu0 %v2192
    %2561 = vmatprep.subr.bf16.mxu0 %v2209
    %2562 = vmatpush1.bf16.msra.mxu0 %v2208
    %2563 = vmatprep.subr.bf16.mxu0 0
    %2564 = vmatpush1.bf16.msra.mxu0 0
    %2565 = vmatprep.subr.bf16.mxu0 0
    %2566 = vmatpush1.bf16.msra.mxu0 0
    %2567 = vmatprep.subr.bf16.mxu0 0
    %2568 = vmatpush1.bf16.msra.mxu0 0
    %2569 = vmatprep.subr.bf16.mxu0 0
    %2570 = vmatpush1.bf16.msra.mxu0 0
    %2571 = vmatprep.subr.bf16.mxu0 0
    %2572 = vmatpush1.bf16.msra.mxu0 0
    %2573 = vmatprep.subr.bf16.mxu0 0
    %2574 = vmatpush1.bf16.msra.mxu0 0
    %2575 = vmatprep.subr.bf16.mxu0 0
    %2576 = vmatpush1.bf16.msra.mxu0 0
    %2577 = vmatprep.subr.bf16.mxu0 0
    %2578 = vmatpush1.bf16.msra.mxu0 0
    %2579 = vmatprep.mubr.bf16.mxu0 0
    %2580 = vmatmul.mubr.bf16.gmra.mrb[0].mxu0 %v1572
    %v2581 = vpop.f32.mrb[0].mxu0
    %v2582 = vadd.f32 0.0, %v2581
    %v2583 = vpop.f32.mrb[0].mxu0
    %v2584 = vadd.f32 0.0, %v2583
    %v2585 = vpop.f32.mrb[0].mxu0
    %v2586 = vpop.f32.mrb[0].mxu0
    %2587 = vdwg.mxu0
    %2588 = vmatprep.subr.bf16.mxu0 %v2099
    %2589 = vmatpush1.bf16.msra.mxu0 %v2098
    %2590 = vmatprep.subr.bf16.mxu0 %v2115
    %2591 = vmatpush1.bf16.msra.mxu0 %v2114
    %2592 = vmatprep.subr.bf16.mxu0 %v2131
    %2593 = vmatpush1.bf16.msra.mxu0 %v2130
    %2594 = vmatprep.subr.bf16.mxu0 %v2147
    %2595 = vmatpush1.bf16.msra.mxu0 %v2146
    %2596 = vmatprep.subr.bf16.mxu0 %v2163
    %2597 = vmatpush1.bf16.msra.mxu0 %v2162
    %2598 = vmatprep.subr.bf16.mxu0 %v2179
    %2599 = vmatpush1.bf16.msra.mxu0 %v2178
    %2600 = vmatprep.subr.bf16.mxu0 %v2195
    %2601 = vmatpush1.bf16.msra.mxu0 %v2194
    %2602 = vmatprep.subr.bf16.mxu0 %v2211
    %2603 = vmatpush1.bf16.msra.mxu0 %v2210
    %2604 = vmatprep.subr.bf16.mxu0 0
    %2605 = vmatpush1.bf16.msra.mxu0 0
    %2606 = vmatprep.subr.bf16.mxu0 0
    %2607 = vmatpush1.bf16.msra.mxu0 0
    %2608 = vmatprep.subr.bf16.mxu0 0
    %2609 = vmatpush1.bf16.msra.mxu0 0
    %2610 = vmatprep.subr.bf16.mxu0 0
    %2611 = vmatpush1.bf16.msra.mxu0 0
    %2612 = vmatprep.subr.bf16.mxu0 0
    %2613 = vmatpush1.bf16.msra.mxu0 0
    %2614 = vmatprep.subr.bf16.mxu0 0
    %2615 = vmatpush1.bf16.msra.mxu0 0
    %2616 = vmatprep.subr.bf16.mxu0 0
    %2617 = vmatpush1.bf16.msra.mxu0 0
    %2618 = vmatprep.subr.bf16.mxu0 0
    %2619 = vmatpush1.bf16.msra.mxu0 0
    %2620 = vmatprep.mubr.bf16.mxu0 0
    %2621 = vmatmul.mubr.bf16.gmra.mrb[0].mxu0 %v1572
    %v2622 = vpop.f32.mrb[0].mxu0
    %v2623 = vadd.f32 0.0, %v2622
    %v2624 = vpop.f32.mrb[0].mxu0
    %v2625 = vadd.f32 0.0, %v2624
    %v2626 = vpop.f32.mrb[0].mxu0
    %v2627 = vpop.f32.mrb[0].mxu0
    %2628 = vdwg.mxu0
    %2629 = vmatprep.subr.bf16.mxu0 %v2101
    %2630 = vmatpush1.bf16.msra.mxu0 %v2100
    %2631 = vmatprep.subr.bf16.mxu0 %v2117
    %2632 = vmatpush1.bf16.msra.mxu0 %v2116
    %2633 = vmatprep.subr.bf16.mxu0 %v2133
    %2634 = vmatpush1.bf16.msra.mxu0 %v2132
    %2635 = vmatprep.subr.bf16.mxu0 %v2149
    %2636 = vmatpush1.bf16.msra.mxu0 %v2148
    %2637 = vmatprep.subr.bf16.mxu0 %v2165
    %2638 = vmatpush1.bf16.msra.mxu0 %v2164
    %2639 = vmatprep.subr.bf16.mxu0 %v2181
    %2640 = vmatpush1.bf16.msra.mxu0 %v2180
    %2641 = vmatprep.subr.bf16.mxu0 %v2197
    %2642 = vmatpush1.bf16.msra.mxu0 %v2196
    %2643 = vmatprep.subr.bf16.mxu0 %v2213
    %2644 = vmatpush1.bf16.msra.mxu0 %v2212
    %2645 = vmatprep.subr.bf16.mxu0 0
    %2646 = vmatpush1.bf16.msra.mxu0 0
    %2647 = vmatprep.subr.bf16.mxu0 0
    %2648 = vmatpush1.bf16.msra.mxu0 0
    %2649 = vmatprep.subr.bf16.mxu0 0
    %2650 = vmatpush1.bf16.msra.mxu0 0
    %2651 = vmatprep.subr.bf16.mxu0 0
    %2652 = vmatpush1.bf16.msra.mxu0 0
    %2653 = vmatprep.subr.bf16.mxu0 0
    %2654 = vmatpush1.bf16.msra.mxu0 0
    %2655 = vmatprep.subr.bf16.mxu0 0
    %2656 = vmatpush1.bf16.msra.mxu0 0
    %2657 = vmatprep.subr.bf16.mxu0 0
    %2658 = vmatpush1.bf16.msra.mxu0 0
    %2659 = vmatprep.subr.bf16.mxu0 0
    %2660 = vmatpush1.bf16.msra.mxu0 0
    %2661 = vmatprep.mubr.bf16.mxu0 0
    %2662 = vmatmul.mubr.bf16.gmra.mrb[0].mxu0 %v1572
    %v2663 = vpop.f32.mrb[0].mxu0
    %v2664 = vadd.f32 0.0, %v2663
    %v2665 = vpop.f32.mrb[0].mxu0
    %v2666 = vadd.f32 0.0, %v2665
    %v2667 = vpop.f32.mrb[0].mxu0
    %v2668 = vpop.f32.mrb[0].mxu0
    %2669 = vdwg.mxu0
    %v2798 = vunpack.c.l.b16 %v1443
    %v2799 = vunpack.c.h.b16 %v1443
    %v2800 = vunpack.c.l.b16 %v1444
    %v2801 = vunpack.c.h.b16 %v1444
    %v2802 = vunpack.c.l.b16 %v1445
    %v2803 = vunpack.c.h.b16 %v1445
    %v2804 = vunpack.c.l.b16 %v1446
    %v2805 = vunpack.c.h.b16 %v1446
    %v2806 = vunpack.c.l.b16 %v1447
    %v2807 = vunpack.c.h.b16 %v1447
    %v2808 = vunpack.c.l.b16 %v1448
    %v2809 = vunpack.c.h.b16 %v1448
    %v2810 = vunpack.c.l.b16 %v1449
    %v2811 = vunpack.c.h.b16 %v1449
    %v2812 = vunpack.c.l.b16 %v1450
    %v2813 = vunpack.c.h.b16 %v1450
    %v2814 = vunpack.c.l.b16 %v1451
    %v2815 = vunpack.c.h.b16 %v1451
    %v2816 = vunpack.c.l.b16 %v1452
    %v2817 = vunpack.c.h.b16 %v1452
    %v2818 = vunpack.c.l.b16 %v1453
    %v2819 = vunpack.c.h.b16 %v1453
    %v2820 = vunpack.c.l.b16 %v1454
    %v2821 = vunpack.c.h.b16 %v1454
    %v2822 = vunpack.c.l.b16 %v1455
    %v2823 = vunpack.c.h.b16 %v1455
    %v2824 = vunpack.c.l.b16 %v1456
    %v2825 = vunpack.c.h.b16 %v1456
    %v2826 = vunpack.c.l.b16 %v1457
    %v2827 = vunpack.c.h.b16 %v1457
    %v2828 = vunpack.c.l.b16 %v1458
    %v2829 = vunpack.c.h.b16 %v1458
    %v2830 = vunpack.c.l.b16 %v1459
    %v2831 = vunpack.c.h.b16 %v1459
    %v2832 = vunpack.c.l.b16 %v1460
    %v2833 = vunpack.c.h.b16 %v1460
    %v2834 = vunpack.c.l.b16 %v1461
    %v2835 = vunpack.c.h.b16 %v1461
    %v2836 = vunpack.c.l.b16 %v1462
    %v2837 = vunpack.c.h.b16 %v1462
    %v2838 = vunpack.c.l.b16 %v1463
    %v2839 = vunpack.c.h.b16 %v1463
    %v2840 = vunpack.c.l.b16 %v1464
    %v2841 = vunpack.c.h.b16 %v1464
    %v2842 = vunpack.c.l.b16 %v1465
    %v2843 = vunpack.c.h.b16 %v1465
    %v2844 = vunpack.c.l.b16 %v1466
    %v2845 = vunpack.c.h.b16 %v1466
    %v2846 = vunpack.c.l.b16 %v1467
    %v2847 = vunpack.c.h.b16 %v1467
    %v2848 = vunpack.c.l.b16 %v1468
    %v2849 = vunpack.c.h.b16 %v1468
    %v2850 = vunpack.c.l.b16 %v1469
    %v2851 = vunpack.c.h.b16 %v1469
    %v2852 = vunpack.c.l.b16 %v1470
    %v2853 = vunpack.c.h.b16 %v1470
    %v2854 = vunpack.c.l.b16 %v1471
    %v2855 = vunpack.c.h.b16 %v1471
    %v2856 = vunpack.c.l.b16 %v1472
    %v2857 = vunpack.c.h.b16 %v1472
    %v2858 = vunpack.c.l.b16 %v1473
    %v2859 = vunpack.c.h.b16 %v1473
    %v2860 = vunpack.c.l.b16 %v1474
    %v2861 = vunpack.c.h.b16 %v1474
    %v2862 = vunpack.c.l.b16 %v1475
    %v2863 = vunpack.c.h.b16 %v1475
    %v2864 = vunpack.c.l.b16 %v1476
    %v2865 = vunpack.c.h.b16 %v1476
    %v2866 = vunpack.c.l.b16 %v1477
    %v2867 = vunpack.c.h.b16 %v1477
    %v2868 = vunpack.c.l.b16 %v1478
    %v2869 = vunpack.c.h.b16 %v1478
    %v2870 = vunpack.c.l.b16 %v1479
    %v2871 = vunpack.c.h.b16 %v1479
    %v2872 = vunpack.c.l.b16 %v1480
    %v2873 = vunpack.c.h.b16 %v1480
    %v2874 = vunpack.c.l.b16 %v1481
    %v2875 = vunpack.c.h.b16 %v1481
    %v2876 = vunpack.c.l.b16 %v1482
    %v2877 = vunpack.c.h.b16 %v1482
    %v2878 = vunpack.c.l.b16 %v1483
    %v2879 = vunpack.c.h.b16 %v1483
    %v2880 = vunpack.c.l.b16 %v1484
    %v2881 = vunpack.c.h.b16 %v1484
    %v2882 = vunpack.c.l.b16 %v1485
    %v2883 = vunpack.c.h.b16 %v1485
    %v2884 = vunpack.c.l.b16 %v1486
    %v2885 = vunpack.c.h.b16 %v1486
    %v2886 = vunpack.c.l.b16 %v1487
    %v2887 = vunpack.c.h.b16 %v1487
    %v2888 = vunpack.c.l.b16 %v1488
    %v2889 = vunpack.c.h.b16 %v1488
    %v2890 = vunpack.c.l.b16 %v1489
    %v2891 = vunpack.c.h.b16 %v1489
    %v2892 = vunpack.c.l.b16 %v1490
    %v2893 = vunpack.c.h.b16 %v1490
    %v2894 = vunpack.c.l.b16 %v1491
    %v2895 = vunpack.c.h.b16 %v1491
    %v2896 = vunpack.c.l.b16 %v1492
    %v2897 = vunpack.c.h.b16 %v1492
    %v2898 = vunpack.c.l.b16 %v1493
    %v2899 = vunpack.c.h.b16 %v1493
    %v2900 = vunpack.c.l.b16 %v1494
    %v2901 = vunpack.c.h.b16 %v1494
    %v2902 = vunpack.c.l.b16 %v1495
    %v2903 = vunpack.c.h.b16 %v1495
    %v2904 = vunpack.c.l.b16 %v1496
    %v2905 = vunpack.c.h.b16 %v1496
    %v2906 = vunpack.c.l.b16 %v1497
    %v2907 = vunpack.c.h.b16 %v1497
    %v2908 = vunpack.c.l.b16 %v1498
    %v2909 = vunpack.c.h.b16 %v1498
    %v2910 = vunpack.c.l.b16 %v1499
    %v2911 = vunpack.c.h.b16 %v1499
    %v2912 = vunpack.c.l.b16 %v1500
    %v2913 = vunpack.c.h.b16 %v1500
    %v2914 = vunpack.c.l.b16 %v1501
    %v2915 = vunpack.c.h.b16 %v1501
    %v2916 = vunpack.c.l.b16 %v1502
    %v2917 = vunpack.c.h.b16 %v1502
    %v2918 = vunpack.c.l.b16 %v1503
    %v2919 = vunpack.c.h.b16 %v1503
    %v2920 = vunpack.c.l.b16 %v1504
    %v2921 = vunpack.c.h.b16 %v1504
    %v2922 = vunpack.c.l.b16 %v1505
    %v2923 = vunpack.c.h.b16 %v1505
    %v2924 = vunpack.c.l.b16 %v1506
    %v2925 = vunpack.c.h.b16 %v1506
    %v2926 = vunpack.c.l.b16 %v1507
    %v2927 = vunpack.c.h.b16 %v1507
    %v2928 = vunpack.c.l.b16 %v1508
    %v2929 = vunpack.c.h.b16 %v1508
    %v2930 = vunpack.c.l.b16 %v1509
    %v2931 = vunpack.c.h.b16 %v1509
    %v2932 = vunpack.c.l.b16 %v1510
    %v2933 = vunpack.c.h.b16 %v1510
    %v2934 = vunpack.c.l.b16 %v1511
    %v2935 = vunpack.c.h.b16 %v1511
    %v2936 = vunpack.c.l.b16 %v1512
    %v2937 = vunpack.c.h.b16 %v1512
    %v2938 = vunpack.c.l.b16 %v1513
    %v2939 = vunpack.c.h.b16 %v1513
    %v2940 = vunpack.c.l.b16 %v1514
    %v2941 = vunpack.c.h.b16 %v1514
    %v2942 = vunpack.c.l.b16 %v1515
    %v2943 = vunpack.c.h.b16 %v1515
    %v2944 = vunpack.c.l.b16 %v1516
    %v2945 = vunpack.c.h.b16 %v1516
    %v2946 = vunpack.c.l.b16 %v1517
    %v2947 = vunpack.c.h.b16 %v1517
    %v2948 = vunpack.c.l.b16 %v1518
    %v2949 = vunpack.c.h.b16 %v1518
    %v2950 = vunpack.c.l.b16 %v1519
    %v2951 = vunpack.c.h.b16 %v1519
    %v2952 = vunpack.c.l.b16 %v1520
    %v2953 = vunpack.c.h.b16 %v1520
    %v2954 = vunpack.c.l.b16 %v1521
    %v2955 = vunpack.c.h.b16 %v1521
    %v2956 = vunpack.c.l.b16 %v1522
    %v2957 = vunpack.c.h.b16 %v1522
    %v2958 = vunpack.c.l.b16 %v1523
    %v2959 = vunpack.c.h.b16 %v1523
    %v2960 = vunpack.c.l.b16 %v1524
    %v2961 = vunpack.c.h.b16 %v1524
    %v2962 = vunpack.c.l.b16 %v1525
    %v2963 = vunpack.c.h.b16 %v1525
    %v2964 = vunpack.c.l.b16 %v1526
    %v2965 = vunpack.c.h.b16 %v1526
    %v2966 = vunpack.c.l.b16 %v1527
    %v2967 = vunpack.c.h.b16 %v1527
    %v2968 = vunpack.c.l.b16 %v1528
    %v2969 = vunpack.c.h.b16 %v1528
    %v2970 = vunpack.c.l.b16 %v1529
    %v2971 = vunpack.c.h.b16 %v1529
    %v2972 = vunpack.c.l.b16 %v1530
    %v2973 = vunpack.c.h.b16 %v1530
    %v2974 = vunpack.c.l.b16 %v1531
    %v2975 = vunpack.c.h.b16 %v1531
    %v2976 = vunpack.c.l.b16 %v1532
    %v2977 = vunpack.c.h.b16 %v1532
    %v2978 = vunpack.c.l.b16 %v1533
    %v2979 = vunpack.c.h.b16 %v1533
    %v2980 = vunpack.c.l.b16 %v1534
    %v2981 = vunpack.c.h.b16 %v1534
    %v2982 = vunpack.c.l.b16 %v1535
    %v2983 = vunpack.c.h.b16 %v1535
    %v2984 = vunpack.c.l.b16 %v1536
    %v2985 = vunpack.c.h.b16 %v1536
    %v2986 = vunpack.c.l.b16 %v1537
    %v2987 = vunpack.c.h.b16 %v1537
    %v2988 = vunpack.c.l.b16 %v1538
    %v2989 = vunpack.c.h.b16 %v1538
    %v2990 = vunpack.c.l.b16 %v1539
    %v2991 = vunpack.c.h.b16 %v1539
    %v2992 = vunpack.c.l.b16 %v1540
    %v2993 = vunpack.c.h.b16 %v1540
    %v2994 = vunpack.c.l.b16 %v1541
    %v2995 = vunpack.c.h.b16 %v1541
    %v2996 = vunpack.c.l.b16 %v1542
    %v2997 = vunpack.c.h.b16 %v1542
    %v2998 = vunpack.c.l.b16 %v1543
    %v2999 = vunpack.c.h.b16 %v1543
    %v3000 = vunpack.c.l.b16 %v1544
    %v3001 = vunpack.c.h.b16 %v1544
    %v3002 = vunpack.c.l.b16 %v1545
    %v3003 = vunpack.c.h.b16 %v1545
    %v3004 = vunpack.c.l.b16 %v1546
    %v3005 = vunpack.c.h.b16 %v1546
    %v3006 = vunpack.c.l.b16 %v1547
    %v3007 = vunpack.c.h.b16 %v1547
    %v3008 = vunpack.c.l.b16 %v1548
    %v3009 = vunpack.c.h.b16 %v1548
    %v3010 = vunpack.c.l.b16 %v1549
    %v3011 = vunpack.c.h.b16 %v1549
    %v3012 = vunpack.c.l.b16 %v1550
    %v3013 = vunpack.c.h.b16 %v1550
    %v3014 = vunpack.c.l.b16 %v1551
    %v3015 = vunpack.c.h.b16 %v1551
    %v3016 = vunpack.c.l.b16 %v1552
    %v3017 = vunpack.c.h.b16 %v1552
    %v3018 = vunpack.c.l.b16 %v1553
    %v3019 = vunpack.c.h.b16 %v1553
    %v3020 = vunpack.c.l.b16 %v1554
    %v3021 = vunpack.c.h.b16 %v1554
    %v3022 = vunpack.c.l.b16 %v1555
    %v3023 = vunpack.c.h.b16 %v1555
    %v3024 = vunpack.c.l.b16 %v1556
    %v3025 = vunpack.c.h.b16 %v1556
    %v3026 = vunpack.c.l.b16 %v1557
    %v3027 = vunpack.c.h.b16 %v1557
    %v3028 = vunpack.c.l.b16 %v1558
    %v3029 = vunpack.c.h.b16 %v1558
    %v3030 = vunpack.c.l.b16 %v1559
    %v3031 = vunpack.c.h.b16 %v1559
    %v3032 = vunpack.c.l.b16 %v1560
    %v3033 = vunpack.c.h.b16 %v1560
    %v3034 = vunpack.c.l.b16 %v1561
    %v3035 = vunpack.c.h.b16 %v1561
    %v3036 = vunpack.c.l.b16 %v1562
    %v3037 = vunpack.c.h.b16 %v1562
    %v3038 = vunpack.c.l.b16 %v1563
    %v3039 = vunpack.c.h.b16 %v1563
    %v3040 = vunpack.c.l.b16 %v1564
    %v3041 = vunpack.c.h.b16 %v1564
    %v3042 = vunpack.c.l.b16 %v1565
    %v3043 = vunpack.c.h.b16 %v1565
    %v3044 = vunpack.c.l.b16 %v1566
    %v3045 = vunpack.c.h.b16 %v1566
    %v3046 = vunpack.c.l.b16 %v1567
    %v3047 = vunpack.c.h.b16 %v1567
    %v3048 = vunpack.c.l.b16 %v1568
    %v3049 = vunpack.c.h.b16 %v1568
    %v3050 = vunpack.c.l.b16 %v1569
    %v3051 = vunpack.c.h.b16 %v1569
    %v3052 = vunpack.c.l.b16 %v1570
    %v3053 = vunpack.c.h.b16 %v1570
    %v3054 = vpack.c.b16 %v2814, %v2798
    %v3055 = vpack.c.b16 %v2815, %v2799
    %v3056 = vpack.c.b16 %v2816, %v2800
    %v3057 = vpack.c.b16 %v2817, %v2801
    %v3058 = vpack.c.b16 %v2818, %v2802
    %v3059 = vpack.c.b16 %v2819, %v2803
    %v3060 = vpack.c.b16 %v2820, %v2804
    %v3061 = vpack.c.b16 %v2821, %v2805
    %v3062 = vpack.c.b16 %v2822, %v2806
    %v3063 = vpack.c.b16 %v2823, %v2807
    %v3064 = vpack.c.b16 %v2824, %v2808
    %v3065 = vpack.c.b16 %v2825, %v2809
    %v3066 = vpack.c.b16 %v2826, %v2810
    %v3067 = vpack.c.b16 %v2827, %v2811
    %v3068 = vpack.c.b16 %v2828, %v2812
    %v3069 = vpack.c.b16 %v2829, %v2813
    %v3070 = vpack.c.b16 %v2846, %v2830
    %v3071 = vpack.c.b16 %v2847, %v2831
    %v3072 = vpack.c.b16 %v2848, %v2832
    %v3073 = vpack.c.b16 %v2849, %v2833
    %v3074 = vpack.c.b16 %v2850, %v2834
    %v3075 = vpack.c.b16 %v2851, %v2835
    %v3076 = vpack.c.b16 %v2852, %v2836
    %v3077 = vpack.c.b16 %v2853, %v2837
    %v3078 = vpack.c.b16 %v2854, %v2838
    %v3079 = vpack.c.b16 %v2855, %v2839
    %v3080 = vpack.c.b16 %v2856, %v2840
    %v3081 = vpack.c.b16 %v2857, %v2841
    %v3082 = vpack.c.b16 %v2858, %v2842
    %v3083 = vpack.c.b16 %v2859, %v2843
    %v3084 = vpack.c.b16 %v2860, %v2844
    %v3085 = vpack.c.b16 %v2861, %v2845
    %v3086 = vpack.c.b16 %v2878, %v2862
    %v3087 = vpack.c.b16 %v2879, %v2863
    %v3088 = vpack.c.b16 %v2880, %v2864
    %v3089 = vpack.c.b16 %v2881, %v2865
    %v3090 = vpack.c.b16 %v2882, %v2866
    %v3091 = vpack.c.b16 %v2883, %v2867
    %v3092 = vpack.c.b16 %v2884, %v2868
    %v3093 = vpack.c.b16 %v2885, %v2869
    %v3094 = vpack.c.b16 %v2886, %v2870
    %v3095 = vpack.c.b16 %v2887, %v2871
    %v3096 = vpack.c.b16 %v2888, %v2872
    %v3097 = vpack.c.b16 %v2889, %v2873
    %v3098 = vpack.c.b16 %v2890, %v2874
    %v3099 = vpack.c.b16 %v2891, %v2875
    %v3100 = vpack.c.b16 %v2892, %v2876
    %v3101 = vpack.c.b16 %v2893, %v2877
    %v3102 = vpack.c.b16 %v2910, %v2894
    %v3103 = vpack.c.b16 %v2911, %v2895
    %v3104 = vpack.c.b16 %v2912, %v2896
    %v3105 = vpack.c.b16 %v2913, %v2897
    %v3106 = vpack.c.b16 %v2914, %v2898
    %v3107 = vpack.c.b16 %v2915, %v2899
    %v3108 = vpack.c.b16 %v2916, %v2900
    %v3109 = vpack.c.b16 %v2917, %v2901
    %v3110 = vpack.c.b16 %v2918, %v2902
    %v3111 = vpack.c.b16 %v2919, %v2903
    %v3112 = vpack.c.b16 %v2920, %v2904
    %v3113 = vpack.c.b16 %v2921, %v2905
    %v3114 = vpack.c.b16 %v2922, %v2906
    %v3115 = vpack.c.b16 %v2923, %v2907
    %v3116 = vpack.c.b16 %v2924, %v2908
    %v3117 = vpack.c.b16 %v2925, %v2909
    %v3118 = vpack.c.b16 %v2942, %v2926
    %v3119 = vpack.c.b16 %v2943, %v2927
    %v3120 = vpack.c.b16 %v2944, %v2928
    %v3121 = vpack.c.b16 %v2945, %v2929
    %v3122 = vpack.c.b16 %v2946, %v2930
    %v3123 = vpack.c.b16 %v2947, %v2931
    %v3124 = vpack.c.b16 %v2948, %v2932
    %v3125 = vpack.c.b16 %v2949, %v2933
    %v3126 = vpack.c.b16 %v2950, %v2934
    %v3127 = vpack.c.b16 %v2951, %v2935
    %v3128 = vpack.c.b16 %v2952, %v2936
    %v3129 = vpack.c.b16 %v2953, %v2937
    %v3130 = vpack.c.b16 %v2954, %v2938
    %v3131 = vpack.c.b16 %v2955, %v2939
    %v3132 = vpack.c.b16 %v2956, %v2940
    %v3133 = vpack.c.b16 %v2957, %v2941
    %v3134 = vpack.c.b16 %v2974, %v2958
    %v3135 = vpack.c.b16 %v2975, %v2959
    %v3136 = vpack.c.b16 %v2976, %v2960
    %v3137 = vpack.c.b16 %v2977, %v2961
    %v3138 = vpack.c.b16 %v2978, %v2962
    %v3139 = vpack.c.b16 %v2979, %v2963
    %v3140 = vpack.c.b16 %v2980, %v2964
    %v3141 = vpack.c.b16 %v2981, %v2965
    %v3142 = vpack.c.b16 %v2982, %v2966
    %v3143 = vpack.c.b16 %v2983, %v2967
    %v3144 = vpack.c.b16 %v2984, %v2968
    %v3145 = vpack.c.b16 %v2985, %v2969
    %v3146 = vpack.c.b16 %v2986, %v2970
    %v3147 = vpack.c.b16 %v2987, %v2971
    %v3148 = vpack.c.b16 %v2988, %v2972
    %v3149 = vpack.c.b16 %v2989, %v2973
    %v3150 = vpack.c.b16 %v3006, %v2990
    %v3151 = vpack.c.b16 %v3007, %v2991
    %v3152 = vpack.c.b16 %v3008, %v2992
    %v3153 = vpack.c.b16 %v3009, %v2993
    %v3154 = vpack.c.b16 %v3010, %v2994
    %v3155 = vpack.c.b16 %v3011, %v2995
    %v3156 = vpack.c.b16 %v3012, %v2996
    %v3157 = vpack.c.b16 %v3013, %v2997
    %v3158 = vpack.c.b16 %v3014, %v2998
    %v3159 = vpack.c.b16 %v3015, %v2999
    %v3160 = vpack.c.b16 %v3016, %v3000
    %v3161 = vpack.c.b16 %v3017, %v3001
    %v3162 = vpack.c.b16 %v3018, %v3002
    %v3163 = vpack.c.b16 %v3019, %v3003
    %v3164 = vpack.c.b16 %v3020, %v3004
    %v3165 = vpack.c.b16 %v3021, %v3005
    %v3166 = vpack.c.b16 %v3038, %v3022
    %v3167 = vpack.c.b16 %v3039, %v3023
    %v3168 = vpack.c.b16 %v3040, %v3024
    %v3169 = vpack.c.b16 %v3041, %v3025
    %v3170 = vpack.c.b16 %v3042, %v3026
    %v3171 = vpack.c.b16 %v3043, %v3027
    %v3172 = vpack.c.b16 %v3044, %v3028
    %v3173 = vpack.c.b16 %v3045, %v3029
    %v3174 = vpack.c.b16 %v3046, %v3030
    %v3175 = vpack.c.b16 %v3047, %v3031
    %v3176 = vpack.c.b16 %v3048, %v3032
    %v3177 = vpack.c.b16 %v3049, %v3033
    %v3178 = vpack.c.b16 %v3050, %v3034
    %v3179 = vpack.c.b16 %v3051, %v3035
    %v3180 = vpack.c.b16 %v3052, %v3036
    %v3181 = vpack.c.b16 %v3053, %v3037
    %3310 = vmatprep.subr.bf16.mxu0 %v3055
    %3311 = vmatpush1.bf16.msra.mxu0 %v3054
    %3312 = vmatprep.subr.bf16.mxu0 %v3071
    %3313 = vmatpush1.bf16.msra.mxu0 %v3070
    %3314 = vmatprep.subr.bf16.mxu0 %v3087
    %3315 = vmatpush1.bf16.msra.mxu0 %v3086
    %3316 = vmatprep.subr.bf16.mxu0 %v3103
    %3317 = vmatpush1.bf16.msra.mxu0 %v3102
    %3318 = vmatprep.subr.bf16.mxu0 %v3119
    %3319 = vmatpush1.bf16.msra.mxu0 %v3118
    %3320 = vmatprep.subr.bf16.mxu0 %v3135
    %3321 = vmatpush1.bf16.msra.mxu0 %v3134
    %3322 = vmatprep.subr.bf16.mxu0 %v3151
    %3323 = vmatpush1.bf16.msra.mxu0 %v3150
    %3324 = vmatprep.subr.bf16.mxu0 %v3167
    %3325 = vmatpush1.bf16.msra.mxu0 %v3166
    %3326 = vmatprep.subr.bf16.mxu0 0
    %3327 = vmatpush1.bf16.msra.mxu0 0
    %3328 = vmatprep.subr.bf16.mxu0 0
    %3329 = vmatpush1.bf16.msra.mxu0 0
    %3330 = vmatprep.subr.bf16.mxu0 0
    %3331 = vmatpush1.bf16.msra.mxu0 0
    %3332 = vmatprep.subr.bf16.mxu0 0
    %3333 = vmatpush1.bf16.msra.mxu0 0
    %3334 = vmatprep.subr.bf16.mxu0 0
    %3335 = vmatpush1.bf16.msra.mxu0 0
    %3336 = vmatprep.subr.bf16.mxu0 0
    %3337 = vmatpush1.bf16.msra.mxu0 0
    %3338 = vmatprep.subr.bf16.mxu0 0
    %3339 = vmatpush1.bf16.msra.mxu0 0
    %3340 = vmatprep.subr.bf16.mxu0 0
    %3341 = vmatpush1.bf16.msra.mxu0 0
    %3342 = vmatprep.mubr.bf16.mxu0 0
    %3343 = vmatmul.mubr.bf16.gmra.mrb[0].mxu0 %v1442
    %v3344 = vpop.f32.mrb[0].mxu0
    %v3345 = vadd.f32 %v2377, %v3344
    %v3346 = vpop.f32.mrb[0].mxu0
    %v3347 = vadd.f32 %v2379, %v3346
    %v3348 = vpop.f32.mrb[0].mxu0
    %v3349 = vpop.f32.mrb[0].mxu0
    %3350 = vdwg.mxu0
    %3351 = vmatprep.subr.bf16.mxu0 %v3057
    %3352 = vmatpush1.bf16.msra.mxu0 %v3056
    %3353 = vmatprep.subr.bf16.mxu0 %v3073
    %3354 = vmatpush1.bf16.msra.mxu0 %v3072
    %3355 = vmatprep.subr.bf16.mxu0 %v3089
    %3356 = vmatpush1.bf16.msra.mxu0 %v3088
    %3357 = vmatprep.subr.bf16.mxu0 %v3105
    %3358 = vmatpush1.bf16.msra.mxu0 %v3104
    %3359 = vmatprep.subr.bf16.mxu0 %v3121
    %3360 = vmatpush1.bf16.msra.mxu0 %v3120
    %3361 = vmatprep.subr.bf16.mxu0 %v3137
    %3362 = vmatpush1.bf16.msra.mxu0 %v3136
    %3363 = vmatprep.subr.bf16.mxu0 %v3153
    %3364 = vmatpush1.bf16.msra.mxu0 %v3152
    %3365 = vmatprep.subr.bf16.mxu0 %v3169
    %3366 = vmatpush1.bf16.msra.mxu0 %v3168
    %3367 = vmatprep.subr.bf16.mxu0 0
    %3368 = vmatpush1.bf16.msra.mxu0 0
    %3369 = vmatprep.subr.bf16.mxu0 0
    %3370 = vmatpush1.bf16.msra.mxu0 0
    %3371 = vmatprep.subr.bf16.mxu0 0
    %3372 = vmatpush1.bf16.msra.mxu0 0
    %3373 = vmatprep.subr.bf16.mxu0 0
    %3374 = vmatpush1.bf16.msra.mxu0 0
    %3375 = vmatprep.subr.bf16.mxu0 0
    %3376 = vmatpush1.bf16.msra.mxu0 0
    %3377 = vmatprep.subr.bf16.mxu0 0
    %3378 = vmatpush1.bf16.msra.mxu0 0
    %3379 = vmatprep.subr.bf16.mxu0 0
    %3380 = vmatpush1.bf16.msra.mxu0 0
    %3381 = vmatprep.subr.bf16.mxu0 0
    %3382 = vmatpush1.bf16.msra.mxu0 0
    %3383 = vmatprep.mubr.bf16.mxu0 0
    %3384 = vmatmul.mubr.bf16.gmra.mrb[0].mxu0 %v1442
    %v3385 = vpop.f32.mrb[0].mxu0
    %v3386 = vadd.f32 %v2418, %v3385
    %v3387 = vpop.f32.mrb[0].mxu0
    %v3388 = vadd.f32 %v2420, %v3387
    %v3389 = vpop.f32.mrb[0].mxu0
    %v3390 = vpop.f32.mrb[0].mxu0
    %3391 = vdwg.mxu0
    %3392 = vmatprep.subr.bf16.mxu0 %v3059
    %3393 = vmatpush1.bf16.msra.mxu0 %v3058
    %3394 = vmatprep.subr.bf16.mxu0 %v3075
    %3395 = vmatpush1.bf16.msra.mxu0 %v3074
    %3396 = vmatprep.subr.bf16.mxu0 %v3091
    %3397 = vmatpush1.bf16.msra.mxu0 %v3090
    %3398 = vmatprep.subr.bf16.mxu0 %v3107
    %3399 = vmatpush1.bf16.msra.mxu0 %v3106
    %3400 = vmatprep.subr.bf16.mxu0 %v3123
    %3401 = vmatpush1.bf16.msra.mxu0 %v3122
    %3402 = vmatprep.subr.bf16.mxu0 %v3139
    %3403 = vmatpush1.bf16.msra.mxu0 %v3138
    %3404 = vmatprep.subr.bf16.mxu0 %v3155
    %3405 = vmatpush1.bf16.msra.mxu0 %v3154
    %3406 = vmatprep.subr.bf16.mxu0 %v3171
    %3407 = vmatpush1.bf16.msra.mxu0 %v3170
    %3408 = vmatprep.subr.bf16.mxu0 0
    %3409 = vmatpush1.bf16.msra.mxu0 0
    %3410 = vmatprep.subr.bf16.mxu0 0
    %3411 = vmatpush1.bf16.msra.mxu0 0
    %3412 = vmatprep.subr.bf16.mxu0 0
    %3413 = vmatpush1.bf16.msra.mxu0 0
    %3414 = vmatprep.subr.bf16.mxu0 0
    %3415 = vmatpush1.bf16.msra.mxu0 0
    %3416 = vmatprep.subr.bf16.mxu0 0
    %3417 = vmatpush1.bf16.msra.mxu0 0
    %3418 = vmatprep.subr.bf16.mxu0 0
    %3419 = vmatpush1.bf16.msra.mxu0 0
    %3420 = vmatprep.subr.bf16.mxu0 0
    %3421 = vmatpush1.bf16.msra.mxu0 0
    %3422 = vmatprep.subr.bf16.mxu0 0
    %3423 = vmatpush1.bf16.msra.mxu0 0
    %3424 = vmatprep.mubr.bf16.mxu0 0
    %3425 = vmatmul.mubr.bf16.gmra.mrb[0].mxu0 %v1442
    %v3426 = vpop.f32.mrb[0].mxu0
    %v3427 = vadd.f32 %v2459, %v3426
    %v3428 = vpop.f32.mrb[0].mxu0
    %v3429 = vadd.f32 %v2461, %v3428
    %v3430 = vpop.f32.mrb[0].mxu0
    %v3431 = vpop.f32.mrb[0].mxu0
    %3432 = vdwg.mxu0
    %3433 = vmatprep.subr.bf16.mxu0 %v3061
    %3434 = vmatpush1.bf16.msra.mxu0 %v3060
    %3435 = vmatprep.subr.bf16.mxu0 %v3077
    %3436 = vmatpush1.bf16.msra.mxu0 %v3076
    %3437 = vmatprep.subr.bf16.mxu0 %v3093
    %3438 = vmatpush1.bf16.msra.mxu0 %v3092
    %3439 = vmatprep.subr.bf16.mxu0 %v3109
    %3440 = vmatpush1.bf16.msra.mxu0 %v3108
    %3441 = vmatprep.subr.bf16.mxu0 %v3125
    %3442 = vmatpush1.bf16.msra.mxu0 %v3124
    %3443 = vmatprep.subr.bf16.mxu0 %v3141
    %3444 = vmatpush1.bf16.msra.mxu0 %v3140
    %3445 = vmatprep.subr.bf16.mxu0 %v3157
    %3446 = vmatpush1.bf16.msra.mxu0 %v3156
    %3447 = vmatprep.subr.bf16.mxu0 %v3173
    %3448 = vmatpush1.bf16.msra.mxu0 %v3172
    %3449 = vmatprep.subr.bf16.mxu0 0
    %3450 = vmatpush1.bf16.msra.mxu0 0
    %3451 = vmatprep.subr.bf16.mxu0 0
    %3452 = vmatpush1.bf16.msra.mxu0 0
    %3453 = vmatprep.subr.bf16.mxu0 0
    %3454 = vmatpush1.bf16.msra.mxu0 0
    %3455 = vmatprep.subr.bf16.mxu0 0
    %3456 = vmatpush1.bf16.msra.mxu0 0
    %3457 = vmatprep.subr.bf16.mxu0 0
    %3458 = vmatpush1.bf16.msra.mxu0 0
    %3459 = vmatprep.subr.bf16.mxu0 0
    %3460 = vmatpush1.bf16.msra.mxu0 0
    %3461 = vmatprep.subr.bf16.mxu0 0
    %3462 = vmatpush1.bf16.msra.mxu0 0
    %3463 = vmatprep.subr.bf16.mxu0 0
    %3464 = vmatpush1.bf16.msra.mxu0 0
    %3465 = vmatprep.mubr.bf16.mxu0 0
    %3466 = vmatmul.mubr.bf16.gmra.mrb[0].mxu0 %v1442
    %v3467 = vpop.f32.mrb[0].mxu0
    %v3468 = vadd.f32 %v2500, %v3467
    %v3469 = vpop.f32.mrb[0].mxu0
    %v3470 = vadd.f32 %v2502, %v3469
    %v3471 = vpop.f32.mrb[0].mxu0
    %v3472 = vpop.f32.mrb[0].mxu0
    %3473 = vdwg.mxu0
    %3474 = vmatprep.subr.bf16.mxu0 %v3063
    %3475 = vmatpush1.bf16.msra.mxu0 %v3062
    %3476 = vmatprep.subr.bf16.mxu0 %v3079
    %3477 = vmatpush1.bf16.msra.mxu0 %v3078
    %3478 = vmatprep.subr.bf16.mxu0 %v3095
    %3479 = vmatpush1.bf16.msra.mxu0 %v3094
    %3480 = vmatprep.subr.bf16.mxu0 %v3111
    %3481 = vmatpush1.bf16.msra.mxu0 %v3110
    %3482 = vmatprep.subr.bf16.mxu0 %v3127
    %3483 = vmatpush1.bf16.msra.mxu0 %v3126
    %3484 = vmatprep.subr.bf16.mxu0 %v3143
    %3485 = vmatpush1.bf16.msra.mxu0 %v3142
    %3486 = vmatprep.subr.bf16.mxu0 %v3159
    %3487 = vmatpush1.bf16.msra.mxu0 %v3158
    %3488 = vmatprep.subr.bf16.mxu0 %v3175
    %3489 = vmatpush1.bf16.msra.mxu0 %v3174
    %3490 = vmatprep.subr.bf16.mxu0 0
    %3491 = vmatpush1.bf16.msra.mxu0 0
    %3492 = vmatprep.subr.bf16.mxu0 0
    %3493 = vmatpush1.bf16.msra.mxu0 0
    %3494 = vmatprep.subr.bf16.mxu0 0
    %3495 = vmatpush1.bf16.msra.mxu0 0
    %3496 = vmatprep.subr.bf16.mxu0 0
    %3497 = vmatpush1.bf16.msra.mxu0 0
    %3498 = vmatprep.subr.bf16.mxu0 0
    %3499 = vmatpush1.bf16.msra.mxu0 0
    %3500 = vmatprep.subr.bf16.mxu0 0
    %3501 = vmatpush1.bf16.msra.mxu0 0
    %3502 = vmatprep.subr.bf16.mxu0 0
    %3503 = vmatpush1.bf16.msra.mxu0 0
    %3504 = vmatprep.subr.bf16.mxu0 0
    %3505 = vmatpush1.bf16.msra.mxu0 0
    %3506 = vmatprep.mubr.bf16.mxu0 0
    %3507 = vmatmul.mubr.bf16.gmra.mrb[0].mxu0 %v1442
    %v3508 = vpop.f32.mrb[0].mxu0
    %v3509 = vadd.f32 %v2541, %v3508
    %v3510 = vpop.f32.mrb[0].mxu0
    %v3511 = vadd.f32 %v2543, %v3510
    %v3512 = vpop.f32.mrb[0].mxu0
    %v3513 = vpop.f32.mrb[0].mxu0
    %3514 = vdwg.mxu0
    %3515 = vmatprep.subr.bf16.mxu0 %v3065
    %3516 = vmatpush1.bf16.msra.mxu0 %v3064
    %3517 = vmatprep.subr.bf16.mxu0 %v3081
    %3518 = vmatpush1.bf16.msra.mxu0 %v3080
    %3519 = vmatprep.subr.bf16.mxu0 %v3097
    %3520 = vmatpush1.bf16.msra.mxu0 %v3096
    %3521 = vmatprep.subr.bf16.mxu0 %v3113
    %3522 = vmatpush1.bf16.msra.mxu0 %v3112
    %3523 = vmatprep.subr.bf16.mxu0 %v3129
    %3524 = vmatpush1.bf16.msra.mxu0 %v3128
    %3525 = vmatprep.subr.bf16.mxu0 %v3145
    %3526 = vmatpush1.bf16.msra.mxu0 %v3144
    %3527 = vmatprep.subr.bf16.mxu0 %v3161
    %3528 = vmatpush1.bf16.msra.mxu0 %v3160
    %3529 = vmatprep.subr.bf16.mxu0 %v3177
    %3530 = vmatpush1.bf16.msra.mxu0 %v3176
    %3531 = vmatprep.subr.bf16.mxu0 0
    %3532 = vmatpush1.bf16.msra.mxu0 0
    %3533 = vmatprep.subr.bf16.mxu0 0
    %3534 = vmatpush1.bf16.msra.mxu0 0
    %3535 = vmatprep.subr.bf16.mxu0 0
    %3536 = vmatpush1.bf16.msra.mxu0 0
    %3537 = vmatprep.subr.bf16.mxu0 0
    %3538 = vmatpush1.bf16.msra.mxu0 0
    %3539 = vmatprep.subr.bf16.mxu0 0
    %3540 = vmatpush1.bf16.msra.mxu0 0
    %3541 = vmatprep.subr.bf16.mxu0 0
    %3542 = vmatpush1.bf16.msra.mxu0 0
    %3543 = vmatprep.subr.bf16.mxu0 0
    %3544 = vmatpush1.bf16.msra.mxu0 0
    %3545 = vmatprep.subr.bf16.mxu0 0
    %3546 = vmatpush1.bf16.msra.mxu0 0
    %3547 = vmatprep.mubr.bf16.mxu0 0
    %3548 = vmatmul.mubr.bf16.gmra.mrb[0].mxu0 %v1442
    %v3549 = vpop.f32.mrb[0].mxu0
    %v3550 = vadd.f32 %v2582, %v3549
    %v3551 = vpop.f32.mrb[0].mxu0
    %v3552 = vadd.f32 %v2584, %v3551
    %v3553 = vpop.f32.mrb[0].mxu0
    %v3554 = vpop.f32.mrb[0].mxu0
    %3555 = vdwg.mxu0
    %3556 = vmatprep.subr.bf16.mxu0 %v3067
    %3557 = vmatpush1.bf16.msra.mxu0 %v3066
    %3558 = vmatprep.subr.bf16.mxu0 %v3083
    %3559 = vmatpush1.bf16.msra.mxu0 %v3082
    %3560 = vmatprep.subr.bf16.mxu0 %v3099
    %3561 = vmatpush1.bf16.msra.mxu0 %v3098
    %3562 = vmatprep.subr.bf16.mxu0 %v3115
    %3563 = vmatpush1.bf16.msra.mxu0 %v3114
    %3564 = vmatprep.subr.bf16.mxu0 %v3131
    %3565 = vmatpush1.bf16.msra.mxu0 %v3130
    %3566 = vmatprep.subr.bf16.mxu0 %v3147
    %3567 = vmatpush1.bf16.msra.mxu0 %v3146
    %3568 = vmatprep.subr.bf16.mxu0 %v3163
    %3569 = vmatpush1.bf16.msra.mxu0 %v3162
    %3570 = vmatprep.subr.bf16.mxu0 %v3179
    %3571 = vmatpush1.bf16.msra.mxu0 %v3178
    %3572 = vmatprep.subr.bf16.mxu0 0
    %3573 = vmatpush1.bf16.msra.mxu0 0
    %3574 = vmatprep.subr.bf16.mxu0 0
    %3575 = vmatpush1.bf16.msra.mxu0 0
    %3576 = vmatprep.subr.bf16.mxu0 0
    %3577 = vmatpush1.bf16.msra.mxu0 0
    %3578 = vmatprep.subr.bf16.mxu0 0
    %3579 = vmatpush1.bf16.msra.mxu0 0
    %3580 = vmatprep.subr.bf16.mxu0 0
    %3581 = vmatpush1.bf16.msra.mxu0 0
    %3582 = vmatprep.subr.bf16.mxu0 0
    %3583 = vmatpush1.bf16.msra.mxu0 0
    %3584 = vmatprep.subr.bf16.mxu0 0
    %3585 = vmatpush1.bf16.msra.mxu0 0
    %3586 = vmatprep.subr.bf16.mxu0 0
    %3587 = vmatpush1.bf16.msra.mxu0 0
    %3588 = vmatprep.mubr.bf16.mxu0 0
    %3589 = vmatmul.mubr.bf16.gmra.mrb[0].mxu0 %v1442
    %v3590 = vpop.f32.mrb[0].mxu0
    %v3591 = vadd.f32 %v2623, %v3590
    %v3592 = vpop.f32.mrb[0].mxu0
    %v3593 = vadd.f32 %v2625, %v3592
    %v3594 = vpop.f32.mrb[0].mxu0
    %v3595 = vpop.f32.mrb[0].mxu0
    %3596 = vdwg.mxu0
    %3597 = vmatprep.subr.bf16.mxu0 %v3069
    %3598 = vmatpush1.bf16.msra.mxu0 %v3068
    %3599 = vmatprep.subr.bf16.mxu0 %v3085
    %3600 = vmatpush1.bf16.msra.mxu0 %v3084
    %3601 = vmatprep.subr.bf16.mxu0 %v3101
    %3602 = vmatpush1.bf16.msra.mxu0 %v3100
    %3603 = vmatprep.subr.bf16.mxu0 %v3117
    %3604 = vmatpush1.bf16.msra.mxu0 %v3116
    %3605 = vmatprep.subr.bf16.mxu0 %v3133
    %3606 = vmatpush1.bf16.msra.mxu0 %v3132
    %3607 = vmatprep.subr.bf16.mxu0 %v3149
    %3608 = vmatpush1.bf16.msra.mxu0 %v3148
    %3609 = vmatprep.subr.bf16.mxu0 %v3165
    %3610 = vmatpush1.bf16.msra.mxu0 %v3164
    %3611 = vmatprep.subr.bf16.mxu0 %v3181
    %3612 = vmatpush1.bf16.msra.mxu0 %v3180
    %3613 = vmatprep.subr.bf16.mxu0 0
    %3614 = vmatpush1.bf16.msra.mxu0 0
    %3615 = vmatprep.subr.bf16.mxu0 0
    %3616 = vmatpush1.bf16.msra.mxu0 0
    %3617 = vmatprep.subr.bf16.mxu0 0
    %3618 = vmatpush1.bf16.msra.mxu0 0
    %3619 = vmatprep.subr.bf16.mxu0 0
    %3620 = vmatpush1.bf16.msra.mxu0 0
    %3621 = vmatprep.subr.bf16.mxu0 0
    %3622 = vmatpush1.bf16.msra.mxu0 0
    %3623 = vmatprep.subr.bf16.mxu0 0
    %3624 = vmatpush1.bf16.msra.mxu0 0
    %3625 = vmatprep.subr.bf16.mxu0 0
    %3626 = vmatpush1.bf16.msra.mxu0 0
    %3627 = vmatprep.subr.bf16.mxu0 0
    %3628 = vmatpush1.bf16.msra.mxu0 0
    %3629 = vmatprep.mubr.bf16.mxu0 0
    %3630 = vmatmul.mubr.bf16.gmra.mrb[0].mxu0 %v1442
    %v3631 = vpop.f32.mrb[0].mxu0
    %v3632 = vadd.f32 %v2664, %v3631
    %v3633 = vpop.f32.mrb[0].mxu0
    %v3634 = vadd.f32 %v2666, %v3633
    %v3635 = vpop.f32.mrb[0].mxu0
    %v3636 = vpop.f32.mrb[0].mxu0
    %3637 = vdwg.mxu0
    %v3638 = vld [vmem:[#allocation4 + $0x4] sm:$0x3]
    %v3639 = vpack.c.bf16 %v3638, %v3638
    %s3640 = scalar_lea.vmem [#allocation16], 2048
    %v3641 = vld [vmem:[%s3640] sm:$0xff]
    %v3642 = vld [vmem:[%s3640 + $0x8] sm:$0xff]
    %v3643 = vld [vmem:[%s3640 + $0x10] sm:$0xff]
    %v3644 = vld [vmem:[%s3640 + $0x18] sm:$0xff]
    %v3645 = vld [vmem:[%s3640 + $0x20] sm:$0xff]
    %v3646 = vld [vmem:[%s3640 + $0x28] sm:$0xff]
    %v3647 = vld [vmem:[%s3640 + $0x30] sm:$0xff]
    %v3648 = vld [vmem:[%s3640 + $0x38] sm:$0xff]
    %v3649 = vld [vmem:[%s3640 + $0x40] sm:$0xff]
    %v3650 = vld [vmem:[%s3640 + $0x48] sm:$0xff]
    %v3651 = vld [vmem:[%s3640 + $0x50] sm:$0xff]
    %v3652 = vld [vmem:[%s3640 + $0x58] sm:$0xff]
    %v3653 = vld [vmem:[%s3640 + $0x60] sm:$0xff]
    %v3654 = vld [vmem:[%s3640 + $0x68] sm:$0xff]
    %v3655 = vld [vmem:[%s3640 + $0x70] sm:$0xff]
    %v3656 = vld [vmem:[%s3640 + $0x78] sm:$0xff]
    %v3657 = vld [vmem:[%s3640 + $0x80] sm:$0xff]
    %v3658 = vld [vmem:[%s3640 + $0x88] sm:$0xff]
    %v3659 = vld [vmem:[%s3640 + $0x90] sm:$0xff]
    %v3660 = vld [vmem:[%s3640 + $0x98] sm:$0xff]
    %v3661 = vld [vmem:[%s3640 + $0xa0] sm:$0xff]
    %v3662 = vld [vmem:[%s3640 + $0xa8] sm:$0xff]
    %v3663 = vld [vmem:[%s3640 + $0xb0] sm:$0xff]
    %v3664 = vld [vmem:[%s3640 + $0xb8] sm:$0xff]
    %v3665 = vld [vmem:[%s3640 + $0xc0] sm:$0xff]
    %v3666 = vld [vmem:[%s3640 + $0xc8] sm:$0xff]
    %v3667 = vld [vmem:[%s3640 + $0xd0] sm:$0xff]
    %v3668 = vld [vmem:[%s3640 + $0xd8] sm:$0xff]
    %v3669 = vld [vmem:[%s3640 + $0xe0] sm:$0xff]
    %v3670 = vld [vmem:[%s3640 + $0xe8] sm:$0xff]
    %v3671 = vld [vmem:[%s3640 + $0xf0] sm:$0xff]
    %v3672 = vld [vmem:[%s3640 + $0xf8] sm:$0xff]
    %v3673 = vld [vmem:[%s3640 + $0x100] sm:$0xff]
    %v3674 = vld [vmem:[%s3640 + $0x108] sm:$0xff]
    %v3675 = vld [vmem:[%s3640 + $0x110] sm:$0xff]
    %v3676 = vld [vmem:[%s3640 + $0x118] sm:$0xff]
    %v3677 = vld [vmem:[%s3640 + $0x120] sm:$0xff]
    %v3678 = vld [vmem:[%s3640 + $0x128] sm:$0xff]
    %v3679 = vld [vmem:[%s3640 + $0x130] sm:$0xff]
    %v3680 = vld [vmem:[%s3640 + $0x138] sm:$0xff]
    %v3681 = vld [vmem:[%s3640 + $0x140] sm:$0xff]
    %v3682 = vld [vmem:[%s3640 + $0x148] sm:$0xff]
    %v3683 = vld [vmem:[%s3640 + $0x150] sm:$0xff]
    %v3684 = vld [vmem:[%s3640 + $0x158] sm:$0xff]
    %v3685 = vld [vmem:[%s3640 + $0x160] sm:$0xff]
    %v3686 = vld [vmem:[%s3640 + $0x168] sm:$0xff]
    %v3687 = vld [vmem:[%s3640 + $0x170] sm:$0xff]
    %v3688 = vld [vmem:[%s3640 + $0x178] sm:$0xff]
    %v3689 = vld [vmem:[%s3640 + $0x180] sm:$0xff]
    %v3690 = vld [vmem:[%s3640 + $0x188] sm:$0xff]
    %v3691 = vld [vmem:[%s3640 + $0x190] sm:$0xff]
    %v3692 = vld [vmem:[%s3640 + $0x198] sm:$0xff]
    %v3693 = vld [vmem:[%s3640 + $0x1a0] sm:$0xff]
    %v3694 = vld [vmem:[%s3640 + $0x1a8] sm:$0xff]
    %v3695 = vld [vmem:[%s3640 + $0x1b0] sm:$0xff]
    %v3696 = vld [vmem:[%s3640 + $0x1b8] sm:$0xff]
    %v3697 = vld [vmem:[%s3640 + $0x1c0] sm:$0xff]
    %v3698 = vld [vmem:[%s3640 + $0x1c8] sm:$0xff]
    %v3699 = vld [vmem:[%s3640 + $0x1d0] sm:$0xff]
    %v3700 = vld [vmem:[%s3640 + $0x1d8] sm:$0xff]
    %v3701 = vld [vmem:[%s3640 + $0x1e0] sm:$0xff]
    %v3702 = vld [vmem:[%s3640 + $0x1e8] sm:$0xff]
    %v3703 = vld [vmem:[%s3640 + $0x1f0] sm:$0xff]
    %v3704 = vld [vmem:[%s3640 + $0x1f8] sm:$0xff]
    %v3705 = vld [vmem:[%s3640 + $0x200] sm:$0xff]
    %v3706 = vld [vmem:[%s3640 + $0x208] sm:$0xff]
    %v3707 = vld [vmem:[%s3640 + $0x210] sm:$0xff]
    %v3708 = vld [vmem:[%s3640 + $0x218] sm:$0xff]
    %v3709 = vld [vmem:[%s3640 + $0x220] sm:$0xff]
    %v3710 = vld [vmem:[%s3640 + $0x228] sm:$0xff]
    %v3711 = vld [vmem:[%s3640 + $0x230] sm:$0xff]
    %v3712 = vld [vmem:[%s3640 + $0x238] sm:$0xff]
    %v3713 = vld [vmem:[%s3640 + $0x240] sm:$0xff]
    %v3714 = vld [vmem:[%s3640 + $0x248] sm:$0xff]
    %v3715 = vld [vmem:[%s3640 + $0x250] sm:$0xff]
    %v3716 = vld [vmem:[%s3640 + $0x258] sm:$0xff]
    %v3717 = vld [vmem:[%s3640 + $0x260] sm:$0xff]
    %v3718 = vld [vmem:[%s3640 + $0x268] sm:$0xff]
    %v3719 = vld [vmem:[%s3640 + $0x270] sm:$0xff]
    %v3720 = vld [vmem:[%s3640 + $0x278] sm:$0xff]
    %v3721 = vld [vmem:[%s3640 + $0x280] sm:$0xff]
    %v3722 = vld [vmem:[%s3640 + $0x288] sm:$0xff]
    %v3723 = vld [vmem:[%s3640 + $0x290] sm:$0xff]
    %v3724 = vld [vmem:[%s3640 + $0x298] sm:$0xff]
    %v3725 = vld [vmem:[%s3640 + $0x2a0] sm:$0xff]
    %v3726 = vld [vmem:[%s3640 + $0x2a8] sm:$0xff]
    %v3727 = vld [vmem:[%s3640 + $0x2b0] sm:$0xff]
    %v3728 = vld [vmem:[%s3640 + $0x2b8] sm:$0xff]
    %v3729 = vld [vmem:[%s3640 + $0x2c0] sm:$0xff]
    %v3730 = vld [vmem:[%s3640 + $0x2c8] sm:$0xff]
    %v3731 = vld [vmem:[%s3640 + $0x2d0] sm:$0xff]
    %v3732 = vld [vmem:[%s3640 + $0x2d8] sm:$0xff]
    %v3733 = vld [vmem:[%s3640 + $0x2e0] sm:$0xff]
    %v3734 = vld [vmem:[%s3640 + $0x2e8] sm:$0xff]
    %v3735 = vld [vmem:[%s3640 + $0x2f0] sm:$0xff]
    %v3736 = vld [vmem:[%s3640 + $0x2f8] sm:$0xff]
    %v3737 = vld [vmem:[%s3640 + $0x300] sm:$0xff]
    %v3738 = vld [vmem:[%s3640 + $0x308] sm:$0xff]
    %v3739 = vld [vmem:[%s3640 + $0x310] sm:$0xff]
    %v3740 = vld [vmem:[%s3640 + $0x318] sm:$0xff]
    %v3741 = vld [vmem:[%s3640 + $0x320] sm:$0xff]
    %v3742 = vld [vmem:[%s3640 + $0x328] sm:$0xff]
    %v3743 = vld [vmem:[%s3640 + $0x330] sm:$0xff]
    %v3744 = vld [vmem:[%s3640 + $0x338] sm:$0xff]
    %v3745 = vld [vmem:[%s3640 + $0x340] sm:$0xff]
    %v3746 = vld [vmem:[%s3640 + $0x348] sm:$0xff]
    %v3747 = vld [vmem:[%s3640 + $0x350] sm:$0xff]
    %v3748 = vld [vmem:[%s3640 + $0x358] sm:$0xff]
    %v3749 = vld [vmem:[%s3640 + $0x360] sm:$0xff]
    %v3750 = vld [vmem:[%s3640 + $0x368] sm:$0xff]
    %v3751 = vld [vmem:[%s3640 + $0x370] sm:$0xff]
    %v3752 = vld [vmem:[%s3640 + $0x378] sm:$0xff]
    %v3753 = vld [vmem:[%s3640 + $0x380] sm:$0xff]
    %v3754 = vld [vmem:[%s3640 + $0x388] sm:$0xff]
    %v3755 = vld [vmem:[%s3640 + $0x390] sm:$0xff]
    %v3756 = vld [vmem:[%s3640 + $0x398] sm:$0xff]
    %v3757 = vld [vmem:[%s3640 + $0x3a0] sm:$0xff]
    %v3758 = vld [vmem:[%s3640 + $0x3a8] sm:$0xff]
    %v3759 = vld [vmem:[%s3640 + $0x3b0] sm:$0xff]
    %v3760 = vld [vmem:[%s3640 + $0x3b8] sm:$0xff]
    %v3761 = vld [vmem:[%s3640 + $0x3c0] sm:$0xff]
    %v3762 = vld [vmem:[%s3640 + $0x3c8] sm:$0xff]
    %v3763 = vld [vmem:[%s3640 + $0x3d0] sm:$0xff]
    %v3764 = vld [vmem:[%s3640 + $0x3d8] sm:$0xff]
    %v3765 = vld [vmem:[%s3640 + $0x3e0] sm:$0xff]
    %v3766 = vld [vmem:[%s3640 + $0x3e8] sm:$0xff]
    %v3767 = vld [vmem:[%s3640 + $0x3f0] sm:$0xff]
    %v3768 = vld [vmem:[%s3640 + $0x3f8] sm:$0xff]
    %v3897 = vunpack.c.l.b16 %v3641
    %v3898 = vunpack.c.h.b16 %v3641
    %v3899 = vunpack.c.l.b16 %v3642
    %v3900 = vunpack.c.h.b16 %v3642
    %v3901 = vunpack.c.l.b16 %v3643
    %v3902 = vunpack.c.h.b16 %v3643
    %v3903 = vunpack.c.l.b16 %v3644
    %v3904 = vunpack.c.h.b16 %v3644
    %v3905 = vunpack.c.l.b16 %v3645
    %v3906 = vunpack.c.h.b16 %v3645
    %v3907 = vunpack.c.l.b16 %v3646
    %v3908 = vunpack.c.h.b16 %v3646
    %v3909 = vunpack.c.l.b16 %v3647
    %v3910 = vunpack.c.h.b16 %v3647
    %v3911 = vunpack.c.l.b16 %v3648
    %v3912 = vunpack.c.h.b16 %v3648
    %v3913 = vunpack.c.l.b16 %v3649
    %v3914 = vunpack.c.h.b16 %v3649
    %v3915 = vunpack.c.l.b16 %v3650
    %v3916 = vunpack.c.h.b16 %v3650
    %v3917 = vunpack.c.l.b16 %v3651
    %v3918 = vunpack.c.h.b16 %v3651
    %v3919 = vunpack.c.l.b16 %v3652
    %v3920 = vunpack.c.h.b16 %v3652
    %v3921 = vunpack.c.l.b16 %v3653
    %v3922 = vunpack.c.h.b16 %v3653
    %v3923 = vunpack.c.l.b16 %v3654
    %v3924 = vunpack.c.h.b16 %v3654
    %v3925 = vunpack.c.l.b16 %v3655
    %v3926 = vunpack.c.h.b16 %v3655
    %v3927 = vunpack.c.l.b16 %v3656
    %v3928 = vunpack.c.h.b16 %v3656
    %v3929 = vunpack.c.l.b16 %v3657
    %v3930 = vunpack.c.h.b16 %v3657
    %v3931 = vunpack.c.l.b16 %v3658
    %v3932 = vunpack.c.h.b16 %v3658
    %v3933 = vunpack.c.l.b16 %v3659
    %v3934 = vunpack.c.h.b16 %v3659
    %v3935 = vunpack.c.l.b16 %v3660
    %v3936 = vunpack.c.h.b16 %v3660
    %v3937 = vunpack.c.l.b16 %v3661
    %v3938 = vunpack.c.h.b16 %v3661
    %v3939 = vunpack.c.l.b16 %v3662
    %v3940 = vunpack.c.h.b16 %v3662
    %v3941 = vunpack.c.l.b16 %v3663
    %v3942 = vunpack.c.h.b16 %v3663
    %v3943 = vunpack.c.l.b16 %v3664
    %v3944 = vunpack.c.h.b16 %v3664
    %v3945 = vunpack.c.l.b16 %v3665
    %v3946 = vunpack.c.h.b16 %v3665
    %v3947 = vunpack.c.l.b16 %v3666
    %v3948 = vunpack.c.h.b16 %v3666
    %v3949 = vunpack.c.l.b16 %v3667
    %v3950 = vunpack.c.h.b16 %v3667
    %v3951 = vunpack.c.l.b16 %v3668
    %v3952 = vunpack.c.h.b16 %v3668
    %v3953 = vunpack.c.l.b16 %v3669
    %v3954 = vunpack.c.h.b16 %v3669
    %v3955 = vunpack.c.l.b16 %v3670
    %v3956 = vunpack.c.h.b16 %v3670
    %v3957 = vunpack.c.l.b16 %v3671
    %v3958 = vunpack.c.h.b16 %v3671
    %v3959 = vunpack.c.l.b16 %v3672
    %v3960 = vunpack.c.h.b16 %v3672
    %v3961 = vunpack.c.l.b16 %v3673
    %v3962 = vunpack.c.h.b16 %v3673
    %v3963 = vunpack.c.l.b16 %v3674
    %v3964 = vunpack.c.h.b16 %v3674
    %v3965 = vunpack.c.l.b16 %v3675
    %v3966 = vunpack.c.h.b16 %v3675
    %v3967 = vunpack.c.l.b16 %v3676
    %v3968 = vunpack.c.h.b16 %v3676
    %v3969 = vunpack.c.l.b16 %v3677
    %v3970 = vunpack.c.h.b16 %v3677
    %v3971 = vunpack.c.l.b16 %v3678
    %v3972 = vunpack.c.h.b16 %v3678
    %v3973 = vunpack.c.l.b16 %v3679
    %v3974 = vunpack.c.h.b16 %v3679
    %v3975 = vunpack.c.l.b16 %v3680
    %v3976 = vunpack.c.h.b16 %v3680
    %v3977 = vunpack.c.l.b16 %v3681
    %v3978 = vunpack.c.h.b16 %v3681
    %v3979 = vunpack.c.l.b16 %v3682
    %v3980 = vunpack.c.h.b16 %v3682
    %v3981 = vunpack.c.l.b16 %v3683
    %v3982 = vunpack.c.h.b16 %v3683
    %v3983 = vunpack.c.l.b16 %v3684
    %v3984 = vunpack.c.h.b16 %v3684
    %v3985 = vunpack.c.l.b16 %v3685
    %v3986 = vunpack.c.h.b16 %v3685
    %v3987 = vunpack.c.l.b16 %v3686
    %v3988 = vunpack.c.h.b16 %v3686
    %v3989 = vunpack.c.l.b16 %v3687
    %v3990 = vunpack.c.h.b16 %v3687
    %v3991 = vunpack.c.l.b16 %v3688
    %v3992 = vunpack.c.h.b16 %v3688
    %v3993 = vunpack.c.l.b16 %v3689
    %v3994 = vunpack.c.h.b16 %v3689
    %v3995 = vunpack.c.l.b16 %v3690
    %v3996 = vunpack.c.h.b16 %v3690
    %v3997 = vunpack.c.l.b16 %v3691
    %v3998 = vunpack.c.h.b16 %v3691
    %v3999 = vunpack.c.l.b16 %v3692
    %v4000 = vunpack.c.h.b16 %v3692
    %v4001 = vunpack.c.l.b16 %v3693
    %v4002 = vunpack.c.h.b16 %v3693
    %v4003 = vunpack.c.l.b16 %v3694
    %v4004 = vunpack.c.h.b16 %v3694
    %v4005 = vunpack.c.l.b16 %v3695
    %v4006 = vunpack.c.h.b16 %v3695
    %v4007 = vunpack.c.l.b16 %v3696
    %v4008 = vunpack.c.h.b16 %v3696
    %v4009 = vunpack.c.l.b16 %v3697
    %v4010 = vunpack.c.h.b16 %v3697
    %v4011 = vunpack.c.l.b16 %v3698
    %v4012 = vunpack.c.h.b16 %v3698
    %v4013 = vunpack.c.l.b16 %v3699
    %v4014 = vunpack.c.h.b16 %v3699
    %v4015 = vunpack.c.l.b16 %v3700
    %v4016 = vunpack.c.h.b16 %v3700
    %v4017 = vunpack.c.l.b16 %v3701
    %v4018 = vunpack.c.h.b16 %v3701
    %v4019 = vunpack.c.l.b16 %v3702
    %v4020 = vunpack.c.h.b16 %v3702
    %v4021 = vunpack.c.l.b16 %v3703
    %v4022 = vunpack.c.h.b16 %v3703
    %v4023 = vunpack.c.l.b16 %v3704
    %v4024 = vunpack.c.h.b16 %v3704
    %v4025 = vunpack.c.l.b16 %v3705
    %v4026 = vunpack.c.h.b16 %v3705
    %v4027 = vunpack.c.l.b16 %v3706
    %v4028 = vunpack.c.h.b16 %v3706
    %v4029 = vunpack.c.l.b16 %v3707
    %v4030 = vunpack.c.h.b16 %v3707
    %v4031 = vunpack.c.l.b16 %v3708
    %v4032 = vunpack.c.h.b16 %v3708
    %v4033 = vunpack.c.l.b16 %v3709
    %v4034 = vunpack.c.h.b16 %v3709
    %v4035 = vunpack.c.l.b16 %v3710
    %v4036 = vunpack.c.h.b16 %v3710
    %v4037 = vunpack.c.l.b16 %v3711
    %v4038 = vunpack.c.h.b16 %v3711
    %v4039 = vunpack.c.l.b16 %v3712
    %v4040 = vunpack.c.h.b16 %v3712
    %v4041 = vunpack.c.l.b16 %v3713
    %v4042 = vunpack.c.h.b16 %v3713
    %v4043 = vunpack.c.l.b16 %v3714
    %v4044 = vunpack.c.h.b16 %v3714
    %v4045 = vunpack.c.l.b16 %v3715
    %v4046 = vunpack.c.h.b16 %v3715
    %v4047 = vunpack.c.l.b16 %v3716
    %v4048 = vunpack.c.h.b16 %v3716
    %v4049 = vunpack.c.l.b16 %v3717
    %v4050 = vunpack.c.h.b16 %v3717
    %v4051 = vunpack.c.l.b16 %v3718
    %v4052 = vunpack.c.h.b16 %v3718
    %v4053 = vunpack.c.l.b16 %v3719
    %v4054 = vunpack.c.h.b16 %v3719
    %v4055 = vunpack.c.l.b16 %v3720
    %v4056 = vunpack.c.h.b16 %v3720
    %v4057 = vunpack.c.l.b16 %v3721
    %v4058 = vunpack.c.h.b16 %v3721
    %v4059 = vunpack.c.l.b16 %v3722
    %v4060 = vunpack.c.h.b16 %v3722
    %v4061 = vunpack.c.l.b16 %v3723
    %v4062 = vunpack.c.h.b16 %v3723
    %v4063 = vunpack.c.l.b16 %v3724
    %v4064 = vunpack.c.h.b16 %v3724
    %v4065 = vunpack.c.l.b16 %v3725
    %v4066 = vunpack.c.h.b16 %v3725
    %v4067 = vunpack.c.l.b16 %v3726
    %v4068 = vunpack.c.h.b16 %v3726
    %v4069 = vunpack.c.l.b16 %v3727
    %v4070 = vunpack.c.h.b16 %v3727
    %v4071 = vunpack.c.l.b16 %v3728
    %v4072 = vunpack.c.h.b16 %v3728
    %v4073 = vunpack.c.l.b16 %v3729
    %v4074 = vunpack.c.h.b16 %v3729
    %v4075 = vunpack.c.l.b16 %v3730
    %v4076 = vunpack.c.h.b16 %v3730
    %v4077 = vunpack.c.l.b16 %v3731
    %v4078 = vunpack.c.h.b16 %v3731
    %v4079 = vunpack.c.l.b16 %v3732
    %v4080 = vunpack.c.h.b16 %v3732
    %v4081 = vunpack.c.l.b16 %v3733
    %v4082 = vunpack.c.h.b16 %v3733
    %v4083 = vunpack.c.l.b16 %v3734
    %v4084 = vunpack.c.h.b16 %v3734
    %v4085 = vunpack.c.l.b16 %v3735
    %v4086 = vunpack.c.h.b16 %v3735
    %v4087 = vunpack.c.l.b16 %v3736
    %v4088 = vunpack.c.h.b16 %v3736
    %v4089 = vunpack.c.l.b16 %v3737
    %v4090 = vunpack.c.h.b16 %v3737
    %v4091 = vunpack.c.l.b16 %v3738
    %v4092 = vunpack.c.h.b16 %v3738
    %v4093 = vunpack.c.l.b16 %v3739
    %v4094 = vunpack.c.h.b16 %v3739
    %v4095 = vunpack.c.l.b16 %v3740
    %v4096 = vunpack.c.h.b16 %v3740
    %v4097 = vunpack.c.l.b16 %v3741
    %v4098 = vunpack.c.h.b16 %v3741
    %v4099 = vunpack.c.l.b16 %v3742
    %v4100 = vunpack.c.h.b16 %v3742
    %v4101 = vunpack.c.l.b16 %v3743
    %v4102 = vunpack.c.h.b16 %v3743
    %v4103 = vunpack.c.l.b16 %v3744
    %v4104 = vunpack.c.h.b16 %v3744
    %v4105 = vunpack.c.l.b16 %v3745
    %v4106 = vunpack.c.h.b16 %v3745
    %v4107 = vunpack.c.l.b16 %v3746
    %v4108 = vunpack.c.h.b16 %v3746
    %v4109 = vunpack.c.l.b16 %v3747
    %v4110 = vunpack.c.h.b16 %v3747
    %v4111 = vunpack.c.l.b16 %v3748
    %v4112 = vunpack.c.h.b16 %v3748
    %v4113 = vunpack.c.l.b16 %v3749
    %v4114 = vunpack.c.h.b16 %v3749
    %v4115 = vunpack.c.l.b16 %v3750
    %v4116 = vunpack.c.h.b16 %v3750
    %v4117 = vunpack.c.l.b16 %v3751
    %v4118 = vunpack.c.h.b16 %v3751
    %v4119 = vunpack.c.l.b16 %v3752
    %v4120 = vunpack.c.h.b16 %v3752
    %v4121 = vunpack.c.l.b16 %v3753
    %v4122 = vunpack.c.h.b16 %v3753
    %v4123 = vunpack.c.l.b16 %v3754
    %v4124 = vunpack.c.h.b16 %v3754
    %v4125 = vunpack.c.l.b16 %v3755
    %v4126 = vunpack.c.h.b16 %v3755
    %v4127 = vunpack.c.l.b16 %v3756
    %v4128 = vunpack.c.h.b16 %v3756
    %v4129 = vunpack.c.l.b16 %v3757
    %v4130 = vunpack.c.h.b16 %v3757
    %v4131 = vunpack.c.l.b16 %v3758
    %v4132 = vunpack.c.h.b16 %v3758
    %v4133 = vunpack.c.l.b16 %v3759
    %v4134 = vunpack.c.h.b16 %v3759
    %v4135 = vunpack.c.l.b16 %v3760
    %v4136 = vunpack.c.h.b16 %v3760
    %v4137 = vunpack.c.l.b16 %v3761
    %v4138 = vunpack.c.h.b16 %v3761
    %v4139 = vunpack.c.l.b16 %v3762
    %v4140 = vunpack.c.h.b16 %v3762
    %v4141 = vunpack.c.l.b16 %v3763
    %v4142 = vunpack.c.h.b16 %v3763
    %v4143 = vunpack.c.l.b16 %v3764
    %v4144 = vunpack.c.h.b16 %v3764
    %v4145 = vunpack.c.l.b16 %v3765
    %v4146 = vunpack.c.h.b16 %v3765
    %v4147 = vunpack.c.l.b16 %v3766
    %v4148 = vunpack.c.h.b16 %v3766
    %v4149 = vunpack.c.l.b16 %v3767
    %v4150 = vunpack.c.h.b16 %v3767
    %v4151 = vunpack.c.l.b16 %v3768
    %v4152 = vunpack.c.h.b16 %v3768
    %v4153 = vpack.c.b16 %v3913, %v3897
    %v4154 = vpack.c.b16 %v3914, %v3898
    %v4155 = vpack.c.b16 %v3915, %v3899
    %v4156 = vpack.c.b16 %v3916, %v3900
    %v4157 = vpack.c.b16 %v3917, %v3901
    %v4158 = vpack.c.b16 %v3918, %v3902
    %v4159 = vpack.c.b16 %v3919, %v3903
    %v4160 = vpack.c.b16 %v3920, %v3904
    %v4161 = vpack.c.b16 %v3921, %v3905
    %v4162 = vpack.c.b16 %v3922, %v3906
    %v4163 = vpack.c.b16 %v3923, %v3907
    %v4164 = vpack.c.b16 %v3924, %v3908
    %v4165 = vpack.c.b16 %v3925, %v3909
    %v4166 = vpack.c.b16 %v3926, %v3910
    %v4167 = vpack.c.b16 %v3927, %v3911
    %v4168 = vpack.c.b16 %v3928, %v3912
    %v4169 = vpack.c.b16 %v3945, %v3929
    %v4170 = vpack.c.b16 %v3946, %v3930
    %v4171 = vpack.c.b16 %v3947, %v3931
    %v4172 = vpack.c.b16 %v3948, %v3932
    %v4173 = vpack.c.b16 %v3949, %v3933
    %v4174 = vpack.c.b16 %v3950, %v3934
    %v4175 = vpack.c.b16 %v3951, %v3935
    %v4176 = vpack.c.b16 %v3952, %v3936
    %v4177 = vpack.c.b16 %v3953, %v3937
    %v4178 = vpack.c.b16 %v3954, %v3938
    %v4179 = vpack.c.b16 %v3955, %v3939
    %v4180 = vpack.c.b16 %v3956, %v3940
    %v4181 = vpack.c.b16 %v3957, %v3941
    %v4182 = vpack.c.b16 %v3958, %v3942
    %v4183 = vpack.c.b16 %v3959, %v3943
    %v4184 = vpack.c.b16 %v3960, %v3944
    %v4185 = vpack.c.b16 %v3977, %v3961
    %v4186 = vpack.c.b16 %v3978, %v3962
    %v4187 = vpack.c.b16 %v3979, %v3963
    %v4188 = vpack.c.b16 %v3980, %v3964
    %v4189 = vpack.c.b16 %v3981, %v3965
    %v4190 = vpack.c.b16 %v3982, %v3966
    %v4191 = vpack.c.b16 %v3983, %v3967
    %v4192 = vpack.c.b16 %v3984, %v3968
    %v4193 = vpack.c.b16 %v3985, %v3969
    %v4194 = vpack.c.b16 %v3986, %v3970
    %v4195 = vpack.c.b16 %v3987, %v3971
    %v4196 = vpack.c.b16 %v3988, %v3972
    %v4197 = vpack.c.b16 %v3989, %v3973
    %v4198 = vpack.c.b16 %v3990, %v3974
    %v4199 = vpack.c.b16 %v3991, %v3975
    %v4200 = vpack.c.b16 %v3992, %v3976
    %v4201 = vpack.c.b16 %v4009, %v3993
    %v4202 = vpack.c.b16 %v4010, %v3994
    %v4203 = vpack.c.b16 %v4011, %v3995
    %v4204 = vpack.c.b16 %v4012, %v3996
    %v4205 = vpack.c.b16 %v4013, %v3997
    %v4206 = vpack.c.b16 %v4014, %v3998
    %v4207 = vpack.c.b16 %v4015, %v3999
    %v4208 = vpack.c.b16 %v4016, %v4000
    %v4209 = vpack.c.b16 %v4017, %v4001
    %v4210 = vpack.c.b16 %v4018, %v4002
    %v4211 = vpack.c.b16 %v4019, %v4003
    %v4212 = vpack.c.b16 %v4020, %v4004
    %v4213 = vpack.c.b16 %v4021, %v4005
    %v4214 = vpack.c.b16 %v4022, %v4006
    %v4215 = vpack.c.b16 %v4023, %v4007
    %v4216 = vpack.c.b16 %v4024, %v4008
    %v4217 = vpack.c.b16 %v4041, %v4025
    %v4218 = vpack.c.b16 %v4042, %v4026
    %v4219 = vpack.c.b16 %v4043, %v4027
    %v4220 = vpack.c.b16 %v4044, %v4028
    %v4221 = vpack.c.b16 %v4045, %v4029
    %v4222 = vpack.c.b16 %v4046, %v4030
    %v4223 = vpack.c.b16 %v4047, %v4031
    %v4224 = vpack.c.b16 %v4048, %v4032
    %v4225 = vpack.c.b16 %v4049, %v4033
    %v4226 = vpack.c.b16 %v4050, %v4034
    %v4227 = vpack.c.b16 %v4051, %v4035
    %v4228 = vpack.c.b16 %v4052, %v4036
    %v4229 = vpack.c.b16 %v4053, %v4037
    %v4230 = vpack.c.b16 %v4054, %v4038
    %v4231 = vpack.c.b16 %v4055, %v4039
    %v4232 = vpack.c.b16 %v4056, %v4040
    %v4233 = vpack.c.b16 %v4073, %v4057
    %v4234 = vpack.c.b16 %v4074, %v4058
    %v4235 = vpack.c.b16 %v4075, %v4059
    %v4236 = vpack.c.b16 %v4076, %v4060
    %v4237 = vpack.c.b16 %v4077, %v4061
    %v4238 = vpack.c.b16 %v4078, %v4062
    %v4239 = vpack.c.b16 %v4079, %v4063
    %v4240 = vpack.c.b16 %v4080, %v4064
    %v4241 = vpack.c.b16 %v4081, %v4065
    %v4242 = vpack.c.b16 %v4082, %v4066
    %v4243 = vpack.c.b16 %v4083, %v4067
    %v4244 = vpack.c.b16 %v4084, %v4068
    %v4245 = vpack.c.b16 %v4085, %v4069
    %v4246 = vpack.c.b16 %v4086, %v4070
    %v4247 = vpack.c.b16 %v4087, %v4071
    %v4248 = vpack.c.b16 %v4088, %v4072
    %v4249 = vpack.c.b16 %v4105, %v4089
    %v4250 = vpack.c.b16 %v4106, %v4090
    %v4251 = vpack.c.b16 %v4107, %v4091
    %v4252 = vpack.c.b16 %v4108, %v4092
    %v4253 = vpack.c.b16 %v4109, %v4093
    %v4254 = vpack.c.b16 %v4110, %v4094
    %v4255 = vpack.c.b16 %v4111, %v4095
    %v4256 = vpack.c.b16 %v4112, %v4096
    %v4257 = vpack.c.b16 %v4113, %v4097
    %v4258 = vpack.c.b16 %v4114, %v4098
    %v4259 = vpack.c.b16 %v4115, %v4099
    %v4260 = vpack.c.b16 %v4116, %v4100
    %v4261 = vpack.c.b16 %v4117, %v4101
    %v4262 = vpack.c.b16 %v4118, %v4102
    %v4263 = vpack.c.b16 %v4119, %v4103
    %v4264 = vpack.c.b16 %v4120, %v4104
    %v4265 = vpack.c.b16 %v4137, %v4121
    %v4266 = vpack.c.b16 %v4138, %v4122
    %v4267 = vpack.c.b16 %v4139, %v4123
    %v4268 = vpack.c.b16 %v4140, %v4124
    %v4269 = vpack.c.b16 %v4141, %v4125
    %v4270 = vpack.c.b16 %v4142, %v4126
    %v4271 = vpack.c.b16 %v4143, %v4127
    %v4272 = vpack.c.b16 %v4144, %v4128
    %v4273 = vpack.c.b16 %v4145, %v4129
    %v4274 = vpack.c.b16 %v4146, %v4130
    %v4275 = vpack.c.b16 %v4147, %v4131
    %v4276 = vpack.c.b16 %v4148, %v4132
    %v4277 = vpack.c.b16 %v4149, %v4133
    %v4278 = vpack.c.b16 %v4150, %v4134
    %v4279 = vpack.c.b16 %v4151, %v4135
    %v4280 = vpack.c.b16 %v4152, %v4136
    %4409 = vmatprep.subr.bf16.mxu0 %v4154
    %4410 = vmatpush1.bf16.msra.mxu0 %v4153
    %4411 = vmatprep.subr.bf16.mxu0 %v4170
    %4412 = vmatpush1.bf16.msra.mxu0 %v4169
    %4413 = vmatprep.subr.bf16.mxu0 %v4186
    %4414 = vmatpush1.bf16.msra.mxu0 %v4185
    %4415 = vmatprep.subr.bf16.mxu0 %v4202
    %4416 = vmatpush1.bf16.msra.mxu0 %v4201
    %4417 = vmatprep.subr.bf16.mxu0 %v4218
    %4418 = vmatpush1.bf16.msra.mxu0 %v4217
    %4419 = vmatprep.subr.bf16.mxu0 %v4234
    %4420 = vmatpush1.bf16.msra.mxu0 %v4233
    %4421 = vmatprep.subr.bf16.mxu0 %v4250
    %4422 = vmatpush1.bf16.msra.mxu0 %v4249
    %4423 = vmatprep.subr.bf16.mxu0 %v4266
    %4424 = vmatpush1.bf16.msra.mxu0 %v4265
    %4425 = vmatprep.subr.bf16.mxu0 0
    %4426 = vmatpush1.bf16.msra.mxu0 0
    %4427 = vmatprep.subr.bf16.mxu0 0
    %4428 = vmatpush1.bf16.msra.mxu0 0
    %4429 = vmatprep.subr.bf16.mxu0 0
    %4430 = vmatpush1.bf16.msra.mxu0 0
    %4431 = vmatprep.subr.bf16.mxu0 0
    %4432 = vmatpush1.bf16.msra.mxu0 0
    %4433 = vmatprep.subr.bf16.mxu0 0
    %4434 = vmatpush1.bf16.msra.mxu0 0
    %4435 = vmatprep.subr.bf16.mxu0 0
    %4436 = vmatpush1.bf16.msra.mxu0 0
    %4437 = vmatprep.subr.bf16.mxu0 0
    %4438 = vmatpush1.bf16.msra.mxu0 0
    %4439 = vmatprep.subr.bf16.mxu0 0
    %4440 = vmatpush1.bf16.msra.mxu0 0
    %4441 = vmatprep.mubr.bf16.mxu0 0
    %4442 = vmatmul.mubr.bf16.gmra.mrb[0].mxu0 %v3639
    %v4443 = vpop.f32.mrb[0].mxu0
    %v4444 = vadd.f32 0.0, %v4443
    %v4445 = vpop.f32.mrb[0].mxu0
    %v4446 = vadd.f32 0.0, %v4445
    %v4447 = vpop.f32.mrb[0].mxu0
    %v4448 = vpop.f32.mrb[0].mxu0
    %4449 = vdwg.mxu0
    %4450 = vmatprep.subr.bf16.mxu0 %v4156
    %4451 = vmatpush1.bf16.msra.mxu0 %v4155
    %4452 = vmatprep.subr.bf16.mxu0 %v4172
    %4453 = vmatpush1.bf16.msra.mxu0 %v4171
    %4454 = vmatprep.subr.bf16.mxu0 %v4188
    %4455 = vmatpush1.bf16.msra.mxu0 %v4187
    %4456 = vmatprep.subr.bf16.mxu0 %v4204
    %4457 = vmatpush1.bf16.msra.mxu0 %v4203
    %4458 = vmatprep.subr.bf16.mxu0 %v4220
    %4459 = vmatpush1.bf16.msra.mxu0 %v4219
    %4460 = vmatprep.subr.bf16.mxu0 %v4236
    %4461 = vmatpush1.bf16.msra.mxu0 %v4235
    %4462 = vmatprep.subr.bf16.mxu0 %v4252
    %4463 = vmatpush1.bf16.msra.mxu0 %v4251
    %4464 = vmatprep.subr.bf16.mxu0 %v4268
    %4465 = vmatpush1.bf16.msra.mxu0 %v4267
    %4466 = vmatprep.subr.bf16.mxu0 0
    %4467 = vmatpush1.bf16.msra.mxu0 0
    %4468 = vmatprep.subr.bf16.mxu0 0
    %4469 = vmatpush1.bf16.msra.mxu0 0
    %4470 = vmatprep.subr.bf16.mxu0 0
    %4471 = vmatpush1.bf16.msra.mxu0 0
    %4472 = vmatprep.subr.bf16.mxu0 0
    %4473 = vmatpush1.bf16.msra.mxu0 0
    %4474 = vmatprep.subr.bf16.mxu0 0
    %4475 = vmatpush1.bf16.msra.mxu0 0
    %4476 = vmatprep.subr.bf16.mxu0 0
    %4477 = vmatpush1.bf16.msra.mxu0 0
    %4478 = vmatprep.subr.bf16.mxu0 0
    %4479 = vmatpush1.bf16.msra.mxu0 0
    %4480 = vmatprep.subr.bf16.mxu0 0
    %4481 = vmatpush1.bf16.msra.mxu0 0
    %4482 = vmatprep.mubr.bf16.mxu0 0
    %4483 = vmatmul.mubr.bf16.gmra.mrb[0].mxu0 %v3639
    %v4484 = vpop.f32.mrb[0].mxu0
    %v4485 = vadd.f32 0.0, %v4484
    %v4486 = vpop.f32.mrb[0].mxu0
    %v4487 = vadd.f32 0.0, %v4486
    %v4488 = vpop.f32.mrb[0].mxu0
    %v4489 = vpop.f32.mrb[0].mxu0
    %4490 = vdwg.mxu0
    %4491 = vmatprep.subr.bf16.mxu0 %v4158
    %4492 = vmatpush1.bf16.msra.mxu0 %v4157
    %4493 = vmatprep.subr.bf16.mxu0 %v4174
    %4494 = vmatpush1.bf16.msra.mxu0 %v4173
    %4495 = vmatprep.subr.bf16.mxu0 %v4190
    %4496 = vmatpush1.bf16.msra.mxu0 %v4189
    %4497 = vmatprep.subr.bf16.mxu0 %v4206
    %4498 = vmatpush1.bf16.msra.mxu0 %v4205
    %4499 = vmatprep.subr.bf16.mxu0 %v4222
    %4500 = vmatpush1.bf16.msra.mxu0 %v4221
    %4501 = vmatprep.subr.bf16.mxu0 %v4238
    %4502 = vmatpush1.bf16.msra.mxu0 %v4237
    %4503 = vmatprep.subr.bf16.mxu0 %v4254
    %4504 = vmatpush1.bf16.msra.mxu0 %v4253
    %4505 = vmatprep.subr.bf16.mxu0 %v4270
    %4506 = vmatpush1.bf16.msra.mxu0 %v4269
    %4507 = vmatprep.subr.bf16.mxu0 0
    %4508 = vmatpush1.bf16.msra.mxu0 0
    %4509 = vmatprep.subr.bf16.mxu0 0
    %4510 = vmatpush1.bf16.msra.mxu0 0
    %4511 = vmatprep.subr.bf16.mxu0 0
    %4512 = vmatpush1.bf16.msra.mxu0 0
    %4513 = vmatprep.subr.bf16.mxu0 0
    %4514 = vmatpush1.bf16.msra.mxu0 0
    %4515 = vmatprep.subr.bf16.mxu0 0
    %4516 = vmatpush1.bf16.msra.mxu0 0
    %4517 = vmatprep.subr.bf16.mxu0 0
    %4518 = vmatpush1.bf16.msra.mxu0 0
    %4519 = vmatprep.subr.bf16.mxu0 0
    %4520 = vmatpush1.bf16.msra.mxu0 0
    %4521 = vmatprep.subr.bf16.mxu0 0
    %4522 = vmatpush1.bf16.msra.mxu0 0
    %4523 = vmatprep.mubr.bf16.mxu0 0
    %4524 = vmatmul.mubr.bf16.gmra.mrb[0].mxu0 %v3639
    %v4525 = vpop.f32.mrb[0].mxu0
    %v4526 = vadd.f32 0.0, %v4525
    %v4527 = vpop.f32.mrb[0].mxu0
    %v4528 = vadd.f32 0.0, %v4527
    %v4529 = vpop.f32.mrb[0].mxu0
    %v4530 = vpop.f32.mrb[0].mxu0
    %4531 = vdwg.mxu0
    %4532 = vmatprep.subr.bf16.mxu0 %v4160
    %4533 = vmatpush1.bf16.msra.mxu0 %v4159
    %4534 = vmatprep.subr.bf16.mxu0 %v4176
    %4535 = vmatpush1.bf16.msra.mxu0 %v4175
    %4536 = vmatprep.subr.bf16.mxu0 %v4192
    %4537 = vmatpush1.bf16.msra.mxu0 %v4191
    %4538 = vmatprep.subr.bf16.mxu0 %v4208
    %4539 = vmatpush1.bf16.msra.mxu0 %v4207
    %4540 = vmatprep.subr.bf16.mxu0 %v4224
    %4541 = vmatpush1.bf16.msra.mxu0 %v4223
    %4542 = vmatprep.subr.bf16.mxu0 %v4240
    %4543 = vmatpush1.bf16.msra.mxu0 %v4239
    %4544 = vmatprep.subr.bf16.mxu0 %v4256
    %4545 = vmatpush1.bf16.msra.mxu0 %v4255
    %4546 = vmatprep.subr.bf16.mxu0 %v4272
    %4547 = vmatpush1.bf16.msra.mxu0 %v4271
    %4548 = vmatprep.subr.bf16.mxu0 0
    %4549 = vmatpush1.bf16.msra.mxu0 0
    %4550 = vmatprep.subr.bf16.mxu0 0
    %4551 = vmatpush1.bf16.msra.mxu0 0
    %4552 = vmatprep.subr.bf16.mxu0 0
    %4553 = vmatpush1.bf16.msra.mxu0 0
    %4554 = vmatprep.subr.bf16.mxu0 0
    %4555 = vmatpush1.bf16.msra.mxu0 0
    %4556 = vmatprep.subr.bf16.mxu0 0
    %4557 = vmatpush1.bf16.msra.mxu0 0
    %4558 = vmatprep.subr.bf16.mxu0 0
    %4559 = vmatpush1.bf16.msra.mxu0 0
    %4560 = vmatprep.subr.bf16.mxu0 0
    %4561 = vmatpush1.bf16.msra.mxu0 0
    %4562 = vmatprep.subr.bf16.mxu0 0
    %4563 = vmatpush1.bf16.msra.mxu0 0
    %4564 = vmatprep.mubr.bf16.mxu0 0
    %4565 = vmatmul.mubr.bf16.gmra.mrb[0].mxu0 %v3639
    %v4566 = vpop.f32.mrb[0].mxu0
    %v4567 = vadd.f32 0.0, %v4566
    %v4568 = vpop.f32.mrb[0].mxu0
    %v4569 = vadd.f32 0.0, %v4568
    %v4570 = vpop.f32.mrb[0].mxu0
    %v4571 = vpop.f32.mrb[0].mxu0
    %4572 = vdwg.mxu0
    %4573 = vmatprep.subr.bf16.mxu0 %v4162
    %4574 = vmatpush1.bf16.msra.mxu0 %v4161
    %4575 = vmatprep.subr.bf16.mxu0 %v4178
    %4576 = vmatpush1.bf16.msra.mxu0 %v4177
    %4577 = vmatprep.subr.bf16.mxu0 %v4194
    %4578 = vmatpush1.bf16.msra.mxu0 %v4193
    %4579 = vmatprep.subr.bf16.mxu0 %v4210
    %4580 = vmatpush1.bf16.msra.mxu0 %v4209
    %4581 = vmatprep.subr.bf16.mxu0 %v4226
    %4582 = vmatpush1.bf16.msra.mxu0 %v4225
    %4583 = vmatprep.subr.bf16.mxu0 %v4242
    %4584 = vmatpush1.bf16.msra.mxu0 %v4241
    %4585 = vmatprep.subr.bf16.mxu0 %v4258
    %4586 = vmatpush1.bf16.msra.mxu0 %v4257
    %4587 = vmatprep.subr.bf16.mxu0 %v4274
    %4588 = vmatpush1.bf16.msra.mxu0 %v4273
    %4589 = vmatprep.subr.bf16.mxu0 0
    %4590 = vmatpush1.bf16.msra.mxu0 0
    %4591 = vmatprep.subr.bf16.mxu0 0
    %4592 = vmatpush1.bf16.msra.mxu0 0
    %4593 = vmatprep.subr.bf16.mxu0 0
    %4594 = vmatpush1.bf16.msra.mxu0 0
    %4595 = vmatprep.subr.bf16.mxu0 0
    %4596 = vmatpush1.bf16.msra.mxu0 0
    %4597 = vmatprep.subr.bf16.mxu0 0
    %4598 = vmatpush1.bf16.msra.mxu0 0
    %4599 = vmatprep.subr.bf16.mxu0 0
    %4600 = vmatpush1.bf16.msra.mxu0 0
    %4601 = vmatprep.subr.bf16.mxu0 0
    %4602 = vmatpush1.bf16.msra.mxu0 0
    %4603 = vmatprep.subr.bf16.mxu0 0
    %4604 = vmatpush1.bf16.msra.mxu0 0
    %4605 = vmatprep.mubr.bf16.mxu0 0
    %4606 = vmatmul.mubr.bf16.gmra.mrb[0].mxu0 %v3639
    %v4607 = vpop.f32.mrb[0].mxu0
    %v4608 = vadd.f32 0.0, %v4607
    %v4609 = vpop.f32.mrb[0].mxu0
    %v4610 = vadd.f32 0.0, %v4609
    %v4611 = vpop.f32.mrb[0].mxu0
    %v4612 = vpop.f32.mrb[0].mxu0
    %4613 = vdwg.mxu0
    %4614 = vmatprep.subr.bf16.mxu0 %v4164
    %4615 = vmatpush1.bf16.msra.mxu0 %v4163
    %4616 = vmatprep.subr.bf16.mxu0 %v4180
    %4617 = vmatpush1.bf16.msra.mxu0 %v4179
    %4618 = vmatprep.subr.bf16.mxu0 %v4196
    %4619 = vmatpush1.bf16.msra.mxu0 %v4195
    %4620 = vmatprep.subr.bf16.mxu0 %v4212
    %4621 = vmatpush1.bf16.msra.mxu0 %v4211
    %4622 = vmatprep.subr.bf16.mxu0 %v4228
    %4623 = vmatpush1.bf16.msra.mxu0 %v4227
    %4624 = vmatprep.subr.bf16.mxu0 %v4244
    %4625 = vmatpush1.bf16.msra.mxu0 %v4243
    %4626 = vmatprep.subr.bf16.mxu0 %v4260
    %4627 = vmatpush1.bf16.msra.mxu0 %v4259
    %4628 = vmatprep.subr.bf16.mxu0 %v4276
    %4629 = vmatpush1.bf16.msra.mxu0 %v4275
    %4630 = vmatprep.subr.bf16.mxu0 0
    %4631 = vmatpush1.bf16.msra.mxu0 0
    %4632 = vmatprep.subr.bf16.mxu0 0
    %4633 = vmatpush1.bf16.msra.mxu0 0
    %4634 = vmatprep.subr.bf16.mxu0 0
    %4635 = vmatpush1.bf16.msra.mxu0 0
    %4636 = vmatprep.subr.bf16.mxu0 0
    %4637 = vmatpush1.bf16.msra.mxu0 0
    %4638 = vmatprep.subr.bf16.mxu0 0
    %4639 = vmatpush1.bf16.msra.mxu0 0
    %4640 = vmatprep.subr.bf16.mxu0 0
    %4641 = vmatpush1.bf16.msra.mxu0 0
    %4642 = vmatprep.subr.bf16.mxu0 0
    %4643 = vmatpush1.bf16.msra.mxu0 0
    %4644 = vmatprep.subr.bf16.mxu0 0
    %4645 = vmatpush1.bf16.msra.mxu0 0
    %4646 = vmatprep.mubr.bf16.mxu0 0
    %4647 = vmatmul.mubr.bf16.gmra.mrb[0].mxu0 %v3639
    %v4648 = vpop.f32.mrb[0].mxu0
    %v4649 = vadd.f32 0.0, %v4648
    %v4650 = vpop.f32.mrb[0].mxu0
    %v4651 = vadd.f32 0.0, %v4650
    %v4652 = vpop.f32.mrb[0].mxu0
    %v4653 = vpop.f32.mrb[0].mxu0
    %4654 = vdwg.mxu0
    %4655 = vmatprep.subr.bf16.mxu0 %v4166
    %4656 = vmatpush1.bf16.msra.mxu0 %v4165
    %4657 = vmatprep.subr.bf16.mxu0 %v4182
    %4658 = vmatpush1.bf16.msra.mxu0 %v4181
    %4659 = vmatprep.subr.bf16.mxu0 %v4198
    %4660 = vmatpush1.bf16.msra.mxu0 %v4197
    %4661 = vmatprep.subr.bf16.mxu0 %v4214
    %4662 = vmatpush1.bf16.msra.mxu0 %v4213
    %4663 = vmatprep.subr.bf16.mxu0 %v4230
    %4664 = vmatpush1.bf16.msra.mxu0 %v4229
    %4665 = vmatprep.subr.bf16.mxu0 %v4246
    %4666 = vmatpush1.bf16.msra.mxu0 %v4245
    %4667 = vmatprep.subr.bf16.mxu0 %v4262
    %4668 = vmatpush1.bf16.msra.mxu0 %v4261
    %4669 = vmatprep.subr.bf16.mxu0 %v4278
    %4670 = vmatpush1.bf16.msra.mxu0 %v4277
    %4671 = vmatprep.subr.bf16.mxu0 0
    %4672 = vmatpush1.bf16.msra.mxu0 0
    %4673 = vmatprep.subr.bf16.mxu0 0
    %4674 = vmatpush1.bf16.msra.mxu0 0
    %4675 = vmatprep.subr.bf16.mxu0 0
    %4676 = vmatpush1.bf16.msra.mxu0 0
    %4677 = vmatprep.subr.bf16.mxu0 0
    %4678 = vmatpush1.bf16.msra.mxu0 0
    %4679 = vmatprep.subr.bf16.mxu0 0
    %4680 = vmatpush1.bf16.msra.mxu0 0
    %4681 = vmatprep.subr.bf16.mxu0 0
    %4682 = vmatpush1.bf16.msra.mxu0 0
    %4683 = vmatprep.subr.bf16.mxu0 0
    %4684 = vmatpush1.bf16.msra.mxu0 0
    %4685 = vmatprep.subr.bf16.mxu0 0
    %4686 = vmatpush1.bf16.msra.mxu0 0
    %4687 = vmatprep.mubr.bf16.mxu0 0
    %4688 = vmatmul.mubr.bf16.gmra.mrb[0].mxu0 %v3639
    %v4689 = vpop.f32.mrb[0].mxu0
    %v4690 = vadd.f32 0.0, %v4689
    %v4691 = vpop.f32.mrb[0].mxu0
    %v4692 = vadd.f32 0.0, %v4691
    %v4693 = vpop.f32.mrb[0].mxu0
    %v4694 = vpop.f32.mrb[0].mxu0
    %4695 = vdwg.mxu0
    %4696 = vmatprep.subr.bf16.mxu0 %v4168
    %4697 = vmatpush1.bf16.msra.mxu0 %v4167
    %4698 = vmatprep.subr.bf16.mxu0 %v4184
    %4699 = vmatpush1.bf16.msra.mxu0 %v4183
    %4700 = vmatprep.subr.bf16.mxu0 %v4200
    %4701 = vmatpush1.bf16.msra.mxu0 %v4199
    %4702 = vmatprep.subr.bf16.mxu0 %v4216
    %4703 = vmatpush1.bf16.msra.mxu0 %v4215
    %4704 = vmatprep.subr.bf16.mxu0 %v4232
    %4705 = vmatpush1.bf16.msra.mxu0 %v4231
    %4706 = vmatprep.subr.bf16.mxu0 %v4248
    %4707 = vmatpush1.bf16.msra.mxu0 %v4247
    %4708 = vmatprep.subr.bf16.mxu0 %v4264
    %4709 = vmatpush1.bf16.msra.mxu0 %v4263
    %4710 = vmatprep.subr.bf16.mxu0 %v4280
    %4711 = vmatpush1.bf16.msra.mxu0 %v4279
    %4712 = vmatprep.subr.bf16.mxu0 0
    %4713 = vmatpush1.bf16.msra.mxu0 0
    %4714 = vmatprep.subr.bf16.mxu0 0
    %4715 = vmatpush1.bf16.msra.mxu0 0
    %4716 = vmatprep.subr.bf16.mxu0 0
    %4717 = vmatpush1.bf16.msra.mxu0 0
    %4718 = vmatprep.subr.bf16.mxu0 0
    %4719 = vmatpush1.bf16.msra.mxu0 0
    %4720 = vmatprep.subr.bf16.mxu0 0
    %4721 = vmatpush1.bf16.msra.mxu0 0
    %4722 = vmatprep.subr.bf16.mxu0 0
    %4723 = vmatpush1.bf16.msra.mxu0 0
    %4724 = vmatprep.subr.bf16.mxu0 0
    %4725 = vmatpush1.bf16.msra.mxu0 0
    %4726 = vmatprep.subr.bf16.mxu0 0
    %4727 = vmatpush1.bf16.msra.mxu0 0
    %4728 = vmatprep.mubr.bf16.mxu0 0
    %4729 = vmatmul.mubr.bf16.gmra.mrb[0].mxu0 %v3639
    %v4730 = vpop.f32.mrb[0].mxu0
    %v4731 = vadd.f32 0.0, %v4730
    %v4732 = vpop.f32.mrb[0].mxu0
    %v4733 = vadd.f32 0.0, %v4732
    %v4734 = vpop.f32.mrb[0].mxu0
    %v4735 = vpop.f32.mrb[0].mxu0
    %4736 = vdwg.mxu0
    %v4737 = vadd.f32 %v3345, %v4444
    %v4738 = vadd.f32 %v3347, %v4446
    %v4739 = vadd.f32 %v3386, %v4485
    %v4740 = vadd.f32 %v3388, %v4487
    %v4741 = vadd.f32 %v3427, %v4526
    %v4742 = vadd.f32 %v3429, %v4528
    %v4743 = vadd.f32 %v3468, %v4567
    %v4744 = vadd.f32 %v3470, %v4569
    %v4745 = vadd.f32 %v3509, %v4608
    %v4746 = vadd.f32 %v3511, %v4610
    %v4747 = vadd.f32 %v3550, %v4649
    %v4748 = vadd.f32 %v3552, %v4651
    %v4749 = vadd.f32 %v3591, %v4690
    %v4750 = vadd.f32 %v3593, %v4692
    %v4751 = vadd.f32 %v3632, %v4731
    %v4752 = vadd.f32 %v3634, %v4733
    %v4753 = vld [vmem:[#allocation4 + $0x6] sm:$0x3]
    %v4754 = vpack.c.bf16 %v4753, %v4753
    %s4755 = scalar_lea.vmem [#allocation16], 3072
    %v4756 = vld [vmem:[%s4755] sm:$0xff]
    %v4757 = vld [vmem:[%s4755 + $0x8] sm:$0xff]
    %v4758 = vld [vmem:[%s4755 + $0x10] sm:$0xff]
    %v4759 = vld [vmem:[%s4755 + $0x18] sm:$0xff]
    %v4760 = vld [vmem:[%s4755 + $0x20] sm:$0xff]
    %v4761 = vld [vmem:[%s4755 + $0x28] sm:$0xff]
    %v4762 = vld [vmem:[%s4755 + $0x30] sm:$0xff]
    %v4763 = vld [vmem:[%s4755 + $0x38] sm:$0xff]
    %v4764 = vld [vmem:[%s4755 + $0x40] sm:$0xff]
    %v4765 = vld [vmem:[%s4755 + $0x48] sm:$0xff]
    %v4766 = vld [vmem:[%s4755 + $0x50] sm:$0xff]
    %v4767 = vld [vmem:[%s4755 + $0x58] sm:$0xff]
    %v4768 = vld [vmem:[%s4755 + $0x60] sm:$0xff]
    %v4769 = vld [vmem:[%s4755 + $0x68] sm:$0xff]
    %v4770 = vld [vmem:[%s4755 + $0x70] sm:$0xff]
    %v4771 = vld [vmem:[%s4755 + $0x78] sm:$0xff]
    %v4772 = vld [vmem:[%s4755 + $0x80] sm:$0xff]
    %v4773 = vld [vmem:[%s4755 + $0x88] sm:$0xff]
    %v4774 = vld [vmem:[%s4755 + $0x90] sm:$0xff]
    %v4775 = vld [vmem:[%s4755 + $0x98] sm:$0xff]
    %v4776 = vld [vmem:[%s4755 + $0xa0] sm:$0xff]
    %v4777 = vld [vmem:[%s4755 + $0xa8] sm:$0xff]
    %v4778 = vld [vmem:[%s4755 + $0xb0] sm:$0xff]
    %v4779 = vld [vmem:[%s4755 + $0xb8] sm:$0xff]
    %v4780 = vld [vmem:[%s4755 + $0xc0] sm:$0xff]
    %v4781 = vld [vmem:[%s4755 + $0xc8] sm:$0xff]
    %v4782 = vld [vmem:[%s4755 + $0xd0] sm:$0xff]
    %v4783 = vld [vmem:[%s4755 + $0xd8] sm:$0xff]
    %v4784 = vld [vmem:[%s4755 + $0xe0] sm:$0xff]
    %v4785 = vld [vmem:[%s4755 + $0xe8] sm:$0xff]
    %v4786 = vld [vmem:[%s4755 + $0xf0] sm:$0xff]
    %v4787 = vld [vmem:[%s4755 + $0xf8] sm:$0xff]
    %v4788 = vld [vmem:[%s4755 + $0x100] sm:$0xff]
    %v4789 = vld [vmem:[%s4755 + $0x108] sm:$0xff]
    %v4790 = vld [vmem:[%s4755 + $0x110] sm:$0xff]
    %v4791 = vld [vmem:[%s4755 + $0x118] sm:$0xff]
    %v4792 = vld [vmem:[%s4755 + $0x120] sm:$0xff]
    %v4793 = vld [vmem:[%s4755 + $0x128] sm:$0xff]
    %v4794 = vld [vmem:[%s4755 + $0x130] sm:$0xff]
    %v4795 = vld [vmem:[%s4755 + $0x138] sm:$0xff]
    %v4796 = vld [vmem:[%s4755 + $0x140] sm:$0xff]
    %v4797 = vld [vmem:[%s4755 + $0x148] sm:$0xff]
    %v4798 = vld [vmem:[%s4755 + $0x150] sm:$0xff]
    %v4799 = vld [vmem:[%s4755 + $0x158] sm:$0xff]
    %v4800 = vld [vmem:[%s4755 + $0x160] sm:$0xff]
    %v4801 = vld [vmem:[%s4755 + $0x168] sm:$0xff]
    %v4802 = vld [vmem:[%s4755 + $0x170] sm:$0xff]
    %v4803 = vld [vmem:[%s4755 + $0x178] sm:$0xff]
    %v4804 = vld [vmem:[%s4755 + $0x180] sm:$0xff]
    %v4805 = vld [vmem:[%s4755 + $0x188] sm:$0xff]
    %v4806 = vld [vmem:[%s4755 + $0x190] sm:$0xff]
    %v4807 = vld [vmem:[%s4755 + $0x198] sm:$0xff]
    %v4808 = vld [vmem:[%s4755 + $0x1a0] sm:$0xff]
    %v4809 = vld [vmem:[%s4755 + $0x1a8] sm:$0xff]
    %v4810 = vld [vmem:[%s4755 + $0x1b0] sm:$0xff]
    %v4811 = vld [vmem:[%s4755 + $0x1b8] sm:$0xff]
    %v4812 = vld [vmem:[%s4755 + $0x1c0] sm:$0xff]
    %v4813 = vld [vmem:[%s4755 + $0x1c8] sm:$0xff]
    %v4814 = vld [vmem:[%s4755 + $0x1d0] sm:$0xff]
    %v4815 = vld [vmem:[%s4755 + $0x1d8] sm:$0xff]
    %v4816 = vld [vmem:[%s4755 + $0x1e0] sm:$0xff]
    %v4817 = vld [vmem:[%s4755 + $0x1e8] sm:$0xff]
    %v4818 = vld [vmem:[%s4755 + $0x1f0] sm:$0xff]
    %v4819 = vld [vmem:[%s4755 + $0x1f8] sm:$0xff]
    %v4820 = vld [vmem:[%s4755 + $0x200] sm:$0xff]
    %v4821 = vld [vmem:[%s4755 + $0x208] sm:$0xff]
    %v4822 = vld [vmem:[%s4755 + $0x210] sm:$0xff]
    %v4823 = vld [vmem:[%s4755 + $0x218] sm:$0xff]
    %v4824 = vld [vmem:[%s4755 + $0x220] sm:$0xff]
    %v4825 = vld [vmem:[%s4755 + $0x228] sm:$0xff]
    %v4826 = vld [vmem:[%s4755 + $0x230] sm:$0xff]
    %v4827 = vld [vmem:[%s4755 + $0x238] sm:$0xff]
    %v4828 = vld [vmem:[%s4755 + $0x240] sm:$0xff]
    %v4829 = vld [vmem:[%s4755 + $0x248] sm:$0xff]
    %v4830 = vld [vmem:[%s4755 + $0x250] sm:$0xff]
    %v4831 = vld [vmem:[%s4755 + $0x258] sm:$0xff]
    %v4832 = vld [vmem:[%s4755 + $0x260] sm:$0xff]
    %v4833 = vld [vmem:[%s4755 + $0x268] sm:$0xff]
    %v4834 = vld [vmem:[%s4755 + $0x270] sm:$0xff]
    %v4835 = vld [vmem:[%s4755 + $0x278] sm:$0xff]
    %v4836 = vld [vmem:[%s4755 + $0x280] sm:$0xff]
    %v4837 = vld [vmem:[%s4755 + $0x288] sm:$0xff]
    %v4838 = vld [vmem:[%s4755 + $0x290] sm:$0xff]
    %v4839 = vld [vmem:[%s4755 + $0x298] sm:$0xff]
    %v4840 = vld [vmem:[%s4755 + $0x2a0] sm:$0xff]
    %v4841 = vld [vmem:[%s4755 + $0x2a8] sm:$0xff]
    %v4842 = vld [vmem:[%s4755 + $0x2b0] sm:$0xff]
    %v4843 = vld [vmem:[%s4755 + $0x2b8] sm:$0xff]
    %v4844 = vld [vmem:[%s4755 + $0x2c0] sm:$0xff]
    %v4845 = vld [vmem:[%s4755 + $0x2c8] sm:$0xff]
    %v4846 = vld [vmem:[%s4755 + $0x2d0] sm:$0xff]
    %v4847 = vld [vmem:[%s4755 + $0x2d8] sm:$0xff]
    %v4848 = vld [vmem:[%s4755 + $0x2e0] sm:$0xff]
    %v4849 = vld [vmem:[%s4755 + $0x2e8] sm:$0xff]
    %v4850 = vld [vmem:[%s4755 + $0x2f0] sm:$0xff]
    %v4851 = vld [vmem:[%s4755 + $0x2f8] sm:$0xff]
    %v4852 = vld [vmem:[%s4755 + $0x300] sm:$0xff]
    %v4853 = vld [vmem:[%s4755 + $0x308] sm:$0xff]
    %v4854 = vld [vmem:[%s4755 + $0x310] sm:$0xff]
    %v4855 = vld [vmem:[%s4755 + $0x318] sm:$0xff]
    %v4856 = vld [vmem:[%s4755 + $0x320] sm:$0xff]
    %v4857 = vld [vmem:[%s4755 + $0x328] sm:$0xff]
    %v4858 = vld [vmem:[%s4755 + $0x330] sm:$0xff]
    %v4859 = vld [vmem:[%s4755 + $0x338] sm:$0xff]
    %v4860 = vld [vmem:[%s4755 + $0x340] sm:$0xff]
    %v4861 = vld [vmem:[%s4755 + $0x348] sm:$0xff]
    %v4862 = vld [vmem:[%s4755 + $0x350] sm:$0xff]
    %v4863 = vld [vmem:[%s4755 + $0x358] sm:$0xff]
    %v4864 = vld [vmem:[%s4755 + $0x360] sm:$0xff]
    %v4865 = vld [vmem:[%s4755 + $0x368] sm:$0xff]
    %v4866 = vld [vmem:[%s4755 + $0x370] sm:$0xff]
    %v4867 = vld [vmem:[%s4755 + $0x378] sm:$0xff]
    %v4868 = vld [vmem:[%s4755 + $0x380] sm:$0xff]
    %v4869 = vld [vmem:[%s4755 + $0x388] sm:$0xff]
    %v4870 = vld [vmem:[%s4755 + $0x390] sm:$0xff]
    %v4871 = vld [vmem:[%s4755 + $0x398] sm:$0xff]
    %v4872 = vld [vmem:[%s4755 + $0x3a0] sm:$0xff]
    %v4873 = vld [vmem:[%s4755 + $0x3a8] sm:$0xff]
    %v4874 = vld [vmem:[%s4755 + $0x3b0] sm:$0xff]
    %v4875 = vld [vmem:[%s4755 + $0x3b8] sm:$0xff]
    %v4876 = vld [vmem:[%s4755 + $0x3c0] sm:$0xff]
    %v4877 = vld [vmem:[%s4755 + $0x3c8] sm:$0xff]
    %v4878 = vld [vmem:[%s4755 + $0x3d0] sm:$0xff]
    %v4879 = vld [vmem:[%s4755 + $0x3d8] sm:$0xff]
    %v4880 = vld [vmem:[%s4755 + $0x3e0] sm:$0xff]
    %v4881 = vld [vmem:[%s4755 + $0x3e8] sm:$0xff]
    %v4882 = vld [vmem:[%s4755 + $0x3f0] sm:$0xff]
    %v4883 = vld [vmem:[%s4755 + $0x3f8] sm:$0xff]
    %v5012 = vunpack.c.l.b16 %v4756
    %v5013 = vunpack.c.h.b16 %v4756
    %v5014 = vunpack.c.l.b16 %v4757
    %v5015 = vunpack.c.h.b16 %v4757
    %v5016 = vunpack.c.l.b16 %v4758
    %v5017 = vunpack.c.h.b16 %v4758
    %v5018 = vunpack.c.l.b16 %v4759
    %v5019 = vunpack.c.h.b16 %v4759
    %v5020 = vunpack.c.l.b16 %v4760
    %v5021 = vunpack.c.h.b16 %v4760
    %v5022 = vunpack.c.l.b16 %v4761
    %v5023 = vunpack.c.h.b16 %v4761
    %v5024 = vunpack.c.l.b16 %v4762
    %v5025 = vunpack.c.h.b16 %v4762
    %v5026 = vunpack.c.l.b16 %v4763
    %v5027 = vunpack.c.h.b16 %v4763
    %v5028 = vunpack.c.l.b16 %v4764
    %v5029 = vunpack.c.h.b16 %v4764
    %v5030 = vunpack.c.l.b16 %v4765
    %v5031 = vunpack.c.h.b16 %v4765
    %v5032 = vunpack.c.l.b16 %v4766
    %v5033 = vunpack.c.h.b16 %v4766
    %v5034 = vunpack.c.l.b16 %v4767
    %v5035 = vunpack.c.h.b16 %v4767
    %v5036 = vunpack.c.l.b16 %v4768
    %v5037 = vunpack.c.h.b16 %v4768
    %v5038 = vunpack.c.l.b16 %v4769
    %v5039 = vunpack.c.h.b16 %v4769
    %v5040 = vunpack.c.l.b16 %v4770
    %v5041 = vunpack.c.h.b16 %v4770
    %v5042 = vunpack.c.l.b16 %v4771
    %v5043 = vunpack.c.h.b16 %v4771
    %v5044 = vunpack.c.l.b16 %v4772
    %v5045 = vunpack.c.h.b16 %v4772
    %v5046 = vunpack.c.l.b16 %v4773
    %v5047 = vunpack.c.h.b16 %v4773
    %v5048 = vunpack.c.l.b16 %v4774
    %v5049 = vunpack.c.h.b16 %v4774
    %v5050 = vunpack.c.l.b16 %v4775
    %v5051 = vunpack.c.h.b16 %v4775
    %v5052 = vunpack.c.l.b16 %v4776
    %v5053 = vunpack.c.h.b16 %v4776
    %v5054 = vunpack.c.l.b16 %v4777
    %v5055 = vunpack.c.h.b16 %v4777
    %v5056 = vunpack.c.l.b16 %v4778
    %v5057 = vunpack.c.h.b16 %v4778
    %v5058 = vunpack.c.l.b16 %v4779
    %v5059 = vunpack.c.h.b16 %v4779
    %v5060 = vunpack.c.l.b16 %v4780
    %v5061 = vunpack.c.h.b16 %v4780
    %v5062 = vunpack.c.l.b16 %v4781
    %v5063 = vunpack.c.h.b16 %v4781
    %v5064 = vunpack.c.l.b16 %v4782
    %v5065 = vunpack.c.h.b16 %v4782
    %v5066 = vunpack.c.l.b16 %v4783
    %v5067 = vunpack.c.h.b16 %v4783
    %v5068 = vunpack.c.l.b16 %v4784
    %v5069 = vunpack.c.h.b16 %v4784
    %v5070 = vunpack.c.l.b16 %v4785
    %v5071 = vunpack.c.h.b16 %v4785
    %v5072 = vunpack.c.l.b16 %v4786
    %v5073 = vunpack.c.h.b16 %v4786
    %v5074 = vunpack.c.l.b16 %v4787
    %v5075 = vunpack.c.h.b16 %v4787
    %v5076 = vunpack.c.l.b16 %v4788
    %v5077 = vunpack.c.h.b16 %v4788
    %v5078 = vunpack.c.l.b16 %v4789
    %v5079 = vunpack.c.h.b16 %v4789
    %v5080 = vunpack.c.l.b16 %v4790
    %v5081 = vunpack.c.h.b16 %v4790
    %v5082 = vunpack.c.l.b16 %v4791
    %v5083 = vunpack.c.h.b16 %v4791
    %v5084 = vunpack.c.l.b16 %v4792
    %v5085 = vunpack.c.h.b16 %v4792
    %v5086 = vunpack.c.l.b16 %v4793
    %v5087 = vunpack.c.h.b16 %v4793
    %v5088 = vunpack.c.l.b16 %v4794
    %v5089 = vunpack.c.h.b16 %v4794
    %v5090 = vunpack.c.l.b16 %v4795
    %v5091 = vunpack.c.h.b16 %v4795
    %v5092 = vunpack.c.l.b16 %v4796
    %v5093 = vunpack.c.h.b16 %v4796
    %v5094 = vunpack.c.l.b16 %v4797
    %v5095 = vunpack.c.h.b16 %v4797
    %v5096 = vunpack.c.l.b16 %v4798
    %v5097 = vunpack.c.h.b16 %v4798
    %v5098 = vunpack.c.l.b16 %v4799
    %v5099 = vunpack.c.h.b16 %v4799
    %v5100 = vunpack.c.l.b16 %v4800
    %v5101 = vunpack.c.h.b16 %v4800
    %v5102 = vunpack.c.l.b16 %v4801
    %v5103 = vunpack.c.h.b16 %v4801
    %v5104 = vunpack.c.l.b16 %v4802
    %v5105 = vunpack.c.h.b16 %v4802
    %v5106 = vunpack.c.l.b16 %v4803
    %v5107 = vunpack.c.h.b16 %v4803
    %v5108 = vunpack.c.l.b16 %v4804
    %v5109 = vunpack.c.h.b16 %v4804
    %v5110 = vunpack.c.l.b16 %v4805
    %v5111 = vunpack.c.h.b16 %v4805
    %v5112 = vunpack.c.l.b16 %v4806
    %v5113 = vunpack.c.h.b16 %v4806
    %v5114 = vunpack.c.l.b16 %v4807
    %v5115 = vunpack.c.h.b16 %v4807
    %v5116 = vunpack.c.l.b16 %v4808
    %v5117 = vunpack.c.h.b16 %v4808
    %v5118 = vunpack.c.l.b16 %v4809
    %v5119 = vunpack.c.h.b16 %v4809
    %v5120 = vunpack.c.l.b16 %v4810
    %v5121 = vunpack.c.h.b16 %v4810
    %v5122 = vunpack.c.l.b16 %v4811
    %v5123 = vunpack.c.h.b16 %v4811
    %v5124 = vunpack.c.l.b16 %v4812
    %v5125 = vunpack.c.h.b16 %v4812
    %v5126 = vunpack.c.l.b16 %v4813
    %v5127 = vunpack.c.h.b16 %v4813
    %v5128 = vunpack.c.l.b16 %v4814
    %v5129 = vunpack.c.h.b16 %v4814
    %v5130 = vunpack.c.l.b16 %v4815
    %v5131 = vunpack.c.h.b16 %v4815
    %v5132 = vunpack.c.l.b16 %v4816
    %v5133 = vunpack.c.h.b16 %v4816
    %v5134 = vunpack.c.l.b16 %v4817
    %v5135 = vunpack.c.h.b16 %v4817
    %v5136 = vunpack.c.l.b16 %v4818
    %v5137 = vunpack.c.h.b16 %v4818
    %v5138 = vunpack.c.l.b16 %v4819
    %v5139 = vunpack.c.h.b16 %v4819
    %v5140 = vunpack.c.l.b16 %v4820
    %v5141 = vunpack.c.h.b16 %v4820
    %v5142 = vunpack.c.l.b16 %v4821
    %v5143 = vunpack.c.h.b16 %v4821
    %v5144 = vunpack.c.l.b16 %v4822
    %v5145 = vunpack.c.h.b16 %v4822
    %v5146 = vunpack.c.l.b16 %v4823
    %v5147 = vunpack.c.h.b16 %v4823
    %v5148 = vunpack.c.l.b16 %v4824
    %v5149 = vunpack.c.h.b16 %v4824
    %v5150 = vunpack.c.l.b16 %v4825
    %v5151 = vunpack.c.h.b16 %v4825
    %v5152 = vunpack.c.l.b16 %v4826
    %v5153 = vunpack.c.h.b16 %v4826
    %v5154 = vunpack.c.l.b16 %v4827
    %v5155 = vunpack.c.h.b16 %v4827
    %v5156 = vunpack.c.l.b16 %v4828
    %v5157 = vunpack.c.h.b16 %v4828
    %v5158 = vunpack.c.l.b16 %v4829
    %v5159 = vunpack.c.h.b16 %v4829
    %v5160 = vunpack.c.l.b16 %v4830
    %v5161 = vunpack.c.h.b16 %v4830
    %v5162 = vunpack.c.l.b16 %v4831
    %v5163 = vunpack.c.h.b16 %v4831
    %v5164 = vunpack.c.l.b16 %v4832
    %v5165 = vunpack.c.h.b16 %v4832
    %v5166 = vunpack.c.l.b16 %v4833
    %v5167 = vunpack.c.h.b16 %v4833
    %v5168 = vunpack.c.l.b16 %v4834
    %v5169 = vunpack.c.h.b16 %v4834
    %v5170 = vunpack.c.l.b16 %v4835
    %v5171 = vunpack.c.h.b16 %v4835
    %v5172 = vunpack.c.l.b16 %v4836
    %v5173 = vunpack.c.h.b16 %v4836
    %v5174 = vunpack.c.l.b16 %v4837
    %v5175 = vunpack.c.h.b16 %v4837
    %v5176 = vunpack.c.l.b16 %v4838
    %v5177 = vunpack.c.h.b16 %v4838
    %v5178 = vunpack.c.l.b16 %v4839
    %v5179 = vunpack.c.h.b16 %v4839
    %v5180 = vunpack.c.l.b16 %v4840
    %v5181 = vunpack.c.h.b16 %v4840
    %v5182 = vunpack.c.l.b16 %v4841
    %v5183 = vunpack.c.h.b16 %v4841
    %v5184 = vunpack.c.l.b16 %v4842
    %v5185 = vunpack.c.h.b16 %v4842
    %v5186 = vunpack.c.l.b16 %v4843
    %v5187 = vunpack.c.h.b16 %v4843
    %v5188 = vunpack.c.l.b16 %v4844
    %v5189 = vunpack.c.h.b16 %v4844
    %v5190 = vunpack.c.l.b16 %v4845
    %v5191 = vunpack.c.h.b16 %v4845
    %v5192 = vunpack.c.l.b16 %v4846
    %v5193 = vunpack.c.h.b16 %v4846
    %v5194 = vunpack.c.l.b16 %v4847
    %v5195 = vunpack.c.h.b16 %v4847
    %v5196 = vunpack.c.l.b16 %v4848
    %v5197 = vunpack.c.h.b16 %v4848
    %v5198 = vunpack.c.l.b16 %v4849
    %v5199 = vunpack.c.h.b16 %v4849
    %v5200 = vunpack.c.l.b16 %v4850
    %v5201 = vunpack.c.h.b16 %v4850
    %v5202 = vunpack.c.l.b16 %v4851
    %v5203 = vunpack.c.h.b16 %v4851
    %v5204 = vunpack.c.l.b16 %v4852
    %v5205 = vunpack.c.h.b16 %v4852
    %v5206 = vunpack.c.l.b16 %v4853
    %v5207 = vunpack.c.h.b16 %v4853
    %v5208 = vunpack.c.l.b16 %v4854
    %v5209 = vunpack.c.h.b16 %v4854
    %v5210 = vunpack.c.l.b16 %v4855
    %v5211 = vunpack.c.h.b16 %v4855
    %v5212 = vunpack.c.l.b16 %v4856
    %v5213 = vunpack.c.h.b16 %v4856
    %v5214 = vunpack.c.l.b16 %v4857
    %v5215 = vunpack.c.h.b16 %v4857
    %v5216 = vunpack.c.l.b16 %v4858
    %v5217 = vunpack.c.h.b16 %v4858
    %v5218 = vunpack.c.l.b16 %v4859
    %v5219 = vunpack.c.h.b16 %v4859
    %v5220 = vunpack.c.l.b16 %v4860
    %v5221 = vunpack.c.h.b16 %v4860
    %v5222 = vunpack.c.l.b16 %v4861
    %v5223 = vunpack.c.h.b16 %v4861
    %v5224 = vunpack.c.l.b16 %v4862
    %v5225 = vunpack.c.h.b16 %v4862
    %v5226 = vunpack.c.l.b16 %v4863
    %v5227 = vunpack.c.h.b16 %v4863
    %v5228 = vunpack.c.l.b16 %v4864
    %v5229 = vunpack.c.h.b16 %v4864
    %v5230 = vunpack.c.l.b16 %v4865
    %v5231 = vunpack.c.h.b16 %v4865
    %v5232 = vunpack.c.l.b16 %v4866
    %v5233 = vunpack.c.h.b16 %v4866
    %v5234 = vunpack.c.l.b16 %v4867
    %v5235 = vunpack.c.h.b16 %v4867
    %v5236 = vunpack.c.l.b16 %v4868
    %v5237 = vunpack.c.h.b16 %v4868
    %v5238 = vunpack.c.l.b16 %v4869
    %v5239 = vunpack.c.h.b16 %v4869
    %v5240 = vunpack.c.l.b16 %v4870
    %v5241 = vunpack.c.h.b16 %v4870
    %v5242 = vunpack.c.l.b16 %v4871
    %v5243 = vunpack.c.h.b16 %v4871
    %v5244 = vunpack.c.l.b16 %v4872
    %v5245 = vunpack.c.h.b16 %v4872
    %v5246 = vunpack.c.l.b16 %v4873
    %v5247 = vunpack.c.h.b16 %v4873
    %v5248 = vunpack.c.l.b16 %v4874
    %v5249 = vunpack.c.h.b16 %v4874
    %v5250 = vunpack.c.l.b16 %v4875
    %v5251 = vunpack.c.h.b16 %v4875
    %v5252 = vunpack.c.l.b16 %v4876
    %v5253 = vunpack.c.h.b16 %v4876
    %v5254 = vunpack.c.l.b16 %v4877
    %v5255 = vunpack.c.h.b16 %v4877
    %v5256 = vunpack.c.l.b16 %v4878
    %v5257 = vunpack.c.h.b16 %v4878
    %v5258 = vunpack.c.l.b16 %v4879
    %v5259 = vunpack.c.h.b16 %v4879
    %v5260 = vunpack.c.l.b16 %v4880
    %v5261 = vunpack.c.h.b16 %v4880
    %v5262 = vunpack.c.l.b16 %v4881
    %v5263 = vunpack.c.h.b16 %v4881
    %v5264 = vunpack.c.l.b16 %v4882
    %v5265 = vunpack.c.h.b16 %v4882
    %v5266 = vunpack.c.l.b16 %v4883
    %v5267 = vunpack.c.h.b16 %v4883
    %v5268 = vpack.c.b16 %v5028, %v5012
    %v5269 = vpack.c.b16 %v5029, %v5013
    %v5270 = vpack.c.b16 %v5030, %v5014
    %v5271 = vpack.c.b16 %v5031, %v5015
    %v5272 = vpack.c.b16 %v5032, %v5016
    %v5273 = vpack.c.b16 %v5033, %v5017
    %v5274 = vpack.c.b16 %v5034, %v5018
    %v5275 = vpack.c.b16 %v5035, %v5019
    %v5276 = vpack.c.b16 %v5036, %v5020
    %v5277 = vpack.c.b16 %v5037, %v5021
    %v5278 = vpack.c.b16 %v5038, %v5022
    %v5279 = vpack.c.b16 %v5039, %v5023
    %v5280 = vpack.c.b16 %v5040, %v5024
    %v5281 = vpack.c.b16 %v5041, %v5025
    %v5282 = vpack.c.b16 %v5042, %v5026
    %v5283 = vpack.c.b16 %v5043, %v5027
    %v5284 = vpack.c.b16 %v5060, %v5044
    %v5285 = vpack.c.b16 %v5061, %v5045
    %v5286 = vpack.c.b16 %v5062, %v5046
    %v5287 = vpack.c.b16 %v5063, %v5047
    %v5288 = vpack.c.b16 %v5064, %v5048
    %v5289 = vpack.c.b16 %v5065, %v5049
    %v5290 = vpack.c.b16 %v5066, %v5050
    %v5291 = vpack.c.b16 %v5067, %v5051
    %v5292 = vpack.c.b16 %v5068, %v5052
    %v5293 = vpack.c.b16 %v5069, %v5053
    %v5294 = vpack.c.b16 %v5070, %v5054
    %v5295 = vpack.c.b16 %v5071, %v5055
    %v5296 = vpack.c.b16 %v5072, %v5056
    %v5297 = vpack.c.b16 %v5073, %v5057
    %v5298 = vpack.c.b16 %v5074, %v5058
    %v5299 = vpack.c.b16 %v5075, %v5059
    %v5300 = vpack.c.b16 %v5092, %v5076
    %v5301 = vpack.c.b16 %v5093, %v5077
    %v5302 = vpack.c.b16 %v5094, %v5078
    %v5303 = vpack.c.b16 %v5095, %v5079
    %v5304 = vpack.c.b16 %v5096, %v5080
    %v5305 = vpack.c.b16 %v5097, %v5081
    %v5306 = vpack.c.b16 %v5098, %v5082
    %v5307 = vpack.c.b16 %v5099, %v5083
    %v5308 = vpack.c.b16 %v5100, %v5084
    %v5309 = vpack.c.b16 %v5101, %v5085
    %v5310 = vpack.c.b16 %v5102, %v5086
    %v5311 = vpack.c.b16 %v5103, %v5087
    %v5312 = vpack.c.b16 %v5104, %v5088
    %v5313 = vpack.c.b16 %v5105, %v5089
    %v5314 = vpack.c.b16 %v5106, %v5090
    %v5315 = vpack.c.b16 %v5107, %v5091
    %v5316 = vpack.c.b16 %v5124, %v5108
    %v5317 = vpack.c.b16 %v5125, %v5109
    %v5318 = vpack.c.b16 %v5126, %v5110
    %v5319 = vpack.c.b16 %v5127, %v5111
    %v5320 = vpack.c.b16 %v5128, %v5112
    %v5321 = vpack.c.b16 %v5129, %v5113
    %v5322 = vpack.c.b16 %v5130, %v5114
    %v5323 = vpack.c.b16 %v5131, %v5115
    %v5324 = vpack.c.b16 %v5132, %v5116
    %v5325 = vpack.c.b16 %v5133, %v5117
    %v5326 = vpack.c.b16 %v5134, %v5118
    %v5327 = vpack.c.b16 %v5135, %v5119
    %v5328 = vpack.c.b16 %v5136, %v5120
    %v5329 = vpack.c.b16 %v5137, %v5121
    %v5330 = vpack.c.b16 %v5138, %v5122
    %v5331 = vpack.c.b16 %v5139, %v5123
    %v5332 = vpack.c.b16 %v5156, %v5140
    %v5333 = vpack.c.b16 %v5157, %v5141
    %v5334 = vpack.c.b16 %v5158, %v5142
    %v5335 = vpack.c.b16 %v5159, %v5143
    %v5336 = vpack.c.b16 %v5160, %v5144
    %v5337 = vpack.c.b16 %v5161, %v5145
    %v5338 = vpack.c.b16 %v5162, %v5146
    %v5339 = vpack.c.b16 %v5163, %v5147
    %v5340 = vpack.c.b16 %v5164, %v5148
    %v5341 = vpack.c.b16 %v5165, %v5149
    %v5342 = vpack.c.b16 %v5166, %v5150
    %v5343 = vpack.c.b16 %v5167, %v5151
    %v5344 = vpack.c.b16 %v5168, %v5152
    %v5345 = vpack.c.b16 %v5169, %v5153
    %v5346 = vpack.c.b16 %v5170, %v5154
    %v5347 = vpack.c.b16 %v5171, %v5155
    %v5348 = vpack.c.b16 %v5188, %v5172
    %v5349 = vpack.c.b16 %v5189, %v5173
    %v5350 = vpack.c.b16 %v5190, %v5174
    %v5351 = vpack.c.b16 %v5191, %v5175
    %v5352 = vpack.c.b16 %v5192, %v5176
    %v5353 = vpack.c.b16 %v5193, %v5177
    %v5354 = vpack.c.b16 %v5194, %v5178
    %v5355 = vpack.c.b16 %v5195, %v5179
    %v5356 = vpack.c.b16 %v5196, %v5180
    %v5357 = vpack.c.b16 %v5197, %v5181
    %v5358 = vpack.c.b16 %v5198, %v5182
    %v5359 = vpack.c.b16 %v5199, %v5183
    %v5360 = vpack.c.b16 %v5200, %v5184
    %v5361 = vpack.c.b16 %v5201, %v5185
    %v5362 = vpack.c.b16 %v5202, %v5186
    %v5363 = vpack.c.b16 %v5203, %v5187
    %v5364 = vpack.c.b16 %v5220, %v5204
    %v5365 = vpack.c.b16 %v5221, %v5205
    %v5366 = vpack.c.b16 %v5222, %v5206
    %v5367 = vpack.c.b16 %v5223, %v5207
    %v5368 = vpack.c.b16 %v5224, %v5208
    %v5369 = vpack.c.b16 %v5225, %v5209
    %v5370 = vpack.c.b16 %v5226, %v5210
    %v5371 = vpack.c.b16 %v5227, %v5211
    %v5372 = vpack.c.b16 %v5228, %v5212
    %v5373 = vpack.c.b16 %v5229, %v5213
    %v5374 = vpack.c.b16 %v5230, %v5214
    %v5375 = vpack.c.b16 %v5231, %v5215
    %v5376 = vpack.c.b16 %v5232, %v5216
    %v5377 = vpack.c.b16 %v5233, %v5217
    %v5378 = vpack.c.b16 %v5234, %v5218
    %v5379 = vpack.c.b16 %v5235, %v5219
    %v5380 = vpack.c.b16 %v5252, %v5236
    %v5381 = vpack.c.b16 %v5253, %v5237
    %v5382 = vpack.c.b16 %v5254, %v5238
    %v5383 = vpack.c.b16 %v5255, %v5239
    %v5384 = vpack.c.b16 %v5256, %v5240
    %v5385 = vpack.c.b16 %v5257, %v5241
    %v5386 = vpack.c.b16 %v5258, %v5242
    %v5387 = vpack.c.b16 %v5259, %v5243
    %v5388 = vpack.c.b16 %v5260, %v5244
    %v5389 = vpack.c.b16 %v5261, %v5245
    %v5390 = vpack.c.b16 %v5262, %v5246
    %v5391 = vpack.c.b16 %v5263, %v5247
    %v5392 = vpack.c.b16 %v5264, %v5248
    %v5393 = vpack.c.b16 %v5265, %v5249
    %v5394 = vpack.c.b16 %v5266, %v5250
    %v5395 = vpack.c.b16 %v5267, %v5251
    %5524 = vmatprep.subr.bf16.mxu0 %v5269
    %5525 = vmatpush1.bf16.msra.mxu0 %v5268
    %5526 = vmatprep.subr.bf16.mxu0 %v5285
    %5527 = vmatpush1.bf16.msra.mxu0 %v5284
    %5528 = vmatprep.subr.bf16.mxu0 %v5301
    %5529 = vmatpush1.bf16.msra.mxu0 %v5300
    %5530 = vmatprep.subr.bf16.mxu0 %v5317
    %5531 = vmatpush1.bf16.msra.mxu0 %v5316
    %5532 = vmatprep.subr.bf16.mxu0 %v5333
    %5533 = vmatpush1.bf16.msra.mxu0 %v5332
    %5534 = vmatprep.subr.bf16.mxu0 %v5349
    %5535 = vmatpush1.bf16.msra.mxu0 %v5348
    %5536 = vmatprep.subr.bf16.mxu0 %v5365
    %5537 = vmatpush1.bf16.msra.mxu0 %v5364
    %5538 = vmatprep.subr.bf16.mxu0 %v5381
    %5539 = vmatpush1.bf16.msra.mxu0 %v5380
    %5540 = vmatprep.subr.bf16.mxu0 0
    %5541 = vmatpush1.bf16.msra.mxu0 0
    %5542 = vmatprep.subr.bf16.mxu0 0
    %5543 = vmatpush1.bf16.msra.mxu0 0
    %5544 = vmatprep.subr.bf16.mxu0 0
    %5545 = vmatpush1.bf16.msra.mxu0 0
    %5546 = vmatprep.subr.bf16.mxu0 0
    %5547 = vmatpush1.bf16.msra.mxu0 0
    %5548 = vmatprep.subr.bf16.mxu0 0
    %5549 = vmatpush1.bf16.msra.mxu0 0
    %5550 = vmatprep.subr.bf16.mxu0 0
    %5551 = vmatpush1.bf16.msra.mxu0 0
    %5552 = vmatprep.subr.bf16.mxu0 0
    %5553 = vmatpush1.bf16.msra.mxu0 0
    %5554 = vmatprep.subr.bf16.mxu0 0
    %5555 = vmatpush1.bf16.msra.mxu0 0
    %5556 = vmatprep.mubr.bf16.mxu0 0
    %5557 = vmatmul.mubr.bf16.gmra.mrb[0].mxu0 %v4754
    %v5558 = vpop.f32.mrb[0].mxu0
    %v5559 = vadd.f32 0.0, %v5558
    %v5560 = vpop.f32.mrb[0].mxu0
    %v5561 = vadd.f32 0.0, %v5560
    %v5562 = vpop.f32.mrb[0].mxu0
    %v5563 = vpop.f32.mrb[0].mxu0
    %5564 = vdwg.mxu0
    %5565 = vmatprep.subr.bf16.mxu0 %v5271
    %5566 = vmatpush1.bf16.msra.mxu0 %v5270
    %5567 = vmatprep.subr.bf16.mxu0 %v5287
    %5568 = vmatpush1.bf16.msra.mxu0 %v5286
    %5569 = vmatprep.subr.bf16.mxu0 %v5303
    %5570 = vmatpush1.bf16.msra.mxu0 %v5302
    %5571 = vmatprep.subr.bf16.mxu0 %v5319
    %5572 = vmatpush1.bf16.msra.mxu0 %v5318
    %5573 = vmatprep.subr.bf16.mxu0 %v5335
    %5574 = vmatpush1.bf16.msra.mxu0 %v5334
    %5575 = vmatprep.subr.bf16.mxu0 %v5351
    %5576 = vmatpush1.bf16.msra.mxu0 %v5350
    %5577 = vmatprep.subr.bf16.mxu0 %v5367
    %5578 = vmatpush1.bf16.msra.mxu0 %v5366
    %5579 = vmatprep.subr.bf16.mxu0 %v5383
    %5580 = vmatpush1.bf16.msra.mxu0 %v5382
    %5581 = vmatprep.subr.bf16.mxu0 0
    %5582 = vmatpush1.bf16.msra.mxu0 0
    %5583 = vmatprep.subr.bf16.mxu0 0
    %5584 = vmatpush1.bf16.msra.mxu0 0
    %5585 = vmatprep.subr.bf16.mxu0 0
    %5586 = vmatpush1.bf16.msra.mxu0 0
    %5587 = vmatprep.subr.bf16.mxu0 0
    %5588 = vmatpush1.bf16.msra.mxu0 0
    %5589 = vmatprep.subr.bf16.mxu0 0
    %5590 = vmatpush1.bf16.msra.mxu0 0
    %5591 = vmatprep.subr.bf16.mxu0 0
    %5592 = vmatpush1.bf16.msra.mxu0 0
    %5593 = vmatprep.subr.bf16.mxu0 0
    %5594 = vmatpush1.bf16.msra.mxu0 0
    %5595 = vmatprep.subr.bf16.mxu0 0
    %5596 = vmatpush1.bf16.msra.mxu0 0
    %5597 = vmatprep.mubr.bf16.mxu0 0
    %5598 = vmatmul.mubr.bf16.gmra.mrb[0].mxu0 %v4754
    %v5599 = vpop.f32.mrb[0].mxu0
    %v5600 = vadd.f32 0.0, %v5599
    %v5601 = vpop.f32.mrb[0].mxu0
    %v5602 = vadd.f32 0.0, %v5601
    %v5603 = vpop.f32.mrb[0].mxu0
    %v5604 = vpop.f32.mrb[0].mxu0
    %5605 = vdwg.mxu0
    %5606 = vmatprep.subr.bf16.mxu0 %v5273
    %5607 = vmatpush1.bf16.msra.mxu0 %v5272
    %5608 = vmatprep.subr.bf16.mxu0 %v5289
    %5609 = vmatpush1.bf16.msra.mxu0 %v5288
    %5610 = vmatprep.subr.bf16.mxu0 %v5305
    %5611 = vmatpush1.bf16.msra.mxu0 %v5304
    %5612 = vmatprep.subr.bf16.mxu0 %v5321
    %5613 = vmatpush1.bf16.msra.mxu0 %v5320
    %5614 = vmatprep.subr.bf16.mxu0 %v5337
    %5615 = vmatpush1.bf16.msra.mxu0 %v5336
    %5616 = vmatprep.subr.bf16.mxu0 %v5353
    %5617 = vmatpush1.bf16.msra.mxu0 %v5352
    %5618 = vmatprep.subr.bf16.mxu0 %v5369
    %5619 = vmatpush1.bf16.msra.mxu0 %v5368
    %5620 = vmatprep.subr.bf16.mxu0 %v5385
    %5621 = vmatpush1.bf16.msra.mxu0 %v5384
    %5622 = vmatprep.subr.bf16.mxu0 0
    %5623 = vmatpush1.bf16.msra.mxu0 0
    %5624 = vmatprep.subr.bf16.mxu0 0
    %5625 = vmatpush1.bf16.msra.mxu0 0
    %5626 = vmatprep.subr.bf16.mxu0 0
    %5627 = vmatpush1.bf16.msra.mxu0 0
    %5628 = vmatprep.subr.bf16.mxu0 0
    %5629 = vmatpush1.bf16.msra.mxu0 0
    %5630 = vmatprep.subr.bf16.mxu0 0
    %5631 = vmatpush1.bf16.msra.mxu0 0
    %5632 = vmatprep.subr.bf16.mxu0 0
    %5633 = vmatpush1.bf16.msra.mxu0 0
    %5634 = vmatprep.subr.bf16.mxu0 0
    %5635 = vmatpush1.bf16.msra.mxu0 0
    %5636 = vmatprep.subr.bf16.mxu0 0
    %5637 = vmatpush1.bf16.msra.mxu0 0
    %5638 = vmatprep.mubr.bf16.mxu0 0
    %5639 = vmatmul.mubr.bf16.gmra.mrb[0].mxu0 %v4754
    %v5640 = vpop.f32.mrb[0].mxu0
    %v5641 = vadd.f32 0.0, %v5640
    %v5642 = vpop.f32.mrb[0].mxu0
    %v5643 = vadd.f32 0.0, %v5642
    %v5644 = vpop.f32.mrb[0].mxu0
    %v5645 = vpop.f32.mrb[0].mxu0
    %5646 = vdwg.mxu0
    %5647 = vmatprep.subr.bf16.mxu0 %v5275
    %5648 = vmatpush1.bf16.msra.mxu0 %v5274
    %5649 = vmatprep.subr.bf16.mxu0 %v5291
    %5650 = vmatpush1.bf16.msra.mxu0 %v5290
    %5651 = vmatprep.subr.bf16.mxu0 %v5307
    %5652 = vmatpush1.bf16.msra.mxu0 %v5306
    %5653 = vmatprep.subr.bf16.mxu0 %v5323
    %5654 = vmatpush1.bf16.msra.mxu0 %v5322
    %5655 = vmatprep.subr.bf16.mxu0 %v5339
    %5656 = vmatpush1.bf16.msra.mxu0 %v5338
    %5657 = vmatprep.subr.bf16.mxu0 %v5355
    %5658 = vmatpush1.bf16.msra.mxu0 %v5354
    %5659 = vmatprep.subr.bf16.mxu0 %v5371
    %5660 = vmatpush1.bf16.msra.mxu0 %v5370
    %5661 = vmatprep.subr.bf16.mxu0 %v5387
    %5662 = vmatpush1.bf16.msra.mxu0 %v5386
    %5663 = vmatprep.subr.bf16.mxu0 0
    %5664 = vmatpush1.bf16.msra.mxu0 0
    %5665 = vmatprep.subr.bf16.mxu0 0
    %5666 = vmatpush1.bf16.msra.mxu0 0
    %5667 = vmatprep.subr.bf16.mxu0 0
    %5668 = vmatpush1.bf16.msra.mxu0 0
    %5669 = vmatprep.subr.bf16.mxu0 0
    %5670 = vmatpush1.bf16.msra.mxu0 0
    %5671 = vmatprep.subr.bf16.mxu0 0
    %5672 = vmatpush1.bf16.msra.mxu0 0
    %5673 = vmatprep.subr.bf16.mxu0 0
    %5674 = vmatpush1.bf16.msra.mxu0 0
    %5675 = vmatprep.subr.bf16.mxu0 0
    %5676 = vmatpush1.bf16.msra.mxu0 0
    %5677 = vmatprep.subr.bf16.mxu0 0
    %5678 = vmatpush1.bf16.msra.mxu0 0
    %5679 = vmatprep.mubr.bf16.mxu0 0
    %5680 = vmatmul.mubr.bf16.gmra.mrb[0].mxu0 %v4754
    %v5681 = vpop.f32.mrb[0].mxu0
    %v5682 = vadd.f32 0.0, %v5681
    %v5683 = vpop.f32.mrb[0].mxu0
    %v5684 = vadd.f32 0.0, %v5683
    %v5685 = vpop.f32.mrb[0].mxu0
    %v5686 = vpop.f32.mrb[0].mxu0
    %5687 = vdwg.mxu0
    %5688 = vmatprep.subr.bf16.mxu0 %v5277
    %5689 = vmatpush1.bf16.msra.mxu0 %v5276
    %5690 = vmatprep.subr.bf16.mxu0 %v5293
    %5691 = vmatpush1.bf16.msra.mxu0 %v5292
    %5692 = vmatprep.subr.bf16.mxu0 %v5309
    %5693 = vmatpush1.bf16.msra.mxu0 %v5308
    %5694 = vmatprep.subr.bf16.mxu0 %v5325
    %5695 = vmatpush1.bf16.msra.mxu0 %v5324
    %5696 = vmatprep.subr.bf16.mxu0 %v5341
    %5697 = vmatpush1.bf16.msra.mxu0 %v5340
    %5698 = vmatprep.subr.bf16.mxu0 %v5357
    %5699 = vmatpush1.bf16.msra.mxu0 %v5356
    %5700 = vmatprep.subr.bf16.mxu0 %v5373
    %5701 = vmatpush1.bf16.msra.mxu0 %v5372
    %5702 = vmatprep.subr.bf16.mxu0 %v5389
    %5703 = vmatpush1.bf16.msra.mxu0 %v5388
    %5704 = vmatprep.subr.bf16.mxu0 0
    %5705 = vmatpush1.bf16.msra.mxu0 0
    %5706 = vmatprep.subr.bf16.mxu0 0
    %5707 = vmatpush1.bf16.msra.mxu0 0
    %5708 = vmatprep.subr.bf16.mxu0 0
    %5709 = vmatpush1.bf16.msra.mxu0 0
    %5710 = vmatprep.subr.bf16.mxu0 0
    %5711 = vmatpush1.bf16.msra.mxu0 0
    %5712 = vmatprep.subr.bf16.mxu0 0
    %5713 = vmatpush1.bf16.msra.mxu0 0
    %5714 = vmatprep.subr.bf16.mxu0 0
    %5715 = vmatpush1.bf16.msra.mxu0 0
    %5716 = vmatprep.subr.bf16.mxu0 0
    %5717 = vmatpush1.bf16.msra.mxu0 0
    %5718 = vmatprep.subr.bf16.mxu0 0
    %5719 = vmatpush1.bf16.msra.mxu0 0
    %5720 = vmatprep.mubr.bf16.mxu0 0
    %5721 = vmatmul.mubr.bf16.gmra.mrb[0].mxu0 %v4754
    %v5722 = vpop.f32.mrb[0].mxu0
    %v5723 = vadd.f32 0.0, %v5722
    %v5724 = vpop.f32.mrb[0].mxu0
    %v5725 = vadd.f32 0.0, %v5724
    %v5726 = vpop.f32.mrb[0].mxu0
    %v5727 = vpop.f32.mrb[0].mxu0
    %5728 = vdwg.mxu0
    %5729 = vmatprep.subr.bf16.mxu0 %v5279
    %5730 = vmatpush1.bf16.msra.mxu0 %v5278
    %5731 = vmatprep.subr.bf16.mxu0 %v5295
    %5732 = vmatpush1.bf16.msra.mxu0 %v5294
    %5733 = vmatprep.subr.bf16.mxu0 %v5311
    %5734 = vmatpush1.bf16.msra.mxu0 %v5310
    %5735 = vmatprep.subr.bf16.mxu0 %v5327
    %5736 = vmatpush1.bf16.msra.mxu0 %v5326
    %5737 = vmatprep.subr.bf16.mxu0 %v5343
    %5738 = vmatpush1.bf16.msra.mxu0 %v5342
    %5739 = vmatprep.subr.bf16.mxu0 %v5359
    %5740 = vmatpush1.bf16.msra.mxu0 %v5358
    %5741 = vmatprep.subr.bf16.mxu0 %v5375
    %5742 = vmatpush1.bf16.msra.mxu0 %v5374
    %5743 = vmatprep.subr.bf16.mxu0 %v5391
    %5744 = vmatpush1.bf16.msra.mxu0 %v5390
    %5745 = vmatprep.subr.bf16.mxu0 0
    %5746 = vmatpush1.bf16.msra.mxu0 0
    %5747 = vmatprep.subr.bf16.mxu0 0
    %5748 = vmatpush1.bf16.msra.mxu0 0
    %5749 = vmatprep.subr.bf16.mxu0 0
    %5750 = vmatpush1.bf16.msra.mxu0 0
    %5751 = vmatprep.subr.bf16.mxu0 0
    %5752 = vmatpush1.bf16.msra.mxu0 0
    %5753 = vmatprep.subr.bf16.mxu0 0
    %5754 = vmatpush1.bf16.msra.mxu0 0
    %5755 = vmatprep.subr.bf16.mxu0 0
    %5756 = vmatpush1.bf16.msra.mxu0 0
    %5757 = vmatprep.subr.bf16.mxu0 0
    %5758 = vmatpush1.bf16.msra.mxu0 0
    %5759 = vmatprep.subr.bf16.mxu0 0
    %5760 = vmatpush1.bf16.msra.mxu0 0
    %5761 = vmatprep.mubr.bf16.mxu0 0
    %5762 = vmatmul.mubr.bf16.gmra.mrb[0].mxu0 %v4754
    %v5763 = vpop.f32.mrb[0].mxu0
    %v5764 = vadd.f32 0.0, %v5763
    %v5765 = vpop.f32.mrb[0].mxu0
    %v5766 = vadd.f32 0.0, %v5765
    %v5767 = vpop.f32.mrb[0].mxu0
    %v5768 = vpop.f32.mrb[0].mxu0
    %5769 = vdwg.mxu0
    %5770 = vmatprep.subr.bf16.mxu0 %v5281
    %5771 = vmatpush1.bf16.msra.mxu0 %v5280
    %5772 = vmatprep.subr.bf16.mxu0 %v5297
    %5773 = vmatpush1.bf16.msra.mxu0 %v5296
    %5774 = vmatprep.subr.bf16.mxu0 %v5313
    %5775 = vmatpush1.bf16.msra.mxu0 %v5312
    %5776 = vmatprep.subr.bf16.mxu0 %v5329
    %5777 = vmatpush1.bf16.msra.mxu0 %v5328
    %5778 = vmatprep.subr.bf16.mxu0 %v5345
    %5779 = vmatpush1.bf16.msra.mxu0 %v5344
    %5780 = vmatprep.subr.bf16.mxu0 %v5361
    %5781 = vmatpush1.bf16.msra.mxu0 %v5360
    %5782 = vmatprep.subr.bf16.mxu0 %v5377
    %5783 = vmatpush1.bf16.msra.mxu0 %v5376
    %5784 = vmatprep.subr.bf16.mxu0 %v5393
    %5785 = vmatpush1.bf16.msra.mxu0 %v5392
    %5786 = vmatprep.subr.bf16.mxu0 0
    %5787 = vmatpush1.bf16.msra.mxu0 0
    %5788 = vmatprep.subr.bf16.mxu0 0
    %5789 = vmatpush1.bf16.msra.mxu0 0
    %5790 = vmatprep.subr.bf16.mxu0 0
    %5791 = vmatpush1.bf16.msra.mxu0 0
    %5792 = vmatprep.subr.bf16.mxu0 0
    %5793 = vmatpush1.bf16.msra.mxu0 0
    %5794 = vmatprep.subr.bf16.mxu0 0
    %5795 = vmatpush1.bf16.msra.mxu0 0
    %5796 = vmatprep.subr.bf16.mxu0 0
    %5797 = vmatpush1.bf16.msra.mxu0 0
    %5798 = vmatprep.subr.bf16.mxu0 0
    %5799 = vmatpush1.bf16.msra.mxu0 0
    %5800 = vmatprep.subr.bf16.mxu0 0
    %5801 = vmatpush1.bf16.msra.mxu0 0
    %5802 = vmatprep.mubr.bf16.mxu0 0
    %5803 = vmatmul.mubr.bf16.gmra.mrb[0].mxu0 %v4754
    %v5804 = vpop.f32.mrb[0].mxu0
    %v5805 = vadd.f32 0.0, %v5804
    %v5806 = vpop.f32.mrb[0].mxu0
    %v5807 = vadd.f32 0.0, %v5806
    %v5808 = vpop.f32.mrb[0].mxu0
    %v5809 = vpop.f32.mrb[0].mxu0
    %5810 = vdwg.mxu0
    %5811 = vmatprep.subr.bf16.mxu0 %v5283
    %5812 = vmatpush1.bf16.msra.mxu0 %v5282
    %5813 = vmatprep.subr.bf16.mxu0 %v5299
    %5814 = vmatpush1.bf16.msra.mxu0 %v5298
    %5815 = vmatprep.subr.bf16.mxu0 %v5315
    %5816 = vmatpush1.bf16.msra.mxu0 %v5314
    %5817 = vmatprep.subr.bf16.mxu0 %v5331
    %5818 = vmatpush1.bf16.msra.mxu0 %v5330
    %5819 = vmatprep.subr.bf16.mxu0 %v5347
    %5820 = vmatpush1.bf16.msra.mxu0 %v5346
    %5821 = vmatprep.subr.bf16.mxu0 %v5363
    %5822 = vmatpush1.bf16.msra.mxu0 %v5362
    %5823 = vmatprep.subr.bf16.mxu0 %v5379
    %5824 = vmatpush1.bf16.msra.mxu0 %v5378
    %5825 = vmatprep.subr.bf16.mxu0 %v5395
    %5826 = vmatpush1.bf16.msra.mxu0 %v5394
    %5827 = vmatprep.subr.bf16.mxu0 0
    %5828 = vmatpush1.bf16.msra.mxu0 0
    %5829 = vmatprep.subr.bf16.mxu0 0
    %5830 = vmatpush1.bf16.msra.mxu0 0
    %5831 = vmatprep.subr.bf16.mxu0 0
    %5832 = vmatpush1.bf16.msra.mxu0 0
    %5833 = vmatprep.subr.bf16.mxu0 0
    %5834 = vmatpush1.bf16.msra.mxu0 0
    %5835 = vmatprep.subr.bf16.mxu0 0
    %5836 = vmatpush1.bf16.msra.mxu0 0
    %5837 = vmatprep.subr.bf16.mxu0 0
    %5838 = vmatpush1.bf16.msra.mxu0 0
    %5839 = vmatprep.subr.bf16.mxu0 0
    %5840 = vmatpush1.bf16.msra.mxu0 0
    %5841 = vmatprep.subr.bf16.mxu0 0
    %5842 = vmatpush1.bf16.msra.mxu0 0
    %5843 = vmatprep.mubr.bf16.mxu0 0
    %5844 = vmatmul.mubr.bf16.gmra.mrb[0].mxu0 %v4754
    %v5845 = vpop.f32.mrb[0].mxu0
    %v5846 = vadd.f32 0.0, %v5845
    %v5847 = vpop.f32.mrb[0].mxu0
    %v5848 = vadd.f32 0.0, %v5847
    %v5849 = vpop.f32.mrb[0].mxu0
    %v5850 = vpop.f32.mrb[0].mxu0
    %5851 = vdwg.mxu0
    %v5852 = vadd.f32 %v4737, %v5559
    %v5853 = vadd.f32 %v4738, %v5561
    %v5854 = vadd.f32 %v4739, %v5600
    %v5855 = vadd.f32 %v4740, %v5602
    %v5856 = vadd.f32 %v4741, %v5641
    %v5857 = vadd.f32 %v4742, %v5643
    %v5858 = vadd.f32 %v4743, %v5682
    %v5859 = vadd.f32 %v4744, %v5684
    %v5860 = vadd.f32 %v4745, %v5723
    %v5861 = vadd.f32 %v4746, %v5725
    %v5862 = vadd.f32 %v4747, %v5764
    %v5863 = vadd.f32 %v4748, %v5766
    %v5864 = vadd.f32 %v4749, %v5805
    %v5865 = vadd.f32 %v4750, %v5807
    %v5866 = vadd.f32 %v4751, %v5846
    %v5867 = vadd.f32 %v4752, %v5848
    %v5868 = vld [vmem:[#allocation4 + $0x8] sm:$0x3]
    %v5869 = vpack.c.bf16 %v5868, %v5868
    %s5870 = scalar_lea.vmem [#allocation16], 4096
    %v5871 = vld [vmem:[%s5870] sm:$0xff]
    %v5872 = vld [vmem:[%s5870 + $0x8] sm:$0xff]
    %v5873 = vld [vmem:[%s5870 + $0x10] sm:$0xff]
    %v5874 = vld [vmem:[%s5870 + $0x18] sm:$0xff]
    %v5875 = vld [vmem:[%s5870 + $0x20] sm:$0xff]
    %v5876 = vld [vmem:[%s5870 + $0x28] sm:$0xff]
    %v5877 = vld [vmem:[%s5870 + $0x30] sm:$0xff]
    %v5878 = vld [vmem:[%s5870 + $0x38] sm:$0xff]
    %v5879 = vld [vmem:[%s5870 + $0x40] sm:$0xff]
    %v5880 = vld [vmem:[%s5870 + $0x48] sm:$0xff]
    %v5881 = vld [vmem:[%s5870 + $0x50] sm:$0xff]
    %v5882 = vld [vmem:[%s5870 + $0x58] sm:$0xff]
    %v5883 = vld [vmem:[%s5870 + $0x60] sm:$0xff]
    %v5884 = vld [vmem:[%s5870 + $0x68] sm:$0xff]
    %v5885 = vld [vmem:[%s5870 + $0x70] sm:$0xff]
    %v5886 = vld [vmem:[%s5870 + $0x78] sm:$0xff]
    %v5887 = vld [vmem:[%s5870 + $0x80] sm:$0xff]
    %v5888 = vld [vmem:[%s5870 + $0x88] sm:$0xff]
    %v5889 = vld [vmem:[%s5870 + $0x90] sm:$0xff]
    %v5890 = vld [vmem:[%s5870 + $0x98] sm:$0xff]
    %v5891 = vld [vmem:[%s5870 + $0xa0] sm:$0xff]
    %v5892 = vld [vmem:[%s5870 + $0xa8] sm:$0xff]
    %v5893 = vld [vmem:[%s5870 + $0xb0] sm:$0xff]
    %v5894 = vld [vmem:[%s5870 + $0xb8] sm:$0xff]
    %v5895 = vld [vmem:[%s5870 + $0xc0] sm:$0xff]
    %v5896 = vld [vmem:[%s5870 + $0xc8] sm:$0xff]
    %v5897 = vld [vmem:[%s5870 + $0xd0] sm:$0xff]
    %v5898 = vld [vmem:[%s5870 + $0xd8] sm:$0xff]
    %v5899 = vld [vmem:[%s5870 + $0xe0] sm:$0xff]
    %v5900 = vld [vmem:[%s5870 + $0xe8] sm:$0xff]
    %v5901 = vld [vmem:[%s5870 + $0xf0] sm:$0xff]
    %v5902 = vld [vmem:[%s5870 + $0xf8] sm:$0xff]
    %v5903 = vld [vmem:[%s5870 + $0x100] sm:$0xff]
    %v5904 = vld [vmem:[%s5870 + $0x108] sm:$0xff]
    %v5905 = vld [vmem:[%s5870 + $0x110] sm:$0xff]
    %v5906 = vld [vmem:[%s5870 + $0x118] sm:$0xff]
    %v5907 = vld [vmem:[%s5870 + $0x120] sm:$0xff]
    %v5908 = vld [vmem:[%s5870 + $0x128] sm:$0xff]
    %v5909 = vld [vmem:[%s5870 + $0x130] sm:$0xff]
    %v5910 = vld [vmem:[%s5870 + $0x138] sm:$0xff]
    %v5911 = vld [vmem:[%s5870 + $0x140] sm:$0xff]
    %v5912 = vld [vmem:[%s5870 + $0x148] sm:$0xff]
    %v5913 = vld [vmem:[%s5870 + $0x150] sm:$0xff]
    %v5914 = vld [vmem:[%s5870 + $0x158] sm:$0xff]
    %v5915 = vld [vmem:[%s5870 + $0x160] sm:$0xff]
    %v5916 = vld [vmem:[%s5870 + $0x168] sm:$0xff]
    %v5917 = vld [vmem:[%s5870 + $0x170] sm:$0xff]
    %v5918 = vld [vmem:[%s5870 + $0x178] sm:$0xff]
    %v5919 = vld [vmem:[%s5870 + $0x180] sm:$0xff]
    %v5920 = vld [vmem:[%s5870 + $0x188] sm:$0xff]
    %v5921 = vld [vmem:[%s5870 + $0x190] sm:$0xff]
    %v5922 = vld [vmem:[%s5870 + $0x198] sm:$0xff]
    %v5923 = vld [vmem:[%s5870 + $0x1a0] sm:$0xff]
    %v5924 = vld [vmem:[%s5870 + $0x1a8] sm:$0xff]
    %v5925 = vld [vmem:[%s5870 + $0x1b0] sm:$0xff]
    %v5926 = vld [vmem:[%s5870 + $0x1b8] sm:$0xff]
    %v5927 = vld [vmem:[%s5870 + $0x1c0] sm:$0xff]
    %v5928 = vld [vmem:[%s5870 + $0x1c8] sm:$0xff]
    %v5929 = vld [vmem:[%s5870 + $0x1d0] sm:$0xff]
    %v5930 = vld [vmem:[%s5870 + $0x1d8] sm:$0xff]
    %v5931 = vld [vmem:[%s5870 + $0x1e0] sm:$0xff]
    %v5932 = vld [vmem:[%s5870 + $0x1e8] sm:$0xff]
    %v5933 = vld [vmem:[%s5870 + $0x1f0] sm:$0xff]
    %v5934 = vld [vmem:[%s5870 + $0x1f8] sm:$0xff]
    %v5935 = vld [vmem:[%s5870 + $0x200] sm:$0xff]
    %v5936 = vld [vmem:[%s5870 + $0x208] sm:$0xff]
    %v5937 = vld [vmem:[%s5870 + $0x210] sm:$0xff]
    %v5938 = vld [vmem:[%s5870 + $0x218] sm:$0xff]
    %v5939 = vld [vmem:[%s5870 + $0x220] sm:$0xff]
    %v5940 = vld [vmem:[%s5870 + $0x228] sm:$0xff]
    %v5941 = vld [vmem:[%s5870 + $0x230] sm:$0xff]
    %v5942 = vld [vmem:[%s5870 + $0x238] sm:$0xff]
    %v5943 = vld [vmem:[%s5870 + $0x240] sm:$0xff]
    %v5944 = vld [vmem:[%s5870 + $0x248] sm:$0xff]
    %v5945 = vld [vmem:[%s5870 + $0x250] sm:$0xff]
    %v5946 = vld [vmem:[%s5870 + $0x258] sm:$0xff]
    %v5947 = vld [vmem:[%s5870 + $0x260] sm:$0xff]
    %v5948 = vld [vmem:[%s5870 + $0x268] sm:$0xff]
    %v5949 = vld [vmem:[%s5870 + $0x270] sm:$0xff]
    %v5950 = vld [vmem:[%s5870 + $0x278] sm:$0xff]
    %v5951 = vld [vmem:[%s5870 + $0x280] sm:$0xff]
    %v5952 = vld [vmem:[%s5870 + $0x288] sm:$0xff]
    %v5953 = vld [vmem:[%s5870 + $0x290] sm:$0xff]
    %v5954 = vld [vmem:[%s5870 + $0x298] sm:$0xff]
    %v5955 = vld [vmem:[%s5870 + $0x2a0] sm:$0xff]
    %v5956 = vld [vmem:[%s5870 + $0x2a8] sm:$0xff]
    %v5957 = vld [vmem:[%s5870 + $0x2b0] sm:$0xff]
    %v5958 = vld [vmem:[%s5870 + $0x2b8] sm:$0xff]
    %v5959 = vld [vmem:[%s5870 + $0x2c0] sm:$0xff]
    %v5960 = vld [vmem:[%s5870 + $0x2c8] sm:$0xff]
    %v5961 = vld [vmem:[%s5870 + $0x2d0] sm:$0xff]
    %v5962 = vld [vmem:[%s5870 + $0x2d8] sm:$0xff]
    %v5963 = vld [vmem:[%s5870 + $0x2e0] sm:$0xff]
    %v5964 = vld [vmem:[%s5870 + $0x2e8] sm:$0xff]
    %v5965 = vld [vmem:[%s5870 + $0x2f0] sm:$0xff]
    %v5966 = vld [vmem:[%s5870 + $0x2f8] sm:$0xff]
    %v5967 = vld [vmem:[%s5870 + $0x300] sm:$0xff]
    %v5968 = vld [vmem:[%s5870 + $0x308] sm:$0xff]
    %v5969 = vld [vmem:[%s5870 + $0x310] sm:$0xff]
    %v5970 = vld [vmem:[%s5870 + $0x318] sm:$0xff]
    %v5971 = vld [vmem:[%s5870 + $0x320] sm:$0xff]
    %v5972 = vld [vmem:[%s5870 + $0x328] sm:$0xff]
    %v5973 = vld [vmem:[%s5870 + $0x330] sm:$0xff]
    %v5974 = vld [vmem:[%s5870 + $0x338] sm:$0xff]
    %v5975 = vld [vmem:[%s5870 + $0x340] sm:$0xff]
    %v5976 = vld [vmem:[%s5870 + $0x348] sm:$0xff]
    %v5977 = vld [vmem:[%s5870 + $0x350] sm:$0xff]
    %v5978 = vld [vmem:[%s5870 + $0x358] sm:$0xff]
    %v5979 = vld [vmem:[%s5870 + $0x360] sm:$0xff]
    %v5980 = vld [vmem:[%s5870 + $0x368] sm:$0xff]
    %v5981 = vld [vmem:[%s5870 + $0x370] sm:$0xff]
    %v5982 = vld [vmem:[%s5870 + $0x378] sm:$0xff]
    %v5983 = vld [vmem:[%s5870 + $0x380] sm:$0xff]
    %v5984 = vld [vmem:[%s5870 + $0x388] sm:$0xff]
    %v5985 = vld [vmem:[%s5870 + $0x390] sm:$0xff]
    %v5986 = vld [vmem:[%s5870 + $0x398] sm:$0xff]
    %v5987 = vld [vmem:[%s5870 + $0x3a0] sm:$0xff]
    %v5988 = vld [vmem:[%s5870 + $0x3a8] sm:$0xff]
    %v5989 = vld [vmem:[%s5870 + $0x3b0] sm:$0xff]
    %v5990 = vld [vmem:[%s5870 + $0x3b8] sm:$0xff]
    %v5991 = vld [vmem:[%s5870 + $0x3c0] sm:$0xff]
    %v5992 = vld [vmem:[%s5870 + $0x3c8] sm:$0xff]
    %v5993 = vld [vmem:[%s5870 + $0x3d0] sm:$0xff]
    %v5994 = vld [vmem:[%s5870 + $0x3d8] sm:$0xff]
    %v5995 = vld [vmem:[%s5870 + $0x3e0] sm:$0xff]
    %v5996 = vld [vmem:[%s5870 + $0x3e8] sm:$0xff]
    %v5997 = vld [vmem:[%s5870 + $0x3f0] sm:$0xff]
    %v5998 = vld [vmem:[%s5870 + $0x3f8] sm:$0xff]
    %v6127 = vunpack.c.l.b16 %v5871
    %v6128 = vunpack.c.h.b16 %v5871
    %v6129 = vunpack.c.l.b16 %v5872
    %v6130 = vunpack.c.h.b16 %v5872
    %v6131 = vunpack.c.l.b16 %v5873
    %v6132 = vunpack.c.h.b16 %v5873
    %v6133 = vunpack.c.l.b16 %v5874
    %v6134 = vunpack.c.h.b16 %v5874
    %v6135 = vunpack.c.l.b16 %v5875
    %v6136 = vunpack.c.h.b16 %v5875
    %v6137 = vunpack.c.l.b16 %v5876
    %v6138 = vunpack.c.h.b16 %v5876
    %v6139 = vunpack.c.l.b16 %v5877
    %v6140 = vunpack.c.h.b16 %v5877
    %v6141 = vunpack.c.l.b16 %v5878
    %v6142 = vunpack.c.h.b16 %v5878
    %v6143 = vunpack.c.l.b16 %v5879
    %v6144 = vunpack.c.h.b16 %v5879
    %v6145 = vunpack.c.l.b16 %v5880
    %v6146 = vunpack.c.h.b16 %v5880
    %v6147 = vunpack.c.l.b16 %v5881
    %v6148 = vunpack.c.h.b16 %v5881
    %v6149 = vunpack.c.l.b16 %v5882
    %v6150 = vunpack.c.h.b16 %v5882
    %v6151 = vunpack.c.l.b16 %v5883
    %v6152 = vunpack.c.h.b16 %v5883
    %v6153 = vunpack.c.l.b16 %v5884
    %v6154 = vunpack.c.h.b16 %v5884
    %v6155 = vunpack.c.l.b16 %v5885
    %v6156 = vunpack.c.h.b16 %v5885
    %v6157 = vunpack.c.l.b16 %v5886
    %v6158 = vunpack.c.h.b16 %v5886
    %v6159 = vunpack.c.l.b16 %v5887
    %v6160 = vunpack.c.h.b16 %v5887
    %v6161 = vunpack.c.l.b16 %v5888
    %v6162 = vunpack.c.h.b16 %v5888
    %v6163 = vunpack.c.l.b16 %v5889
    %v6164 = vunpack.c.h.b16 %v5889
    %v6165 = vunpack.c.l.b16 %v5890
    %v6166 = vunpack.c.h.b16 %v5890
    %v6167 = vunpack.c.l.b16 %v5891
    %v6168 = vunpack.c.h.b16 %v5891
    %v6169 = vunpack.c.l.b16 %v5892
    %v6170 = vunpack.c.h.b16 %v5892
    %v6171 = vunpack.c.l.b16 %v5893
    %v6172 = vunpack.c.h.b16 %v5893
    %v6173 = vunpack.c.l.b16 %v5894
    %v6174 = vunpack.c.h.b16 %v5894
    %v6175 = vunpack.c.l.b16 %v5895
    %v6176 = vunpack.c.h.b16 %v5895
    %v6177 = vunpack.c.l.b16 %v5896
    %v6178 = vunpack.c.h.b16 %v5896
    %v6179 = vunpack.c.l.b16 %v5897
    %v6180 = vunpack.c.h.b16 %v5897
    %v6181 = vunpack.c.l.b16 %v5898
    %v6182 = vunpack.c.h.b16 %v5898
    %v6183 = vunpack.c.l.b16 %v5899
    %v6184 = vunpack.c.h.b16 %v5899
    %v6185 = vunpack.c.l.b16 %v5900
    %v6186 = vunpack.c.h.b16 %v5900
    %v6187 = vunpack.c.l.b16 %v5901
    %v6188 = vunpack.c.h.b16 %v5901
    %v6189 = vunpack.c.l.b16 %v5902
    %v6190 = vunpack.c.h.b16 %v5902
    %v6191 = vunpack.c.l.b16 %v5903
    %v6192 = vunpack.c.h.b16 %v5903
    %v6193 = vunpack.c.l.b16 %v5904
    %v6194 = vunpack.c.h.b16 %v5904
    %v6195 = vunpack.c.l.b16 %v5905
    %v6196 = vunpack.c.h.b16 %v5905
    %v6197 = vunpack.c.l.b16 %v5906
    %v6198 = vunpack.c.h.b16 %v5906
    %v6199 = vunpack.c.l.b16 %v5907
    %v6200 = vunpack.c.h.b16 %v5907
    %v6201 = vunpack.c.l.b16 %v5908
    %v6202 = vunpack.c.h.b16 %v5908
    %v6203 = vunpack.c.l.b16 %v5909
    %v6204 = vunpack.c.h.b16 %v5909
    %v6205 = vunpack.c.l.b16 %v5910
    %v6206 = vunpack.c.h.b16 %v5910
    %v6207 = vunpack.c.l.b16 %v5911
    %v6208 = vunpack.c.h.b16 %v5911
    %v6209 = vunpack.c.l.b16 %v5912
    %v6210 = vunpack.c.h.b16 %v5912
    %v6211 = vunpack.c.l.b16 %v5913
    %v6212 = vunpack.c.h.b16 %v5913
    %v6213 = vunpack.c.l.b16 %v5914
    %v6214 = vunpack.c.h.b16 %v5914
    %v6215 = vunpack.c.l.b16 %v5915
    %v6216 = vunpack.c.h.b16 %v5915
    %v6217 = vunpack.c.l.b16 %v5916
    %v6218 = vunpack.c.h.b16 %v5916
    %v6219 = vunpack.c.l.b16 %v5917
    %v6220 = vunpack.c.h.b16 %v5917
    %v6221 = vunpack.c.l.b16 %v5918
    %v6222 = vunpack.c.h.b16 %v5918
    %v6223 = vunpack.c.l.b16 %v5919
    %v6224 = vunpack.c.h.b16 %v5919
    %v6225 = vunpack.c.l.b16 %v5920
    %v6226 = vunpack.c.h.b16 %v5920
    %v6227 = vunpack.c.l.b16 %v5921
    %v6228 = vunpack.c.h.b16 %v5921
    %v6229 = vunpack.c.l.b16 %v5922
    %v6230 = vunpack.c.h.b16 %v5922
    %v6231 = vunpack.c.l.b16 %v5923
    %v6232 = vunpack.c.h.b16 %v5923
    %v6233 = vunpack.c.l.b16 %v5924
    %v6234 = vunpack.c.h.b16 %v5924
    %v6235 = vunpack.c.l.b16 %v5925
    %v6236 = vunpack.c.h.b16 %v5925
    %v6237 = vunpack.c.l.b16 %v5926
    %v6238 = vunpack.c.h.b16 %v5926
    %v6239 = vunpack.c.l.b16 %v5927
    %v6240 = vunpack.c.h.b16 %v5927
    %v6241 = vunpack.c.l.b16 %v5928
    %v6242 = vunpack.c.h.b16 %v5928
    %v6243 = vunpack.c.l.b16 %v5929
    %v6244 = vunpack.c.h.b16 %v5929
    %v6245 = vunpack.c.l.b16 %v5930
    %v6246 = vunpack.c.h.b16 %v5930
    %v6247 = vunpack.c.l.b16 %v5931
    %v6248 = vunpack.c.h.b16 %v5931
    %v6249 = vunpack.c.l.b16 %v5932
    %v6250 = vunpack.c.h.b16 %v5932
    %v6251 = vunpack.c.l.b16 %v5933
    %v6252 = vunpack.c.h.b16 %v5933
    %v6253 = vunpack.c.l.b16 %v5934
    %v6254 = vunpack.c.h.b16 %v5934
    %v6255 = vunpack.c.l.b16 %v5935
    %v6256 = vunpack.c.h.b16 %v5935
    %v6257 = vunpack.c.l.b16 %v5936
    %v6258 = vunpack.c.h.b16 %v5936
    %v6259 = vunpack.c.l.b16 %v5937
    %v6260 = vunpack.c.h.b16 %v5937
    %v6261 = vunpack.c.l.b16 %v5938
    %v6262 = vunpack.c.h.b16 %v5938
    %v6263 = vunpack.c.l.b16 %v5939
    %v6264 = vunpack.c.h.b16 %v5939
    %v6265 = vunpack.c.l.b16 %v5940
    %v6266 = vunpack.c.h.b16 %v5940
    %v6267 = vunpack.c.l.b16 %v5941
    %v6268 = vunpack.c.h.b16 %v5941
    %v6269 = vunpack.c.l.b16 %v5942
    %v6270 = vunpack.c.h.b16 %v5942
    %v6271 = vunpack.c.l.b16 %v5943
    %v6272 = vunpack.c.h.b16 %v5943
    %v6273 = vunpack.c.l.b16 %v5944
    %v6274 = vunpack.c.h.b16 %v5944
    %v6275 = vunpack.c.l.b16 %v5945
    %v6276 = vunpack.c.h.b16 %v5945
    %v6277 = vunpack.c.l.b16 %v5946
    %v6278 = vunpack.c.h.b16 %v5946
    %v6279 = vunpack.c.l.b16 %v5947
    %v6280 = vunpack.c.h.b16 %v5947
    %v6281 = vunpack.c.l.b16 %v5948
    %v6282 = vunpack.c.h.b16 %v5948
    %v6283 = vunpack.c.l.b16 %v5949
    %v6284 = vunpack.c.h.b16 %v5949
    %v6285 = vunpack.c.l.b16 %v5950
    %v6286 = vunpack.c.h.b16 %v5950
    %v6287 = vunpack.c.l.b16 %v5951
    %v6288 = vunpack.c.h.b16 %v5951
    %v6289 = vunpack.c.l.b16 %v5952
    %v6290 = vunpack.c.h.b16 %v5952
    %v6291 = vunpack.c.l.b16 %v5953
    %v6292 = vunpack.c.h.b16 %v5953
    %v6293 = vunpack.c.l.b16 %v5954
    %v6294 = vunpack.c.h.b16 %v5954
    %v6295 = vunpack.c.l.b16 %v5955
    %v6296 = vunpack.c.h.b16 %v5955
    %v6297 = vunpack.c.l.b16 %v5956
    %v6298 = vunpack.c.h.b16 %v5956
    %v6299 = vunpack.c.l.b16 %v5957
    %v6300 = vunpack.c.h.b16 %v5957
    %v6301 = vunpack.c.l.b16 %v5958
    %v6302 = vunpack.c.h.b16 %v5958
    %v6303 = vunpack.c.l.b16 %v5959
    %v6304 = vunpack.c.h.b16 %v5959
    %v6305 = vunpack.c.l.b16 %v5960
    %v6306 = vunpack.c.h.b16 %v5960
    %v6307 = vunpack.c.l.b16 %v5961
    %v6308 = vunpack.c.h.b16 %v5961
    %v6309 = vunpack.c.l.b16 %v5962
    %v6310 = vunpack.c.h.b16 %v5962
    %v6311 = vunpack.c.l.b16 %v5963
    %v6312 = vunpack.c.h.b16 %v5963
    %v6313 = vunpack.c.l.b16 %v5964
    %v6314 = vunpack.c.h.b16 %v5964
    %v6315 = vunpack.c.l.b16 %v5965
    %v6316 = vunpack.c.h.b16 %v5965
    %v6317 = vunpack.c.l.b16 %v5966
    %v6318 = vunpack.c.h.b16 %v5966
    %v6319 = vunpack.c.l.b16 %v5967
    %v6320 = vunpack.c.h.b16 %v5967
    %v6321 = vunpack.c.l.b16 %v5968
    %v6322 = vunpack.c.h.b16 %v5968
    %v6323 = vunpack.c.l.b16 %v5969
    %v6324 = vunpack.c.h.b16 %v5969
    %v6325 = vunpack.c.l.b16 %v5970
    %v6326 = vunpack.c.h.b16 %v5970
    %v6327 = vunpack.c.l.b16 %v5971
    %v6328 = vunpack.c.h.b16 %v5971
    %v6329 = vunpack.c.l.b16 %v5972
    %v6330 = vunpack.c.h.b16 %v5972
    %v6331 = vunpack.c.l.b16 %v5973
    %v6332 = vunpack.c.h.b16 %v5973
    %v6333 = vunpack.c.l.b16 %v5974
    %v6334 = vunpack.c.h.b16 %v5974
    %v6335 = vunpack.c.l.b16 %v5975
    %v6336 = vunpack.c.h.b16 %v5975
    %v6337 = vunpack.c.l.b16 %v5976
    %v6338 = vunpack.c.h.b16 %v5976
    %v6339 = vunpack.c.l.b16 %v5977
    %v6340 = vunpack.c.h.b16 %v5977
    %v6341 = vunpack.c.l.b16 %v5978
    %v6342 = vunpack.c.h.b16 %v5978
    %v6343 = vunpack.c.l.b16 %v5979
    %v6344 = vunpack.c.h.b16 %v5979
    %v6345 = vunpack.c.l.b16 %v5980
    %v6346 = vunpack.c.h.b16 %v5980
    %v6347 = vunpack.c.l.b16 %v5981
    %v6348 = vunpack.c.h.b16 %v5981
    %v6349 = vunpack.c.l.b16 %v5982
    %v6350 = vunpack.c.h.b16 %v5982
    %v6351 = vunpack.c.l.b16 %v5983
    %v6352 = vunpack.c.h.b16 %v5983
    %v6353 = vunpack.c.l.b16 %v5984
    %v6354 = vunpack.c.h.b16 %v5984
    %v6355 = vunpack.c.l.b16 %v5985
    %v6356 = vunpack.c.h.b16 %v5985
    %v6357 = vunpack.c.l.b16 %v5986
    %v6358 = vunpack.c.h.b16 %v5986
    %v6359 = vunpack.c.l.b16 %v5987
    %v6360 = vunpack.c.h.b16 %v5987
    %v6361 = vunpack.c.l.b16 %v5988
    %v6362 = vunpack.c.h.b16 %v5988
    %v6363 = vunpack.c.l.b16 %v5989
    %v6364 = vunpack.c.h.b16 %v5989
    %v6365 = vunpack.c.l.b16 %v5990
    %v6366 = vunpack.c.h.b16 %v5990
    %v6367 = vunpack.c.l.b16 %v5991
    %v6368 = vunpack.c.h.b16 %v5991
    %v6369 = vunpack.c.l.b16 %v5992
    %v6370 = vunpack.c.h.b16 %v5992
    %v6371 = vunpack.c.l.b16 %v5993
    %v6372 = vunpack.c.h.b16 %v5993
    %v6373 = vunpack.c.l.b16 %v5994
    %v6374 = vunpack.c.h.b16 %v5994
    %v6375 = vunpack.c.l.b16 %v5995
    %v6376 = vunpack.c.h.b16 %v5995
    %v6377 = vunpack.c.l.b16 %v5996
    %v6378 = vunpack.c.h.b16 %v5996
    %v6379 = vunpack.c.l.b16 %v5997
    %v6380 = vunpack.c.h.b16 %v5997
    %v6381 = vunpack.c.l.b16 %v5998
    %v6382 = vunpack.c.h.b16 %v5998
    %v6383 = vpack.c.b16 %v6143, %v6127
    %v6384 = vpack.c.b16 %v6144, %v6128
    %v6385 = vpack.c.b16 %v6145, %v6129
    %v6386 = vpack.c.b16 %v6146, %v6130
    %v6387 = vpack.c.b16 %v6147, %v6131
    %v6388 = vpack.c.b16 %v6148, %v6132
    %v6389 = vpack.c.b16 %v6149, %v6133
    %v6390 = vpack.c.b16 %v6150, %v6134
    %v6391 = vpack.c.b16 %v6151, %v6135
    %v6392 = vpack.c.b16 %v6152, %v6136
    %v6393 = vpack.c.b16 %v6153, %v6137
    %v6394 = vpack.c.b16 %v6154, %v6138
    %v6395 = vpack.c.b16 %v6155, %v6139
    %v6396 = vpack.c.b16 %v6156, %v6140
    %v6397 = vpack.c.b16 %v6157, %v6141
    %v6398 = vpack.c.b16 %v6158, %v6142
    %v6399 = vpack.c.b16 %v6175, %v6159
    %v6400 = vpack.c.b16 %v6176, %v6160
    %v6401 = vpack.c.b16 %v6177, %v6161
    %v6402 = vpack.c.b16 %v6178, %v6162
    %v6403 = vpack.c.b16 %v6179, %v6163
    %v6404 = vpack.c.b16 %v6180, %v6164
    %v6405 = vpack.c.b16 %v6181, %v6165
    %v6406 = vpack.c.b16 %v6182, %v6166
    %v6407 = vpack.c.b16 %v6183, %v6167
    %v6408 = vpack.c.b16 %v6184, %v6168
    %v6409 = vpack.c.b16 %v6185, %v6169
    %v6410 = vpack.c.b16 %v6186, %v6170
    %v6411 = vpack.c.b16 %v6187, %v6171
    %v6412 = vpack.c.b16 %v6188, %v6172
    %v6413 = vpack.c.b16 %v6189, %v6173
    %v6414 = vpack.c.b16 %v6190, %v6174
    %v6415 = vpack.c.b16 %v6207, %v6191
    %v6416 = vpack.c.b16 %v6208, %v6192
    %v6417 = vpack.c.b16 %v6209, %v6193
    %v6418 = vpack.c.b16 %v6210, %v6194
    %v6419 = vpack.c.b16 %v6211, %v6195
    %v6420 = vpack.c.b16 %v6212, %v6196
    %v6421 = vpack.c.b16 %v6213, %v6197
    %v6422 = vpack.c.b16 %v6214, %v6198
    %v6423 = vpack.c.b16 %v6215, %v6199
    %v6424 = vpack.c.b16 %v6216, %v6200
    %v6425 = vpack.c.b16 %v6217, %v6201
    %v6426 = vpack.c.b16 %v6218, %v6202
    %v6427 = vpack.c.b16 %v6219, %v6203
    %v6428 = vpack.c.b16 %v6220, %v6204
    %v6429 = vpack.c.b16 %v6221, %v6205
    %v6430 = vpack.c.b16 %v6222, %v6206
    %v6431 = vpack.c.b16 %v6239, %v6223
    %v6432 = vpack.c.b16 %v6240, %v6224
    %v6433 = vpack.c.b16 %v6241, %v6225
    %v6434 = vpack.c.b16 %v6242, %v6226
    %v6435 = vpack.c.b16 %v6243, %v6227
    %v6436 = vpack.c.b16 %v6244, %v6228
    %v6437 = vpack.c.b16 %v6245, %v6229
    %v6438 = vpack.c.b16 %v6246, %v6230
    %v6439 = vpack.c.b16 %v6247, %v6231
    %v6440 = vpack.c.b16 %v6248, %v6232
    %v6441 = vpack.c.b16 %v6249, %v6233
    %v6442 = vpack.c.b16 %v6250, %v6234
    %v6443 = vpack.c.b16 %v6251, %v6235
    %v6444 = vpack.c.b16 %v6252, %v6236
    %v6445 = vpack.c.b16 %v6253, %v6237
    %v6446 = vpack.c.b16 %v6254, %v6238
    %v6447 = vpack.c.b16 %v6271, %v6255
    %v6448 = vpack.c.b16 %v6272, %v6256
    %v6449 = vpack.c.b16 %v6273, %v6257
    %v6450 = vpack.c.b16 %v6274, %v6258
    %v6451 = vpack.c.b16 %v6275, %v6259
    %v6452 = vpack.c.b16 %v6276, %v6260
    %v6453 = vpack.c.b16 %v6277, %v6261
    %v6454 = vpack.c.b16 %v6278, %v6262
    %v6455 = vpack.c.b16 %v6279, %v6263
    %v6456 = vpack.c.b16 %v6280, %v6264
    %v6457 = vpack.c.b16 %v6281, %v6265
    %v6458 = vpack.c.b16 %v6282, %v6266
    %v6459 = vpack.c.b16 %v6283, %v6267
    %v6460 = vpack.c.b16 %v6284, %v6268
    %v6461 = vpack.c.b16 %v6285, %v6269
    %v6462 = vpack.c.b16 %v6286, %v6270
    %v6463 = vpack.c.b16 %v6303, %v6287
    %v6464 = vpack.c.b16 %v6304, %v6288
    %v6465 = vpack.c.b16 %v6305, %v6289
    %v6466 = vpack.c.b16 %v6306, %v6290
    %v6467 = vpack.c.b16 %v6307, %v6291
    %v6468 = vpack.c.b16 %v6308, %v6292
    %v6469 = vpack.c.b16 %v6309, %v6293
    %v6470 = vpack.c.b16 %v6310, %v6294
    %v6471 = vpack.c.b16 %v6311, %v6295
    %v6472 = vpack.c.b16 %v6312, %v6296
    %v6473 = vpack.c.b16 %v6313, %v6297
    %v6474 = vpack.c.b16 %v6314, %v6298
    %v6475 = vpack.c.b16 %v6315, %v6299
    %v6476 = vpack.c.b16 %v6316, %v6300
    %v6477 = vpack.c.b16 %v6317, %v6301
    %v6478 = vpack.c.b16 %v6318, %v6302
    %v6479 = vpack.c.b16 %v6335, %v6319
    %v6480 = vpack.c.b16 %v6336, %v6320
    %v6481 = vpack.c.b16 %v6337, %v6321
    %v6482 = vpack.c.b16 %v6338, %v6322
    %v6483 = vpack.c.b16 %v6339, %v6323
    %v6484 = vpack.c.b16 %v6340, %v6324
    %v6485 = vpack.c.b16 %v6341, %v6325
    %v6486 = vpack.c.b16 %v6342, %v6326
    %v6487 = vpack.c.b16 %v6343, %v6327
    %v6488 = vpack.c.b16 %v6344, %v6328
    %v6489 = vpack.c.b16 %v6345, %v6329
    %v6490 = vpack.c.b16 %v6346, %v6330
    %v6491 = vpack.c.b16 %v6347, %v6331
    %v6492 = vpack.c.b16 %v6348, %v6332
    %v6493 = vpack.c.b16 %v6349, %v6333
    %v6494 = vpack.c.b16 %v6350, %v6334
    %v6495 = vpack.c.b16 %v6367, %v6351
    %v6496 = vpack.c.b16 %v6368, %v6352
    %v6497 = vpack.c.b16 %v6369, %v6353
    %v6498 = vpack.c.b16 %v6370, %v6354
    %v6499 = vpack.c.b16 %v6371, %v6355
    %v6500 = vpack.c.b16 %v6372, %v6356
    %v6501 = vpack.c.b16 %v6373, %v6357
    %v6502 = vpack.c.b16 %v6374, %v6358
    %v6503 = vpack.c.b16 %v6375, %v6359
    %v6504 = vpack.c.b16 %v6376, %v6360
    %v6505 = vpack.c.b16 %v6377, %v6361
    %v6506 = vpack.c.b16 %v6378, %v6362
    %v6507 = vpack.c.b16 %v6379, %v6363
    %v6508 = vpack.c.b16 %v6380, %v6364
    %v6509 = vpack.c.b16 %v6381, %v6365
    %v6510 = vpack.c.b16 %v6382, %v6366
    %6639 = vmatprep.subr.bf16.mxu0 %v6384
    %6640 = vmatpush1.bf16.msra.mxu0 %v6383
    %6641 = vmatprep.subr.bf16.mxu0 %v6400
    %6642 = vmatpush1.bf16.msra.mxu0 %v6399
    %6643 = vmatprep.subr.bf16.mxu0 %v6416
    %6644 = vmatpush1.bf16.msra.mxu0 %v6415
    %6645 = vmatprep.subr.bf16.mxu0 %v6432
    %6646 = vmatpush1.bf16.msra.mxu0 %v6431
    %6647 = vmatprep.subr.bf16.mxu0 %v6448
    %6648 = vmatpush1.bf16.msra.mxu0 %v6447
    %6649 = vmatprep.subr.bf16.mxu0 %v6464
    %6650 = vmatpush1.bf16.msra.mxu0 %v6463
    %6651 = vmatprep.subr.bf16.mxu0 %v6480
    %6652 = vmatpush1.bf16.msra.mxu0 %v6479
    %6653 = vmatprep.subr.bf16.mxu0 %v6496
    %6654 = vmatpush1.bf16.msra.mxu0 %v6495
    %6655 = vmatprep.subr.bf16.mxu0 0
    %6656 = vmatpush1.bf16.msra.mxu0 0
    %6657 = vmatprep.subr.bf16.mxu0 0
    %6658 = vmatpush1.bf16.msra.mxu0 0
    %6659 = vmatprep.subr.bf16.mxu0 0
    %6660 = vmatpush1.bf16.msra.mxu0 0
    %6661 = vmatprep.subr.bf16.mxu0 0
    %6662 = vmatpush1.bf16.msra.mxu0 0
    %6663 = vmatprep.subr.bf16.mxu0 0
    %6664 = vmatpush1.bf16.msra.mxu0 0
    %6665 = vmatprep.subr.bf16.mxu0 0
    %6666 = vmatpush1.bf16.msra.mxu0 0
    %6667 = vmatprep.subr.bf16.mxu0 0
    %6668 = vmatpush1.bf16.msra.mxu0 0
    %6669 = vmatprep.subr.bf16.mxu0 0
    %6670 = vmatpush1.bf16.msra.mxu0 0
    %6671 = vmatprep.mubr.bf16.mxu0 0
    %6672 = vmatmul.mubr.bf16.gmra.mrb[0].mxu0 %v5869
    %v6673 = vpop.f32.mrb[0].mxu0
    %v6674 = vadd.f32 0.0, %v6673
    %v6675 = vpop.f32.mrb[0].mxu0
    %v6676 = vadd.f32 0.0, %v6675
    %v6677 = vpop.f32.mrb[0].mxu0
    %v6678 = vpop.f32.mrb[0].mxu0
    %6679 = vdwg.mxu0
    %6680 = vmatprep.subr.bf16.mxu0 %v6386
    %6681 = vmatpush1.bf16.msra.mxu0 %v6385
    %6682 = vmatprep.subr.bf16.mxu0 %v6402
    %6683 = vmatpush1.bf16.msra.mxu0 %v6401
    %6684 = vmatprep.subr.bf16.mxu0 %v6418
    %6685 = vmatpush1.bf16.msra.mxu0 %v6417
    %6686 = vmatprep.subr.bf16.mxu0 %v6434
    %6687 = vmatpush1.bf16.msra.mxu0 %v6433
    %6688 = vmatprep.subr.bf16.mxu0 %v6450
    %6689 = vmatpush1.bf16.msra.mxu0 %v6449
    %6690 = vmatprep.subr.bf16.mxu0 %v6466
    %6691 = vmatpush1.bf16.msra.mxu0 %v6465
    %6692 = vmatprep.subr.bf16.mxu0 %v6482
    %6693 = vmatpush1.bf16.msra.mxu0 %v6481
    %6694 = vmatprep.subr.bf16.mxu0 %v6498
    %6695 = vmatpush1.bf16.msra.mxu0 %v6497
    %6696 = vmatprep.subr.bf16.mxu0 0
    %6697 = vmatpush1.bf16.msra.mxu0 0
    %6698 = vmatprep.subr.bf16.mxu0 0
    %6699 = vmatpush1.bf16.msra.mxu0 0
    %6700 = vmatprep.subr.bf16.mxu0 0
    %6701 = vmatpush1.bf16.msra.mxu0 0
    %6702 = vmatprep.subr.bf16.mxu0 0
    %6703 = vmatpush1.bf16.msra.mxu0 0
    %6704 = vmatprep.subr.bf16.mxu0 0
    %6705 = vmatpush1.bf16.msra.mxu0 0
    %6706 = vmatprep.subr.bf16.mxu0 0
    %6707 = vmatpush1.bf16.msra.mxu0 0
    %6708 = vmatprep.subr.bf16.mxu0 0
    %6709 = vmatpush1.bf16.msra.mxu0 0
    %6710 = vmatprep.subr.bf16.mxu0 0
    %6711 = vmatpush1.bf16.msra.mxu0 0
    %6712 = vmatprep.mubr.bf16.mxu0 0
    %6713 = vmatmul.mubr.bf16.gmra.mrb[0].mxu0 %v5869
    %v6714 = vpop.f32.mrb[0].mxu0
    %v6715 = vadd.f32 0.0, %v6714
    %v6716 = vpop.f32.mrb[0].mxu0
    %v6717 = vadd.f32 0.0, %v6716
    %v6718 = vpop.f32.mrb[0].mxu0
    %v6719 = vpop.f32.mrb[0].mxu0
    %6720 = vdwg.mxu0
    %6721 = vmatprep.subr.bf16.mxu0 %v6388
    %6722 = vmatpush1.bf16.msra.mxu0 %v6387
    %6723 = vmatprep.subr.bf16.mxu0 %v6404
    %6724 = vmatpush1.bf16.msra.mxu0 %v6403
    %6725 = vmatprep.subr.bf16.mxu0 %v6420
    %6726 = vmatpush1.bf16.msra.mxu0 %v6419
    %6727 = vmatprep.subr.bf16.mxu0 %v6436
    %6728 = vmatpush1.bf16.msra.mxu0 %v6435
    %6729 = vmatprep.subr.bf16.mxu0 %v6452
    %6730 = vmatpush1.bf16.msra.mxu0 %v6451
    %6731 = vmatprep.subr.bf16.mxu0 %v6468
    %6732 = vmatpush1.bf16.msra.mxu0 %v6467
    %6733 = vmatprep.subr.bf16.mxu0 %v6484
    %6734 = vmatpush1.bf16.msra.mxu0 %v6483
    %6735 = vmatprep.subr.bf16.mxu0 %v6500
    %6736 = vmatpush1.bf16.msra.mxu0 %v6499
    %6737 = vmatprep.subr.bf16.mxu0 0
    %6738 = vmatpush1.bf16.msra.mxu0 0
    %6739 = vmatprep.subr.bf16.mxu0 0
    %6740 = vmatpush1.bf16.msra.mxu0 0
    %6741 = vmatprep.subr.bf16.mxu0 0
    %6742 = vmatpush1.bf16.msra.mxu0 0
    %6743 = vmatprep.subr.bf16.mxu0 0
    %6744 = vmatpush1.bf16.msra.mxu0 0
    %6745 = vmatprep.subr.bf16.mxu0 0
    %6746 = vmatpush1.bf16.msra.mxu0 0
    %6747 = vmatprep.subr.bf16.mxu0 0
    %6748 = vmatpush1.bf16.msra.mxu0 0
    %6749 = vmatprep.subr.bf16.mxu0 0
    %6750 = vmatpush1.bf16.msra.mxu0 0
    %6751 = vmatprep.subr.bf16.mxu0 0
    %6752 = vmatpush1.bf16.msra.mxu0 0
    %6753 = vmatprep.mubr.bf16.mxu0 0
    %6754 = vmatmul.mubr.bf16.gmra.mrb[0].mxu0 %v5869
    %v6755 = vpop.f32.mrb[0].mxu0
    %v6756 = vadd.f32 0.0, %v6755
    %v6757 = vpop.f32.mrb[0].mxu0
    %v6758 = vadd.f32 0.0, %v6757
    %v6759 = vpop.f32.mrb[0].mxu0
    %v6760 = vpop.f32.mrb[0].mxu0
    %6761 = vdwg.mxu0
    %6762 = vmatprep.subr.bf16.mxu0 %v6390
    %6763 = vmatpush1.bf16.msra.mxu0 %v6389
    %6764 = vmatprep.subr.bf16.mxu0 %v6406
    %6765 = vmatpush1.bf16.msra.mxu0 %v6405
    %6766 = vmatprep.subr.bf16.mxu0 %v6422
    %6767 = vmatpush1.bf16.msra.mxu0 %v6421
    %6768 = vmatprep.subr.bf16.mxu0 %v6438
    %6769 = vmatpush1.bf16.msra.mxu0 %v6437
    %6770 = vmatprep.subr.bf16.mxu0 %v6454
    %6771 = vmatpush1.bf16.msra.mxu0 %v6453
    %6772 = vmatprep.subr.bf16.mxu0 %v6470
    %6773 = vmatpush1.bf16.msra.mxu0 %v6469
    %6774 = vmatprep.subr.bf16.mxu0 %v6486
    %6775 = vmatpush1.bf16.msra.mxu0 %v6485
    %6776 = vmatprep.subr.bf16.mxu0 %v6502
    %6777 = vmatpush1.bf16.msra.mxu0 %v6501
    %6778 = vmatprep.subr.bf16.mxu0 0
    %6779 = vmatpush1.bf16.msra.mxu0 0
    %6780 = vmatprep.subr.bf16.mxu0 0
    %6781 = vmatpush1.bf16.msra.mxu0 0
    %6782 = vmatprep.subr.bf16.mxu0 0
    %6783 = vmatpush1.bf16.msra.mxu0 0
    %6784 = vmatprep.subr.bf16.mxu0 0
    %6785 = vmatpush1.bf16.msra.mxu0 0
    %6786 = vmatprep.subr.bf16.mxu0 0
    %6787 = vmatpush1.bf16.msra.mxu0 0
    %6788 = vmatprep.subr.bf16.mxu0 0
    %6789 = vmatpush1.bf16.msra.mxu0 0
    %6790 = vmatprep.subr.bf16.mxu0 0
    %6791 = vmatpush1.bf16.msra.mxu0 0
    %6792 = vmatprep.subr.bf16.mxu0 0
    %6793 = vmatpush1.bf16.msra.mxu0 0
    %6794 = vmatprep.mubr.bf16.mxu0 0
    %6795 = vmatmul.mubr.bf16.gmra.mrb[0].mxu0 %v5869
    %v6796 = vpop.f32.mrb[0].mxu0
    %v6797 = vadd.f32 0.0, %v6796
    %v6798 = vpop.f32.mrb[0].mxu0
    %v6799 = vadd.f32 0.0, %v6798
    %v6800 = vpop.f32.mrb[0].mxu0
    %v6801 = vpop.f32.mrb[0].mxu0
    %6802 = vdwg.mxu0
    %6803 = vmatprep.subr.bf16.mxu0 %v6392
    %6804 = vmatpush1.bf16.msra.mxu0 %v6391
    %6805 = vmatprep.subr.bf16.mxu0 %v6408
    %6806 = vmatpush1.bf16.msra.mxu0 %v6407
    %6807 = vmatprep.subr.bf16.mxu0 %v6424
    %6808 = vmatpush1.bf16.msra.mxu0 %v6423
    %6809 = vmatprep.subr.bf16.mxu0 %v6440
    %6810 = vmatpush1.bf16.msra.mxu0 %v6439
    %6811 = vmatprep.subr.bf16.mxu0 %v6456
    %6812 = vmatpush1.bf16.msra.mxu0 %v6455
    %6813 = vmatprep.subr.bf16.mxu0 %v6472
    %6814 = vmatpush1.bf16.msra.mxu0 %v6471
    %6815 = vmatprep.subr.bf16.mxu0 %v6488
    %6816 = vmatpush1.bf16.msra.mxu0 %v6487
    %6817 = vmatprep.subr.bf16.mxu0 %v6504
    %6818 = vmatpush1.bf16.msra.mxu0 %v6503
    %6819 = vmatprep.subr.bf16.mxu0 0
    %6820 = vmatpush1.bf16.msra.mxu0 0
    %6821 = vmatprep.subr.bf16.mxu0 0
    %6822 = vmatpush1.bf16.msra.mxu0 0
    %6823 = vmatprep.subr.bf16.mxu0 0
    %6824 = vmatpush1.bf16.msra.mxu0 0
    %6825 = vmatprep.subr.bf16.mxu0 0
    %6826 = vmatpush1.bf16.msra.mxu0 0
    %6827 = vmatprep.subr.bf16.mxu0 0
    %6828 = vmatpush1.bf16.msra.mxu0 0
    %6829 = vmatprep.subr.bf16.mxu0 0
    %6830 = vmatpush1.bf16.msra.mxu0 0
    %6831 = vmatprep.subr.bf16.mxu0 0
    %6832 = vmatpush1.bf16.msra.mxu0 0
    %6833 = vmatprep.subr.bf16.mxu0 0
    %6834 = vmatpush1.bf16.msra.mxu0 0
    %6835 = vmatprep.mubr.bf16.mxu0 0
    %6836 = vmatmul.mubr.bf16.gmra.mrb[0].mxu0 %v5869
    %v6837 = vpop.f32.mrb[0].mxu0
    %v6838 = vadd.f32 0.0, %v6837
    %v6839 = vpop.f32.mrb[0].mxu0
    %v6840 = vadd.f32 0.0, %v6839
    %v6841 = vpop.f32.mrb[0].mxu0
    %v6842 = vpop.f32.mrb[0].mxu0
    %6843 = vdwg.mxu0
    %6844 = vmatprep.subr.bf16.mxu0 %v6394
    %6845 = vmatpush1.bf16.msra.mxu0 %v6393
    %6846 = vmatprep.subr.bf16.mxu0 %v6410
    %6847 = vmatpush1.bf16.msra.mxu0 %v6409
    %6848 = vmatprep.subr.bf16.mxu0 %v6426
    %6849 = vmatpush1.bf16.msra.mxu0 %v6425
    %6850 = vmatprep.subr.bf16.mxu0 %v6442
    %6851 = vmatpush1.bf16.msra.mxu0 %v6441
    %6852 = vmatprep.subr.bf16.mxu0 %v6458
    %6853 = vmatpush1.bf16.msra.mxu0 %v6457
    %6854 = vmatprep.subr.bf16.mxu0 %v6474
    %6855 = vmatpush1.bf16.msra.mxu0 %v6473
    %6856 = vmatprep.subr.bf16.mxu0 %v6490
    %6857 = vmatpush1.bf16.msra.mxu0 %v6489
    %6858 = vmatprep.subr.bf16.mxu0 %v6506
    %6859 = vmatpush1.bf16.msra.mxu0 %v6505
    %6860 = vmatprep.subr.bf16.mxu0 0
    %6861 = vmatpush1.bf16.msra.mxu0 0
    %6862 = vmatprep.subr.bf16.mxu0 0
    %6863 = vmatpush1.bf16.msra.mxu0 0
    %6864 = vmatprep.subr.bf16.mxu0 0
    %6865 = vmatpush1.bf16.msra.mxu0 0
    %6866 = vmatprep.subr.bf16.mxu0 0
    %6867 = vmatpush1.bf16.msra.mxu0 0
    %6868 = vmatprep.subr.bf16.mxu0 0
    %6869 = vmatpush1.bf16.msra.mxu0 0
    %6870 = vmatprep.subr.bf16.mxu0 0
    %6871 = vmatpush1.bf16.msra.mxu0 0
    %6872 = vmatprep.subr.bf16.mxu0 0
    %6873 = vmatpush1.bf16.msra.mxu0 0
    %6874 = vmatprep.subr.bf16.mxu0 0
    %6875 = vmatpush1.bf16.msra.mxu0 0
    %6876 = vmatprep.mubr.bf16.mxu0 0
    %6877 = vmatmul.mubr.bf16.gmra.mrb[0].mxu0 %v5869
    %v6878 = vpop.f32.mrb[0].mxu0
    %v6879 = vadd.f32 0.0, %v6878
    %v6880 = vpop.f32.mrb[0].mxu0
    %v6881 = vadd.f32 0.0, %v6880
    %v6882 = vpop.f32.mrb[0].mxu0
    %v6883 = vpop.f32.mrb[0].mxu0
    %6884 = vdwg.mxu0
    %6885 = vmatprep.subr.bf16.mxu0 %v6396
    %6886 = vmatpush1.bf16.msra.mxu0 %v6395
    %6887 = vmatprep.subr.bf16.mxu0 %v6412
    %6888 = vmatpush1.bf16.msra.mxu0 %v6411
    %6889 = vmatprep.subr.bf16.mxu0 %v6428
    %6890 = vmatpush1.bf16.msra.mxu0 %v6427
    %6891 = vmatprep.subr.bf16.mxu0 %v6444
    %6892 = vmatpush1.bf16.msra.mxu0 %v6443
    %6893 = vmatprep.subr.bf16.mxu0 %v6460
    %6894 = vmatpush1.bf16.msra.mxu0 %v6459
    %6895 = vmatprep.subr.bf16.mxu0 %v6476
    %6896 = vmatpush1.bf16.msra.mxu0 %v6475
    %6897 = vmatprep.subr.bf16.mxu0 %v6492
    %6898 = vmatpush1.bf16.msra.mxu0 %v6491
    %6899 = vmatprep.subr.bf16.mxu0 %v6508
    %6900 = vmatpush1.bf16.msra.mxu0 %v6507
    %6901 = vmatprep.subr.bf16.mxu0 0
    %6902 = vmatpush1.bf16.msra.mxu0 0
    %6903 = vmatprep.subr.bf16.mxu0 0
    %6904 = vmatpush1.bf16.msra.mxu0 0
    %6905 = vmatprep.subr.bf16.mxu0 0
    %6906 = vmatpush1.bf16.msra.mxu0 0
    %6907 = vmatprep.subr.bf16.mxu0 0
    %6908 = vmatpush1.bf16.msra.mxu0 0
    %6909 = vmatprep.subr.bf16.mxu0 0
    %6910 = vmatpush1.bf16.msra.mxu0 0
    %6911 = vmatprep.subr.bf16.mxu0 0
    %6912 = vmatpush1.bf16.msra.mxu0 0
    %6913 = vmatprep.subr.bf16.mxu0 0
    %6914 = vmatpush1.bf16.msra.mxu0 0
    %6915 = vmatprep.subr.bf16.mxu0 0
    %6916 = vmatpush1.bf16.msra.mxu0 0
    %6917 = vmatprep.mubr.bf16.mxu0 0
    %6918 = vmatmul.mubr.bf16.gmra.mrb[0].mxu0 %v5869
    %v6919 = vpop.f32.mrb[0].mxu0
    %v6920 = vadd.f32 0.0, %v6919
    %v6921 = vpop.f32.mrb[0].mxu0
    %v6922 = vadd.f32 0.0, %v6921
    %v6923 = vpop.f32.mrb[0].mxu0
    %v6924 = vpop.f32.mrb[0].mxu0
    %6925 = vdwg.mxu0
    %6926 = vmatprep.subr.bf16.mxu0 %v6398
    %6927 = vmatpush1.bf16.msra.mxu0 %v6397
    %6928 = vmatprep.subr.bf16.mxu0 %v6414
    %6929 = vmatpush1.bf16.msra.mxu0 %v6413
    %6930 = vmatprep.subr.bf16.mxu0 %v6430
    %6931 = vmatpush1.bf16.msra.mxu0 %v6429
    %6932 = vmatprep.subr.bf16.mxu0 %v6446
    %6933 = vmatpush1.bf16.msra.mxu0 %v6445
    %6934 = vmatprep.subr.bf16.mxu0 %v6462
    %6935 = vmatpush1.bf16.msra.mxu0 %v6461
    %6936 = vmatprep.subr.bf16.mxu0 %v6478
    %6937 = vmatpush1.bf16.msra.mxu0 %v6477
    %6938 = vmatprep.subr.bf16.mxu0 %v6494
    %6939 = vmatpush1.bf16.msra.mxu0 %v6493
    %6940 = vmatprep.subr.bf16.mxu0 %v6510
    %6941 = vmatpush1.bf16.msra.mxu0 %v6509
    %6942 = vmatprep.subr.bf16.mxu0 0
    %6943 = vmatpush1.bf16.msra.mxu0 0
    %6944 = vmatprep.subr.bf16.mxu0 0
    %6945 = vmatpush1.bf16.msra.mxu0 0
    %6946 = vmatprep.subr.bf16.mxu0 0
    %6947 = vmatpush1.bf16.msra.mxu0 0
    %6948 = vmatprep.subr.bf16.mxu0 0
    %6949 = vmatpush1.bf16.msra.mxu0 0
    %6950 = vmatprep.subr.bf16.mxu0 0
    %6951 = vmatpush1.bf16.msra.mxu0 0
    %6952 = vmatprep.subr.bf16.mxu0 0
    %6953 = vmatpush1.bf16.msra.mxu0 0
    %6954 = vmatprep.subr.bf16.mxu0 0
    %6955 = vmatpush1.bf16.msra.mxu0 0
    %6956 = vmatprep.subr.bf16.mxu0 0
    %6957 = vmatpush1.bf16.msra.mxu0 0
    %6958 = vmatprep.mubr.bf16.mxu0 0
    %6959 = vmatmul.mubr.bf16.gmra.mrb[0].mxu0 %v5869
    %v6960 = vpop.f32.mrb[0].mxu0
    %v6961 = vadd.f32 0.0, %v6960
    %v6962 = vpop.f32.mrb[0].mxu0
    %v6963 = vadd.f32 0.0, %v6962
    %v6964 = vpop.f32.mrb[0].mxu0
    %v6965 = vpop.f32.mrb[0].mxu0
    %6966 = vdwg.mxu0
    %v6967 = vadd.f32 %v5852, %v6674
    %v6968 = vadd.f32 %v5853, %v6676
    %v6969 = vadd.f32 %v5854, %v6715
    %v6970 = vadd.f32 %v5855, %v6717
    %v6971 = vadd.f32 %v5856, %v6756
    %v6972 = vadd.f32 %v5857, %v6758
    %v6973 = vadd.f32 %v5858, %v6797
    %v6974 = vadd.f32 %v5859, %v6799
    %v6975 = vadd.f32 %v5860, %v6838
    %v6976 = vadd.f32 %v5861, %v6840
    %v6977 = vadd.f32 %v5862, %v6879
    %v6978 = vadd.f32 %v5863, %v6881
    %v6979 = vadd.f32 %v5864, %v6920
    %v6980 = vadd.f32 %v5865, %v6922
    %v6981 = vadd.f32 %v5866, %v6961
    %v6982 = vadd.f32 %v5867, %v6963
    %v6983 = vld [vmem:[#allocation4 + $0xa] sm:$0x3]
    %v6984 = vpack.c.bf16 %v6983, %v6983
    %s6985 = scalar_lea.vmem [#allocation16], 5120
    %v6986 = vld [vmem:[%s6985] sm:$0xff]
    %v6987 = vld [vmem:[%s6985 + $0x8] sm:$0xff]
    %v6988 = vld [vmem:[%s6985 + $0x10] sm:$0xff]
    %v6989 = vld [vmem:[%s6985 + $0x18] sm:$0xff]
    %v6990 = vld [vmem:[%s6985 + $0x20] sm:$0xff]
    %v6991 = vld [vmem:[%s6985 + $0x28] sm:$0xff]
    %v6992 = vld [vmem:[%s6985 + $0x30] sm:$0xff]
    %v6993 = vld [vmem:[%s6985 + $0x38] sm:$0xff]
    %v6994 = vld [vmem:[%s6985 + $0x40] sm:$0xff]
    %v6995 = vld [vmem:[%s6985 + $0x48] sm:$0xff]
    %v6996 = vld [vmem:[%s6985 + $0x50] sm:$0xff]
    %v6997 = vld [vmem:[%s6985 + $0x58] sm:$0xff]
    %v6998 = vld [vmem:[%s6985 + $0x60] sm:$0xff]
    %v6999 = vld [vmem:[%s6985 + $0x68] sm:$0xff]
    %v7000 = vld [vmem:[%s6985 + $0x70] sm:$0xff]
    %v7001 = vld [vmem:[%s6985 + $0x78] sm:$0xff]
    %v7002 = vld [vmem:[%s6985 + $0x80] sm:$0xff]
    %v7003 = vld [vmem:[%s6985 + $0x88] sm:$0xff]
    %v7004 = vld [vmem:[%s6985 + $0x90] sm:$0xff]
    %v7005 = vld [vmem:[%s6985 + $0x98] sm:$0xff]
    %v7006 = vld [vmem:[%s6985 + $0xa0] sm:$0xff]
    %v7007 = vld [vmem:[%s6985 + $0xa8] sm:$0xff]
    %v7008 = vld [vmem:[%s6985 + $0xb0] sm:$0xff]
    %v7009 = vld [vmem:[%s6985 + $0xb8] sm:$0xff]
    %v7010 = vld [vmem:[%s6985 + $0xc0] sm:$0xff]
    %v7011 = vld [vmem:[%s6985 + $0xc8] sm:$0xff]
    %v7012 = vld [vmem:[%s6985 + $0xd0] sm:$0xff]
    %v7013 = vld [vmem:[%s6985 + $0xd8] sm:$0xff]
    %v7014 = vld [vmem:[%s6985 + $0xe0] sm:$0xff]
    %v7015 = vld [vmem:[%s6985 + $0xe8] sm:$0xff]
    %v7016 = vld [vmem:[%s6985 + $0xf0] sm:$0xff]
    %v7017 = vld [vmem:[%s6985 + $0xf8] sm:$0xff]
    %v7018 = vld [vmem:[%s6985 + $0x100] sm:$0xff]
    %v7019 = vld [vmem:[%s6985 + $0x108] sm:$0xff]
    %v7020 = vld [vmem:[%s6985 + $0x110] sm:$0xff]
    %v7021 = vld [vmem:[%s6985 + $0x118] sm:$0xff]
    %v7022 = vld [vmem:[%s6985 + $0x120] sm:$0xff]
    %v7023 = vld [vmem:[%s6985 + $0x128] sm:$0xff]
    %v7024 = vld [vmem:[%s6985 + $0x130] sm:$0xff]
    %v7025 = vld [vmem:[%s6985 + $0x138] sm:$0xff]
    %v7026 = vld [vmem:[%s6985 + $0x140] sm:$0xff]
    %v7027 = vld [vmem:[%s6985 + $0x148] sm:$0xff]
    %v7028 = vld [vmem:[%s6985 + $0x150] sm:$0xff]
    %v7029 = vld [vmem:[%s6985 + $0x158] sm:$0xff]
    %v7030 = vld [vmem:[%s6985 + $0x160] sm:$0xff]
    %v7031 = vld [vmem:[%s6985 + $0x168] sm:$0xff]
    %v7032 = vld [vmem:[%s6985 + $0x170] sm:$0xff]
    %v7033 = vld [vmem:[%s6985 + $0x178] sm:$0xff]
    %v7034 = vld [vmem:[%s6985 + $0x180] sm:$0xff]
    %v7035 = vld [vmem:[%s6985 + $0x188] sm:$0xff]
    %v7036 = vld [vmem:[%s6985 + $0x190] sm:$0xff]
    %v7037 = vld [vmem:[%s6985 + $0x198] sm:$0xff]
    %v7038 = vld [vmem:[%s6985 + $0x1a0] sm:$0xff]
    %v7039 = vld [vmem:[%s6985 + $0x1a8] sm:$0xff]
    %v7040 = vld [vmem:[%s6985 + $0x1b0] sm:$0xff]
    %v7041 = vld [vmem:[%s6985 + $0x1b8] sm:$0xff]
    %v7042 = vld [vmem:[%s6985 + $0x1c0] sm:$0xff]
    %v7043 = vld [vmem:[%s6985 + $0x1c8] sm:$0xff]
    %v7044 = vld [vmem:[%s6985 + $0x1d0] sm:$0xff]
    %v7045 = vld [vmem:[%s6985 + $0x1d8] sm:$0xff]
    %v7046 = vld [vmem:[%s6985 + $0x1e0] sm:$0xff]
    %v7047 = vld [vmem:[%s6985 + $0x1e8] sm:$0xff]
    %v7048 = vld [vmem:[%s6985 + $0x1f0] sm:$0xff]
    %v7049 = vld [vmem:[%s6985 + $0x1f8] sm:$0xff]
    %v7050 = vld [vmem:[%s6985 + $0x200] sm:$0xff]
    %v7051 = vld [vmem:[%s6985 + $0x208] sm:$0xff]
    %v7052 = vld [vmem:[%s6985 + $0x210] sm:$0xff]
    %v7053 = vld [vmem:[%s6985 + $0x218] sm:$0xff]
    %v7054 = vld [vmem:[%s6985 + $0x220] sm:$0xff]
    %v7055 = vld [vmem:[%s6985 + $0x228] sm:$0xff]
    %v7056 = vld [vmem:[%s6985 + $0x230] sm:$0xff]
    %v7057 = vld [vmem:[%s6985 + $0x238] sm:$0xff]
    %v7058 = vld [vmem:[%s6985 + $0x240] sm:$0xff]
    %v7059 = vld [vmem:[%s6985 + $0x248] sm:$0xff]
    %v7060 = vld [vmem:[%s6985 + $0x250] sm:$0xff]
    %v7061 = vld [vmem:[%s6985 + $0x258] sm:$0xff]
    %v7062 = vld [vmem:[%s6985 + $0x260] sm:$0xff]
    %v7063 = vld [vmem:[%s6985 + $0x268] sm:$0xff]
    %v7064 = vld [vmem:[%s6985 + $0x270] sm:$0xff]
    %v7065 = vld [vmem:[%s6985 + $0x278] sm:$0xff]
    %v7066 = vld [vmem:[%s6985 + $0x280] sm:$0xff]
    %v7067 = vld [vmem:[%s6985 + $0x288] sm:$0xff]
    %v7068 = vld [vmem:[%s6985 + $0x290] sm:$0xff]
    %v7069 = vld [vmem:[%s6985 + $0x298] sm:$0xff]
    %v7070 = vld [vmem:[%s6985 + $0x2a0] sm:$0xff]
    %v7071 = vld [vmem:[%s6985 + $0x2a8] sm:$0xff]
    %v7072 = vld [vmem:[%s6985 + $0x2b0] sm:$0xff]
    %v7073 = vld [vmem:[%s6985 + $0x2b8] sm:$0xff]
    %v7074 = vld [vmem:[%s6985 + $0x2c0] sm:$0xff]
    %v7075 = vld [vmem:[%s6985 + $0x2c8] sm:$0xff]
    %v7076 = vld [vmem:[%s6985 + $0x2d0] sm:$0xff]
    %v7077 = vld [vmem:[%s6985 + $0x2d8] sm:$0xff]
    %v7078 = vld [vmem:[%s6985 + $0x2e0] sm:$0xff]
    %v7079 = vld [vmem:[%s6985 + $0x2e8] sm:$0xff]
    %v7080 = vld [vmem:[%s6985 + $0x2f0] sm:$0xff]
    %v7081 = vld [vmem:[%s6985 + $0x2f8] sm:$0xff]
    %v7082 = vld [vmem:[%s6985 + $0x300] sm:$0xff]
    %v7083 = vld [vmem:[%s6985 + $0x308] sm:$0xff]
    %v7084 = vld [vmem:[%s6985 + $0x310] sm:$0xff]
    %v7085 = vld [vmem:[%s6985 + $0x318] sm:$0xff]
    %v7086 = vld [vmem:[%s6985 + $0x320] sm:$0xff]
    %v7087 = vld [vmem:[%s6985 + $0x328] sm:$0xff]
    %v7088 = vld [vmem:[%s6985 + $0x330] sm:$0xff]
    %v7089 = vld [vmem:[%s6985 + $0x338] sm:$0xff]
    %v7090 = vld [vmem:[%s6985 + $0x340] sm:$0xff]
    %v7091 = vld [vmem:[%s6985 + $0x348] sm:$0xff]
    %v7092 = vld [vmem:[%s6985 + $0x350] sm:$0xff]
    %v7093 = vld [vmem:[%s6985 + $0x358] sm:$0xff]
    %v7094 = vld [vmem:[%s6985 + $0x360] sm:$0xff]
    %v7095 = vld [vmem:[%s6985 + $0x368] sm:$0xff]
    %v7096 = vld [vmem:[%s6985 + $0x370] sm:$0xff]
    %v7097 = vld [vmem:[%s6985 + $0x378] sm:$0xff]
    %v7098 = vld [vmem:[%s6985 + $0x380] sm:$0xff]
    %v7099 = vld [vmem:[%s6985 + $0x388] sm:$0xff]
    %v7100 = vld [vmem:[%s6985 + $0x390] sm:$0xff]
    %v7101 = vld [vmem:[%s6985 + $0x398] sm:$0xff]
    %v7102 = vld [vmem:[%s6985 + $0x3a0] sm:$0xff]
    %v7103 = vld [vmem:[%s6985 + $0x3a8] sm:$0xff]
    %v7104 = vld [vmem:[%s6985 + $0x3b0] sm:$0xff]
    %v7105 = vld [vmem:[%s6985 + $0x3b8] sm:$0xff]
    %v7106 = vld [vmem:[%s6985 + $0x3c0] sm:$0xff]
    %v7107 = vld [vmem:[%s6985 + $0x3c8] sm:$0xff]
    %v7108 = vld [vmem:[%s6985 + $0x3d0] sm:$0xff]
    %v7109 = vld [vmem:[%s6985 + $0x3d8] sm:$0xff]
    %v7110 = vld [vmem:[%s6985 + $0x3e0] sm:$0xff]
    %v7111 = vld [vmem:[%s6985 + $0x3e8] sm:$0xff]
    %v7112 = vld [vmem:[%s6985 + $0x3f0] sm:$0xff]
    %v7113 = vld [vmem:[%s6985 + $0x3f8] sm:$0xff]
    %v7242 = vunpack.c.l.b16 %v6986
    %v7243 = vunpack.c.h.b16 %v6986
    %v7244 = vunpack.c.l.b16 %v6987
    %v7245 = vunpack.c.h.b16 %v6987
    %v7246 = vunpack.c.l.b16 %v6988
    %v7247 = vunpack.c.h.b16 %v6988
    %v7248 = vunpack.c.l.b16 %v6989
    %v7249 = vunpack.c.h.b16 %v6989
    %v7250 = vunpack.c.l.b16 %v6990
    %v7251 = vunpack.c.h.b16 %v6990
    %v7252 = vunpack.c.l.b16 %v6991
    %v7253 = vunpack.c.h.b16 %v6991
    %v7254 = vunpack.c.l.b16 %v6992
    %v7255 = vunpack.c.h.b16 %v6992
    %v7256 = vunpack.c.l.b16 %v6993
    %v7257 = vunpack.c.h.b16 %v6993
    %v7258 = vunpack.c.l.b16 %v6994
    %v7259 = vunpack.c.h.b16 %v6994
    %v7260 = vunpack.c.l.b16 %v6995
    %v7261 = vunpack.c.h.b16 %v6995
    %v7262 = vunpack.c.l.b16 %v6996
    %v7263 = vunpack.c.h.b16 %v6996
    %v7264 = vunpack.c.l.b16 %v6997
    %v7265 = vunpack.c.h.b16 %v6997
    %v7266 = vunpack.c.l.b16 %v6998
    %v7267 = vunpack.c.h.b16 %v6998
    %v7268 = vunpack.c.l.b16 %v6999
    %v7269 = vunpack.c.h.b16 %v6999
    %v7270 = vunpack.c.l.b16 %v7000
    %v7271 = vunpack.c.h.b16 %v7000
    %v7272 = vunpack.c.l.b16 %v7001
    %v7273 = vunpack.c.h.b16 %v7001
    %v7274 = vunpack.c.l.b16 %v7002
    %v7275 = vunpack.c.h.b16 %v7002
    %v7276 = vunpack.c.l.b16 %v7003
    %v7277 = vunpack.c.h.b16 %v7003
    %v7278 = vunpack.c.l.b16 %v7004
    %v7279 = vunpack.c.h.b16 %v7004
    %v7280 = vunpack.c.l.b16 %v7005
    %v7281 = vunpack.c.h.b16 %v7005
    %v7282 = vunpack.c.l.b16 %v7006
    %v7283 = vunpack.c.h.b16 %v7006
    %v7284 = vunpack.c.l.b16 %v7007
    %v7285 = vunpack.c.h.b16 %v7007
    %v7286 = vunpack.c.l.b16 %v7008
    %v7287 = vunpack.c.h.b16 %v7008
    %v7288 = vunpack.c.l.b16 %v7009
    %v7289 = vunpack.c.h.b16 %v7009
    %v7290 = vunpack.c.l.b16 %v7010
    %v7291 = vunpack.c.h.b16 %v7010
    %v7292 = vunpack.c.l.b16 %v7011
    %v7293 = vunpack.c.h.b16 %v7011
    %v7294 = vunpack.c.l.b16 %v7012
    %v7295 = vunpack.c.h.b16 %v7012
    %v7296 = vunpack.c.l.b16 %v7013
    %v7297 = vunpack.c.h.b16 %v7013
    %v7298 = vunpack.c.l.b16 %v7014
    %v7299 = vunpack.c.h.b16 %v7014
    %v7300 = vunpack.c.l.b16 %v7015
    %v7301 = vunpack.c.h.b16 %v7015
    %v7302 = vunpack.c.l.b16 %v7016
    %v7303 = vunpack.c.h.b16 %v7016
    %v7304 = vunpack.c.l.b16 %v7017
    %v7305 = vunpack.c.h.b16 %v7017
    %v7306 = vunpack.c.l.b16 %v7018
    %v7307 = vunpack.c.h.b16 %v7018
    %v7308 = vunpack.c.l.b16 %v7019
    %v7309 = vunpack.c.h.b16 %v7019
    %v7310 = vunpack.c.l.b16 %v7020
    %v7311 = vunpack.c.h.b16 %v7020
    %v7312 = vunpack.c.l.b16 %v7021
    %v7313 = vunpack.c.h.b16 %v7021
    %v7314 = vunpack.c.l.b16 %v7022
    %v7315 = vunpack.c.h.b16 %v7022
    %v7316 = vunpack.c.l.b16 %v7023
    %v7317 = vunpack.c.h.b16 %v7023
    %v7318 = vunpack.c.l.b16 %v7024
    %v7319 = vunpack.c.h.b16 %v7024
    %v7320 = vunpack.c.l.b16 %v7025
    %v7321 = vunpack.c.h.b16 %v7025
    %v7322 = vunpack.c.l.b16 %v7026
    %v7323 = vunpack.c.h.b16 %v7026
    %v7324 = vunpack.c.l.b16 %v7027
    %v7325 = vunpack.c.h.b16 %v7027
    %v7326 = vunpack.c.l.b16 %v7028
    %v7327 = vunpack.c.h.b16 %v7028
    %v7328 = vunpack.c.l.b16 %v7029
    %v7329 = vunpack.c.h.b16 %v7029
    %v7330 = vunpack.c.l.b16 %v7030
    %v7331 = vunpack.c.h.b16 %v7030
    %v7332 = vunpack.c.l.b16 %v7031
    %v7333 = vunpack.c.h.b16 %v7031
    %v7334 = vunpack.c.l.b16 %v7032
    %v7335 = vunpack.c.h.b16 %v7032
    %v7336 = vunpack.c.l.b16 %v7033
    %v7337 = vunpack.c.h.b16 %v7033
    %v7338 = vunpack.c.l.b16 %v7034
    %v7339 = vunpack.c.h.b16 %v7034
    %v7340 = vunpack.c.l.b16 %v7035
    %v7341 = vunpack.c.h.b16 %v7035
    %v7342 = vunpack.c.l.b16 %v7036
    %v7343 = vunpack.c.h.b16 %v7036
    %v7344 = vunpack.c.l.b16 %v7037
    %v7345 = vunpack.c.h.b16 %v7037
    %v7346 = vunpack.c.l.b16 %v7038
    %v7347 = vunpack.c.h.b16 %v7038
    %v7348 = vunpack.c.l.b16 %v7039
    %v7349 = vunpack.c.h.b16 %v7039
    %v7350 = vunpack.c.l.b16 %v7040
    %v7351 = vunpack.c.h.b16 %v7040
    %v7352 = vunpack.c.l.b16 %v7041
    %v7353 = vunpack.c.h.b16 %v7041
    %v7354 = vunpack.c.l.b16 %v7042
    %v7355 = vunpack.c.h.b16 %v7042
    %v7356 = vunpack.c.l.b16 %v7043
    %v7357 = vunpack.c.h.b16 %v7043
    %v7358 = vunpack.c.l.b16 %v7044
    %v7359 = vunpack.c.h.b16 %v7044
    %v7360 = vunpack.c.l.b16 %v7045
    %v7361 = vunpack.c.h.b16 %v7045
    %v7362 = vunpack.c.l.b16 %v7046
    %v7363 = vunpack.c.h.b16 %v7046
    %v7364 = vunpack.c.l.b16 %v7047
    %v7365 = vunpack.c.h.b16 %v7047
    %v7366 = vunpack.c.l.b16 %v7048
    %v7367 = vunpack.c.h.b16 %v7048
    %v7368 = vunpack.c.l.b16 %v7049
    %v7369 = vunpack.c.h.b16 %v7049
    %v7370 = vunpack.c.l.b16 %v7050
    %v7371 = vunpack.c.h.b16 %v7050
    %v7372 = vunpack.c.l.b16 %v7051
    %v7373 = vunpack.c.h.b16 %v7051
    %v7374 = vunpack.c.l.b16 %v7052
    %v7375 = vunpack.c.h.b16 %v7052
    %v7376 = vunpack.c.l.b16 %v7053
    %v7377 = vunpack.c.h.b16 %v7053
    %v7378 = vunpack.c.l.b16 %v7054
    %v7379 = vunpack.c.h.b16 %v7054
    %v7380 = vunpack.c.l.b16 %v7055
    %v7381 = vunpack.c.h.b16 %v7055
    %v7382 = vunpack.c.l.b16 %v7056
    %v7383 = vunpack.c.h.b16 %v7056
    %v7384 = vunpack.c.l.b16 %v7057
    %v7385 = vunpack.c.h.b16 %v7057
    %v7386 = vunpack.c.l.b16 %v7058
    %v7387 = vunpack.c.h.b16 %v7058
    %v7388 = vunpack.c.l.b16 %v7059
    %v7389 = vunpack.c.h.b16 %v7059
    %v7390 = vunpack.c.l.b16 %v7060
    %v7391 = vunpack.c.h.b16 %v7060
    %v7392 = vunpack.c.l.b16 %v7061
    %v7393 = vunpack.c.h.b16 %v7061
    %v7394 = vunpack.c.l.b16 %v7062
    %v7395 = vunpack.c.h.b16 %v7062
    %v7396 = vunpack.c.l.b16 %v7063
    %v7397 = vunpack.c.h.b16 %v7063
    %v7398 = vunpack.c.l.b16 %v7064
    %v7399 = vunpack.c.h.b16 %v7064
    %v7400 = vunpack.c.l.b16 %v7065
    %v7401 = vunpack.c.h.b16 %v7065
    %v7402 = vunpack.c.l.b16 %v7066
    %v7403 = vunpack.c.h.b16 %v7066
    %v7404 = vunpack.c.l.b16 %v7067
    %v7405 = vunpack.c.h.b16 %v7067
    %v7406 = vunpack.c.l.b16 %v7068
    %v7407 = vunpack.c.h.b16 %v7068
    %v7408 = vunpack.c.l.b16 %v7069
    %v7409 = vunpack.c.h.b16 %v7069
    %v7410 = vunpack.c.l.b16 %v7070
    %v7411 = vunpack.c.h.b16 %v7070
    %v7412 = vunpack.c.l.b16 %v7071
    %v7413 = vunpack.c.h.b16 %v7071
    %v7414 = vunpack.c.l.b16 %v7072
    %v7415 = vunpack.c.h.b16 %v7072
    %v7416 = vunpack.c.l.b16 %v7073
    %v7417 = vunpack.c.h.b16 %v7073
    %v7418 = vunpack.c.l.b16 %v7074
    %v7419 = vunpack.c.h.b16 %v7074
    %v7420 = vunpack.c.l.b16 %v7075
    %v7421 = vunpack.c.h.b16 %v7075
    %v7422 = vunpack.c.l.b16 %v7076
    %v7423 = vunpack.c.h.b16 %v7076
    %v7424 = vunpack.c.l.b16 %v7077
    %v7425 = vunpack.c.h.b16 %v7077
    %v7426 = vunpack.c.l.b16 %v7078
    %v7427 = vunpack.c.h.b16 %v7078
    %v7428 = vunpack.c.l.b16 %v7079
    %v7429 = vunpack.c.h.b16 %v7079
    %v7430 = vunpack.c.l.b16 %v7080
    %v7431 = vunpack.c.h.b16 %v7080
    %v7432 = vunpack.c.l.b16 %v7081
    %v7433 = vunpack.c.h.b16 %v7081
    %v7434 = vunpack.c.l.b16 %v7082
    %v7435 = vunpack.c.h.b16 %v7082
    %v7436 = vunpack.c.l.b16 %v7083
    %v7437 = vunpack.c.h.b16 %v7083
    %v7438 = vunpack.c.l.b16 %v7084
    %v7439 = vunpack.c.h.b16 %v7084
    %v7440 = vunpack.c.l.b16 %v7085
    %v7441 = vunpack.c.h.b16 %v7085
    %v7442 = vunpack.c.l.b16 %v7086
    %v7443 = vunpack.c.h.b16 %v7086
    %v7444 = vunpack.c.l.b16 %v7087
    %v7445 = vunpack.c.h.b16 %v7087
    %v7446 = vunpack.c.l.b16 %v7088
    %v7447 = vunpack.c.h.b16 %v7088
    %v7448 = vunpack.c.l.b16 %v7089
    %v7449 = vunpack.c.h.b16 %v7089
    %v7450 = vunpack.c.l.b16 %v7090
    %v7451 = vunpack.c.h.b16 %v7090
    %v7452 = vunpack.c.l.b16 %v7091
    %v7453 = vunpack.c.h.b16 %v7091
    %v7454 = vunpack.c.l.b16 %v7092
    %v7455 = vunpack.c.h.b16 %v7092
    %v7456 = vunpack.c.l.b16 %v7093
    %v7457 = vunpack.c.h.b16 %v7093
    %v7458 = vunpack.c.l.b16 %v7094
    %v7459 = vunpack.c.h.b16 %v7094
    %v7460 = vunpack.c.l.b16 %v7095
    %v7461 = vunpack.c.h.b16 %v7095
    %v7462 = vunpack.c.l.b16 %v7096
    %v7463 = vunpack.c.h.b16 %v7096
    %v7464 = vunpack.c.l.b16 %v7097
    %v7465 = vunpack.c.h.b16 %v7097
    %v7466 = vunpack.c.l.b16 %v7098
    %v7467 = vunpack.c.h.b16 %v7098
    %v7468 = vunpack.c.l.b16 %v7099
    %v7469 = vunpack.c.h.b16 %v7099
    %v7470 = vunpack.c.l.b16 %v7100
    %v7471 = vunpack.c.h.b16 %v7100
    %v7472 = vunpack.c.l.b16 %v7101
    %v7473 = vunpack.c.h.b16 %v7101
    %v7474 = vunpack.c.l.b16 %v7102
    %v7475 = vunpack.c.h.b16 %v7102
    %v7476 = vunpack.c.l.b16 %v7103
    %v7477 = vunpack.c.h.b16 %v7103
    %v7478 = vunpack.c.l.b16 %v7104
    %v7479 = vunpack.c.h.b16 %v7104
    %v7480 = vunpack.c.l.b16 %v7105
    %v7481 = vunpack.c.h.b16 %v7105
    %v7482 = vunpack.c.l.b16 %v7106
    %v7483 = vunpack.c.h.b16 %v7106
    %v7484 = vunpack.c.l.b16 %v7107
    %v7485 = vunpack.c.h.b16 %v7107
    %v7486 = vunpack.c.l.b16 %v7108
    %v7487 = vunpack.c.h.b16 %v7108
    %v7488 = vunpack.c.l.b16 %v7109
    %v7489 = vunpack.c.h.b16 %v7109
    %v7490 = vunpack.c.l.b16 %v7110
    %v7491 = vunpack.c.h.b16 %v7110
    %v7492 = vunpack.c.l.b16 %v7111
    %v7493 = vunpack.c.h.b16 %v7111
    %v7494 = vunpack.c.l.b16 %v7112
    %v7495 = vunpack.c.h.b16 %v7112
    %v7496 = vunpack.c.l.b16 %v7113
    %v7497 = vunpack.c.h.b16 %v7113
    %v7498 = vpack.c.b16 %v7258, %v7242
    %v7499 = vpack.c.b16 %v7259, %v7243
    %v7500 = vpack.c.b16 %v7260, %v7244
    %v7501 = vpack.c.b16 %v7261, %v7245
    %v7502 = vpack.c.b16 %v7262, %v7246
    %v7503 = vpack.c.b16 %v7263, %v7247
    %v7504 = vpack.c.b16 %v7264, %v7248
    %v7505 = vpack.c.b16 %v7265, %v7249
    %v7506 = vpack.c.b16 %v7266, %v7250
    %v7507 = vpack.c.b16 %v7267, %v7251
    %v7508 = vpack.c.b16 %v7268, %v7252
    %v7509 = vpack.c.b16 %v7269, %v7253
    %v7510 = vpack.c.b16 %v7270, %v7254
    %v7511 = vpack.c.b16 %v7271, %v7255
    %v7512 = vpack.c.b16 %v7272, %v7256
    %v7513 = vpack.c.b16 %v7273, %v7257
    %v7514 = vpack.c.b16 %v7290, %v7274
    %v7515 = vpack.c.b16 %v7291, %v7275
    %v7516 = vpack.c.b16 %v7292, %v7276
    %v7517 = vpack.c.b16 %v7293, %v7277
    %v7518 = vpack.c.b16 %v7294, %v7278
    %v7519 = vpack.c.b16 %v7295, %v7279
    %v7520 = vpack.c.b16 %v7296, %v7280
    %v7521 = vpack.c.b16 %v7297, %v7281
    %v7522 = vpack.c.b16 %v7298, %v7282
    %v7523 = vpack.c.b16 %v7299, %v7283
    %v7524 = vpack.c.b16 %v7300, %v7284
    %v7525 = vpack.c.b16 %v7301, %v7285
    %v7526 = vpack.c.b16 %v7302, %v7286
    %v7527 = vpack.c.b16 %v7303, %v7287
    %v7528 = vpack.c.b16 %v7304, %v7288
    %v7529 = vpack.c.b16 %v7305, %v7289
    %v7530 = vpack.c.b16 %v7322, %v7306
    %v7531 = vpack.c.b16 %v7323, %v7307
    %v7532 = vpack.c.b16 %v7324, %v7308
    %v7533 = vpack.c.b16 %v7325, %v7309
    %v7534 = vpack.c.b16 %v7326, %v7310
    %v7535 = vpack.c.b16 %v7327, %v7311
    %v7536 = vpack.c.b16 %v7328, %v7312
    %v7537 = vpack.c.b16 %v7329, %v7313
    %v7538 = vpack.c.b16 %v7330, %v7314
    %v7539 = vpack.c.b16 %v7331, %v7315
    %v7540 = vpack.c.b16 %v7332, %v7316
    %v7541 = vpack.c.b16 %v7333, %v7317
    %v7542 = vpack.c.b16 %v7334, %v7318
    %v7543 = vpack.c.b16 %v7335, %v7319
    %v7544 = vpack.c.b16 %v7336, %v7320
    %v7545 = vpack.c.b16 %v7337, %v7321
    %v7546 = vpack.c.b16 %v7354, %v7338
    %v7547 = vpack.c.b16 %v7355, %v7339
    %v7548 = vpack.c.b16 %v7356, %v7340
    %v7549 = vpack.c.b16 %v7357, %v7341
    %v7550 = vpack.c.b16 %v7358, %v7342
    %v7551 = vpack.c.b16 %v7359, %v7343
    %v7552 = vpack.c.b16 %v7360, %v7344
    %v7553 = vpack.c.b16 %v7361, %v7345
    %v7554 = vpack.c.b16 %v7362, %v7346
    %v7555 = vpack.c.b16 %v7363, %v7347
    %v7556 = vpack.c.b16 %v7364, %v7348
    %v7557 = vpack.c.b16 %v7365, %v7349
    %v7558 = vpack.c.b16 %v7366, %v7350
    %v7559 = vpack.c.b16 %v7367, %v7351
    %v7560 = vpack.c.b16 %v7368, %v7352
    %v7561 = vpack.c.b16 %v7369, %v7353
    %v7562 = vpack.c.b16 %v7386, %v7370
    %v7563 = vpack.c.b16 %v7387, %v7371
    %v7564 = vpack.c.b16 %v7388, %v7372
    %v7565 = vpack.c.b16 %v7389, %v7373
    %v7566 = vpack.c.b16 %v7390, %v7374
    %v7567 = vpack.c.b16 %v7391, %v7375
    %v7568 = vpack.c.b16 %v7392, %v7376
    %v7569 = vpack.c.b16 %v7393, %v7377
    %v7570 = vpack.c.b16 %v7394, %v7378
    %v7571 = vpack.c.b16 %v7395, %v7379
    %v7572 = vpack.c.b16 %v7396, %v7380
    %v7573 = vpack.c.b16 %v7397, %v7381
    %v7574 = vpack.c.b16 %v7398, %v7382
    %v7575 = vpack.c.b16 %v7399, %v7383
    %v7576 = vpack.c.b16 %v7400, %v7384
    %v7577 = vpack.c.b16 %v7401, %v7385
    %v7578 = vpack.c.b16 %v7418, %v7402
    %v7579 = vpack.c.b16 %v7419, %v7403
    %v7580 = vpack.c.b16 %v7420, %v7404
    %v7581 = vpack.c.b16 %v7421, %v7405
    %v7582 = vpack.c.b16 %v7422, %v7406
    %v7583 = vpack.c.b16 %v7423, %v7407
    %v7584 = vpack.c.b16 %v7424, %v7408
    %v7585 = vpack.c.b16 %v7425, %v7409
    %v7586 = vpack.c.b16 %v7426, %v7410
    %v7587 = vpack.c.b16 %v7427, %v7411
    %v7588 = vpack.c.b16 %v7428, %v7412
    %v7589 = vpack.c.b16 %v7429, %v7413
    %v7590 = vpack.c.b16 %v7430, %v7414
    %v7591 = vpack.c.b16 %v7431, %v7415
    %v7592 = vpack.c.b16 %v7432, %v7416
    %v7593 = vpack.c.b16 %v7433, %v7417
    %v7594 = vpack.c.b16 %v7450, %v7434
    %v7595 = vpack.c.b16 %v7451, %v7435
    %v7596 = vpack.c.b16 %v7452, %v7436
    %v7597 = vpack.c.b16 %v7453, %v7437
    %v7598 = vpack.c.b16 %v7454, %v7438
    %v7599 = vpack.c.b16 %v7455, %v7439
    %v7600 = vpack.c.b16 %v7456, %v7440
    %v7601 = vpack.c.b16 %v7457, %v7441
    %v7602 = vpack.c.b16 %v7458, %v7442
    %v7603 = vpack.c.b16 %v7459, %v7443
    %v7604 = vpack.c.b16 %v7460, %v7444
    %v7605 = vpack.c.b16 %v7461, %v7445
    %v7606 = vpack.c.b16 %v7462, %v7446
    %v7607 = vpack.c.b16 %v7463, %v7447
    %v7608 = vpack.c.b16 %v7464, %v7448
    %v7609 = vpack.c.b16 %v7465, %v7449
    %v7610 = vpack.c.b16 %v7482, %v7466
    %v7611 = vpack.c.b16 %v7483, %v7467
    %v7612 = vpack.c.b16 %v7484, %v7468
    %v7613 = vpack.c.b16 %v7485, %v7469
    %v7614 = vpack.c.b16 %v7486, %v7470
    %v7615 = vpack.c.b16 %v7487, %v7471
    %v7616 = vpack.c.b16 %v7488, %v7472
    %v7617 = vpack.c.b16 %v7489, %v7473
    %v7618 = vpack.c.b16 %v7490, %v7474
    %v7619 = vpack.c.b16 %v7491, %v7475
    %v7620 = vpack.c.b16 %v7492, %v7476
    %v7621 = vpack.c.b16 %v7493, %v7477
    %v7622 = vpack.c.b16 %v7494, %v7478
    %v7623 = vpack.c.b16 %v7495, %v7479
    %v7624 = vpack.c.b16 %v7496, %v7480
    %v7625 = vpack.c.b16 %v7497, %v7481
    %7754 = vmatprep.subr.bf16.mxu0 %v7499
    %7755 = vmatpush1.bf16.msra.mxu0 %v7498
    %7756 = vmatprep.subr.bf16.mxu0 %v7515
    %7757 = vmatpush1.bf16.msra.mxu0 %v7514
    %7758 = vmatprep.subr.bf16.mxu0 %v7531
    %7759 = vmatpush1.bf16.msra.mxu0 %v7530
    %7760 = vmatprep.subr.bf16.mxu0 %v7547
    %7761 = vmatpush1.bf16.msra.mxu0 %v7546
    %7762 = vmatprep.subr.bf16.mxu0 %v7563
    %7763 = vmatpush1.bf16.msra.mxu0 %v7562
    %7764 = vmatprep.subr.bf16.mxu0 %v7579
    %7765 = vmatpush1.bf16.msra.mxu0 %v7578
    %7766 = vmatprep.subr.bf16.mxu0 %v7595
    %7767 = vmatpush1.bf16.msra.mxu0 %v7594
    %7768 = vmatprep.subr.bf16.mxu0 %v7611
    %7769 = vmatpush1.bf16.msra.mxu0 %v7610
    %7770 = vmatprep.subr.bf16.mxu0 0
    %7771 = vmatpush1.bf16.msra.mxu0 0
    %7772 = vmatprep.subr.bf16.mxu0 0
    %7773 = vmatpush1.bf16.msra.mxu0 0
    %7774 = vmatprep.subr.bf16.mxu0 0
    %7775 = vmatpush1.bf16.msra.mxu0 0
    %7776 = vmatprep.subr.bf16.mxu0 0
    %7777 = vmatpush1.bf16.msra.mxu0 0
    %7778 = vmatprep.subr.bf16.mxu0 0
    %7779 = vmatpush1.bf16.msra.mxu0 0
    %7780 = vmatprep.subr.bf16.mxu0 0
    %7781 = vmatpush1.bf16.msra.mxu0 0
    %7782 = vmatprep.subr.bf16.mxu0 0
    %7783 = vmatpush1.bf16.msra.mxu0 0
    %7784 = vmatprep.subr.bf16.mxu0 0
    %7785 = vmatpush1.bf16.msra.mxu0 0
    %7786 = vmatprep.mubr.bf16.mxu0 0
    %7787 = vmatmul.mubr.bf16.gmra.mrb[0].mxu0 %v6984
    %v7788 = vpop.f32.mrb[0].mxu0
    %v7789 = vadd.f32 0.0, %v7788
    %v7790 = vpop.f32.mrb[0].mxu0
    %v7791 = vadd.f32 0.0, %v7790
    %v7792 = vpop.f32.mrb[0].mxu0
    %v7793 = vpop.f32.mrb[0].mxu0
    %7794 = vdwg.mxu0
    %7795 = vmatprep.subr.bf16.mxu0 %v7501
    %7796 = vmatpush1.bf16.msra.mxu0 %v7500
    %7797 = vmatprep.subr.bf16.mxu0 %v7517
    %7798 = vmatpush1.bf16.msra.mxu0 %v7516
    %7799 = vmatprep.subr.bf16.mxu0 %v7533
    %7800 = vmatpush1.bf16.msra.mxu0 %v7532
    %7801 = vmatprep.subr.bf16.mxu0 %v7549
    %7802 = vmatpush1.bf16.msra.mxu0 %v7548
    %7803 = vmatprep.subr.bf16.mxu0 %v7565
    %7804 = vmatpush1.bf16.msra.mxu0 %v7564
    %7805 = vmatprep.subr.bf16.mxu0 %v7581
    %7806 = vmatpush1.bf16.msra.mxu0 %v7580
    %7807 = vmatprep.subr.bf16.mxu0 %v7597
    %7808 = vmatpush1.bf16.msra.mxu0 %v7596
    %7809 = vmatprep.subr.bf16.mxu0 %v7613
    %7810 = vmatpush1.bf16.msra.mxu0 %v7612
    %7811 = vmatprep.subr.bf16.mxu0 0
    %7812 = vmatpush1.bf16.msra.mxu0 0
    %7813 = vmatprep.subr.bf16.mxu0 0
    %7814 = vmatpush1.bf16.msra.mxu0 0
    %7815 = vmatprep.subr.bf16.mxu0 0
    %7816 = vmatpush1.bf16.msra.mxu0 0
    %7817 = vmatprep.subr.bf16.mxu0 0
    %7818 = vmatpush1.bf16.msra.mxu0 0
    %7819 = vmatprep.subr.bf16.mxu0 0
    %7820 = vmatpush1.bf16.msra.mxu0 0
    %7821 = vmatprep.subr.bf16.mxu0 0
    %7822 = vmatpush1.bf16.msra.mxu0 0
    %7823 = vmatprep.subr.bf16.mxu0 0
    %7824 = vmatpush1.bf16.msra.mxu0 0
    %7825 = vmatprep.subr.bf16.mxu0 0
    %7826 = vmatpush1.bf16.msra.mxu0 0
    %7827 = vmatprep.mubr.bf16.mxu0 0
    %7828 = vmatmul.mubr.bf16.gmra.mrb[0].mxu0 %v6984
    %v7829 = vpop.f32.mrb[0].mxu0
    %v7830 = vadd.f32 0.0, %v7829
    %v7831 = vpop.f32.mrb[0].mxu0
    %v7832 = vadd.f32 0.0, %v7831
    %v7833 = vpop.f32.mrb[0].mxu0
    %v7834 = vpop.f32.mrb[0].mxu0
    %7835 = vdwg.mxu0
    %7836 = vmatprep.subr.bf16.mxu0 %v7503
    %7837 = vmatpush1.bf16.msra.mxu0 %v7502
    %7838 = vmatprep.subr.bf16.mxu0 %v7519
    %7839 = vmatpush1.bf16.msra.mxu0 %v7518
    %7840 = vmatprep.subr.bf16.mxu0 %v7535
    %7841 = vmatpush1.bf16.msra.mxu0 %v7534
    %7842 = vmatprep.subr.bf16.mxu0 %v7551
    %7843 = vmatpush1.bf16.msra.mxu0 %v7550
    %7844 = vmatprep.subr.bf16.mxu0 %v7567
    %7845 = vmatpush1.bf16.msra.mxu0 %v7566
    %7846 = vmatprep.subr.bf16.mxu0 %v7583
    %7847 = vmatpush1.bf16.msra.mxu0 %v7582
    %7848 = vmatprep.subr.bf16.mxu0 %v7599
    %7849 = vmatpush1.bf16.msra.mxu0 %v7598
    %7850 = vmatprep.subr.bf16.mxu0 %v7615
    %7851 = vmatpush1.bf16.msra.mxu0 %v7614
    %7852 = vmatprep.subr.bf16.mxu0 0
    %7853 = vmatpush1.bf16.msra.mxu0 0
    %7854 = vmatprep.subr.bf16.mxu0 0
    %7855 = vmatpush1.bf16.msra.mxu0 0
    %7856 = vmatprep.subr.bf16.mxu0 0
    %7857 = vmatpush1.bf16.msra.mxu0 0
    %7858 = vmatprep.subr.bf16.mxu0 0
    %7859 = vmatpush1.bf16.msra.mxu0 0
    %7860 = vmatprep.subr.bf16.mxu0 0
    %7861 = vmatpush1.bf16.msra.mxu0 0
    %7862 = vmatprep.subr.bf16.mxu0 0
    %7863 = vmatpush1.bf16.msra.mxu0 0
    %7864 = vmatprep.subr.bf16.mxu0 0
    %7865 = vmatpush1.bf16.msra.mxu0 0
    %7866 = vmatprep.subr.bf16.mxu0 0
    %7867 = vmatpush1.bf16.msra.mxu0 0
    %7868 = vmatprep.mubr.bf16.mxu0 0
    %7869 = vmatmul.mubr.bf16.gmra.mrb[0].mxu0 %v6984
    %v7870 = vpop.f32.mrb[0].mxu0
    %v7871 = vadd.f32 0.0, %v7870
    %v7872 = vpop.f32.mrb[0].mxu0
    %v7873 = vadd.f32 0.0, %v7872
    %v7874 = vpop.f32.mrb[0].mxu0
    %v7875 = vpop.f32.mrb[0].mxu0
    %7876 = vdwg.mxu0
    %7877 = vmatprep.subr.bf16.mxu0 %v7505
    %7878 = vmatpush1.bf16.msra.mxu0 %v7504
    %7879 = vmatprep.subr.bf16.mxu0 %v7521
    %7880 = vmatpush1.bf16.msra.mxu0 %v7520
    %7881 = vmatprep.subr.bf16.mxu0 %v7537
    %7882 = vmatpush1.bf16.msra.mxu0 %v7536
    %7883 = vmatprep.subr.bf16.mxu0 %v7553
    %7884 = vmatpush1.bf16.msra.mxu0 %v7552
    %7885 = vmatprep.subr.bf16.mxu0 %v7569
    %7886 = vmatpush1.bf16.msra.mxu0 %v7568
    %7887 = vmatprep.subr.bf16.mxu0 %v7585
    %7888 = vmatpush1.bf16.msra.mxu0 %v7584
    %7889 = vmatprep.subr.bf16.mxu0 %v7601
    %7890 = vmatpush1.bf16.msra.mxu0 %v7600
    %7891 = vmatprep.subr.bf16.mxu0 %v7617
    %7892 = vmatpush1.bf16.msra.mxu0 %v7616
    %7893 = vmatprep.subr.bf16.mxu0 0
    %7894 = vmatpush1.bf16.msra.mxu0 0
    %7895 = vmatprep.subr.bf16.mxu0 0
    %7896 = vmatpush1.bf16.msra.mxu0 0
    %7897 = vmatprep.subr.bf16.mxu0 0
    %7898 = vmatpush1.bf16.msra.mxu0 0
    %7899 = vmatprep.subr.bf16.mxu0 0
    %7900 = vmatpush1.bf16.msra.mxu0 0
    %7901 = vmatprep.subr.bf16.mxu0 0
    %7902 = vmatpush1.bf16.msra.mxu0 0
    %7903 = vmatprep.subr.bf16.mxu0 0
    %7904 = vmatpush1.bf16.msra.mxu0 0
    %7905 = vmatprep.subr.bf16.mxu0 0
    %7906 = vmatpush1.bf16.msra.mxu0 0
    %7907 = vmatprep.subr.bf16.mxu0 0
    %7908 = vmatpush1.bf16.msra.mxu0 0
    %7909 = vmatprep.mubr.bf16.mxu0 0
    %7910 = vmatmul.mubr.bf16.gmra.mrb[0].mxu0 %v6984
    %v7911 = vpop.f32.mrb[0].mxu0
    %v7912 = vadd.f32 0.0, %v7911
    %v7913 = vpop.f32.mrb[0].mxu0
    %v7914 = vadd.f32 0.0, %v7913
    %v7915 = vpop.f32.mrb[0].mxu0
    %v7916 = vpop.f32.mrb[0].mxu0
    %7917 = vdwg.mxu0
    %7918 = vmatprep.subr.bf16.mxu0 %v7507
    %7919 = vmatpush1.bf16.msra.mxu0 %v7506
    %7920 = vmatprep.subr.bf16.mxu0 %v7523
    %7921 = vmatpush1.bf16.msra.mxu0 %v7522
    %7922 = vmatprep.subr.bf16.mxu0 %v7539
    %7923 = vmatpush1.bf16.msra.mxu0 %v7538
    %7924 = vmatprep.subr.bf16.mxu0 %v7555
    %7925 = vmatpush1.bf16.msra.mxu0 %v7554
    %7926 = vmatprep.subr.bf16.mxu0 %v7571
    %7927 = vmatpush1.bf16.msra.mxu0 %v7570
    %7928 = vmatprep.subr.bf16.mxu0 %v7587
    %7929 = vmatpush1.bf16.msra.mxu0 %v7586
    %7930 = vmatprep.subr.bf16.mxu0 %v7603
    %7931 = vmatpush1.bf16.msra.mxu0 %v7602
    %7932 = vmatprep.subr.bf16.mxu0 %v7619
    %7933 = vmatpush1.bf16.msra.mxu0 %v7618
    %7934 = vmatprep.subr.bf16.mxu0 0
    %7935 = vmatpush1.bf16.msra.mxu0 0
    %7936 = vmatprep.subr.bf16.mxu0 0
    %7937 = vmatpush1.bf16.msra.mxu0 0
    %7938 = vmatprep.subr.bf16.mxu0 0
    %7939 = vmatpush1.bf16.msra.mxu0 0
    %7940 = vmatprep.subr.bf16.mxu0 0
    %7941 = vmatpush1.bf16.msra.mxu0 0
    %7942 = vmatprep.subr.bf16.mxu0 0
    %7943 = vmatpush1.bf16.msra.mxu0 0
    %7944 = vmatprep.subr.bf16.mxu0 0
    %7945 = vmatpush1.bf16.msra.mxu0 0
    %7946 = vmatprep.subr.bf16.mxu0 0
    %7947 = vmatpush1.bf16.msra.mxu0 0
    %7948 = vmatprep.subr.bf16.mxu0 0
    %7949 = vmatpush1.bf16.msra.mxu0 0
    %7950 = vmatprep.mubr.bf16.mxu0 0
    %7951 = vmatmul.mubr.bf16.gmra.mrb[0].mxu0 %v6984
    %v7952 = vpop.f32.mrb[0].mxu0
    %v7953 = vadd.f32 0.0, %v7952
    %v7954 = vpop.f32.mrb[0].mxu0
    %v7955 = vadd.f32 0.0, %v7954
    %v7956 = vpop.f32.mrb[0].mxu0
    %v7957 = vpop.f32.mrb[0].mxu0
    %7958 = vdwg.mxu0
    %7959 = vmatprep.subr.bf16.mxu0 %v7509
    %7960 = vmatpush1.bf16.msra.mxu0 %v7508
    %7961 = vmatprep.subr.bf16.mxu0 %v7525
    %7962 = vmatpush1.bf16.msra.mxu0 %v7524
    %7963 = vmatprep.subr.bf16.mxu0 %v7541
    %7964 = vmatpush1.bf16.msra.mxu0 %v7540
    %7965 = vmatprep.subr.bf16.mxu0 %v7557
    %7966 = vmatpush1.bf16.msra.mxu0 %v7556
    %7967 = vmatprep.subr.bf16.mxu0 %v7573
    %7968 = vmatpush1.bf16.msra.mxu0 %v7572
    %7969 = vmatprep.subr.bf16.mxu0 %v7589
    %7970 = vmatpush1.bf16.msra.mxu0 %v7588
    %7971 = vmatprep.subr.bf16.mxu0 %v7605
    %7972 = vmatpush1.bf16.msra.mxu0 %v7604
    %7973 = vmatprep.subr.bf16.mxu0 %v7621
    %7974 = vmatpush1.bf16.msra.mxu0 %v7620
    %7975 = vmatprep.subr.bf16.mxu0 0
    %7976 = vmatpush1.bf16.msra.mxu0 0
    %7977 = vmatprep.subr.bf16.mxu0 0
    %7978 = vmatpush1.bf16.msra.mxu0 0
    %7979 = vmatprep.subr.bf16.mxu0 0
    %7980 = vmatpush1.bf16.msra.mxu0 0
    %7981 = vmatprep.subr.bf16.mxu0 0
    %7982 = vmatpush1.bf16.msra.mxu0 0
    %7983 = vmatprep.subr.bf16.mxu0 0
    %7984 = vmatpush1.bf16.msra.mxu0 0
    %7985 = vmatprep.subr.bf16.mxu0 0
    %7986 = vmatpush1.bf16.msra.mxu0 0
    %7987 = vmatprep.subr.bf16.mxu0 0
    %7988 = vmatpush1.bf16.msra.mxu0 0
    %7989 = vmatprep.subr.bf16.mxu0 0
    %7990 = vmatpush1.bf16.msra.mxu0 0
    %7991 = vmatprep.mubr.bf16.mxu0 0
    %7992 = vmatmul.mubr.bf16.gmra.mrb[0].mxu0 %v6984
    %v7993 = vpop.f32.mrb[0].mxu0
    %v7994 = vadd.f32 0.0, %v7993
    %v7995 = vpop.f32.mrb[0].mxu0
    %v7996 = vadd.f32 0.0, %v7995
    %v7997 = vpop.f32.mrb[0].mxu0
    %v7998 = vpop.f32.mrb[0].mxu0
    %7999 = vdwg.mxu0
    %8000 = vmatprep.subr.bf16.mxu0 %v7511
    %8001 = vmatpush1.bf16.msra.mxu0 %v7510
    %8002 = vmatprep.subr.bf16.mxu0 %v7527
    %8003 = vmatpush1.bf16.msra.mxu0 %v7526
    %8004 = vmatprep.subr.bf16.mxu0 %v7543
    %8005 = vmatpush1.bf16.msra.mxu0 %v7542
    %8006 = vmatprep.subr.bf16.mxu0 %v7559
    %8007 = vmatpush1.bf16.msra.mxu0 %v7558
    %8008 = vmatprep.subr.bf16.mxu0 %v7575
    %8009 = vmatpush1.bf16.msra.mxu0 %v7574
    %8010 = vmatprep.subr.bf16.mxu0 %v7591
    %8011 = vmatpush1.bf16.msra.mxu0 %v7590
    %8012 = vmatprep.subr.bf16.mxu0 %v7607
    %8013 = vmatpush1.bf16.msra.mxu0 %v7606
    %8014 = vmatprep.subr.bf16.mxu0 %v7623
    %8015 = vmatpush1.bf16.msra.mxu0 %v7622
    %8016 = vmatprep.subr.bf16.mxu0 0
    %8017 = vmatpush1.bf16.msra.mxu0 0
    %8018 = vmatprep.subr.bf16.mxu0 0
    %8019 = vmatpush1.bf16.msra.mxu0 0
    %8020 = vmatprep.subr.bf16.mxu0 0
    %8021 = vmatpush1.bf16.msra.mxu0 0
    %8022 = vmatprep.subr.bf16.mxu0 0
    %8023 = vmatpush1.bf16.msra.mxu0 0
    %8024 = vmatprep.subr.bf16.mxu0 0
    %8025 = vmatpush1.bf16.msra.mxu0 0
    %8026 = vmatprep.subr.bf16.mxu0 0
    %8027 = vmatpush1.bf16.msra.mxu0 0
    %8028 = vmatprep.subr.bf16.mxu0 0
    %8029 = vmatpush1.bf16.msra.mxu0 0
    %8030 = vmatprep.subr.bf16.mxu0 0
    %8031 = vmatpush1.bf16.msra.mxu0 0
    %8032 = vmatprep.mubr.bf16.mxu0 0
    %8033 = vmatmul.mubr.bf16.gmra.mrb[0].mxu0 %v6984
    %v8034 = vpop.f32.mrb[0].mxu0
    %v8035 = vadd.f32 0.0, %v8034
    %v8036 = vpop.f32.mrb[0].mxu0
    %v8037 = vadd.f32 0.0, %v8036
    %v8038 = vpop.f32.mrb[0].mxu0
    %v8039 = vpop.f32.mrb[0].mxu0
    %8040 = vdwg.mxu0
    %8041 = vmatprep.subr.bf16.mxu0 %v7513
    %8042 = vmatpush1.bf16.msra.mxu0 %v7512
    %8043 = vmatprep.subr.bf16.mxu0 %v7529
    %8044 = vmatpush1.bf16.msra.mxu0 %v7528
    %8045 = vmatprep.subr.bf16.mxu0 %v7545
    %8046 = vmatpush1.bf16.msra.mxu0 %v7544
    %8047 = vmatprep.subr.bf16.mxu0 %v7561
    %8048 = vmatpush1.bf16.msra.mxu0 %v7560
    %8049 = vmatprep.subr.bf16.mxu0 %v7577
    %8050 = vmatpush1.bf16.msra.mxu0 %v7576
    %8051 = vmatprep.subr.bf16.mxu0 %v7593
    %8052 = vmatpush1.bf16.msra.mxu0 %v7592
    %8053 = vmatprep.subr.bf16.mxu0 %v7609
    %8054 = vmatpush1.bf16.msra.mxu0 %v7608
    %8055 = vmatprep.subr.bf16.mxu0 %v7625
    %8056 = vmatpush1.bf16.msra.mxu0 %v7624
    %8057 = vmatprep.subr.bf16.mxu0 0
    %8058 = vmatpush1.bf16.msra.mxu0 0
    %8059 = vmatprep.subr.bf16.mxu0 0
    %8060 = vmatpush1.bf16.msra.mxu0 0
    %8061 = vmatprep.subr.bf16.mxu0 0
    %8062 = vmatpush1.bf16.msra.mxu0 0
    %8063 = vmatprep.subr.bf16.mxu0 0
    %8064 = vmatpush1.bf16.msra.mxu0 0
    %8065 = vmatprep.subr.bf16.mxu0 0
    %8066 = vmatpush1.bf16.msra.mxu0 0
    %8067 = vmatprep.subr.bf16.mxu0 0
    %8068 = vmatpush1.bf16.msra.mxu0 0
    %8069 = vmatprep.subr.bf16.mxu0 0
    %8070 = vmatpush1.bf16.msra.mxu0 0
    %8071 = vmatprep.subr.bf16.mxu0 0
    %8072 = vmatpush1.bf16.msra.mxu0 0
    %8073 = vmatprep.mubr.bf16.mxu0 0
    %8074 = vmatmul.mubr.bf16.gmra.mrb[0].mxu0 %v6984
    %v8075 = vpop.f32.mrb[0].mxu0
    %v8076 = vadd.f32 0.0, %v8075
    %v8077 = vpop.f32.mrb[0].mxu0
    %v8078 = vadd.f32 0.0, %v8077
    %v8079 = vpop.f32.mrb[0].mxu0
    %v8080 = vpop.f32.mrb[0].mxu0
    %8081 = vdwg.mxu0
    %v8082 = vadd.f32 %v6967, %v7789
    %v8083 = vadd.f32 %v6968, %v7791
    %v8084 = vadd.f32 %v6969, %v7830
    %v8085 = vadd.f32 %v6970, %v7832
    %v8086 = vadd.f32 %v6971, %v7871
    %v8087 = vadd.f32 %v6972, %v7873
    %v8088 = vadd.f32 %v6973, %v7912
    %v8089 = vadd.f32 %v6974, %v7914
    %v8090 = vadd.f32 %v6975, %v7953
    %v8091 = vadd.f32 %v6976, %v7955
    %v8092 = vadd.f32 %v6977, %v7994
    %v8093 = vadd.f32 %v6978, %v7996
    %v8094 = vadd.f32 %v6979, %v8035
    %v8095 = vadd.f32 %v6980, %v8037
    %v8096 = vadd.f32 %v6981, %v8076
    %v8097 = vadd.f32 %v6982, %v8078
    %v8098 = vld [vmem:[#allocation4 + $0xc] sm:$0x3]
    %v8099 = vpack.c.bf16 %v8098, %v8098
    %s8100 = scalar_lea.vmem [#allocation16], 6144
    %v8101 = vld [vmem:[%s8100] sm:$0xff]
    %v8102 = vld [vmem:[%s8100 + $0x8] sm:$0xff]
    %v8103 = vld [vmem:[%s8100 + $0x10] sm:$0xff]
    %v8104 = vld [vmem:[%s8100 + $0x18] sm:$0xff]
    %v8105 = vld [vmem:[%s8100 + $0x20] sm:$0xff]
    %v8106 = vld [vmem:[%s8100 + $0x28] sm:$0xff]
    %v8107 = vld [vmem:[%s8100 + $0x30] sm:$0xff]
    %v8108 = vld [vmem:[%s8100 + $0x38] sm:$0xff]
    %v8109 = vld [vmem:[%s8100 + $0x40] sm:$0xff]
    %v8110 = vld [vmem:[%s8100 + $0x48] sm:$0xff]
    %v8111 = vld [vmem:[%s8100 + $0x50] sm:$0xff]
    %v8112 = vld [vmem:[%s8100 + $0x58] sm:$0xff]
    %v8113 = vld [vmem:[%s8100 + $0x60] sm:$0xff]
    %v8114 = vld [vmem:[%s8100 + $0x68] sm:$0xff]
    %v8115 = vld [vmem:[%s8100 + $0x70] sm:$0xff]
    %v8116 = vld [vmem:[%s8100 + $0x78] sm:$0xff]
    %v8117 = vld [vmem:[%s8100 + $0x80] sm:$0xff]
    %v8118 = vld [vmem:[%s8100 + $0x88] sm:$0xff]
    %v8119 = vld [vmem:[%s8100 + $0x90] sm:$0xff]
    %v8120 = vld [vmem:[%s8100 + $0x98] sm:$0xff]
    %v8121 = vld [vmem:[%s8100 + $0xa0] sm:$0xff]
    %v8122 = vld [vmem:[%s8100 + $0xa8] sm:$0xff]
    %v8123 = vld [vmem:[%s8100 + $0xb0] sm:$0xff]
    %v8124 = vld [vmem:[%s8100 + $0xb8] sm:$0xff]
    %v8125 = vld [vmem:[%s8100 + $0xc0] sm:$0xff]
    %v8126 = vld [vmem:[%s8100 + $0xc8] sm:$0xff]
    %v8127 = vld [vmem:[%s8100 + $0xd0] sm:$0xff]
    %v8128 = vld [vmem:[%s8100 + $0xd8] sm:$0xff]
    %v8129 = vld [vmem:[%s8100 + $0xe0] sm:$0xff]
    %v8130 = vld [vmem:[%s8100 + $0xe8] sm:$0xff]
    %v8131 = vld [vmem:[%s8100 + $0xf0] sm:$0xff]
    %v8132 = vld [vmem:[%s8100 + $0xf8] sm:$0xff]
    %v8133 = vld [vmem:[%s8100 + $0x100] sm:$0xff]
    %v8134 = vld [vmem:[%s8100 + $0x108] sm:$0xff]
    %v8135 = vld [vmem:[%s8100 + $0x110] sm:$0xff]
    %v8136 = vld [vmem:[%s8100 + $0x118] sm:$0xff]
    %v8137 = vld [vmem:[%s8100 + $0x120] sm:$0xff]
    %v8138 = vld [vmem:[%s8100 + $0x128] sm:$0xff]
    %v8139 = vld [vmem:[%s8100 + $0x130] sm:$0xff]
    %v8140 = vld [vmem:[%s8100 + $0x138] sm:$0xff]
    %v8141 = vld [vmem:[%s8100 + $0x140] sm:$0xff]
    %v8142 = vld [vmem:[%s8100 + $0x148] sm:$0xff]
    %v8143 = vld [vmem:[%s8100 + $0x150] sm:$0xff]
    %v8144 = vld [vmem:[%s8100 + $0x158] sm:$0xff]
    %v8145 = vld [vmem:[%s8100 + $0x160] sm:$0xff]
    %v8146 = vld [vmem:[%s8100 + $0x168] sm:$0xff]
    %v8147 = vld [vmem:[%s8100 + $0x170] sm:$0xff]
    %v8148 = vld [vmem:[%s8100 + $0x178] sm:$0xff]
    %v8149 = vld [vmem:[%s8100 + $0x180] sm:$0xff]
    %v8150 = vld [vmem:[%s8100 + $0x188] sm:$0xff]
    %v8151 = vld [vmem:[%s8100 + $0x190] sm:$0xff]
    %v8152 = vld [vmem:[%s8100 + $0x198] sm:$0xff]
    %v8153 = vld [vmem:[%s8100 + $0x1a0] sm:$0xff]
    %v8154 = vld [vmem:[%s8100 + $0x1a8] sm:$0xff]
    %v8155 = vld [vmem:[%s8100 + $0x1b0] sm:$0xff]
    %v8156 = vld [vmem:[%s8100 + $0x1b8] sm:$0xff]
    %v8157 = vld [vmem:[%s8100 + $0x1c0] sm:$0xff]
    %v8158 = vld [vmem:[%s8100 + $0x1c8] sm:$0xff]
    %v8159 = vld [vmem:[%s8100 + $0x1d0] sm:$0xff]
    %v8160 = vld [vmem:[%s8100 + $0x1d8] sm:$0xff]
    %v8161 = vld [vmem:[%s8100 + $0x1e0] sm:$0xff]
    %v8162 = vld [vmem:[%s8100 + $0x1e8] sm:$0xff]
    %v8163 = vld [vmem:[%s8100 + $0x1f0] sm:$0xff]
    %v8164 = vld [vmem:[%s8100 + $0x1f8] sm:$0xff]
    %v8165 = vld [vmem:[%s8100 + $0x200] sm:$0xff]
    %v8166 = vld [vmem:[%s8100 + $0x208] sm:$0xff]
    %v8167 = vld [vmem:[%s8100 + $0x210] sm:$0xff]
    %v8168 = vld [vmem:[%s8100 + $0x218] sm:$0xff]
    %v8169 = vld [vmem:[%s8100 + $0x220] sm:$0xff]
    %v8170 = vld [vmem:[%s8100 + $0x228] sm:$0xff]
    %v8171 = vld [vmem:[%s8100 + $0x230] sm:$0xff]
    %v8172 = vld [vmem:[%s8100 + $0x238] sm:$0xff]
    %v8173 = vld [vmem:[%s8100 + $0x240] sm:$0xff]
    %v8174 = vld [vmem:[%s8100 + $0x248] sm:$0xff]
    %v8175 = vld [vmem:[%s8100 + $0x250] sm:$0xff]
    %v8176 = vld [vmem:[%s8100 + $0x258] sm:$0xff]
    %v8177 = vld [vmem:[%s8100 + $0x260] sm:$0xff]
    %v8178 = vld [vmem:[%s8100 + $0x268] sm:$0xff]
    %v8179 = vld [vmem:[%s8100 + $0x270] sm:$0xff]
    %v8180 = vld [vmem:[%s8100 + $0x278] sm:$0xff]
    %v8181 = vld [vmem:[%s8100 + $0x280] sm:$0xff]
    %v8182 = vld [vmem:[%s8100 + $0x288] sm:$0xff]
    %v8183 = vld [vmem:[%s8100 + $0x290] sm:$0xff]
    %v8184 = vld [vmem:[%s8100 + $0x298] sm:$0xff]
    %v8185 = vld [vmem:[%s8100 + $0x2a0] sm:$0xff]
    %v8186 = vld [vmem:[%s8100 + $0x2a8] sm:$0xff]
    %v8187 = vld [vmem:[%s8100 + $0x2b0] sm:$0xff]
    %v8188 = vld [vmem:[%s8100 + $0x2b8] sm:$0xff]
    %v8189 = vld [vmem:[%s8100 + $0x2c0] sm:$0xff]
    %v8190 = vld [vmem:[%s8100 + $0x2c8] sm:$0xff]
    %v8191 = vld [vmem:[%s8100 + $0x2d0] sm:$0xff]
    %v8192 = vld [vmem:[%s8100 + $0x2d8] sm:$0xff]
    %v8193 = vld [vmem:[%s8100 + $0x2e0] sm:$0xff]
    %v8194 = vld [vmem:[%s8100 + $0x2e8] sm:$0xff]
    %v8195 = vld [vmem:[%s8100 + $0x2f0] sm:$0xff]
    %v8196 = vld [vmem:[%s8100 + $0x2f8] sm:$0xff]
    %v8197 = vld [vmem:[%s8100 + $0x300] sm:$0xff]
    %v8198 = vld [vmem:[%s8100 + $0x308] sm:$0xff]
    %v8199 = vld [vmem:[%s8100 + $0x310] sm:$0xff]
    %v8200 = vld [vmem:[%s8100 + $0x318] sm:$0xff]
    %v8201 = vld [vmem:[%s8100 + $0x320] sm:$0xff]
    %v8202 = vld [vmem:[%s8100 + $0x328] sm:$0xff]
    %v8203 = vld [vmem:[%s8100 + $0x330] sm:$0xff]
    %v8204 = vld [vmem:[%s8100 + $0x338] sm:$0xff]
    %v8205 = vld [vmem:[%s8100 + $0x340] sm:$0xff]
    %v8206 = vld [vmem:[%s8100 + $0x348] sm:$0xff]
    %v8207 = vld [vmem:[%s8100 + $0x350] sm:$0xff]
    %v8208 = vld [vmem:[%s8100 + $0x358] sm:$0xff]
    %v8209 = vld [vmem:[%s8100 + $0x360] sm:$0xff]
    %v8210 = vld [vmem:[%s8100 + $0x368] sm:$0xff]
    %v8211 = vld [vmem:[%s8100 + $0x370] sm:$0xff]
    %v8212 = vld [vmem:[%s8100 + $0x378] sm:$0xff]
    %v8213 = vld [vmem:[%s8100 + $0x380] sm:$0xff]
    %v8214 = vld [vmem:[%s8100 + $0x388] sm:$0xff]
    %v8215 = vld [vmem:[%s8100 + $0x390] sm:$0xff]
    %v8216 = vld [vmem:[%s8100 + $0x398] sm:$0xff]
    %v8217 = vld [vmem:[%s8100 + $0x3a0] sm:$0xff]
    %v8218 = vld [vmem:[%s8100 + $0x3a8] sm:$0xff]
    %v8219 = vld [vmem:[%s8100 + $0x3b0] sm:$0xff]
    %v8220 = vld [vmem:[%s8100 + $0x3b8] sm:$0xff]
    %v8221 = vld [vmem:[%s8100 + $0x3c0] sm:$0xff]
    %v8222 = vld [vmem:[%s8100 + $0x3c8] sm:$0xff]
    %v8223 = vld [vmem:[%s8100 + $0x3d0] sm:$0xff]
    %v8224 = vld [vmem:[%s8100 + $0x3d8] sm:$0xff]
    %v8225 = vld [vmem:[%s8100 + $0x3e0] sm:$0xff]
    %v8226 = vld [vmem:[%s8100 + $0x3e8] sm:$0xff]
    %v8227 = vld [vmem:[%s8100 + $0x3f0] sm:$0xff]
    %v8228 = vld [vmem:[%s8100 + $0x3f8] sm:$0xff]
    %v8357 = vunpack.c.l.b16 %v8101
    %v8358 = vunpack.c.h.b16 %v8101
    %v8359 = vunpack.c.l.b16 %v8102
    %v8360 = vunpack.c.h.b16 %v8102
    %v8361 = vunpack.c.l.b16 %v8103
    %v8362 = vunpack.c.h.b16 %v8103
    %v8363 = vunpack.c.l.b16 %v8104
    %v8364 = vunpack.c.h.b16 %v8104
    %v8365 = vunpack.c.l.b16 %v8105
    %v8366 = vunpack.c.h.b16 %v8105
    %v8367 = vunpack.c.l.b16 %v8106
    %v8368 = vunpack.c.h.b16 %v8106
    %v8369 = vunpack.c.l.b16 %v8107
    %v8370 = vunpack.c.h.b16 %v8107
    %v8371 = vunpack.c.l.b16 %v8108
    %v8372 = vunpack.c.h.b16 %v8108
    %v8373 = vunpack.c.l.b16 %v8109
    %v8374 = vunpack.c.h.b16 %v8109
    %v8375 = vunpack.c.l.b16 %v8110
    %v8376 = vunpack.c.h.b16 %v8110
    %v8377 = vunpack.c.l.b16 %v8111
    %v8378 = vunpack.c.h.b16 %v8111
    %v8379 = vunpack.c.l.b16 %v8112
    %v8380 = vunpack.c.h.b16 %v8112
    %v8381 = vunpack.c.l.b16 %v8113
    %v8382 = vunpack.c.h.b16 %v8113
    %v8383 = vunpack.c.l.b16 %v8114
    %v8384 = vunpack.c.h.b16 %v8114
    %v8385 = vunpack.c.l.b16 %v8115
    %v8386 = vunpack.c.h.b16 %v8115
    %v8387 = vunpack.c.l.b16 %v8116
    %v8388 = vunpack.c.h.b16 %v8116
    %v8389 = vunpack.c.l.b16 %v8117
    %v8390 = vunpack.c.h.b16 %v8117
    %v8391 = vunpack.c.l.b16 %v8118
    %v8392 = vunpack.c.h.b16 %v8118
    %v8393 = vunpack.c.l.b16 %v8119
    %v8394 = vunpack.c.h.b16 %v8119
    %v8395 = vunpack.c.l.b16 %v8120
    %v8396 = vunpack.c.h.b16 %v8120
    %v8397 = vunpack.c.l.b16 %v8121
    %v8398 = vunpack.c.h.b16 %v8121
    %v8399 = vunpack.c.l.b16 %v8122
    %v8400 = vunpack.c.h.b16 %v8122
    %v8401 = vunpack.c.l.b16 %v8123
    %v8402 = vunpack.c.h.b16 %v8123
    %v8403 = vunpack.c.l.b16 %v8124
    %v8404 = vunpack.c.h.b16 %v8124
    %v8405 = vunpack.c.l.b16 %v8125
    %v8406 = vunpack.c.h.b16 %v8125
    %v8407 = vunpack.c.l.b16 %v8126
    %v8408 = vunpack.c.h.b16 %v8126
    %v8409 = vunpack.c.l.b16 %v8127
    %v8410 = vunpack.c.h.b16 %v8127
    %v8411 = vunpack.c.l.b16 %v8128
    %v8412 = vunpack.c.h.b16 %v8128
    %v8413 = vunpack.c.l.b16 %v8129
    %v8414 = vunpack.c.h.b16 %v8129
    %v8415 = vunpack.c.l.b16 %v8130
    %v8416 = vunpack.c.h.b16 %v8130
    %v8417 = vunpack.c.l.b16 %v8131
    %v8418 = vunpack.c.h.b16 %v8131
    %v8419 = vunpack.c.l.b16 %v8132
    %v8420 = vunpack.c.h.b16 %v8132
    %v8421 = vunpack.c.l.b16 %v8133
    %v8422 = vunpack.c.h.b16 %v8133
    %v8423 = vunpack.c.l.b16 %v8134
    %v8424 = vunpack.c.h.b16 %v8134
    %v8425 = vunpack.c.l.b16 %v8135
    %v8426 = vunpack.c.h.b16 %v8135
    %v8427 = vunpack.c.l.b16 %v8136
    %v8428 = vunpack.c.h.b16 %v8136
    %v8429 = vunpack.c.l.b16 %v8137
    %v8430 = vunpack.c.h.b16 %v8137
    %v8431 = vunpack.c.l.b16 %v8138
    %v8432 = vunpack.c.h.b16 %v8138
    %v8433 = vunpack.c.l.b16 %v8139
    %v8434 = vunpack.c.h.b16 %v8139
    %v8435 = vunpack.c.l.b16 %v8140
    %v8436 = vunpack.c.h.b16 %v8140
    %v8437 = vunpack.c.l.b16 %v8141
    %v8438 = vunpack.c.h.b16 %v8141
    %v8439 = vunpack.c.l.b16 %v8142
    %v8440 = vunpack.c.h.b16 %v8142
    %v8441 = vunpack.c.l.b16 %v8143
    %v8442 = vunpack.c.h.b16 %v8143
    %v8443 = vunpack.c.l.b16 %v8144
    %v8444 = vunpack.c.h.b16 %v8144
    %v8445 = vunpack.c.l.b16 %v8145
    %v8446 = vunpack.c.h.b16 %v8145
    %v8447 = vunpack.c.l.b16 %v8146
    %v8448 = vunpack.c.h.b16 %v8146
    %v8449 = vunpack.c.l.b16 %v8147
    %v8450 = vunpack.c.h.b16 %v8147
    %v8451 = vunpack.c.l.b16 %v8148
    %v8452 = vunpack.c.h.b16 %v8148
    %v8453 = vunpack.c.l.b16 %v8149
    %v8454 = vunpack.c.h.b16 %v8149
    %v8455 = vunpack.c.l.b16 %v8150
    %v8456 = vunpack.c.h.b16 %v8150
    %v8457 = vunpack.c.l.b16 %v8151
    %v8458 = vunpack.c.h.b16 %v8151
    %v8459 = vunpack.c.l.b16 %v8152
    %v8460 = vunpack.c.h.b16 %v8152
    %v8461 = vunpack.c.l.b16 %v8153
    %v8462 = vunpack.c.h.b16 %v8153
    %v8463 = vunpack.c.l.b16 %v8154
    %v8464 = vunpack.c.h.b16 %v8154
    %v8465 = vunpack.c.l.b16 %v8155
    %v8466 = vunpack.c.h.b16 %v8155
    %v8467 = vunpack.c.l.b16 %v8156
    %v8468 = vunpack.c.h.b16 %v8156
    %v8469 = vunpack.c.l.b16 %v8157
    %v8470 = vunpack.c.h.b16 %v8157
    %v8471 = vunpack.c.l.b16 %v8158
    %v8472 = vunpack.c.h.b16 %v8158
    %v8473 = vunpack.c.l.b16 %v8159
    %v8474 = vunpack.c.h.b16 %v8159
    %v8475 = vunpack.c.l.b16 %v8160
    %v8476 = vunpack.c.h.b16 %v8160
    %v8477 = vunpack.c.l.b16 %v8161
    %v8478 = vunpack.c.h.b16 %v8161
    %v8479 = vunpack.c.l.b16 %v8162
    %v8480 = vunpack.c.h.b16 %v8162
    %v8481 = vunpack.c.l.b16 %v8163
    %v8482 = vunpack.c.h.b16 %v8163
    %v8483 = vunpack.c.l.b16 %v8164
    %v8484 = vunpack.c.h.b16 %v8164
    %v8485 = vunpack.c.l.b16 %v8165
    %v8486 = vunpack.c.h.b16 %v8165
    %v8487 = vunpack.c.l.b16 %v8166
    %v8488 = vunpack.c.h.b16 %v8166
    %v8489 = vunpack.c.l.b16 %v8167
    %v8490 = vunpack.c.h.b16 %v8167
    %v8491 = vunpack.c.l.b16 %v8168
    %v8492 = vunpack.c.h.b16 %v8168
    %v8493 = vunpack.c.l.b16 %v8169
    %v8494 = vunpack.c.h.b16 %v8169
    %v8495 = vunpack.c.l.b16 %v8170
    %v8496 = vunpack.c.h.b16 %v8170
    %v8497 = vunpack.c.l.b16 %v8171
    %v8498 = vunpack.c.h.b16 %v8171
    %v8499 = vunpack.c.l.b16 %v8172
    %v8500 = vunpack.c.h.b16 %v8172
    %v8501 = vunpack.c.l.b16 %v8173
    %v8502 = vunpack.c.h.b16 %v8173
    %v8503 = vunpack.c.l.b16 %v8174
    %v8504 = vunpack.c.h.b16 %v8174
    %v8505 = vunpack.c.l.b16 %v8175
    %v8506 = vunpack.c.h.b16 %v8175
    %v8507 = vunpack.c.l.b16 %v8176
    %v8508 = vunpack.c.h.b16 %v8176
    %v8509 = vunpack.c.l.b16 %v8177
    %v8510 = vunpack.c.h.b16 %v8177
    %v8511 = vunpack.c.l.b16 %v8178
    %v8512 = vunpack.c.h.b16 %v8178
    %v8513 = vunpack.c.l.b16 %v8179
    %v8514 = vunpack.c.h.b16 %v8179
    %v8515 = vunpack.c.l.b16 %v8180
    %v8516 = vunpack.c.h.b16 %v8180
    %v8517 = vunpack.c.l.b16 %v8181
    %v8518 = vunpack.c.h.b16 %v8181
    %v8519 = vunpack.c.l.b16 %v8182
    %v8520 = vunpack.c.h.b16 %v8182
    %v8521 = vunpack.c.l.b16 %v8183
    %v8522 = vunpack.c.h.b16 %v8183
    %v8523 = vunpack.c.l.b16 %v8184
    %v8524 = vunpack.c.h.b16 %v8184
    %v8525 = vunpack.c.l.b16 %v8185
    %v8526 = vunpack.c.h.b16 %v8185
    %v8527 = vunpack.c.l.b16 %v8186
    %v8528 = vunpack.c.h.b16 %v8186
    %v8529 = vunpack.c.l.b16 %v8187
    %v8530 = vunpack.c.h.b16 %v8187
    %v8531 = vunpack.c.l.b16 %v8188
    %v8532 = vunpack.c.h.b16 %v8188
    %v8533 = vunpack.c.l.b16 %v8189
    %v8534 = vunpack.c.h.b16 %v8189
    %v8535 = vunpack.c.l.b16 %v8190
    %v8536 = vunpack.c.h.b16 %v8190
    %v8537 = vunpack.c.l.b16 %v8191
    %v8538 = vunpack.c.h.b16 %v8191
    %v8539 = vunpack.c.l.b16 %v8192
    %v8540 = vunpack.c.h.b16 %v8192
    %v8541 = vunpack.c.l.b16 %v8193
    %v8542 = vunpack.c.h.b16 %v8193
    %v8543 = vunpack.c.l.b16 %v8194
    %v8544 = vunpack.c.h.b16 %v8194
    %v8545 = vunpack.c.l.b16 %v8195
    %v8546 = vunpack.c.h.b16 %v8195
    %v8547 = vunpack.c.l.b16 %v8196
    %v8548 = vunpack.c.h.b16 %v8196
    %v8549 = vunpack.c.l.b16 %v8197
    %v8550 = vunpack.c.h.b16 %v8197
    %v8551 = vunpack.c.l.b16 %v8198
    %v8552 = vunpack.c.h.b16 %v8198
    %v8553 = vunpack.c.l.b16 %v8199
    %v8554 = vunpack.c.h.b16 %v8199
    %v8555 = vunpack.c.l.b16 %v8200
    %v8556 = vunpack.c.h.b16 %v8200
    %v8557 = vunpack.c.l.b16 %v8201
    %v8558 = vunpack.c.h.b16 %v8201
    %v8559 = vunpack.c.l.b16 %v8202
    %v8560 = vunpack.c.h.b16 %v8202
    %v8561 = vunpack.c.l.b16 %v8203
    %v8562 = vunpack.c.h.b16 %v8203
    %v8563 = vunpack.c.l.b16 %v8204
    %v8564 = vunpack.c.h.b16 %v8204
    %v8565 = vunpack.c.l.b16 %v8205
    %v8566 = vunpack.c.h.b16 %v8205
    %v8567 = vunpack.c.l.b16 %v8206
    %v8568 = vunpack.c.h.b16 %v8206
    %v8569 = vunpack.c.l.b16 %v8207
    %v8570 = vunpack.c.h.b16 %v8207
    %v8571 = vunpack.c.l.b16 %v8208
    %v8572 = vunpack.c.h.b16 %v8208
    %v8573 = vunpack.c.l.b16 %v8209
    %v8574 = vunpack.c.h.b16 %v8209
    %v8575 = vunpack.c.l.b16 %v8210
    %v8576 = vunpack.c.h.b16 %v8210
    %v8577 = vunpack.c.l.b16 %v8211
    %v8578 = vunpack.c.h.b16 %v8211
    %v8579 = vunpack.c.l.b16 %v8212
    %v8580 = vunpack.c.h.b16 %v8212
    %v8581 = vunpack.c.l.b16 %v8213
    %v8582 = vunpack.c.h.b16 %v8213
    %v8583 = vunpack.c.l.b16 %v8214
    %v8584 = vunpack.c.h.b16 %v8214
    %v8585 = vunpack.c.l.b16 %v8215
    %v8586 = vunpack.c.h.b16 %v8215
    %v8587 = vunpack.c.l.b16 %v8216
    %v8588 = vunpack.c.h.b16 %v8216
    %v8589 = vunpack.c.l.b16 %v8217
    %v8590 = vunpack.c.h.b16 %v8217
    %v8591 = vunpack.c.l.b16 %v8218
    %v8592 = vunpack.c.h.b16 %v8218
    %v8593 = vunpack.c.l.b16 %v8219
    %v8594 = vunpack.c.h.b16 %v8219
    %v8595 = vunpack.c.l.b16 %v8220
    %v8596 = vunpack.c.h.b16 %v8220
    %v8597 = vunpack.c.l.b16 %v8221
    %v8598 = vunpack.c.h.b16 %v8221
    %v8599 = vunpack.c.l.b16 %v8222
    %v8600 = vunpack.c.h.b16 %v8222
    %v8601 = vunpack.c.l.b16 %v8223
    %v8602 = vunpack.c.h.b16 %v8223
    %v8603 = vunpack.c.l.b16 %v8224
    %v8604 = vunpack.c.h.b16 %v8224
    %v8605 = vunpack.c.l.b16 %v8225
    %v8606 = vunpack.c.h.b16 %v8225
    %v8607 = vunpack.c.l.b16 %v8226
    %v8608 = vunpack.c.h.b16 %v8226
    %v8609 = vunpack.c.l.b16 %v8227
    %v8610 = vunpack.c.h.b16 %v8227
    %v8611 = vunpack.c.l.b16 %v8228
    %v8612 = vunpack.c.h.b16 %v8228
    %v8613 = vpack.c.b16 %v8373, %v8357
    %v8614 = vpack.c.b16 %v8374, %v8358
    %v8615 = vpack.c.b16 %v8375, %v8359
    %v8616 = vpack.c.b16 %v8376, %v8360
    %v8617 = vpack.c.b16 %v8377, %v8361
    %v8618 = vpack.c.b16 %v8378, %v8362
    %v8619 = vpack.c.b16 %v8379, %v8363
    %v8620 = vpack.c.b16 %v8380, %v8364
    %v8621 = vpack.c.b16 %v8381, %v8365
    %v8622 = vpack.c.b16 %v8382, %v8366
    %v8623 = vpack.c.b16 %v8383, %v8367
    %v8624 = vpack.c.b16 %v8384, %v8368
    %v8625 = vpack.c.b16 %v8385, %v8369
    %v8626 = vpack.c.b16 %v8386, %v8370
    %v8627 = vpack.c.b16 %v8387, %v8371
    %v8628 = vpack.c.b16 %v8388, %v8372
    %v8629 = vpack.c.b16 %v8405, %v8389
    %v8630 = vpack.c.b16 %v8406, %v8390
    %v8631 = vpack.c.b16 %v8407, %v8391
    %v8632 = vpack.c.b16 %v8408, %v8392
    %v8633 = vpack.c.b16 %v8409, %v8393
    %v8634 = vpack.c.b16 %v8410, %v8394
    %v8635 = vpack.c.b16 %v8411, %v8395
    %v8636 = vpack.c.b16 %v8412, %v8396
    %v8637 = vpack.c.b16 %v8413, %v8397
    %v8638 = vpack.c.b16 %v8414, %v8398
    %v8639 = vpack.c.b16 %v8415, %v8399
    %v8640 = vpack.c.b16 %v8416, %v8400
    %v8641 = vpack.c.b16 %v8417, %v8401
    %v8642 = vpack.c.b16 %v8418, %v8402
    %v8643 = vpack.c.b16 %v8419, %v8403
    %v8644 = vpack.c.b16 %v8420, %v8404
    %v8645 = vpack.c.b16 %v8437, %v8421
    %v8646 = vpack.c.b16 %v8438, %v8422
    %v8647 = vpack.c.b16 %v8439, %v8423
    %v8648 = vpack.c.b16 %v8440, %v8424
    %v8649 = vpack.c.b16 %v8441, %v8425
    %v8650 = vpack.c.b16 %v8442, %v8426
    %v8651 = vpack.c.b16 %v8443, %v8427
    %v8652 = vpack.c.b16 %v8444, %v8428
    %v8653 = vpack.c.b16 %v8445, %v8429
    %v8654 = vpack.c.b16 %v8446, %v8430
    %v8655 = vpack.c.b16 %v8447, %v8431
    %v8656 = vpack.c.b16 %v8448, %v8432
    %v8657 = vpack.c.b16 %v8449, %v8433
    %v8658 = vpack.c.b16 %v8450, %v8434
    %v8659 = vpack.c.b16 %v8451, %v8435
    %v8660 = vpack.c.b16 %v8452, %v8436
    %v8661 = vpack.c.b16 %v8469, %v8453
    %v8662 = vpack.c.b16 %v8470, %v8454
    %v8663 = vpack.c.b16 %v8471, %v8455
    %v8664 = vpack.c.b16 %v8472, %v8456
    %v8665 = vpack.c.b16 %v8473, %v8457
    %v8666 = vpack.c.b16 %v8474, %v8458
    %v8667 = vpack.c.b16 %v8475, %v8459
    %v8668 = vpack.c.b16 %v8476, %v8460
    %v8669 = vpack.c.b16 %v8477, %v8461
    %v8670 = vpack.c.b16 %v8478, %v8462
    %v8671 = vpack.c.b16 %v8479, %v8463
    %v8672 = vpack.c.b16 %v8480, %v8464
    %v8673 = vpack.c.b16 %v8481, %v8465
    %v8674 = vpack.c.b16 %v8482, %v8466
    %v8675 = vpack.c.b16 %v8483, %v8467
    %v8676 = vpack.c.b16 %v8484, %v8468
    %v8677 = vpack.c.b16 %v8501, %v8485
    %v8678 = vpack.c.b16 %v8502, %v8486
    %v8679 = vpack.c.b16 %v8503, %v8487
    %v8680 = vpack.c.b16 %v8504, %v8488
    %v8681 = vpack.c.b16 %v8505, %v8489
    %v8682 = vpack.c.b16 %v8506, %v8490
    %v8683 = vpack.c.b16 %v8507, %v8491
    %v8684 = vpack.c.b16 %v8508, %v8492
    %v8685 = vpack.c.b16 %v8509, %v8493
    %v8686 = vpack.c.b16 %v8510, %v8494
    %v8687 = vpack.c.b16 %v8511, %v8495
    %v8688 = vpack.c.b16 %v8512, %v8496
    %v8689 = vpack.c.b16 %v8513, %v8497
    %v8690 = vpack.c.b16 %v8514, %v8498
    %v8691 = vpack.c.b16 %v8515, %v8499
    %v8692 = vpack.c.b16 %v8516, %v8500
    %v8693 = vpack.c.b16 %v8533, %v8517
    %v8694 = vpack.c.b16 %v8534, %v8518
    %v8695 = vpack.c.b16 %v8535, %v8519
    %v8696 = vpack.c.b16 %v8536, %v8520
    %v8697 = vpack.c.b16 %v8537, %v8521
    %v8698 = vpack.c.b16 %v8538, %v8522
    %v8699 = vpack.c.b16 %v8539, %v8523
    %v8700 = vpack.c.b16 %v8540, %v8524
    %v8701 = vpack.c.b16 %v8541, %v8525
    %v8702 = vpack.c.b16 %v8542, %v8526
    %v8703 = vpack.c.b16 %v8543, %v8527
    %v8704 = vpack.c.b16 %v8544, %v8528
    %v8705 = vpack.c.b16 %v8545, %v8529
    %v8706 = vpack.c.b16 %v8546, %v8530
    %v8707 = vpack.c.b16 %v8547, %v8531
    %v8708 = vpack.c.b16 %v8548, %v8532
    %v8709 = vpack.c.b16 %v8565, %v8549
    %v8710 = vpack.c.b16 %v8566, %v8550
    %v8711 = vpack.c.b16 %v8567, %v8551
    %v8712 = vpack.c.b16 %v8568, %v8552
    %v8713 = vpack.c.b16 %v8569, %v8553
    %v8714 = vpack.c.b16 %v8570, %v8554
    %v8715 = vpack.c.b16 %v8571, %v8555
    %v8716 = vpack.c.b16 %v8572, %v8556
    %v8717 = vpack.c.b16 %v8573, %v8557
    %v8718 = vpack.c.b16 %v8574, %v8558
    %v8719 = vpack.c.b16 %v8575, %v8559
    %v8720 = vpack.c.b16 %v8576, %v8560
    %v8721 = vpack.c.b16 %v8577, %v8561
    %v8722 = vpack.c.b16 %v8578, %v8562
    %v8723 = vpack.c.b16 %v8579, %v8563
    %v8724 = vpack.c.b16 %v8580, %v8564
    %v8725 = vpack.c.b16 %v8597, %v8581
    %v8726 = vpack.c.b16 %v8598, %v8582
    %v8727 = vpack.c.b16 %v8599, %v8583
    %v8728 = vpack.c.b16 %v8600, %v8584
    %v8729 = vpack.c.b16 %v8601, %v8585
    %v8730 = vpack.c.b16 %v8602, %v8586
    %v8731 = vpack.c.b16 %v8603, %v8587
    %v8732 = vpack.c.b16 %v8604, %v8588
    %v8733 = vpack.c.b16 %v8605, %v8589
    %v8734 = vpack.c.b16 %v8606, %v8590
    %v8735 = vpack.c.b16 %v8607, %v8591
    %v8736 = vpack.c.b16 %v8608, %v8592
    %v8737 = vpack.c.b16 %v8609, %v8593
    %v8738 = vpack.c.b16 %v8610, %v8594
    %v8739 = vpack.c.b16 %v8611, %v8595
    %v8740 = vpack.c.b16 %v8612, %v8596
    %8869 = vmatprep.subr.bf16.mxu0 %v8614
    %8870 = vmatpush1.bf16.msra.mxu0 %v8613
    %8871 = vmatprep.subr.bf16.mxu0 %v8630
    %8872 = vmatpush1.bf16.msra.mxu0 %v8629
    %8873 = vmatprep.subr.bf16.mxu0 %v8646
    %8874 = vmatpush1.bf16.msra.mxu0 %v8645
    %8875 = vmatprep.subr.bf16.mxu0 %v8662
    %8876 = vmatpush1.bf16.msra.mxu0 %v8661
    %8877 = vmatprep.subr.bf16.mxu0 %v8678
    %8878 = vmatpush1.bf16.msra.mxu0 %v8677
    %8879 = vmatprep.subr.bf16.mxu0 %v8694
    %8880 = vmatpush1.bf16.msra.mxu0 %v8693
    %8881 = vmatprep.subr.bf16.mxu0 %v8710
    %8882 = vmatpush1.bf16.msra.mxu0 %v8709
    %8883 = vmatprep.subr.bf16.mxu0 %v8726
    %8884 = vmatpush1.bf16.msra.mxu0 %v8725
    %8885 = vmatprep.subr.bf16.mxu0 0
    %8886 = vmatpush1.bf16.msra.mxu0 0
    %8887 = vmatprep.subr.bf16.mxu0 0
    %8888 = vmatpush1.bf16.msra.mxu0 0
    %8889 = vmatprep.subr.bf16.mxu0 0
    %8890 = vmatpush1.bf16.msra.mxu0 0
    %8891 = vmatprep.subr.bf16.mxu0 0
    %8892 = vmatpush1.bf16.msra.mxu0 0
    %8893 = vmatprep.subr.bf16.mxu0 0
    %8894 = vmatpush1.bf16.msra.mxu0 0
    %8895 = vmatprep.subr.bf16.mxu0 0
    %8896 = vmatpush1.bf16.msra.mxu0 0
    %8897 = vmatprep.subr.bf16.mxu0 0
    %8898 = vmatpush1.bf16.msra.mxu0 0
    %8899 = vmatprep.subr.bf16.mxu0 0
    %8900 = vmatpush1.bf16.msra.mxu0 0
    %8901 = vmatprep.mubr.bf16.mxu0 0
    %8902 = vmatmul.mubr.bf16.gmra.mrb[0].mxu0 %v8099
    %v8903 = vpop.f32.mrb[0].mxu0
    %v8904 = vadd.f32 0.0, %v8903
    %v8905 = vpop.f32.mrb[0].mxu0
    %v8906 = vadd.f32 0.0, %v8905
    %v8907 = vpop.f32.mrb[0].mxu0
    %v8908 = vpop.f32.mrb[0].mxu0
    %8909 = vdwg.mxu0
    %8910 = vmatprep.subr.bf16.mxu0 %v8616
    %8911 = vmatpush1.bf16.msra.mxu0 %v8615
    %8912 = vmatprep.subr.bf16.mxu0 %v8632
    %8913 = vmatpush1.bf16.msra.mxu0 %v8631
    %8914 = vmatprep.subr.bf16.mxu0 %v8648
    %8915 = vmatpush1.bf16.msra.mxu0 %v8647
    %8916 = vmatprep.subr.bf16.mxu0 %v8664
    %8917 = vmatpush1.bf16.msra.mxu0 %v8663
    %8918 = vmatprep.subr.bf16.mxu0 %v8680
    %8919 = vmatpush1.bf16.msra.mxu0 %v8679
    %8920 = vmatprep.subr.bf16.mxu0 %v8696
    %8921 = vmatpush1.bf16.msra.mxu0 %v8695
    %8922 = vmatprep.subr.bf16.mxu0 %v8712
    %8923 = vmatpush1.bf16.msra.mxu0 %v8711
    %8924 = vmatprep.subr.bf16.mxu0 %v8728
    %8925 = vmatpush1.bf16.msra.mxu0 %v8727
    %8926 = vmatprep.subr.bf16.mxu0 0
    %8927 = vmatpush1.bf16.msra.mxu0 0
    %8928 = vmatprep.subr.bf16.mxu0 0
    %8929 = vmatpush1.bf16.msra.mxu0 0
    %8930 = vmatprep.subr.bf16.mxu0 0
    %8931 = vmatpush1.bf16.msra.mxu0 0
    %8932 = vmatprep.subr.bf16.mxu0 0
    %8933 = vmatpush1.bf16.msra.mxu0 0
    %8934 = vmatprep.subr.bf16.mxu0 0
    %8935 = vmatpush1.bf16.msra.mxu0 0
    %8936 = vmatprep.subr.bf16.mxu0 0
    %8937 = vmatpush1.bf16.msra.mxu0 0
    %8938 = vmatprep.subr.bf16.mxu0 0
    %8939 = vmatpush1.bf16.msra.mxu0 0
    %8940 = vmatprep.subr.bf16.mxu0 0
    %8941 = vmatpush1.bf16.msra.mxu0 0
    %8942 = vmatprep.mubr.bf16.mxu0 0
    %8943 = vmatmul.mubr.bf16.gmra.mrb[0].mxu0 %v8099
    %v8944 = vpop.f32.mrb[0].mxu0
    %v8945 = vadd.f32 0.0, %v8944
    %v8946 = vpop.f32.mrb[0].mxu0
    %v8947 = vadd.f32 0.0, %v8946
    %v8948 = vpop.f32.mrb[0].mxu0
    %v8949 = vpop.f32.mrb[0].mxu0
    %8950 = vdwg.mxu0
    %8951 = vmatprep.subr.bf16.mxu0 %v8618
    %8952 = vmatpush1.bf16.msra.mxu0 %v8617
    %8953 = vmatprep.subr.bf16.mxu0 %v8634
    %8954 = vmatpush1.bf16.msra.mxu0 %v8633
    %8955 = vmatprep.subr.bf16.mxu0 %v8650
    %8956 = vmatpush1.bf16.msra.mxu0 %v8649
    %8957 = vmatprep.subr.bf16.mxu0 %v8666
    %8958 = vmatpush1.bf16.msra.mxu0 %v8665
    %8959 = vmatprep.subr.bf16.mxu0 %v8682
    %8960 = vmatpush1.bf16.msra.mxu0 %v8681
    %8961 = vmatprep.subr.bf16.mxu0 %v8698
    %8962 = vmatpush1.bf16.msra.mxu0 %v8697
    %8963 = vmatprep.subr.bf16.mxu0 %v8714
    %8964 = vmatpush1.bf16.msra.mxu0 %v8713
    %8965 = vmatprep.subr.bf16.mxu0 %v8730
    %8966 = vmatpush1.bf16.msra.mxu0 %v8729
    %8967 = vmatprep.subr.bf16.mxu0 0
    %8968 = vmatpush1.bf16.msra.mxu0 0
    %8969 = vmatprep.subr.bf16.mxu0 0
    %8970 = vmatpush1.bf16.msra.mxu0 0
    %8971 = vmatprep.subr.bf16.mxu0 0
    %8972 = vmatpush1.bf16.msra.mxu0 0
    %8973 = vmatprep.subr.bf16.mxu0 0
    %8974 = vmatpush1.bf16.msra.mxu0 0
    %8975 = vmatprep.subr.bf16.mxu0 0
    %8976 = vmatpush1.bf16.msra.mxu0 0
    %8977 = vmatprep.subr.bf16.mxu0 0
    %8978 = vmatpush1.bf16.msra.mxu0 0
    %8979 = vmatprep.subr.bf16.mxu0 0
    %8980 = vmatpush1.bf16.msra.mxu0 0
    %8981 = vmatprep.subr.bf16.mxu0 0
    %8982 = vmatpush1.bf16.msra.mxu0 0
    %8983 = vmatprep.mubr.bf16.mxu0 0
    %8984 = vmatmul.mubr.bf16.gmra.mrb[0].mxu0 %v8099
    %v8985 = vpop.f32.mrb[0].mxu0
    %v8986 = vadd.f32 0.0, %v8985
    %v8987 = vpop.f32.mrb[0].mxu0
    %v8988 = vadd.f32 0.0, %v8987
    %v8989 = vpop.f32.mrb[0].mxu0
    %v8990 = vpop.f32.mrb[0].mxu0
    %8991 = vdwg.mxu0
    %8992 = vmatprep.subr.bf16.mxu0 %v8620
    %8993 = vmatpush1.bf16.msra.mxu0 %v8619
    %8994 = vmatprep.subr.bf16.mxu0 %v8636
    %8995 = vmatpush1.bf16.msra.mxu0 %v8635
    %8996 = vmatprep.subr.bf16.mxu0 %v8652
    %8997 = vmatpush1.bf16.msra.mxu0 %v8651
    %8998 = vmatprep.subr.bf16.mxu0 %v8668
    %8999 = vmatpush1.bf16.msra.mxu0 %v8667
    %9000 = vmatprep.subr.bf16.mxu0 %v8684
    %9001 = vmatpush1.bf16.msra.mxu0 %v8683
    %9002 = vmatprep.subr.bf16.mxu0 %v8700
    %9003 = vmatpush1.bf16.msra.mxu0 %v8699
    %9004 = vmatprep.subr.bf16.mxu0 %v8716
    %9005 = vmatpush1.bf16.msra.mxu0 %v8715
    %9006 = vmatprep.subr.bf16.mxu0 %v8732
    %9007 = vmatpush1.bf16.msra.mxu0 %v8731
    %9008 = vmatprep.subr.bf16.mxu0 0
    %9009 = vmatpush1.bf16.msra.mxu0 0
    %9010 = vmatprep.subr.bf16.mxu0 0
    %9011 = vmatpush1.bf16.msra.mxu0 0
    %9012 = vmatprep.subr.bf16.mxu0 0
    %9013 = vmatpush1.bf16.msra.mxu0 0
    %9014 = vmatprep.subr.bf16.mxu0 0
    %9015 = vmatpush1.bf16.msra.mxu0 0
    %9016 = vmatprep.subr.bf16.mxu0 0
    %9017 = vmatpush1.bf16.msra.mxu0 0
    %9018 = vmatprep.subr.bf16.mxu0 0
    %9019 = vmatpush1.bf16.msra.mxu0 0
    %9020 = vmatprep.subr.bf16.mxu0 0
    %9021 = vmatpush1.bf16.msra.mxu0 0
    %9022 = vmatprep.subr.bf16.mxu0 0
    %9023 = vmatpush1.bf16.msra.mxu0 0
    %9024 = vmatprep.mubr.bf16.mxu0 0
    %9025 = vmatmul.mubr.bf16.gmra.mrb[0].mxu0 %v8099
    %v9026 = vpop.f32.mrb[0].mxu0
    %v9027 = vadd.f32 0.0, %v9026
    %v9028 = vpop.f32.mrb[0].mxu0
    %v9029 = vadd.f32 0.0, %v9028
    %v9030 = vpop.f32.mrb[0].mxu0
    %v9031 = vpop.f32.mrb[0].mxu0
    %9032 = vdwg.mxu0
    %9033 = vmatprep.subr.bf16.mxu0 %v8622
    %9034 = vmatpush1.bf16.msra.mxu0 %v8621
    %9035 = vmatprep.subr.bf16.mxu0 %v8638
    %9036 = vmatpush1.bf16.msra.mxu0 %v8637
    %9037 = vmatprep.subr.bf16.mxu0 %v8654
    %9038 = vmatpush1.bf16.msra.mxu0 %v8653
    %9039 = vmatprep.subr.bf16.mxu0 %v8670
    %9040 = vmatpush1.bf16.msra.mxu0 %v8669
    %9041 = vmatprep.subr.bf16.mxu0 %v8686
    %9042 = vmatpush1.bf16.msra.mxu0 %v8685
    %9043 = vmatprep.subr.bf16.mxu0 %v8702
    %9044 = vmatpush1.bf16.msra.mxu0 %v8701
    %9045 = vmatprep.subr.bf16.mxu0 %v8718
    %9046 = vmatpush1.bf16.msra.mxu0 %v8717
    %9047 = vmatprep.subr.bf16.mxu0 %v8734
    %9048 = vmatpush1.bf16.msra.mxu0 %v8733
    %9049 = vmatprep.subr.bf16.mxu0 0
    %9050 = vmatpush1.bf16.msra.mxu0 0
    %9051 = vmatprep.subr.bf16.mxu0 0
    %9052 = vmatpush1.bf16.msra.mxu0 0
    %9053 = vmatprep.subr.bf16.mxu0 0
    %9054 = vmatpush1.bf16.msra.mxu0 0
    %9055 = vmatprep.subr.bf16.mxu0 0
    %9056 = vmatpush1.bf16.msra.mxu0 0
    %9057 = vmatprep.subr.bf16.mxu0 0
    %9058 = vmatpush1.bf16.msra.mxu0 0
    %9059 = vmatprep.subr.bf16.mxu0 0
    %9060 = vmatpush1.bf16.msra.mxu0 0
    %9061 = vmatprep.subr.bf16.mxu0 0
    %9062 = vmatpush1.bf16.msra.mxu0 0
    %9063 = vmatprep.subr.bf16.mxu0 0
    %9064 = vmatpush1.bf16.msra.mxu0 0
    %9065 = vmatprep.mubr.bf16.mxu0 0
    %9066 = vmatmul.mubr.bf16.gmra.mrb[0].mxu0 %v8099
    %v9067 = vpop.f32.mrb[0].mxu0
    %v9068 = vadd.f32 0.0, %v9067
    %v9069 = vpop.f32.mrb[0].mxu0
    %v9070 = vadd.f32 0.0, %v9069
    %v9071 = vpop.f32.mrb[0].mxu0
    %v9072 = vpop.f32.mrb[0].mxu0
    %9073 = vdwg.mxu0
    %9074 = vmatprep.subr.bf16.mxu0 %v8624
    %9075 = vmatpush1.bf16.msra.mxu0 %v8623
    %9076 = vmatprep.subr.bf16.mxu0 %v8640
    %9077 = vmatpush1.bf16.msra.mxu0 %v8639
    %9078 = vmatprep.subr.bf16.mxu0 %v8656
    %9079 = vmatpush1.bf16.msra.mxu0 %v8655
    %9080 = vmatprep.subr.bf16.mxu0 %v8672
    %9081 = vmatpush1.bf16.msra.mxu0 %v8671
    %9082 = vmatprep.subr.bf16.mxu0 %v8688
    %9083 = vmatpush1.bf16.msra.mxu0 %v8687
    %9084 = vmatprep.subr.bf16.mxu0 %v8704
    %9085 = vmatpush1.bf16.msra.mxu0 %v8703
    %9086 = vmatprep.subr.bf16.mxu0 %v8720
    %9087 = vmatpush1.bf16.msra.mxu0 %v8719
    %9088 = vmatprep.subr.bf16.mxu0 %v8736
    %9089 = vmatpush1.bf16.msra.mxu0 %v8735
    %9090 = vmatprep.subr.bf16.mxu0 0
    %9091 = vmatpush1.bf16.msra.mxu0 0
    %9092 = vmatprep.subr.bf16.mxu0 0
    %9093 = vmatpush1.bf16.msra.mxu0 0
    %9094 = vmatprep.subr.bf16.mxu0 0
    %9095 = vmatpush1.bf16.msra.mxu0 0
    %9096 = vmatprep.subr.bf16.mxu0 0
    %9097 = vmatpush1.bf16.msra.mxu0 0
    %9098 = vmatprep.subr.bf16.mxu0 0
    %9099 = vmatpush1.bf16.msra.mxu0 0
    %9100 = vmatprep.subr.bf16.mxu0 0
    %9101 = vmatpush1.bf16.msra.mxu0 0
    %9102 = vmatprep.subr.bf16.mxu0 0
    %9103 = vmatpush1.bf16.msra.mxu0 0
    %9104 = vmatprep.subr.bf16.mxu0 0
    %9105 = vmatpush1.bf16.msra.mxu0 0
    %9106 = vmatprep.mubr.bf16.mxu0 0
    %9107 = vmatmul.mubr.bf16.gmra.mrb[0].mxu0 %v8099
    %v9108 = vpop.f32.mrb[0].mxu0
    %v9109 = vadd.f32 0.0, %v9108
    %v9110 = vpop.f32.mrb[0].mxu0
    %v9111 = vadd.f32 0.0, %v9110
    %v9112 = vpop.f32.mrb[0].mxu0
    %v9113 = vpop.f32.mrb[0].mxu0
    %9114 = vdwg.mxu0
    %9115 = vmatprep.subr.bf16.mxu0 %v8626
    %9116 = vmatpush1.bf16.msra.mxu0 %v8625
    %9117 = vmatprep.subr.bf16.mxu0 %v8642
    %9118 = vmatpush1.bf16.msra.mxu0 %v8641
    %9119 = vmatprep.subr.bf16.mxu0 %v8658
    %9120 = vmatpush1.bf16.msra.mxu0 %v8657
    %9121 = vmatprep.subr.bf16.mxu0 %v8674
    %9122 = vmatpush1.bf16.msra.mxu0 %v8673
    %9123 = vmatprep.subr.bf16.mxu0 %v8690
    %9124 = vmatpush1.bf16.msra.mxu0 %v8689
    %9125 = vmatprep.subr.bf16.mxu0 %v8706
    %9126 = vmatpush1.bf16.msra.mxu0 %v8705
    %9127 = vmatprep.subr.bf16.mxu0 %v8722
    %9128 = vmatpush1.bf16.msra.mxu0 %v8721
    %9129 = vmatprep.subr.bf16.mxu0 %v8738
    %9130 = vmatpush1.bf16.msra.mxu0 %v8737
    %9131 = vmatprep.subr.bf16.mxu0 0
    %9132 = vmatpush1.bf16.msra.mxu0 0
    %9133 = vmatprep.subr.bf16.mxu0 0
    %9134 = vmatpush1.bf16.msra.mxu0 0
    %9135 = vmatprep.subr.bf16.mxu0 0
    %9136 = vmatpush1.bf16.msra.mxu0 0
    %9137 = vmatprep.subr.bf16.mxu0 0
    %9138 = vmatpush1.bf16.msra.mxu0 0
    %9139 = vmatprep.subr.bf16.mxu0 0
    %9140 = vmatpush1.bf16.msra.mxu0 0
    %9141 = vmatprep.subr.bf16.mxu0 0
    %9142 = vmatpush1.bf16.msra.mxu0 0
    %9143 = vmatprep.subr.bf16.mxu0 0
    %9144 = vmatpush1.bf16.msra.mxu0 0
    %9145 = vmatprep.subr.bf16.mxu0 0
    %9146 = vmatpush1.bf16.msra.mxu0 0
    %9147 = vmatprep.mubr.bf16.mxu0 0
    %9148 = vmatmul.mubr.bf16.gmra.mrb[0].mxu0 %v8099
    %v9149 = vpop.f32.mrb[0].mxu0
    %v9150 = vadd.f32 0.0, %v9149
    %v9151 = vpop.f32.mrb[0].mxu0
    %v9152 = vadd.f32 0.0, %v9151
    %v9153 = vpop.f32.mrb[0].mxu0
    %v9154 = vpop.f32.mrb[0].mxu0
    %9155 = vdwg.mxu0
    %9156 = vmatprep.subr.bf16.mxu0 %v8628
    %9157 = vmatpush1.bf16.msra.mxu0 %v8627
    %9158 = vmatprep.subr.bf16.mxu0 %v8644
    %9159 = vmatpush1.bf16.msra.mxu0 %v8643
    %9160 = vmatprep.subr.bf16.mxu0 %v8660
    %9161 = vmatpush1.bf16.msra.mxu0 %v8659
    %9162 = vmatprep.subr.bf16.mxu0 %v8676
    %9163 = vmatpush1.bf16.msra.mxu0 %v8675
    %9164 = vmatprep.subr.bf16.mxu0 %v8692
    %9165 = vmatpush1.bf16.msra.mxu0 %v8691
    %9166 = vmatprep.subr.bf16.mxu0 %v8708
    %9167 = vmatpush1.bf16.msra.mxu0 %v8707
    %9168 = vmatprep.subr.bf16.mxu0 %v8724
    %9169 = vmatpush1.bf16.msra.mxu0 %v8723
    %9170 = vmatprep.subr.bf16.mxu0 %v8740
    %9171 = vmatpush1.bf16.msra.mxu0 %v8739
    %9172 = vmatprep.subr.bf16.mxu0 0
    %9173 = vmatpush1.bf16.msra.mxu0 0
    %9174 = vmatprep.subr.bf16.mxu0 0
    %9175 = vmatpush1.bf16.msra.mxu0 0
    %9176 = vmatprep.subr.bf16.mxu0 0
    %9177 = vmatpush1.bf16.msra.mxu0 0
    %9178 = vmatprep.subr.bf16.mxu0 0
    %9179 = vmatpush1.bf16.msra.mxu0 0
    %9180 = vmatprep.subr.bf16.mxu0 0
    %9181 = vmatpush1.bf16.msra.mxu0 0
    %9182 = vmatprep.subr.bf16.mxu0 0
    %9183 = vmatpush1.bf16.msra.mxu0 0
    %9184 = vmatprep.subr.bf16.mxu0 0
    %9185 = vmatpush1.bf16.msra.mxu0 0
    %9186 = vmatprep.subr.bf16.mxu0 0
    %9187 = vmatpush1.bf16.msra.mxu0 0
    %9188 = vmatprep.mubr.bf16.mxu0 0
    %9189 = vmatmul.mubr.bf16.gmra.mrb[0].mxu0 %v8099
    %v9190 = vpop.f32.mrb[0].mxu0
    %v9191 = vadd.f32 0.0, %v9190
    %v9192 = vpop.f32.mrb[0].mxu0
    %v9193 = vadd.f32 0.0, %v9192
    %v9194 = vpop.f32.mrb[0].mxu0
    %v9195 = vpop.f32.mrb[0].mxu0
    %9196 = vdwg.mxu0
    %v9197 = vadd.f32 %v8082, %v8904
    %v9198 = vadd.f32 %v8083, %v8906
    %v9199 = vadd.f32 %v8084, %v8945
    %v9200 = vadd.f32 %v8085, %v8947
    %v9201 = vadd.f32 %v8086, %v8986
    %v9202 = vadd.f32 %v8087, %v8988
    %v9203 = vadd.f32 %v8088, %v9027
    %v9204 = vadd.f32 %v8089, %v9029
    %v9205 = vadd.f32 %v8090, %v9068
    %v9206 = vadd.f32 %v8091, %v9070
    %v9207 = vadd.f32 %v8092, %v9109
    %v9208 = vadd.f32 %v8093, %v9111
    %v9209 = vadd.f32 %v8094, %v9150
    %v9210 = vadd.f32 %v8095, %v9152
    %v9211 = vadd.f32 %v8096, %v9191
    %v9212 = vadd.f32 %v8097, %v9193
    %v9213 = vld [vmem:[#allocation4 + $0xe] sm:$0x3]
    %v9214 = vpack.c.bf16 %v9213, %v9213
    %s9215 = scalar_lea.vmem [#allocation16], 7168
    %v9216 = vld [vmem:[%s9215] sm:$0xff]
    %v9217 = vld [vmem:[%s9215 + $0x8] sm:$0xff]
    %v9218 = vld [vmem:[%s9215 + $0x10] sm:$0xff]
    %v9219 = vld [vmem:[%s9215 + $0x18] sm:$0xff]
    %v9220 = vld [vmem:[%s9215 + $0x20] sm:$0xff]
    %v9221 = vld [vmem:[%s9215 + $0x28] sm:$0xff]
    %v9222 = vld [vmem:[%s9215 + $0x30] sm:$0xff]
    %v9223 = vld [vmem:[%s9215 + $0x38] sm:$0xff]
    %v9224 = vld [vmem:[%s9215 + $0x40] sm:$0xff]
    %v9225 = vld [vmem:[%s9215 + $0x48] sm:$0xff]
    %v9226 = vld [vmem:[%s9215 + $0x50] sm:$0xff]
    %v9227 = vld [vmem:[%s9215 + $0x58] sm:$0xff]
    %v9228 = vld [vmem:[%s9215 + $0x60] sm:$0xff]
    %v9229 = vld [vmem:[%s9215 + $0x68] sm:$0xff]
    %v9230 = vld [vmem:[%s9215 + $0x70] sm:$0xff]
    %v9231 = vld [vmem:[%s9215 + $0x78] sm:$0xff]
    %v9232 = vld [vmem:[%s9215 + $0x80] sm:$0xff]
    %v9233 = vld [vmem:[%s9215 + $0x88] sm:$0xff]
    %v9234 = vld [vmem:[%s9215 + $0x90] sm:$0xff]
    %v9235 = vld [vmem:[%s9215 + $0x98] sm:$0xff]
    %v9236 = vld [vmem:[%s9215 + $0xa0] sm:$0xff]
    %v9237 = vld [vmem:[%s9215 + $0xa8] sm:$0xff]
    %v9238 = vld [vmem:[%s9215 + $0xb0] sm:$0xff]
    %v9239 = vld [vmem:[%s9215 + $0xb8] sm:$0xff]
    %v9240 = vld [vmem:[%s9215 + $0xc0] sm:$0xff]
    %v9241 = vld [vmem:[%s9215 + $0xc8] sm:$0xff]
    %v9242 = vld [vmem:[%s9215 + $0xd0] sm:$0xff]
    %v9243 = vld [vmem:[%s9215 + $0xd8] sm:$0xff]
    %v9244 = vld [vmem:[%s9215 + $0xe0] sm:$0xff]
    %v9245 = vld [vmem:[%s9215 + $0xe8] sm:$0xff]
    %v9246 = vld [vmem:[%s9215 + $0xf0] sm:$0xff]
    %v9247 = vld [vmem:[%s9215 + $0xf8] sm:$0xff]
    %v9248 = vld [vmem:[%s9215 + $0x100] sm:$0xff]
    %v9249 = vld [vmem:[%s9215 + $0x108] sm:$0xff]
    %v9250 = vld [vmem:[%s9215 + $0x110] sm:$0xff]
    %v9251 = vld [vmem:[%s9215 + $0x118] sm:$0xff]
    %v9252 = vld [vmem:[%s9215 + $0x120] sm:$0xff]
    %v9253 = vld [vmem:[%s9215 + $0x128] sm:$0xff]
    %v9254 = vld [vmem:[%s9215 + $0x130] sm:$0xff]
    %v9255 = vld [vmem:[%s9215 + $0x138] sm:$0xff]
    %v9256 = vld [vmem:[%s9215 + $0x140] sm:$0xff]
    %v9257 = vld [vmem:[%s9215 + $0x148] sm:$0xff]
    %v9258 = vld [vmem:[%s9215 + $0x150] sm:$0xff]
    %v9259 = vld [vmem:[%s9215 + $0x158] sm:$0xff]
    %v9260 = vld [vmem:[%s9215 + $0x160] sm:$0xff]
    %v9261 = vld [vmem:[%s9215 + $0x168] sm:$0xff]
    %v9262 = vld [vmem:[%s9215 + $0x170] sm:$0xff]
    %v9263 = vld [vmem:[%s9215 + $0x178] sm:$0xff]
    %v9264 = vld [vmem:[%s9215 + $0x180] sm:$0xff]
    %v9265 = vld [vmem:[%s9215 + $0x188] sm:$0xff]
    %v9266 = vld [vmem:[%s9215 + $0x190] sm:$0xff]
    %v9267 = vld [vmem:[%s9215 + $0x198] sm:$0xff]
    %v9268 = vld [vmem:[%s9215 + $0x1a0] sm:$0xff]
    %v9269 = vld [vmem:[%s9215 + $0x1a8] sm:$0xff]
    %v9270 = vld [vmem:[%s9215 + $0x1b0] sm:$0xff]
    %v9271 = vld [vmem:[%s9215 + $0x1b8] sm:$0xff]
    %v9272 = vld [vmem:[%s9215 + $0x1c0] sm:$0xff]
    %v9273 = vld [vmem:[%s9215 + $0x1c8] sm:$0xff]
    %v9274 = vld [vmem:[%s9215 + $0x1d0] sm:$0xff]
    %v9275 = vld [vmem:[%s9215 + $0x1d8] sm:$0xff]
    %v9276 = vld [vmem:[%s9215 + $0x1e0] sm:$0xff]
    %v9277 = vld [vmem:[%s9215 + $0x1e8] sm:$0xff]
    %v9278 = vld [vmem:[%s9215 + $0x1f0] sm:$0xff]
    %v9279 = vld [vmem:[%s9215 + $0x1f8] sm:$0xff]
    %v9280 = vld [vmem:[%s9215 + $0x200] sm:$0xff]
    %v9281 = vld [vmem:[%s9215 + $0x208] sm:$0xff]
    %v9282 = vld [vmem:[%s9215 + $0x210] sm:$0xff]
    %v9283 = vld [vmem:[%s9215 + $0x218] sm:$0xff]
    %v9284 = vld [vmem:[%s9215 + $0x220] sm:$0xff]
    %v9285 = vld [vmem:[%s9215 + $0x228] sm:$0xff]
    %v9286 = vld [vmem:[%s9215 + $0x230] sm:$0xff]
    %v9287 = vld [vmem:[%s9215 + $0x238] sm:$0xff]
    %v9288 = vld [vmem:[%s9215 + $0x240] sm:$0xff]
    %v9289 = vld [vmem:[%s9215 + $0x248] sm:$0xff]
    %v9290 = vld [vmem:[%s9215 + $0x250] sm:$0xff]
    %v9291 = vld [vmem:[%s9215 + $0x258] sm:$0xff]
    %v9292 = vld [vmem:[%s9215 + $0x260] sm:$0xff]
    %v9293 = vld [vmem:[%s9215 + $0x268] sm:$0xff]
    %v9294 = vld [vmem:[%s9215 + $0x270] sm:$0xff]
    %v9295 = vld [vmem:[%s9215 + $0x278] sm:$0xff]
    %v9296 = vld [vmem:[%s9215 + $0x280] sm:$0xff]
    %v9297 = vld [vmem:[%s9215 + $0x288] sm:$0xff]
    %v9298 = vld [vmem:[%s9215 + $0x290] sm:$0xff]
    %v9299 = vld [vmem:[%s9215 + $0x298] sm:$0xff]
    %v9300 = vld [vmem:[%s9215 + $0x2a0] sm:$0xff]
    %v9301 = vld [vmem:[%s9215 + $0x2a8] sm:$0xff]
    %v9302 = vld [vmem:[%s9215 + $0x2b0] sm:$0xff]
    %v9303 = vld [vmem:[%s9215 + $0x2b8] sm:$0xff]
    %v9304 = vld [vmem:[%s9215 + $0x2c0] sm:$0xff]
    %v9305 = vld [vmem:[%s9215 + $0x2c8] sm:$0xff]
    %v9306 = vld [vmem:[%s9215 + $0x2d0] sm:$0xff]
    %v9307 = vld [vmem:[%s9215 + $0x2d8] sm:$0xff]
    %v9308 = vld [vmem:[%s9215 + $0x2e0] sm:$0xff]
    %v9309 = vld [vmem:[%s9215 + $0x2e8] sm:$0xff]
    %v9310 = vld [vmem:[%s9215 + $0x2f0] sm:$0xff]
    %v9311 = vld [vmem:[%s9215 + $0x2f8] sm:$0xff]
    %v9312 = vld [vmem:[%s9215 + $0x300] sm:$0xff]
    %v9313 = vld [vmem:[%s9215 + $0x308] sm:$0xff]
    %v9314 = vld [vmem:[%s9215 + $0x310] sm:$0xff]
    %v9315 = vld [vmem:[%s9215 + $0x318] sm:$0xff]
    %v9316 = vld [vmem:[%s9215 + $0x320] sm:$0xff]
    %v9317 = vld [vmem:[%s9215 + $0x328] sm:$0xff]
    %v9318 = vld [vmem:[%s9215 + $0x330] sm:$0xff]
    %v9319 = vld [vmem:[%s9215 + $0x338] sm:$0xff]
    %v9320 = vld [vmem:[%s9215 + $0x340] sm:$0xff]
    %v9321 = vld [vmem:[%s9215 + $0x348] sm:$0xff]
    %v9322 = vld [vmem:[%s9215 + $0x350] sm:$0xff]
    %v9323 = vld [vmem:[%s9215 + $0x358] sm:$0xff]
    %v9324 = vld [vmem:[%s9215 + $0x360] sm:$0xff]
    %v9325 = vld [vmem:[%s9215 + $0x368] sm:$0xff]
    %v9326 = vld [vmem:[%s9215 + $0x370] sm:$0xff]
    %v9327 = vld [vmem:[%s9215 + $0x378] sm:$0xff]
    %v9328 = vld [vmem:[%s9215 + $0x380] sm:$0xff]
    %v9329 = vld [vmem:[%s9215 + $0x388] sm:$0xff]
    %v9330 = vld [vmem:[%s9215 + $0x390] sm:$0xff]
    %v9331 = vld [vmem:[%s9215 + $0x398] sm:$0xff]
    %v9332 = vld [vmem:[%s9215 + $0x3a0] sm:$0xff]
    %v9333 = vld [vmem:[%s9215 + $0x3a8] sm:$0xff]
    %v9334 = vld [vmem:[%s9215 + $0x3b0] sm:$0xff]
    %v9335 = vld [vmem:[%s9215 + $0x3b8] sm:$0xff]
    %v9336 = vld [vmem:[%s9215 + $0x3c0] sm:$0xff]
    %v9337 = vld [vmem:[%s9215 + $0x3c8] sm:$0xff]
    %v9338 = vld [vmem:[%s9215 + $0x3d0] sm:$0xff]
    %v9339 = vld [vmem:[%s9215 + $0x3d8] sm:$0xff]
    %v9340 = vld [vmem:[%s9215 + $0x3e0] sm:$0xff]
    %v9341 = vld [vmem:[%s9215 + $0x3e8] sm:$0xff]
    %v9342 = vld [vmem:[%s9215 + $0x3f0] sm:$0xff]
    %v9343 = vld [vmem:[%s9215 + $0x3f8] sm:$0xff]
    %v9472 = vunpack.c.l.b16 %v9216
    %v9473 = vunpack.c.h.b16 %v9216
    %v9474 = vunpack.c.l.b16 %v9217
    %v9475 = vunpack.c.h.b16 %v9217
    %v9476 = vunpack.c.l.b16 %v9218
    %v9477 = vunpack.c.h.b16 %v9218
    %v9478 = vunpack.c.l.b16 %v9219
    %v9479 = vunpack.c.h.b16 %v9219
    %v9480 = vunpack.c.l.b16 %v9220
    %v9481 = vunpack.c.h.b16 %v9220
    %v9482 = vunpack.c.l.b16 %v9221
    %v9483 = vunpack.c.h.b16 %v9221
    %v9484 = vunpack.c.l.b16 %v9222
    %v9485 = vunpack.c.h.b16 %v9222
    %v9486 = vunpack.c.l.b16 %v9223
    %v9487 = vunpack.c.h.b16 %v9223
    %v9488 = vunpack.c.l.b16 %v9224
    %v9489 = vunpack.c.h.b16 %v9224
    %v9490 = vunpack.c.l.b16 %v9225
    %v9491 = vunpack.c.h.b16 %v9225
    %v9492 = vunpack.c.l.b16 %v9226
    %v9493 = vunpack.c.h.b16 %v9226
    %v9494 = vunpack.c.l.b16 %v9227
    %v9495 = vunpack.c.h.b16 %v9227
    %v9496 = vunpack.c.l.b16 %v9228
    %v9497 = vunpack.c.h.b16 %v9228
    %v9498 = vunpack.c.l.b16 %v9229
    %v9499 = vunpack.c.h.b16 %v9229
    %v9500 = vunpack.c.l.b16 %v9230
    %v9501 = vunpack.c.h.b16 %v9230
    %v9502 = vunpack.c.l.b16 %v9231
    %v9503 = vunpack.c.h.b16 %v9231
    %v9504 = vunpack.c.l.b16 %v9232
    %v9505 = vunpack.c.h.b16 %v9232
    %v9506 = vunpack.c.l.b16 %v9233
    %v9507 = vunpack.c.h.b16 %v9233
    %v9508 = vunpack.c.l.b16 %v9234
    %v9509 = vunpack.c.h.b16 %v9234
    %v9510 = vunpack.c.l.b16 %v9235
    %v9511 = vunpack.c.h.b16 %v9235
    %v9512 = vunpack.c.l.b16 %v9236
    %v9513 = vunpack.c.h.b16 %v9236
    %v9514 = vunpack.c.l.b16 %v9237
    %v9515 = vunpack.c.h.b16 %v9237
    %v9516 = vunpack.c.l.b16 %v9238
    %v9517 = vunpack.c.h.b16 %v9238
    %v9518 = vunpack.c.l.b16 %v9239
    %v9519 = vunpack.c.h.b16 %v9239
    %v9520 = vunpack.c.l.b16 %v9240
    %v9521 = vunpack.c.h.b16 %v9240
    %v9522 = vunpack.c.l.b16 %v9241
    %v9523 = vunpack.c.h.b16 %v9241
    %v9524 = vunpack.c.l.b16 %v9242
    %v9525 = vunpack.c.h.b16 %v9242
    %v9526 = vunpack.c.l.b16 %v9243
    %v9527 = vunpack.c.h.b16 %v9243
    %v9528 = vunpack.c.l.b16 %v9244
    %v9529 = vunpack.c.h.b16 %v9244
    %v9530 = vunpack.c.l.b16 %v9245
    %v9531 = vunpack.c.h.b16 %v9245
    %v9532 = vunpack.c.l.b16 %v9246
    %v9533 = vunpack.c.h.b16 %v9246
    %v9534 = vunpack.c.l.b16 %v9247
    %v9535 = vunpack.c.h.b16 %v9247
    %v9536 = vunpack.c.l.b16 %v9248
    %v9537 = vunpack.c.h.b16 %v9248
    %v9538 = vunpack.c.l.b16 %v9249
    %v9539 = vunpack.c.h.b16 %v9249
    %v9540 = vunpack.c.l.b16 %v9250
    %v9541 = vunpack.c.h.b16 %v9250
    %v9542 = vunpack.c.l.b16 %v9251
    %v9543 = vunpack.c.h.b16 %v9251
    %v9544 = vunpack.c.l.b16 %v9252
    %v9545 = vunpack.c.h.b16 %v9252
    %v9546 = vunpack.c.l.b16 %v9253
    %v9547 = vunpack.c.h.b16 %v9253
    %v9548 = vunpack.c.l.b16 %v9254
    %v9549 = vunpack.c.h.b16 %v9254
    %v9550 = vunpack.c.l.b16 %v9255
    %v9551 = vunpack.c.h.b16 %v9255
    %v9552 = vunpack.c.l.b16 %v9256
    %v9553 = vunpack.c.h.b16 %v9256
    %v9554 = vunpack.c.l.b16 %v9257
    %v9555 = vunpack.c.h.b16 %v9257
    %v9556 = vunpack.c.l.b16 %v9258
    %v9557 = vunpack.c.h.b16 %v9258
    %v9558 = vunpack.c.l.b16 %v9259
    %v9559 = vunpack.c.h.b16 %v9259
    %v9560 = vunpack.c.l.b16 %v9260
    %v9561 = vunpack.c.h.b16 %v9260
    %v9562 = vunpack.c.l.b16 %v9261
    %v9563 = vunpack.c.h.b16 %v9261
    %v9564 = vunpack.c.l.b16 %v9262
    %v9565 = vunpack.c.h.b16 %v9262
    %v9566 = vunpack.c.l.b16 %v9263
    %v9567 = vunpack.c.h.b16 %v9263
    %v9568 = vunpack.c.l.b16 %v9264
    %v9569 = vunpack.c.h.b16 %v9264
    %v9570 = vunpack.c.l.b16 %v9265
    %v9571 = vunpack.c.h.b16 %v9265
    %v9572 = vunpack.c.l.b16 %v9266
    %v9573 = vunpack.c.h.b16 %v9266
    %v9574 = vunpack.c.l.b16 %v9267
    %v9575 = vunpack.c.h.b16 %v9267
    %v9576 = vunpack.c.l.b16 %v9268
    %v9577 = vunpack.c.h.b16 %v9268
    %v9578 = vunpack.c.l.b16 %v9269
    %v9579 = vunpack.c.h.b16 %v9269
    %v9580 = vunpack.c.l.b16 %v9270
    %v9581 = vunpack.c.h.b16 %v9270
    %v9582 = vunpack.c.l.b16 %v9271
    %v9583 = vunpack.c.h.b16 %v9271
    %v9584 = vunpack.c.l.b16 %v9272
    %v9585 = vunpack.c.h.b16 %v9272
    %v9586 = vunpack.c.l.b16 %v9273
    %v9587 = vunpack.c.h.b16 %v9273
    %v9588 = vunpack.c.l.b16 %v9274
    %v9589 = vunpack.c.h.b16 %v9274
    %v9590 = vunpack.c.l.b16 %v9275
    %v9591 = vunpack.c.h.b16 %v9275
    %v9592 = vunpack.c.l.b16 %v9276
    %v9593 = vunpack.c.h.b16 %v9276
    %v9594 = vunpack.c.l.b16 %v9277
    %v9595 = vunpack.c.h.b16 %v9277
    %v9596 = vunpack.c.l.b16 %v9278
    %v9597 = vunpack.c.h.b16 %v9278
    %v9598 = vunpack.c.l.b16 %v9279
    %v9599 = vunpack.c.h.b16 %v9279
    %v9600 = vunpack.c.l.b16 %v9280
    %v9601 = vunpack.c.h.b16 %v9280
    %v9602 = vunpack.c.l.b16 %v9281
    %v9603 = vunpack.c.h.b16 %v9281
    %v9604 = vunpack.c.l.b16 %v9282
    %v9605 = vunpack.c.h.b16 %v9282
    %v9606 = vunpack.c.l.b16 %v9283
    %v9607 = vunpack.c.h.b16 %v9283
    %v9608 = vunpack.c.l.b16 %v9284
    %v9609 = vunpack.c.h.b16 %v9284
    %v9610 = vunpack.c.l.b16 %v9285
    %v9611 = vunpack.c.h.b16 %v9285
    %v9612 = vunpack.c.l.b16 %v9286
    %v9613 = vunpack.c.h.b16 %v9286
    %v9614 = vunpack.c.l.b16 %v9287
    %v9615 = vunpack.c.h.b16 %v9287
    %v9616 = vunpack.c.l.b16 %v9288
    %v9617 = vunpack.c.h.b16 %v9288
    %v9618 = vunpack.c.l.b16 %v9289
    %v9619 = vunpack.c.h.b16 %v9289
    %v9620 = vunpack.c.l.b16 %v9290
    %v9621 = vunpack.c.h.b16 %v9290
    %v9622 = vunpack.c.l.b16 %v9291
    %v9623 = vunpack.c.h.b16 %v9291
    %v9624 = vunpack.c.l.b16 %v9292
    %v9625 = vunpack.c.h.b16 %v9292
    %v9626 = vunpack.c.l.b16 %v9293
    %v9627 = vunpack.c.h.b16 %v9293
    %v9628 = vunpack.c.l.b16 %v9294
    %v9629 = vunpack.c.h.b16 %v9294
    %v9630 = vunpack.c.l.b16 %v9295
    %v9631 = vunpack.c.h.b16 %v9295
    %v9632 = vunpack.c.l.b16 %v9296
    %v9633 = vunpack.c.h.b16 %v9296
    %v9634 = vunpack.c.l.b16 %v9297
    %v9635 = vunpack.c.h.b16 %v9297
    %v9636 = vunpack.c.l.b16 %v9298
    %v9637 = vunpack.c.h.b16 %v9298
    %v9638 = vunpack.c.l.b16 %v9299
    %v9639 = vunpack.c.h.b16 %v9299
    %v9640 = vunpack.c.l.b16 %v9300
    %v9641 = vunpack.c.h.b16 %v9300
    %v9642 = vunpack.c.l.b16 %v9301
    %v9643 = vunpack.c.h.b16 %v9301
    %v9644 = vunpack.c.l.b16 %v9302
    %v9645 = vunpack.c.h.b16 %v9302
    %v9646 = vunpack.c.l.b16 %v9303
    %v9647 = vunpack.c.h.b16 %v9303
    %v9648 = vunpack.c.l.b16 %v9304
    %v9649 = vunpack.c.h.b16 %v9304
    %v9650 = vunpack.c.l.b16 %v9305
    %v9651 = vunpack.c.h.b16 %v9305
    %v9652 = vunpack.c.l.b16 %v9306
    %v9653 = vunpack.c.h.b16 %v9306
    %v9654 = vunpack.c.l.b16 %v9307
    %v9655 = vunpack.c.h.b16 %v9307
    %v9656 = vunpack.c.l.b16 %v9308
    %v9657 = vunpack.c.h.b16 %v9308
    %v9658 = vunpack.c.l.b16 %v9309
    %v9659 = vunpack.c.h.b16 %v9309
    %v9660 = vunpack.c.l.b16 %v9310
    %v9661 = vunpack.c.h.b16 %v9310
    %v9662 = vunpack.c.l.b16 %v9311
    %v9663 = vunpack.c.h.b16 %v9311
    %v9664 = vunpack.c.l.b16 %v9312
    %v9665 = vunpack.c.h.b16 %v9312
    %v9666 = vunpack.c.l.b16 %v9313
    %v9667 = vunpack.c.h.b16 %v9313
    %v9668 = vunpack.c.l.b16 %v9314
    %v9669 = vunpack.c.h.b16 %v9314
    %v9670 = vunpack.c.l.b16 %v9315
    %v9671 = vunpack.c.h.b16 %v9315
    %v9672 = vunpack.c.l.b16 %v9316
    %v9673 = vunpack.c.h.b16 %v9316
    %v9674 = vunpack.c.l.b16 %v9317
    %v9675 = vunpack.c.h.b16 %v9317
    %v9676 = vunpack.c.l.b16 %v9318
    %v9677 = vunpack.c.h.b16 %v9318
    %v9678 = vunpack.c.l.b16 %v9319
    %v9679 = vunpack.c.h.b16 %v9319
    %v9680 = vunpack.c.l.b16 %v9320
    %v9681 = vunpack.c.h.b16 %v9320
    %v9682 = vunpack.c.l.b16 %v9321
    %v9683 = vunpack.c.h.b16 %v9321
    %v9684 = vunpack.c.l.b16 %v9322
    %v9685 = vunpack.c.h.b16 %v9322
    %v9686 = vunpack.c.l.b16 %v9323
    %v9687 = vunpack.c.h.b16 %v9323
    %v9688 = vunpack.c.l.b16 %v9324
    %v9689 = vunpack.c.h.b16 %v9324
    %v9690 = vunpack.c.l.b16 %v9325
    %v9691 = vunpack.c.h.b16 %v9325
    %v9692 = vunpack.c.l.b16 %v9326
    %v9693 = vunpack.c.h.b16 %v9326
    %v9694 = vunpack.c.l.b16 %v9327
    %v9695 = vunpack.c.h.b16 %v9327
    %v9696 = vunpack.c.l.b16 %v9328
    %v9697 = vunpack.c.h.b16 %v9328
    %v9698 = vunpack.c.l.b16 %v9329
    %v9699 = vunpack.c.h.b16 %v9329
    %v9700 = vunpack.c.l.b16 %v9330
    %v9701 = vunpack.c.h.b16 %v9330
    %v9702 = vunpack.c.l.b16 %v9331
    %v9703 = vunpack.c.h.b16 %v9331
    %v9704 = vunpack.c.l.b16 %v9332
    %v9705 = vunpack.c.h.b16 %v9332
    %v9706 = vunpack.c.l.b16 %v9333
    %v9707 = vunpack.c.h.b16 %v9333
    %v9708 = vunpack.c.l.b16 %v9334
    %v9709 = vunpack.c.h.b16 %v9334
    %v9710 = vunpack.c.l.b16 %v9335
    %v9711 = vunpack.c.h.b16 %v9335
    %v9712 = vunpack.c.l.b16 %v9336
    %v9713 = vunpack.c.h.b16 %v9336
    %v9714 = vunpack.c.l.b16 %v9337
    %v9715 = vunpack.c.h.b16 %v9337
    %v9716 = vunpack.c.l.b16 %v9338
    %v9717 = vunpack.c.h.b16 %v9338
    %v9718 = vunpack.c.l.b16 %v9339
    %v9719 = vunpack.c.h.b16 %v9339
    %v9720 = vunpack.c.l.b16 %v9340
    %v9721 = vunpack.c.h.b16 %v9340
    %v9722 = vunpack.c.l.b16 %v9341
    %v9723 = vunpack.c.h.b16 %v9341
    %v9724 = vunpack.c.l.b16 %v9342
    %v9725 = vunpack.c.h.b16 %v9342
    %v9726 = vunpack.c.l.b16 %v9343
    %v9727 = vunpack.c.h.b16 %v9343
    %v9728 = vpack.c.b16 %v9488, %v9472
    %v9729 = vpack.c.b16 %v9489, %v9473
    %v9730 = vpack.c.b16 %v9490, %v9474
    %v9731 = vpack.c.b16 %v9491, %v9475
    %v9732 = vpack.c.b16 %v9492, %v9476
    %v9733 = vpack.c.b16 %v9493, %v9477
    %v9734 = vpack.c.b16 %v9494, %v9478
    %v9735 = vpack.c.b16 %v9495, %v9479
    %v9736 = vpack.c.b16 %v9496, %v9480
    %v9737 = vpack.c.b16 %v9497, %v9481
    %v9738 = vpack.c.b16 %v9498, %v9482
    %v9739 = vpack.c.b16 %v9499, %v9483
    %v9740 = vpack.c.b16 %v9500, %v9484
    %v9741 = vpack.c.b16 %v9501, %v9485
    %v9742 = vpack.c.b16 %v9502, %v9486
    %v9743 = vpack.c.b16 %v9503, %v9487
    %v9744 = vpack.c.b16 %v9520, %v9504
    %v9745 = vpack.c.b16 %v9521, %v9505
    %v9746 = vpack.c.b16 %v9522, %v9506
    %v9747 = vpack.c.b16 %v9523, %v9507
    %v9748 = vpack.c.b16 %v9524, %v9508
    %v9749 = vpack.c.b16 %v9525, %v9509
    %v9750 = vpack.c.b16 %v9526, %v9510
    %v9751 = vpack.c.b16 %v9527, %v9511
    %v9752 = vpack.c.b16 %v9528, %v9512
    %v9753 = vpack.c.b16 %v9529, %v9513
    %v9754 = vpack.c.b16 %v9530, %v9514
    %v9755 = vpack.c.b16 %v9531, %v9515
    %v9756 = vpack.c.b16 %v9532, %v9516
    %v9757 = vpack.c.b16 %v9533, %v9517
    %v9758 = vpack.c.b16 %v9534, %v9518
    %v9759 = vpack.c.b16 %v9535, %v9519
    %v9760 = vpack.c.b16 %v9552, %v9536
    %v9761 = vpack.c.b16 %v9553, %v9537
    %v9762 = vpack.c.b16 %v9554, %v9538
    %v9763 = vpack.c.b16 %v9555, %v9539
    %v9764 = vpack.c.b16 %v9556, %v9540
    %v9765 = vpack.c.b16 %v9557, %v9541
    %v9766 = vpack.c.b16 %v9558, %v9542
    %v9767 = vpack.c.b16 %v9559, %v9543
    %v9768 = vpack.c.b16 %v9560, %v9544
    %v9769 = vpack.c.b16 %v9561, %v9545
    %v9770 = vpack.c.b16 %v9562, %v9546
    %v9771 = vpack.c.b16 %v9563, %v9547
    %v9772 = vpack.c.b16 %v9564, %v9548
    %v9773 = vpack.c.b16 %v9565, %v9549
    %v9774 = vpack.c.b16 %v9566, %v9550
    %v9775 = vpack.c.b16 %v9567, %v9551
    %v9776 = vpack.c.b16 %v9584, %v9568
    %v9777 = vpack.c.b16 %v9585, %v9569
    %v9778 = vpack.c.b16 %v9586, %v9570
    %v9779 = vpack.c.b16 %v9587, %v9571
    %v9780 = vpack.c.b16 %v9588, %v9572
    %v9781 = vpack.c.b16 %v9589, %v9573
    %v9782 = vpack.c.b16 %v9590, %v9574
    %v9783 = vpack.c.b16 %v9591, %v9575
    %v9784 = vpack.c.b16 %v9592, %v9576
    %v9785 = vpack.c.b16 %v9593, %v9577
    %v9786 = vpack.c.b16 %v9594, %v9578
    %v9787 = vpack.c.b16 %v9595, %v9579
    %v9788 = vpack.c.b16 %v9596, %v9580
    %v9789 = vpack.c.b16 %v9597, %v9581
    %v9790 = vpack.c.b16 %v9598, %v9582
    %v9791 = vpack.c.b16 %v9599, %v9583
    %v9792 = vpack.c.b16 %v9616, %v9600
    %v9793 = vpack.c.b16 %v9617, %v9601
    %v9794 = vpack.c.b16 %v9618, %v9602
    %v9795 = vpack.c.b16 %v9619, %v9603
    %v9796 = vpack.c.b16 %v9620, %v9604
    %v9797 = vpack.c.b16 %v9621, %v9605
    %v9798 = vpack.c.b16 %v9622, %v9606
    %v9799 = vpack.c.b16 %v9623, %v9607
    %v9800 = vpack.c.b16 %v9624, %v9608
    %v9801 = vpack.c.b16 %v9625, %v9609
    %v9802 = vpack.c.b16 %v9626, %v9610
    %v9803 = vpack.c.b16 %v9627, %v9611
    %v9804 = vpack.c.b16 %v9628, %v9612
    %v9805 = vpack.c.b16 %v9629, %v9613
    %v9806 = vpack.c.b16 %v9630, %v9614
    %v9807 = vpack.c.b16 %v9631, %v9615
    %v9808 = vpack.c.b16 %v9648, %v9632
    %v9809 = vpack.c.b16 %v9649, %v9633
    %v9810 = vpack.c.b16 %v9650, %v9634
    %v9811 = vpack.c.b16 %v9651, %v9635
    %v9812 = vpack.c.b16 %v9652, %v9636
    %v9813 = vpack.c.b16 %v9653, %v9637
    %v9814 = vpack.c.b16 %v9654, %v9638
    %v9815 = vpack.c.b16 %v9655, %v9639
    %v9816 = vpack.c.b16 %v9656, %v9640
    %v9817 = vpack.c.b16 %v9657, %v9641
    %v9818 = vpack.c.b16 %v9658, %v9642
    %v9819 = vpack.c.b16 %v9659, %v9643
    %v9820 = vpack.c.b16 %v9660, %v9644
    %v9821 = vpack.c.b16 %v9661, %v9645
    %v9822 = vpack.c.b16 %v9662, %v9646
    %v9823 = vpack.c.b16 %v9663, %v9647
    %v9824 = vpack.c.b16 %v9680, %v9664
    %v9825 = vpack.c.b16 %v9681, %v9665
    %v9826 = vpack.c.b16 %v9682, %v9666
    %v9827 = vpack.c.b16 %v9683, %v9667
    %v9828 = vpack.c.b16 %v9684, %v9668
    %v9829 = vpack.c.b16 %v9685, %v9669
    %v9830 = vpack.c.b16 %v9686, %v9670
    %v9831 = vpack.c.b16 %v9687, %v9671
    %v9832 = vpack.c.b16 %v9688, %v9672
    %v9833 = vpack.c.b16 %v9689, %v9673
    %v9834 = vpack.c.b16 %v9690, %v9674
    %v9835 = vpack.c.b16 %v9691, %v9675
    %v9836 = vpack.c.b16 %v9692, %v9676
    %v9837 = vpack.c.b16 %v9693, %v9677
    %v9838 = vpack.c.b16 %v9694, %v9678
    %v9839 = vpack.c.b16 %v9695, %v9679
    %v9840 = vpack.c.b16 %v9712, %v9696
    %v9841 = vpack.c.b16 %v9713, %v9697
    %v9842 = vpack.c.b16 %v9714, %v9698
    %v9843 = vpack.c.b16 %v9715, %v9699
    %v9844 = vpack.c.b16 %v9716, %v9700
    %v9845 = vpack.c.b16 %v9717, %v9701
    %v9846 = vpack.c.b16 %v9718, %v9702
    %v9847 = vpack.c.b16 %v9719, %v9703
    %v9848 = vpack.c.b16 %v9720, %v9704
    %v9849 = vpack.c.b16 %v9721, %v9705
    %v9850 = vpack.c.b16 %v9722, %v9706
    %v9851 = vpack.c.b16 %v9723, %v9707
    %v9852 = vpack.c.b16 %v9724, %v9708
    %v9853 = vpack.c.b16 %v9725, %v9709
    %v9854 = vpack.c.b16 %v9726, %v9710
    %v9855 = vpack.c.b16 %v9727, %v9711
    %9984 = vmatprep.subr.bf16.mxu0 %v9729
    %9985 = vmatpush1.bf16.msra.mxu0 %v9728
    %9986 = vmatprep.subr.bf16.mxu0 %v9745
    %9987 = vmatpush1.bf16.msra.mxu0 %v9744
    %9988 = vmatprep.subr.bf16.mxu0 %v9761
    %9989 = vmatpush1.bf16.msra.mxu0 %v9760
    %9990 = vmatprep.subr.bf16.mxu0 %v9777
    %9991 = vmatpush1.bf16.msra.mxu0 %v9776
    %9992 = vmatprep.subr.bf16.mxu0 %v9793
    %9993 = vmatpush1.bf16.msra.mxu0 %v9792
    %9994 = vmatprep.subr.bf16.mxu0 %v9809
    %9995 = vmatpush1.bf16.msra.mxu0 %v9808
    %9996 = vmatprep.subr.bf16.mxu0 %v9825
    %9997 = vmatpush1.bf16.msra.mxu0 %v9824
    %9998 = vmatprep.subr.bf16.mxu0 %v9841
    %9999 = vmatpush1.bf16.msra.mxu0 %v9840
    %10000 = vmatprep.subr.bf16.mxu0 0
    %10001 = vmatpush1.bf16.msra.mxu0 0
    %10002 = vmatprep.subr.bf16.mxu0 0
    %10003 = vmatpush1.bf16.msra.mxu0 0
    %10004 = vmatprep.subr.bf16.mxu0 0
    %10005 = vmatpush1.bf16.msra.mxu0 0
    %10006 = vmatprep.subr.bf16.mxu0 0
    %10007 = vmatpush1.bf16.msra.mxu0 0
    %10008 = vmatprep.subr.bf16.mxu0 0
    %10009 = vmatpush1.bf16.msra.mxu0 0
    %10010 = vmatprep.subr.bf16.mxu0 0
    %10011 = vmatpush1.bf16.msra.mxu0 0
    %10012 = vmatprep.subr.bf16.mxu0 0
    %10013 = vmatpush1.bf16.msra.mxu0 0
    %10014 = vmatprep.subr.bf16.mxu0 0
    %10015 = vmatpush1.bf16.msra.mxu0 0
    %10016 = vmatprep.mubr.bf16.mxu0 0
    %10017 = vmatmul.mubr.bf16.gmra.mrb[0].mxu0 %v9214
    %v10018 = vpop.f32.mrb[0].mxu0
    %v10019 = vadd.f32 0.0, %v10018
    %v10020 = vpop.f32.mrb[0].mxu0
    %v10021 = vadd.f32 0.0, %v10020
    %v10022 = vpop.f32.mrb[0].mxu0
    %v10023 = vpop.f32.mrb[0].mxu0
    %10024 = vdwg.mxu0
    %10025 = vmatprep.subr.bf16.mxu0 %v9731
    %10026 = vmatpush1.bf16.msra.mxu0 %v9730
    %10027 = vmatprep.subr.bf16.mxu0 %v9747
    %10028 = vmatpush1.bf16.msra.mxu0 %v9746
    %10029 = vmatprep.subr.bf16.mxu0 %v9763
    %10030 = vmatpush1.bf16.msra.mxu0 %v9762
    %10031 = vmatprep.subr.bf16.mxu0 %v9779
    %10032 = vmatpush1.bf16.msra.mxu0 %v9778
    %10033 = vmatprep.subr.bf16.mxu0 %v9795
    %10034 = vmatpush1.bf16.msra.mxu0 %v9794
    %10035 = vmatprep.subr.bf16.mxu0 %v9811
    %10036 = vmatpush1.bf16.msra.mxu0 %v9810
    %10037 = vmatprep.subr.bf16.mxu0 %v9827
    %10038 = vmatpush1.bf16.msra.mxu0 %v9826
    %10039 = vmatprep.subr.bf16.mxu0 %v9843
    %10040 = vmatpush1.bf16.msra.mxu0 %v9842
    %10041 = vmatprep.subr.bf16.mxu0 0
    %10042 = vmatpush1.bf16.msra.mxu0 0
    %10043 = vmatprep.subr.bf16.mxu0 0
    %10044 = vmatpush1.bf16.msra.mxu0 0
    %10045 = vmatprep.subr.bf16.mxu0 0
    %10046 = vmatpush1.bf16.msra.mxu0 0
    %10047 = vmatprep.subr.bf16.mxu0 0
    %10048 = vmatpush1.bf16.msra.mxu0 0
    %10049 = vmatprep.subr.bf16.mxu0 0
    %10050 = vmatpush1.bf16.msra.mxu0 0
    %10051 = vmatprep.subr.bf16.mxu0 0
    %10052 = vmatpush1.bf16.msra.mxu0 0
    %10053 = vmatprep.subr.bf16.mxu0 0
    %10054 = vmatpush1.bf16.msra.mxu0 0
    %10055 = vmatprep.subr.bf16.mxu0 0
    %10056 = vmatpush1.bf16.msra.mxu0 0
    %10057 = vmatprep.mubr.bf16.mxu0 0
    %10058 = vmatmul.mubr.bf16.gmra.mrb[0].mxu0 %v9214
    %v10059 = vpop.f32.mrb[0].mxu0
    %v10060 = vadd.f32 0.0, %v10059
    %v10061 = vpop.f32.mrb[0].mxu0
    %v10062 = vadd.f32 0.0, %v10061
    %v10063 = vpop.f32.mrb[0].mxu0
    %v10064 = vpop.f32.mrb[0].mxu0
    %10065 = vdwg.mxu0
    %10066 = vmatprep.subr.bf16.mxu0 %v9733
    %10067 = vmatpush1.bf16.msra.mxu0 %v9732
    %10068 = vmatprep.subr.bf16.mxu0 %v9749
    %10069 = vmatpush1.bf16.msra.mxu0 %v9748
    %10070 = vmatprep.subr.bf16.mxu0 %v9765
    %10071 = vmatpush1.bf16.msra.mxu0 %v9764
    %10072 = vmatprep.subr.bf16.mxu0 %v9781
    %10073 = vmatpush1.bf16.msra.mxu0 %v9780
    %10074 = vmatprep.subr.bf16.mxu0 %v9797
    %10075 = vmatpush1.bf16.msra.mxu0 %v9796
    %10076 = vmatprep.subr.bf16.mxu0 %v9813
    %10077 = vmatpush1.bf16.msra.mxu0 %v9812
    %10078 = vmatprep.subr.bf16.mxu0 %v9829
    %10079 = vmatpush1.bf16.msra.mxu0 %v9828
    %10080 = vmatprep.subr.bf16.mxu0 %v9845
    %10081 = vmatpush1.bf16.msra.mxu0 %v9844
    %10082 = vmatprep.subr.bf16.mxu0 0
    %10083 = vmatpush1.bf16.msra.mxu0 0
    %10084 = vmatprep.subr.bf16.mxu0 0
    %10085 = vmatpush1.bf16.msra.mxu0 0
    %10086 = vmatprep.subr.bf16.mxu0 0
    %10087 = vmatpush1.bf16.msra.mxu0 0
    %10088 = vmatprep.subr.bf16.mxu0 0
    %10089 = vmatpush1.bf16.msra.mxu0 0
    %10090 = vmatprep.subr.bf16.mxu0 0
    %10091 = vmatpush1.bf16.msra.mxu0 0
    %10092 = vmatprep.subr.bf16.mxu0 0
    %10093 = vmatpush1.bf16.msra.mxu0 0
    %10094 = vmatprep.subr.bf16.mxu0 0
    %10095 = vmatpush1.bf16.msra.mxu0 0
    %10096 = vmatprep.subr.bf16.mxu0 0
    %10097 = vmatpush1.bf16.msra.mxu0 0
    %10098 = vmatprep.mubr.bf16.mxu0 0
    %10099 = vmatmul.mubr.bf16.gmra.mrb[0].mxu0 %v9214
    %v10100 = vpop.f32.mrb[0].mxu0
    %v10101 = vadd.f32 0.0, %v10100
    %v10102 = vpop.f32.mrb[0].mxu0
    %v10103 = vadd.f32 0.0, %v10102
    %v10104 = vpop.f32.mrb[0].mxu0
    %v10105 = vpop.f32.mrb[0].mxu0
    %10106 = vdwg.mxu0
    %10107 = vmatprep.subr.bf16.mxu0 %v9735
    %10108 = vmatpush1.bf16.msra.mxu0 %v9734
    %10109 = vmatprep.subr.bf16.mxu0 %v9751
    %10110 = vmatpush1.bf16.msra.mxu0 %v9750
    %10111 = vmatprep.subr.bf16.mxu0 %v9767
    %10112 = vmatpush1.bf16.msra.mxu0 %v9766
    %10113 = vmatprep.subr.bf16.mxu0 %v9783
    %10114 = vmatpush1.bf16.msra.mxu0 %v9782
    %10115 = vmatprep.subr.bf16.mxu0 %v9799
    %10116 = vmatpush1.bf16.msra.mxu0 %v9798
    %10117 = vmatprep.subr.bf16.mxu0 %v9815
    %10118 = vmatpush1.bf16.msra.mxu0 %v9814
    %10119 = vmatprep.subr.bf16.mxu0 %v9831
    %10120 = vmatpush1.bf16.msra.mxu0 %v9830
    %10121 = vmatprep.subr.bf16.mxu0 %v9847
    %10122 = vmatpush1.bf16.msra.mxu0 %v9846
    %10123 = vmatprep.subr.bf16.mxu0 0
    %10124 = vmatpush1.bf16.msra.mxu0 0
    %10125 = vmatprep.subr.bf16.mxu0 0
    %10126 = vmatpush1.bf16.msra.mxu0 0
    %10127 = vmatprep.subr.bf16.mxu0 0
    %10128 = vmatpush1.bf16.msra.mxu0 0
    %10129 = vmatprep.subr.bf16.mxu0 0
    %10130 = vmatpush1.bf16.msra.mxu0 0
    %10131 = vmatprep.subr.bf16.mxu0 0
    %10132 = vmatpush1.bf16.msra.mxu0 0
    %10133 = vmatprep.subr.bf16.mxu0 0
    %10134 = vmatpush1.bf16.msra.mxu0 0
    %10135 = vmatprep.subr.bf16.mxu0 0
    %10136 = vmatpush1.bf16.msra.mxu0 0
    %10137 = vmatprep.subr.bf16.mxu0 0
    %10138 = vmatpush1.bf16.msra.mxu0 0
    %10139 = vmatprep.mubr.bf16.mxu0 0
    %10140 = vmatmul.mubr.bf16.gmra.mrb[0].mxu0 %v9214
    %v10141 = vpop.f32.mrb[0].mxu0
    %v10142 = vadd.f32 0.0, %v10141
    %v10143 = vpop.f32.mrb[0].mxu0
    %v10144 = vadd.f32 0.0, %v10143
    %v10145 = vpop.f32.mrb[0].mxu0
    %v10146 = vpop.f32.mrb[0].mxu0
    %10147 = vdwg.mxu0
    %10148 = vmatprep.subr.bf16.mxu0 %v9737
    %10149 = vmatpush1.bf16.msra.mxu0 %v9736
    %10150 = vmatprep.subr.bf16.mxu0 %v9753
    %10151 = vmatpush1.bf16.msra.mxu0 %v9752
    %10152 = vmatprep.subr.bf16.mxu0 %v9769
    %10153 = vmatpush1.bf16.msra.mxu0 %v9768
    %10154 = vmatprep.subr.bf16.mxu0 %v9785
    %10155 = vmatpush1.bf16.msra.mxu0 %v9784
    %10156 = vmatprep.subr.bf16.mxu0 %v9801
    %10157 = vmatpush1.bf16.msra.mxu0 %v9800
    %10158 = vmatprep.subr.bf16.mxu0 %v9817
    %10159 = vmatpush1.bf16.msra.mxu0 %v9816
    %10160 = vmatprep.subr.bf16.mxu0 %v9833
    %10161 = vmatpush1.bf16.msra.mxu0 %v9832
    %10162 = vmatprep.subr.bf16.mxu0 %v9849
    %10163 = vmatpush1.bf16.msra.mxu0 %v9848
    %10164 = vmatprep.subr.bf16.mxu0 0
    %10165 = vmatpush1.bf16.msra.mxu0 0
    %10166 = vmatprep.subr.bf16.mxu0 0
    %10167 = vmatpush1.bf16.msra.mxu0 0
    %10168 = vmatprep.subr.bf16.mxu0 0
    %10169 = vmatpush1.bf16.msra.mxu0 0
    %10170 = vmatprep.subr.bf16.mxu0 0
    %10171 = vmatpush1.bf16.msra.mxu0 0
    %10172 = vmatprep.subr.bf16.mxu0 0
    %10173 = vmatpush1.bf16.msra.mxu0 0
    %10174 = vmatprep.subr.bf16.mxu0 0
    %10175 = vmatpush1.bf16.msra.mxu0 0
    %10176 = vmatprep.subr.bf16.mxu0 0
    %10177 = vmatpush1.bf16.msra.mxu0 0
    %10178 = vmatprep.subr.bf16.mxu0 0
    %10179 = vmatpush1.bf16.msra.mxu0 0
    %10180 = vmatprep.mubr.bf16.mxu0 0
    %10181 = vmatmul.mubr.bf16.gmra.mrb[0].mxu0 %v9214
    %v10182 = vpop.f32.mrb[0].mxu0
    %v10183 = vadd.f32 0.0, %v10182
    %v10184 = vpop.f32.mrb[0].mxu0
    %v10185 = vadd.f32 0.0, %v10184
    %v10186 = vpop.f32.mrb[0].mxu0
    %v10187 = vpop.f32.mrb[0].mxu0
    %10188 = vdwg.mxu0
    %10189 = vmatprep.subr.bf16.mxu0 %v9739
    %10190 = vmatpush1.bf16.msra.mxu0 %v9738
    %10191 = vmatprep.subr.bf16.mxu0 %v9755
    %10192 = vmatpush1.bf16.msra.mxu0 %v9754
    %10193 = vmatprep.subr.bf16.mxu0 %v9771
    %10194 = vmatpush1.bf16.msra.mxu0 %v9770
    %10195 = vmatprep.subr.bf16.mxu0 %v9787
    %10196 = vmatpush1.bf16.msra.mxu0 %v9786
    %10197 = vmatprep.subr.bf16.mxu0 %v9803
    %10198 = vmatpush1.bf16.msra.mxu0 %v9802
    %10199 = vmatprep.subr.bf16.mxu0 %v9819
    %10200 = vmatpush1.bf16.msra.mxu0 %v9818
    %10201 = vmatprep.subr.bf16.mxu0 %v9835
    %10202 = vmatpush1.bf16.msra.mxu0 %v9834
    %10203 = vmatprep.subr.bf16.mxu0 %v9851
    %10204 = vmatpush1.bf16.msra.mxu0 %v9850
    %10205 = vmatprep.subr.bf16.mxu0 0
    %10206 = vmatpush1.bf16.msra.mxu0 0
    %10207 = vmatprep.subr.bf16.mxu0 0
    %10208 = vmatpush1.bf16.msra.mxu0 0
    %10209 = vmatprep.subr.bf16.mxu0 0
    %10210 = vmatpush1.bf16.msra.mxu0 0
    %10211 = vmatprep.subr.bf16.mxu0 0
    %10212 = vmatpush1.bf16.msra.mxu0 0
    %10213 = vmatprep.subr.bf16.mxu0 0
    %10214 = vmatpush1.bf16.msra.mxu0 0
    %10215 = vmatprep.subr.bf16.mxu0 0
    %10216 = vmatpush1.bf16.msra.mxu0 0
    %10217 = vmatprep.subr.bf16.mxu0 0
    %10218 = vmatpush1.bf16.msra.mxu0 0
    %10219 = vmatprep.subr.bf16.mxu0 0
    %10220 = vmatpush1.bf16.msra.mxu0 0
    %10221 = vmatprep.mubr.bf16.mxu0 0
    %10222 = vmatmul.mubr.bf16.gmra.mrb[0].mxu0 %v9214
    %v10223 = vpop.f32.mrb[0].mxu0
    %v10224 = vadd.f32 0.0, %v10223
    %v10225 = vpop.f32.mrb[0].mxu0
    %v10226 = vadd.f32 0.0, %v10225
    %v10227 = vpop.f32.mrb[0].mxu0
    %v10228 = vpop.f32.mrb[0].mxu0
    %10229 = vdwg.mxu0
    %10230 = vmatprep.subr.bf16.mxu0 %v9741
    %10231 = vmatpush1.bf16.msra.mxu0 %v9740
    %10232 = vmatprep.subr.bf16.mxu0 %v9757
    %10233 = vmatpush1.bf16.msra.mxu0 %v9756
    %10234 = vmatprep.subr.bf16.mxu0 %v9773
    %10235 = vmatpush1.bf16.msra.mxu0 %v9772
    %10236 = vmatprep.subr.bf16.mxu0 %v9789
    %10237 = vmatpush1.bf16.msra.mxu0 %v9788
    %10238 = vmatprep.subr.bf16.mxu0 %v9805
    %10239 = vmatpush1.bf16.msra.mxu0 %v9804
    %10240 = vmatprep.subr.bf16.mxu0 %v9821
    %10241 = vmatpush1.bf16.msra.mxu0 %v9820
    %10242 = vmatprep.subr.bf16.mxu0 %v9837
    %10243 = vmatpush1.bf16.msra.mxu0 %v9836
    %10244 = vmatprep.subr.bf16.mxu0 %v9853
    %10245 = vmatpush1.bf16.msra.mxu0 %v9852
    %10246 = vmatprep.subr.bf16.mxu0 0
    %10247 = vmatpush1.bf16.msra.mxu0 0
    %10248 = vmatprep.subr.bf16.mxu0 0
    %10249 = vmatpush1.bf16.msra.mxu0 0
    %10250 = vmatprep.subr.bf16.mxu0 0
    %10251 = vmatpush1.bf16.msra.mxu0 0
    %10252 = vmatprep.subr.bf16.mxu0 0
    %10253 = vmatpush1.bf16.msra.mxu0 0
    %10254 = vmatprep.subr.bf16.mxu0 0
    %10255 = vmatpush1.bf16.msra.mxu0 0
    %10256 = vmatprep.subr.bf16.mxu0 0
    %10257 = vmatpush1.bf16.msra.mxu0 0
    %10258 = vmatprep.subr.bf16.mxu0 0
    %10259 = vmatpush1.bf16.msra.mxu0 0
    %10260 = vmatprep.subr.bf16.mxu0 0
    %10261 = vmatpush1.bf16.msra.mxu0 0
    %10262 = vmatprep.mubr.bf16.mxu0 0
    %10263 = vmatmul.mubr.bf16.gmra.mrb[0].mxu0 %v9214
    %v10264 = vpop.f32.mrb[0].mxu0
    %v10265 = vadd.f32 0.0, %v10264
    %v10266 = vpop.f32.mrb[0].mxu0
    %v10267 = vadd.f32 0.0, %v10266
    %v10268 = vpop.f32.mrb[0].mxu0
    %v10269 = vpop.f32.mrb[0].mxu0
    %10270 = vdwg.mxu0
    %10271 = vmatprep.subr.bf16.mxu0 %v9743
    %10272 = vmatpush1.bf16.msra.mxu0 %v9742
    %10273 = vmatprep.subr.bf16.mxu0 %v9759
    %10274 = vmatpush1.bf16.msra.mxu0 %v9758
    %10275 = vmatprep.subr.bf16.mxu0 %v9775
    %10276 = vmatpush1.bf16.msra.mxu0 %v9774
    %10277 = vmatprep.subr.bf16.mxu0 %v9791
    %10278 = vmatpush1.bf16.msra.mxu0 %v9790
    %10279 = vmatprep.subr.bf16.mxu0 %v9807
    %10280 = vmatpush1.bf16.msra.mxu0 %v9806
    %10281 = vmatprep.subr.bf16.mxu0 %v9823
    %10282 = vmatpush1.bf16.msra.mxu0 %v9822
    %10283 = vmatprep.subr.bf16.mxu0 %v9839
    %10284 = vmatpush1.bf16.msra.mxu0 %v9838
    %10285 = vmatprep.subr.bf16.mxu0 %v9855
    %10286 = vmatpush1.bf16.msra.mxu0 %v9854
    %10287 = vmatprep.subr.bf16.mxu0 0
    %10288 = vmatpush1.bf16.msra.mxu0 0
    %10289 = vmatprep.subr.bf16.mxu0 0
    %10290 = vmatpush1.bf16.msra.mxu0 0
    %10291 = vmatprep.subr.bf16.mxu0 0
    %10292 = vmatpush1.bf16.msra.mxu0 0
    %10293 = vmatprep.subr.bf16.mxu0 0
    %10294 = vmatpush1.bf16.msra.mxu0 0
    %10295 = vmatprep.subr.bf16.mxu0 0
    %10296 = vmatpush1.bf16.msra.mxu0 0
    %10297 = vmatprep.subr.bf16.mxu0 0
    %10298 = vmatpush1.bf16.msra.mxu0 0
    %10299 = vmatprep.subr.bf16.mxu0 0
    %10300 = vmatpush1.bf16.msra.mxu0 0
    %10301 = vmatprep.subr.bf16.mxu0 0
    %10302 = vmatpush1.bf16.msra.mxu0 0
    %10303 = vmatprep.mubr.bf16.mxu0 0
    %10304 = vmatmul.mubr.bf16.gmra.mrb[0].mxu0 %v9214
    %v10305 = vpop.f32.mrb[0].mxu0
    %v10306 = vadd.f32 0.0, %v10305
    %v10307 = vpop.f32.mrb[0].mxu0
    %v10308 = vadd.f32 0.0, %v10307
    %v10309 = vpop.f32.mrb[0].mxu0
    %v10310 = vpop.f32.mrb[0].mxu0
    %10311 = vdwg.mxu0
    %v10312 = vadd.f32 %v9197, %v10019
    %v10313 = vadd.f32 %v9198, %v10021
    %v10314 = vadd.f32 %v9199, %v10060
    %v10315 = vadd.f32 %v9200, %v10062
    %v10316 = vadd.f32 %v9201, %v10101
    %v10317 = vadd.f32 %v9202, %v10103
    %v10318 = vadd.f32 %v9203, %v10142
    %v10319 = vadd.f32 %v9204, %v10144
    %v10320 = vadd.f32 %v9205, %v10183
    %v10321 = vadd.f32 %v9206, %v10185
    %v10322 = vadd.f32 %v9207, %v10224
    %v10323 = vadd.f32 %v9208, %v10226
    %v10324 = vadd.f32 %v9209, %v10265
    %v10325 = vadd.f32 %v9210, %v10267
    %v10326 = vadd.f32 %v9211, %v10306
    %v10327 = vadd.f32 %v9212, %v10308
    %v10328 = vld [vmem:[#allocation17] sm:$0xff]
    %v10329 = vld [vmem:[#allocation17 + $0x8] sm:$0xff]
    %v10332 = vlaneseq
    %v10333 = vshrl.u32 %v10332, 7
    %v10334 = vsub.s32 0, %v10333
    %v10335 = vrot.slane %v10328, %v10334
    %v10336 = vlaneseq
    %v10337 = vshrl.u32 %v10336, 7
    %v10338 = vsub.s32 1, %v10337
    %v10339 = vrot.slane %v10328, %v10338
    %v10340 = vlaneseq
    %v10341 = vshrl.u32 %v10340, 7
    %v10342 = vsub.s32 2, %v10341
    %v10343 = vrot.slane %v10328, %v10342
    %v10344 = vlaneseq
    %v10345 = vshrl.u32 %v10344, 7
    %v10346 = vsub.s32 3, %v10345
    %v10347 = vrot.slane %v10328, %v10346
    %v10348 = vlaneseq
    %v10349 = vshrl.u32 %v10348, 7
    %v10350 = vsub.s32 4, %v10349
    %v10351 = vrot.slane %v10328, %v10350
    %v10352 = vlaneseq
    %v10353 = vshrl.u32 %v10352, 7
    %v10354 = vsub.s32 5, %v10353
    %v10355 = vrot.slane %v10328, %v10354
    %v10356 = vlaneseq
    %v10357 = vshrl.u32 %v10356, 7
    %v10358 = vsub.s32 6, %v10357
    %v10359 = vrot.slane %v10328, %v10358
    %v10360 = vlaneseq
    %v10361 = vshrl.u32 %v10360, 7
    %v10362 = vsub.s32 7, %v10361
    %v10363 = vrot.slane %v10328, %v10362
    %v10364 = vlaneseq
    %v10365 = vshrl.u32 %v10364, 7
    %v10366 = vsub.s32 0, %v10365
    %v10367 = vrot.slane %v10329, %v10366
    %v10368 = vlaneseq
    %v10369 = vshrl.u32 %v10368, 7
    %v10370 = vsub.s32 1, %v10369
    %v10371 = vrot.slane %v10329, %v10370
    %v10372 = vlaneseq
    %v10373 = vshrl.u32 %v10372, 7
    %v10374 = vsub.s32 2, %v10373
    %v10375 = vrot.slane %v10329, %v10374
    %v10376 = vlaneseq
    %v10377 = vshrl.u32 %v10376, 7
    %v10378 = vsub.s32 3, %v10377
    %v10379 = vrot.slane %v10329, %v10378
    %v10380 = vlaneseq
    %v10381 = vshrl.u32 %v10380, 7
    %v10382 = vsub.s32 4, %v10381
    %v10383 = vrot.slane %v10329, %v10382
    %v10384 = vlaneseq
    %v10385 = vshrl.u32 %v10384, 7
    %v10386 = vsub.s32 5, %v10385
    %v10387 = vrot.slane %v10329, %v10386
    %v10388 = vlaneseq
    %v10389 = vshrl.u32 %v10388, 7
    %v10390 = vsub.s32 6, %v10389
    %v10391 = vrot.slane %v10329, %v10390
    %v10392 = vlaneseq
    %v10393 = vshrl.u32 %v10392, 7
    %v10394 = vsub.s32 7, %v10393
    %v10395 = vrot.slane %v10329, %v10394
    %v10412 = vadd.f32 %v10312, %v10335
    %v10413 = vadd.f32 %v10313, %v10339
    %v10414 = vadd.f32 %v10314, %v10343
    %v10415 = vadd.f32 %v10315, %v10347
    %v10416 = vadd.f32 %v10316, %v10351
    %v10417 = vadd.f32 %v10317, %v10355
    %v10418 = vadd.f32 %v10318, %v10359
    %v10419 = vadd.f32 %v10319, %v10363
    %v10420 = vadd.f32 %v10320, %v10367
    %v10421 = vadd.f32 %v10321, %v10371
    %v10422 = vadd.f32 %v10322, %v10375
    %v10423 = vadd.f32 %v10323, %v10379
    %v10424 = vadd.f32 %v10324, %v10383
    %v10425 = vadd.f32 %v10325, %v10387
    %v10426 = vadd.f32 %v10326, %v10391
    %v10427 = vadd.f32 %v10327, %v10395
    %v10428 = vmax.f32 %v10412, 0.0
    %v10429 = vmax.f32 %v10413, 0.0
    %v10430 = vmax.f32 %v10414, 0.0
    %v10431 = vmax.f32 %v10415, 0.0
    %v10432 = vmax.f32 %v10416, 0.0
    %v10433 = vmax.f32 %v10417, 0.0
    %v10434 = vmax.f32 %v10418, 0.0
    %v10435 = vmax.f32 %v10419, 0.0
    %v10436 = vmax.f32 %v10420, 0.0
    %v10437 = vmax.f32 %v10421, 0.0
    %v10438 = vmax.f32 %v10422, 0.0
    %v10439 = vmax.f32 %v10423, 0.0
    %v10440 = vmax.f32 %v10424, 0.0
    %v10441 = vmax.f32 %v10425, 0.0
    %v10442 = vmax.f32 %v10426, 0.0
    %v10443 = vmax.f32 %v10427, 0.0
    %v10444 = vpack.c.bf16 %v10428, %v10428
    %v10445 = vpack.c.bf16 %v10429, %v10429
    %v10446 = vpack.c.bf16 %v10430, %v10430
    %v10447 = vpack.c.bf16 %v10431, %v10431
    %v10448 = vpack.c.bf16 %v10432, %v10432
    %v10449 = vpack.c.bf16 %v10433, %v10433
    %v10450 = vpack.c.bf16 %v10434, %v10434
    %v10451 = vpack.c.bf16 %v10435, %v10435
    %v10452 = vpack.c.bf16 %v10436, %v10436
    %v10453 = vpack.c.bf16 %v10437, %v10437
    %v10454 = vpack.c.bf16 %v10438, %v10438
    %v10455 = vpack.c.bf16 %v10439, %v10439
    %v10456 = vpack.c.bf16 %v10440, %v10440
    %v10457 = vpack.c.bf16 %v10441, %v10441
    %v10458 = vpack.c.bf16 %v10442, %v10442
    %v10459 = vpack.c.bf16 %v10443, %v10443
    %v10460 = vld [vmem:[#allocation19] sm:$0xf]
    %v10461 = vld [vmem:[#allocation19 + $0x4] sm:$0xf]
    %v10462 = vld [vmem:[#allocation19 + $0x8] sm:$0xf]
    %v10463 = vld [vmem:[#allocation19 + $0xc] sm:$0xf]
    %v10464 = vld [vmem:[#allocation19 + $0x10] sm:$0xf]
    %v10465 = vld [vmem:[#allocation19 + $0x14] sm:$0xf]
    %v10466 = vld [vmem:[#allocation19 + $0x18] sm:$0xf]
    %v10467 = vld [vmem:[#allocation19 + $0x1c] sm:$0xf]
    %v10468 = vld [vmem:[#allocation19 + $0x20] sm:$0xf]
    %v10469 = vld [vmem:[#allocation19 + $0x24] sm:$0xf]
    %v10470 = vld [vmem:[#allocation19 + $0x28] sm:$0xf]
    %v10471 = vld [vmem:[#allocation19 + $0x2c] sm:$0xf]
    %v10472 = vld [vmem:[#allocation19 + $0x30] sm:$0xf]
    %v10473 = vld [vmem:[#allocation19 + $0x34] sm:$0xf]
    %v10474 = vld [vmem:[#allocation19 + $0x38] sm:$0xf]
    %v10475 = vld [vmem:[#allocation19 + $0x3c] sm:$0xf]
    %v10476 = vld [vmem:[#allocation19 + $0x40] sm:$0xf]
    %v10477 = vld [vmem:[#allocation19 + $0x44] sm:$0xf]
    %v10478 = vld [vmem:[#allocation19 + $0x48] sm:$0xf]
    %v10479 = vld [vmem:[#allocation19 + $0x4c] sm:$0xf]
    %v10480 = vld [vmem:[#allocation19 + $0x50] sm:$0xf]
    %v10481 = vld [vmem:[#allocation19 + $0x54] sm:$0xf]
    %v10482 = vld [vmem:[#allocation19 + $0x58] sm:$0xf]
    %v10483 = vld [vmem:[#allocation19 + $0x5c] sm:$0xf]
    %v10484 = vld [vmem:[#allocation19 + $0x60] sm:$0xf]
    %v10485 = vld [vmem:[#allocation19 + $0x64] sm:$0xf]
    %v10486 = vld [vmem:[#allocation19 + $0x68] sm:$0xf]
    %v10487 = vld [vmem:[#allocation19 + $0x6c] sm:$0xf]
    %v10488 = vld [vmem:[#allocation19 + $0x70] sm:$0xf]
    %v10489 = vld [vmem:[#allocation19 + $0x74] sm:$0xf]
    %v10490 = vld [vmem:[#allocation19 + $0x78] sm:$0xf]
    %v10491 = vld [vmem:[#allocation19 + $0x7c] sm:$0xf]
    %v10492 = vld [vmem:[#allocation19 + $0x80] sm:$0xf]
    %v10493 = vld [vmem:[#allocation19 + $0x84] sm:$0xf]
    %v10494 = vld [vmem:[#allocation19 + $0x88] sm:$0xf]
    %v10495 = vld [vmem:[#allocation19 + $0x8c] sm:$0xf]
    %v10496 = vld [vmem:[#allocation19 + $0x90] sm:$0xf]
    %v10497 = vld [vmem:[#allocation19 + $0x94] sm:$0xf]
    %v10498 = vld [vmem:[#allocation19 + $0x98] sm:$0xf]
    %v10499 = vld [vmem:[#allocation19 + $0x9c] sm:$0xf]
    %v10500 = vld [vmem:[#allocation19 + $0xa0] sm:$0xf]
    %v10501 = vld [vmem:[#allocation19 + $0xa4] sm:$0xf]
    %v10502 = vld [vmem:[#allocation19 + $0xa8] sm:$0xf]
    %v10503 = vld [vmem:[#allocation19 + $0xac] sm:$0xf]
    %v10504 = vld [vmem:[#allocation19 + $0xb0] sm:$0xf]
    %v10505 = vld [vmem:[#allocation19 + $0xb4] sm:$0xf]
    %v10506 = vld [vmem:[#allocation19 + $0xb8] sm:$0xf]
    %v10507 = vld [vmem:[#allocation19 + $0xbc] sm:$0xf]
    %v10508 = vld [vmem:[#allocation19 + $0xc0] sm:$0xf]
    %v10509 = vld [vmem:[#allocation19 + $0xc4] sm:$0xf]
    %v10510 = vld [vmem:[#allocation19 + $0xc8] sm:$0xf]
    %v10511 = vld [vmem:[#allocation19 + $0xcc] sm:$0xf]
    %v10512 = vld [vmem:[#allocation19 + $0xd0] sm:$0xf]
    %v10513 = vld [vmem:[#allocation19 + $0xd4] sm:$0xf]
    %v10514 = vld [vmem:[#allocation19 + $0xd8] sm:$0xf]
    %v10515 = vld [vmem:[#allocation19 + $0xdc] sm:$0xf]
    %v10516 = vld [vmem:[#allocation19 + $0xe0] sm:$0xf]
    %v10517 = vld [vmem:[#allocation19 + $0xe4] sm:$0xf]
    %v10518 = vld [vmem:[#allocation19 + $0xe8] sm:$0xf]
    %v10519 = vld [vmem:[#allocation19 + $0xec] sm:$0xf]
    %v10520 = vld [vmem:[#allocation19 + $0xf0] sm:$0xf]
    %v10521 = vld [vmem:[#allocation19 + $0xf4] sm:$0xf]
    %v10522 = vld [vmem:[#allocation19 + $0xf8] sm:$0xf]
    %v10523 = vld [vmem:[#allocation19 + $0xfc] sm:$0xf]
    %v10524 = vld [vmem:[#allocation19 + $0x100] sm:$0xf]
    %v10525 = vld [vmem:[#allocation19 + $0x104] sm:$0xf]
    %v10526 = vld [vmem:[#allocation19 + $0x108] sm:$0xf]
    %v10527 = vld [vmem:[#allocation19 + $0x10c] sm:$0xf]
    %v10528 = vld [vmem:[#allocation19 + $0x110] sm:$0xf]
    %v10529 = vld [vmem:[#allocation19 + $0x114] sm:$0xf]
    %v10530 = vld [vmem:[#allocation19 + $0x118] sm:$0xf]
    %v10531 = vld [vmem:[#allocation19 + $0x11c] sm:$0xf]
    %v10532 = vld [vmem:[#allocation19 + $0x120] sm:$0xf]
    %v10533 = vld [vmem:[#allocation19 + $0x124] sm:$0xf]
    %v10534 = vld [vmem:[#allocation19 + $0x128] sm:$0xf]
    %v10535 = vld [vmem:[#allocation19 + $0x12c] sm:$0xf]
    %v10536 = vld [vmem:[#allocation19 + $0x130] sm:$0xf]
    %v10537 = vld [vmem:[#allocation19 + $0x134] sm:$0xf]
    %v10538 = vld [vmem:[#allocation19 + $0x138] sm:$0xf]
    %v10539 = vld [vmem:[#allocation19 + $0x13c] sm:$0xf]
    %v10540 = vld [vmem:[#allocation19 + $0x140] sm:$0xf]
    %v10541 = vld [vmem:[#allocation19 + $0x144] sm:$0xf]
    %v10542 = vld [vmem:[#allocation19 + $0x148] sm:$0xf]
    %v10543 = vld [vmem:[#allocation19 + $0x14c] sm:$0xf]
    %v10544 = vld [vmem:[#allocation19 + $0x150] sm:$0xf]
    %v10545 = vld [vmem:[#allocation19 + $0x154] sm:$0xf]
    %v10546 = vld [vmem:[#allocation19 + $0x158] sm:$0xf]
    %v10547 = vld [vmem:[#allocation19 + $0x15c] sm:$0xf]
    %v10548 = vld [vmem:[#allocation19 + $0x160] sm:$0xf]
    %v10549 = vld [vmem:[#allocation19 + $0x164] sm:$0xf]
    %v10550 = vld [vmem:[#allocation19 + $0x168] sm:$0xf]
    %v10551 = vld [vmem:[#allocation19 + $0x16c] sm:$0xf]
    %v10552 = vld [vmem:[#allocation19 + $0x170] sm:$0xf]
    %v10553 = vld [vmem:[#allocation19 + $0x174] sm:$0xf]
    %v10554 = vld [vmem:[#allocation19 + $0x178] sm:$0xf]
    %v10555 = vld [vmem:[#allocation19 + $0x17c] sm:$0xf]
    %v10556 = vld [vmem:[#allocation19 + $0x180] sm:$0xf]
    %v10557 = vld [vmem:[#allocation19 + $0x184] sm:$0xf]
    %v10558 = vld [vmem:[#allocation19 + $0x188] sm:$0xf]
    %v10559 = vld [vmem:[#allocation19 + $0x18c] sm:$0xf]
    %v10560 = vld [vmem:[#allocation19 + $0x190] sm:$0xf]
    %v10561 = vld [vmem:[#allocation19 + $0x194] sm:$0xf]
    %v10562 = vld [vmem:[#allocation19 + $0x198] sm:$0xf]
    %v10563 = vld [vmem:[#allocation19 + $0x19c] sm:$0xf]
    %v10564 = vld [vmem:[#allocation19 + $0x1a0] sm:$0xf]
    %v10565 = vld [vmem:[#allocation19 + $0x1a4] sm:$0xf]
    %v10566 = vld [vmem:[#allocation19 + $0x1a8] sm:$0xf]
    %v10567 = vld [vmem:[#allocation19 + $0x1ac] sm:$0xf]
    %v10568 = vld [vmem:[#allocation19 + $0x1b0] sm:$0xf]
    %v10569 = vld [vmem:[#allocation19 + $0x1b4] sm:$0xf]
    %v10570 = vld [vmem:[#allocation19 + $0x1b8] sm:$0xf]
    %v10571 = vld [vmem:[#allocation19 + $0x1bc] sm:$0xf]
    %v10572 = vld [vmem:[#allocation19 + $0x1c0] sm:$0xf]
    %v10573 = vld [vmem:[#allocation19 + $0x1c4] sm:$0xf]
    %v10574 = vld [vmem:[#allocation19 + $0x1c8] sm:$0xf]
    %v10575 = vld [vmem:[#allocation19 + $0x1cc] sm:$0xf]
    %v10576 = vld [vmem:[#allocation19 + $0x1d0] sm:$0xf]
    %v10577 = vld [vmem:[#allocation19 + $0x1d4] sm:$0xf]
    %v10578 = vld [vmem:[#allocation19 + $0x1d8] sm:$0xf]
    %v10579 = vld [vmem:[#allocation19 + $0x1dc] sm:$0xf]
    %v10580 = vld [vmem:[#allocation19 + $0x1e0] sm:$0xf]
    %v10581 = vld [vmem:[#allocation19 + $0x1e4] sm:$0xf]
    %v10582 = vld [vmem:[#allocation19 + $0x1e8] sm:$0xf]
    %v10583 = vld [vmem:[#allocation19 + $0x1ec] sm:$0xf]
    %v10584 = vld [vmem:[#allocation19 + $0x1f0] sm:$0xf]
    %v10585 = vld [vmem:[#allocation19 + $0x1f4] sm:$0xf]
    %v10586 = vld [vmem:[#allocation19 + $0x1f8] sm:$0xf]
    %v10587 = vld [vmem:[#allocation19 + $0x1fc] sm:$0xf]
    %v10588 = vld [vmem:[#allocation19 + $0x200] sm:$0xf]
    %v10589 = vld [vmem:[#allocation19 + $0x204] sm:$0xf]
    %v10590 = vld [vmem:[#allocation19 + $0x208] sm:$0xf]
    %v10591 = vld [vmem:[#allocation19 + $0x20c] sm:$0xf]
    %v10592 = vld [vmem:[#allocation19 + $0x210] sm:$0xf]
    %v10593 = vld [vmem:[#allocation19 + $0x214] sm:$0xf]
    %v10594 = vld [vmem:[#allocation19 + $0x218] sm:$0xf]
    %v10595 = vld [vmem:[#allocation19 + $0x21c] sm:$0xf]
    %v10596 = vld [vmem:[#allocation19 + $0x220] sm:$0xf]
    %v10597 = vld [vmem:[#allocation19 + $0x224] sm:$0xf]
    %v10598 = vld [vmem:[#allocation19 + $0x228] sm:$0xf]
    %v10599 = vld [vmem:[#allocation19 + $0x22c] sm:$0xf]
    %v10600 = vld [vmem:[#allocation19 + $0x230] sm:$0xf]
    %v10601 = vld [vmem:[#allocation19 + $0x234] sm:$0xf]
    %v10602 = vld [vmem:[#allocation19 + $0x238] sm:$0xf]
    %v10603 = vld [vmem:[#allocation19 + $0x23c] sm:$0xf]
    %v10604 = vld [vmem:[#allocation19 + $0x240] sm:$0xf]
    %v10605 = vld [vmem:[#allocation19 + $0x244] sm:$0xf]
    %v10606 = vld [vmem:[#allocation19 + $0x248] sm:$0xf]
    %v10607 = vld [vmem:[#allocation19 + $0x24c] sm:$0xf]
    %v10608 = vld [vmem:[#allocation19 + $0x250] sm:$0xf]
    %v10609 = vld [vmem:[#allocation19 + $0x254] sm:$0xf]
    %v10610 = vld [vmem:[#allocation19 + $0x258] sm:$0xf]
    %v10611 = vld [vmem:[#allocation19 + $0x25c] sm:$0xf]
    %v10612 = vld [vmem:[#allocation19 + $0x260] sm:$0xf]
    %v10613 = vld [vmem:[#allocation19 + $0x264] sm:$0xf]
    %v10614 = vld [vmem:[#allocation19 + $0x268] sm:$0xf]
    %v10615 = vld [vmem:[#allocation19 + $0x26c] sm:$0xf]
    %v10616 = vld [vmem:[#allocation19 + $0x270] sm:$0xf]
    %v10617 = vld [vmem:[#allocation19 + $0x274] sm:$0xf]
    %v10618 = vld [vmem:[#allocation19 + $0x278] sm:$0xf]
    %v10619 = vld [vmem:[#allocation19 + $0x27c] sm:$0xf]
    %v10620 = vld [vmem:[#allocation19 + $0x280] sm:$0xf]
    %v10621 = vld [vmem:[#allocation19 + $0x284] sm:$0xf]
    %v10622 = vld [vmem:[#allocation19 + $0x288] sm:$0xf]
    %v10623 = vld [vmem:[#allocation19 + $0x28c] sm:$0xf]
    %v10624 = vld [vmem:[#allocation19 + $0x290] sm:$0xf]
    %v10625 = vld [vmem:[#allocation19 + $0x294] sm:$0xf]
    %v10626 = vld [vmem:[#allocation19 + $0x298] sm:$0xf]
    %v10627 = vld [vmem:[#allocation19 + $0x29c] sm:$0xf]
    %v10628 = vld [vmem:[#allocation19 + $0x2a0] sm:$0xf]
    %v10629 = vld [vmem:[#allocation19 + $0x2a4] sm:$0xf]
    %v10630 = vld [vmem:[#allocation19 + $0x2a8] sm:$0xf]
    %v10631 = vld [vmem:[#allocation19 + $0x2ac] sm:$0xf]
    %v10632 = vld [vmem:[#allocation19 + $0x2b0] sm:$0xf]
    %v10633 = vld [vmem:[#allocation19 + $0x2b4] sm:$0xf]
    %v10634 = vld [vmem:[#allocation19 + $0x2b8] sm:$0xf]
    %v10635 = vld [vmem:[#allocation19 + $0x2bc] sm:$0xf]
    %v10636 = vld [vmem:[#allocation19 + $0x2c0] sm:$0xf]
    %v10637 = vld [vmem:[#allocation19 + $0x2c4] sm:$0xf]
    %v10638 = vld [vmem:[#allocation19 + $0x2c8] sm:$0xf]
    %v10639 = vld [vmem:[#allocation19 + $0x2cc] sm:$0xf]
    %v10640 = vld [vmem:[#allocation19 + $0x2d0] sm:$0xf]
    %v10641 = vld [vmem:[#allocation19 + $0x2d4] sm:$0xf]
    %v10642 = vld [vmem:[#allocation19 + $0x2d8] sm:$0xf]
    %v10643 = vld [vmem:[#allocation19 + $0x2dc] sm:$0xf]
    %v10644 = vld [vmem:[#allocation19 + $0x2e0] sm:$0xf]
    %v10645 = vld [vmem:[#allocation19 + $0x2e4] sm:$0xf]
    %v10646 = vld [vmem:[#allocation19 + $0x2e8] sm:$0xf]
    %v10647 = vld [vmem:[#allocation19 + $0x2ec] sm:$0xf]
    %v10648 = vld [vmem:[#allocation19 + $0x2f0] sm:$0xf]
    %v10649 = vld [vmem:[#allocation19 + $0x2f4] sm:$0xf]
    %v10650 = vld [vmem:[#allocation19 + $0x2f8] sm:$0xf]
    %v10651 = vld [vmem:[#allocation19 + $0x2fc] sm:$0xf]
    %v10652 = vld [vmem:[#allocation19 + $0x300] sm:$0xf]
    %v10653 = vld [vmem:[#allocation19 + $0x304] sm:$0xf]
    %v10654 = vld [vmem:[#allocation19 + $0x308] sm:$0xf]
    %v10655 = vld [vmem:[#allocation19 + $0x30c] sm:$0xf]
    %v10656 = vld [vmem:[#allocation19 + $0x310] sm:$0xf]
    %v10657 = vld [vmem:[#allocation19 + $0x314] sm:$0xf]
    %v10658 = vld [vmem:[#allocation19 + $0x318] sm:$0xf]
    %v10659 = vld [vmem:[#allocation19 + $0x31c] sm:$0xf]
    %v10660 = vld [vmem:[#allocation19 + $0x320] sm:$0xf]
    %v10661 = vld [vmem:[#allocation19 + $0x324] sm:$0xf]
    %v10662 = vld [vmem:[#allocation19 + $0x328] sm:$0xf]
    %v10663 = vld [vmem:[#allocation19 + $0x32c] sm:$0xf]
    %v10664 = vld [vmem:[#allocation19 + $0x330] sm:$0xf]
    %v10665 = vld [vmem:[#allocation19 + $0x334] sm:$0xf]
    %v10666 = vld [vmem:[#allocation19 + $0x338] sm:$0xf]
    %v10667 = vld [vmem:[#allocation19 + $0x33c] sm:$0xf]
    %v10668 = vld [vmem:[#allocation19 + $0x340] sm:$0xf]
    %v10669 = vld [vmem:[#allocation19 + $0x344] sm:$0xf]
    %v10670 = vld [vmem:[#allocation19 + $0x348] sm:$0xf]
    %v10671 = vld [vmem:[#allocation19 + $0x34c] sm:$0xf]
    %v10672 = vld [vmem:[#allocation19 + $0x350] sm:$0xf]
    %v10673 = vld [vmem:[#allocation19 + $0x354] sm:$0xf]
    %v10674 = vld [vmem:[#allocation19 + $0x358] sm:$0xf]
    %v10675 = vld [vmem:[#allocation19 + $0x35c] sm:$0xf]
    %v10676 = vld [vmem:[#allocation19 + $0x360] sm:$0xf]
    %v10677 = vld [vmem:[#allocation19 + $0x364] sm:$0xf]
    %v10678 = vld [vmem:[#allocation19 + $0x368] sm:$0xf]
    %v10679 = vld [vmem:[#allocation19 + $0x36c] sm:$0xf]
    %v10680 = vld [vmem:[#allocation19 + $0x370] sm:$0xf]
    %v10681 = vld [vmem:[#allocation19 + $0x374] sm:$0xf]
    %v10682 = vld [vmem:[#allocation19 + $0x378] sm:$0xf]
    %v10683 = vld [vmem:[#allocation19 + $0x37c] sm:$0xf]
    %v10684 = vld [vmem:[#allocation19 + $0x380] sm:$0xf]
    %v10685 = vld [vmem:[#allocation19 + $0x384] sm:$0xf]
    %v10686 = vld [vmem:[#allocation19 + $0x388] sm:$0xf]
    %v10687 = vld [vmem:[#allocation19 + $0x38c] sm:$0xf]
    %v10688 = vld [vmem:[#allocation19 + $0x390] sm:$0xf]
    %v10689 = vld [vmem:[#allocation19 + $0x394] sm:$0xf]
    %v10690 = vld [vmem:[#allocation19 + $0x398] sm:$0xf]
    %v10691 = vld [vmem:[#allocation19 + $0x39c] sm:$0xf]
    %v10692 = vld [vmem:[#allocation19 + $0x3a0] sm:$0xf]
    %v10693 = vld [vmem:[#allocation19 + $0x3a4] sm:$0xf]
    %v10694 = vld [vmem:[#allocation19 + $0x3a8] sm:$0xf]
    %v10695 = vld [vmem:[#allocation19 + $0x3ac] sm:$0xf]
    %v10696 = vld [vmem:[#allocation19 + $0x3b0] sm:$0xf]
    %v10697 = vld [vmem:[#allocation19 + $0x3b4] sm:$0xf]
    %v10698 = vld [vmem:[#allocation19 + $0x3b8] sm:$0xf]
    %v10699 = vld [vmem:[#allocation19 + $0x3bc] sm:$0xf]
    %v10700 = vld [vmem:[#allocation19 + $0x3c0] sm:$0xf]
    %v10701 = vld [vmem:[#allocation19 + $0x3c4] sm:$0xf]
    %v10702 = vld [vmem:[#allocation19 + $0x3c8] sm:$0xf]
    %v10703 = vld [vmem:[#allocation19 + $0x3cc] sm:$0xf]
    %v10704 = vld [vmem:[#allocation19 + $0x3d0] sm:$0xf]
    %v10705 = vld [vmem:[#allocation19 + $0x3d4] sm:$0xf]
    %v10706 = vld [vmem:[#allocation19 + $0x3d8] sm:$0xf]
    %v10707 = vld [vmem:[#allocation19 + $0x3dc] sm:$0xf]
    %v10708 = vld [vmem:[#allocation19 + $0x3e0] sm:$0xf]
    %v10709 = vld [vmem:[#allocation19 + $0x3e4] sm:$0xf]
    %v10710 = vld [vmem:[#allocation19 + $0x3e8] sm:$0xf]
    %v10711 = vld [vmem:[#allocation19 + $0x3ec] sm:$0xf]
    %v10712 = vld [vmem:[#allocation19 + $0x3f0] sm:$0xf]
    %v10713 = vld [vmem:[#allocation19 + $0x3f4] sm:$0xf]
    %v10714 = vld [vmem:[#allocation19 + $0x3f8] sm:$0xf]
    %v10715 = vld [vmem:[#allocation19 + $0x3fc] sm:$0xf]
    %v10716 = vld [vmem:[#allocation20] sm:$0x1]
    %v10718 = vlaneseq
    %v10719 = vshrl.u32 %v10718, 7
    %v10720 = vsub.s32 0, %v10719
    %v10721 = vrot.slane %v10716, %v10720
    %v10979 = vunpack.c.l.b16 %v10460
    %v10980 = vunpack.c.l.b16 %v10461
    %v10981 = vunpack.c.l.b16 %v10462
    %v10982 = vunpack.c.l.b16 %v10463
    %v10983 = vunpack.c.l.b16 %v10464
    %v10984 = vunpack.c.l.b16 %v10465
    %v10985 = vunpack.c.l.b16 %v10466
    %v10986 = vunpack.c.l.b16 %v10467
    %v10987 = vunpack.c.l.b16 %v10468
    %v10988 = vunpack.c.l.b16 %v10469
    %v10989 = vunpack.c.l.b16 %v10470
    %v10990 = vunpack.c.l.b16 %v10471
    %v10991 = vunpack.c.l.b16 %v10472
    %v10992 = vunpack.c.l.b16 %v10473
    %v10993 = vunpack.c.l.b16 %v10474
    %v10994 = vunpack.c.l.b16 %v10475
    %v10995 = vunpack.c.l.b16 %v10476
    %v10996 = vunpack.c.l.b16 %v10477
    %v10997 = vunpack.c.l.b16 %v10478
    %v10998 = vunpack.c.l.b16 %v10479
    %v10999 = vunpack.c.l.b16 %v10480
    %v11000 = vunpack.c.l.b16 %v10481
    %v11001 = vunpack.c.l.b16 %v10482
    %v11002 = vunpack.c.l.b16 %v10483
    %v11003 = vunpack.c.l.b16 %v10484
    %v11004 = vunpack.c.l.b16 %v10485
    %v11005 = vunpack.c.l.b16 %v10486
    %v11006 = vunpack.c.l.b16 %v10487
    %v11007 = vunpack.c.l.b16 %v10488
    %v11008 = vunpack.c.l.b16 %v10489
    %v11009 = vunpack.c.l.b16 %v10490
    %v11010 = vunpack.c.l.b16 %v10491
    %v11011 = vunpack.c.l.b16 %v10492
    %v11012 = vunpack.c.l.b16 %v10493
    %v11013 = vunpack.c.l.b16 %v10494
    %v11014 = vunpack.c.l.b16 %v10495
    %v11015 = vunpack.c.l.b16 %v10496
    %v11016 = vunpack.c.l.b16 %v10497
    %v11017 = vunpack.c.l.b16 %v10498
    %v11018 = vunpack.c.l.b16 %v10499
    %v11019 = vunpack.c.l.b16 %v10500
    %v11020 = vunpack.c.l.b16 %v10501
    %v11021 = vunpack.c.l.b16 %v10502
    %v11022 = vunpack.c.l.b16 %v10503
    %v11023 = vunpack.c.l.b16 %v10504
    %v11024 = vunpack.c.l.b16 %v10505
    %v11025 = vunpack.c.l.b16 %v10506
    %v11026 = vunpack.c.l.b16 %v10507
    %v11027 = vunpack.c.l.b16 %v10508
    %v11028 = vunpack.c.l.b16 %v10509
    %v11029 = vunpack.c.l.b16 %v10510
    %v11030 = vunpack.c.l.b16 %v10511
    %v11031 = vunpack.c.l.b16 %v10512
    %v11032 = vunpack.c.l.b16 %v10513
    %v11033 = vunpack.c.l.b16 %v10514
    %v11034 = vunpack.c.l.b16 %v10515
    %v11035 = vunpack.c.l.b16 %v10516
    %v11036 = vunpack.c.l.b16 %v10517
    %v11037 = vunpack.c.l.b16 %v10518
    %v11038 = vunpack.c.l.b16 %v10519
    %v11039 = vunpack.c.l.b16 %v10520
    %v11040 = vunpack.c.l.b16 %v10521
    %v11041 = vunpack.c.l.b16 %v10522
    %v11042 = vunpack.c.l.b16 %v10523
    %v11043 = vunpack.c.l.b16 %v10524
    %v11044 = vunpack.c.l.b16 %v10525
    %v11045 = vunpack.c.l.b16 %v10526
    %v11046 = vunpack.c.l.b16 %v10527
    %v11047 = vunpack.c.l.b16 %v10528
    %v11048 = vunpack.c.l.b16 %v10529
    %v11049 = vunpack.c.l.b16 %v10530
    %v11050 = vunpack.c.l.b16 %v10531
    %v11051 = vunpack.c.l.b16 %v10532
    %v11052 = vunpack.c.l.b16 %v10533
    %v11053 = vunpack.c.l.b16 %v10534
    %v11054 = vunpack.c.l.b16 %v10535
    %v11055 = vunpack.c.l.b16 %v10536
    %v11056 = vunpack.c.l.b16 %v10537
    %v11057 = vunpack.c.l.b16 %v10538
    %v11058 = vunpack.c.l.b16 %v10539
    %v11059 = vunpack.c.l.b16 %v10540
    %v11060 = vunpack.c.l.b16 %v10541
    %v11061 = vunpack.c.l.b16 %v10542
    %v11062 = vunpack.c.l.b16 %v10543
    %v11063 = vunpack.c.l.b16 %v10544
    %v11064 = vunpack.c.l.b16 %v10545
    %v11065 = vunpack.c.l.b16 %v10546
    %v11066 = vunpack.c.l.b16 %v10547
    %v11067 = vunpack.c.l.b16 %v10548
    %v11068 = vunpack.c.l.b16 %v10549
    %v11069 = vunpack.c.l.b16 %v10550
    %v11070 = vunpack.c.l.b16 %v10551
    %v11071 = vunpack.c.l.b16 %v10552
    %v11072 = vunpack.c.l.b16 %v10553
    %v11073 = vunpack.c.l.b16 %v10554
    %v11074 = vunpack.c.l.b16 %v10555
    %v11075 = vunpack.c.l.b16 %v10556
    %v11076 = vunpack.c.l.b16 %v10557
    %v11077 = vunpack.c.l.b16 %v10558
    %v11078 = vunpack.c.l.b16 %v10559
    %v11079 = vunpack.c.l.b16 %v10560
    %v11080 = vunpack.c.l.b16 %v10561
    %v11081 = vunpack.c.l.b16 %v10562
    %v11082 = vunpack.c.l.b16 %v10563
    %v11083 = vunpack.c.l.b16 %v10564
    %v11084 = vunpack.c.l.b16 %v10565
    %v11085 = vunpack.c.l.b16 %v10566
    %v11086 = vunpack.c.l.b16 %v10567
    %v11087 = vunpack.c.l.b16 %v10568
    %v11088 = vunpack.c.l.b16 %v10569
    %v11089 = vunpack.c.l.b16 %v10570
    %v11090 = vunpack.c.l.b16 %v10571
    %v11091 = vunpack.c.l.b16 %v10572
    %v11092 = vunpack.c.l.b16 %v10573
    %v11093 = vunpack.c.l.b16 %v10574
    %v11094 = vunpack.c.l.b16 %v10575
    %v11095 = vunpack.c.l.b16 %v10576
    %v11096 = vunpack.c.l.b16 %v10577
    %v11097 = vunpack.c.l.b16 %v10578
    %v11098 = vunpack.c.l.b16 %v10579
    %v11099 = vunpack.c.l.b16 %v10580
    %v11100 = vunpack.c.l.b16 %v10581
    %v11101 = vunpack.c.l.b16 %v10582
    %v11102 = vunpack.c.l.b16 %v10583
    %v11103 = vunpack.c.l.b16 %v10584
    %v11104 = vunpack.c.l.b16 %v10585
    %v11105 = vunpack.c.l.b16 %v10586
    %v11106 = vunpack.c.l.b16 %v10587
    %v11107 = vunpack.c.l.b16 %v10588
    %v11108 = vunpack.c.l.b16 %v10589
    %v11109 = vunpack.c.l.b16 %v10590
    %v11110 = vunpack.c.l.b16 %v10591
    %v11111 = vunpack.c.l.b16 %v10592
    %v11112 = vunpack.c.l.b16 %v10593
    %v11113 = vunpack.c.l.b16 %v10594
    %v11114 = vunpack.c.l.b16 %v10595
    %v11115 = vunpack.c.l.b16 %v10596
    %v11116 = vunpack.c.l.b16 %v10597
    %v11117 = vunpack.c.l.b16 %v10598
    %v11118 = vunpack.c.l.b16 %v10599
    %v11119 = vunpack.c.l.b16 %v10600
    %v11120 = vunpack.c.l.b16 %v10601
    %v11121 = vunpack.c.l.b16 %v10602
    %v11122 = vunpack.c.l.b16 %v10603
    %v11123 = vunpack.c.l.b16 %v10604
    %v11124 = vunpack.c.l.b16 %v10605
    %v11125 = vunpack.c.l.b16 %v10606
    %v11126 = vunpack.c.l.b16 %v10607
    %v11127 = vunpack.c.l.b16 %v10608
    %v11128 = vunpack.c.l.b16 %v10609
    %v11129 = vunpack.c.l.b16 %v10610
    %v11130 = vunpack.c.l.b16 %v10611
    %v11131 = vunpack.c.l.b16 %v10612
    %v11132 = vunpack.c.l.b16 %v10613
    %v11133 = vunpack.c.l.b16 %v10614
    %v11134 = vunpack.c.l.b16 %v10615
    %v11135 = vunpack.c.l.b16 %v10616
    %v11136 = vunpack.c.l.b16 %v10617
    %v11137 = vunpack.c.l.b16 %v10618
    %v11138 = vunpack.c.l.b16 %v10619
    %v11139 = vunpack.c.l.b16 %v10620
    %v11140 = vunpack.c.l.b16 %v10621
    %v11141 = vunpack.c.l.b16 %v10622
    %v11142 = vunpack.c.l.b16 %v10623
    %v11143 = vunpack.c.l.b16 %v10624
    %v11144 = vunpack.c.l.b16 %v10625
    %v11145 = vunpack.c.l.b16 %v10626
    %v11146 = vunpack.c.l.b16 %v10627
    %v11147 = vunpack.c.l.b16 %v10628
    %v11148 = vunpack.c.l.b16 %v10629
    %v11149 = vunpack.c.l.b16 %v10630
    %v11150 = vunpack.c.l.b16 %v10631
    %v11151 = vunpack.c.l.b16 %v10632
    %v11152 = vunpack.c.l.b16 %v10633
    %v11153 = vunpack.c.l.b16 %v10634
    %v11154 = vunpack.c.l.b16 %v10635
    %v11155 = vunpack.c.l.b16 %v10636
    %v11156 = vunpack.c.l.b16 %v10637
    %v11157 = vunpack.c.l.b16 %v10638
    %v11158 = vunpack.c.l.b16 %v10639
    %v11159 = vunpack.c.l.b16 %v10640
    %v11160 = vunpack.c.l.b16 %v10641
    %v11161 = vunpack.c.l.b16 %v10642
    %v11162 = vunpack.c.l.b16 %v10643
    %v11163 = vunpack.c.l.b16 %v10644
    %v11164 = vunpack.c.l.b16 %v10645
    %v11165 = vunpack.c.l.b16 %v10646
    %v11166 = vunpack.c.l.b16 %v10647
    %v11167 = vunpack.c.l.b16 %v10648
    %v11168 = vunpack.c.l.b16 %v10649
    %v11169 = vunpack.c.l.b16 %v10650
    %v11170 = vunpack.c.l.b16 %v10651
    %v11171 = vunpack.c.l.b16 %v10652
    %v11172 = vunpack.c.l.b16 %v10653
    %v11173 = vunpack.c.l.b16 %v10654
    %v11174 = vunpack.c.l.b16 %v10655
    %v11175 = vunpack.c.l.b16 %v10656
    %v11176 = vunpack.c.l.b16 %v10657
    %v11177 = vunpack.c.l.b16 %v10658
    %v11178 = vunpack.c.l.b16 %v10659
    %v11179 = vunpack.c.l.b16 %v10660
    %v11180 = vunpack.c.l.b16 %v10661
    %v11181 = vunpack.c.l.b16 %v10662
    %v11182 = vunpack.c.l.b16 %v10663
    %v11183 = vunpack.c.l.b16 %v10664
    %v11184 = vunpack.c.l.b16 %v10665
    %v11185 = vunpack.c.l.b16 %v10666
    %v11186 = vunpack.c.l.b16 %v10667
    %v11187 = vunpack.c.l.b16 %v10668
    %v11188 = vunpack.c.l.b16 %v10669
    %v11189 = vunpack.c.l.b16 %v10670
    %v11190 = vunpack.c.l.b16 %v10671
    %v11191 = vunpack.c.l.b16 %v10672
    %v11192 = vunpack.c.l.b16 %v10673
    %v11193 = vunpack.c.l.b16 %v10674
    %v11194 = vunpack.c.l.b16 %v10675
    %v11195 = vunpack.c.l.b16 %v10676
    %v11196 = vunpack.c.l.b16 %v10677
    %v11197 = vunpack.c.l.b16 %v10678
    %v11198 = vunpack.c.l.b16 %v10679
    %v11199 = vunpack.c.l.b16 %v10680
    %v11200 = vunpack.c.l.b16 %v10681
    %v11201 = vunpack.c.l.b16 %v10682
    %v11202 = vunpack.c.l.b16 %v10683
    %v11203 = vunpack.c.l.b16 %v10684
    %v11204 = vunpack.c.l.b16 %v10685
    %v11205 = vunpack.c.l.b16 %v10686
    %v11206 = vunpack.c.l.b16 %v10687
    %v11207 = vunpack.c.l.b16 %v10688
    %v11208 = vunpack.c.l.b16 %v10689
    %v11209 = vunpack.c.l.b16 %v10690
    %v11210 = vunpack.c.l.b16 %v10691
    %v11211 = vunpack.c.l.b16 %v10692
    %v11212 = vunpack.c.l.b16 %v10693
    %v11213 = vunpack.c.l.b16 %v10694
    %v11214 = vunpack.c.l.b16 %v10695
    %v11215 = vunpack.c.l.b16 %v10696
    %v11216 = vunpack.c.l.b16 %v10697
    %v11217 = vunpack.c.l.b16 %v10698
    %v11218 = vunpack.c.l.b16 %v10699
    %v11219 = vunpack.c.l.b16 %v10700
    %v11220 = vunpack.c.l.b16 %v10701
    %v11221 = vunpack.c.l.b16 %v10702
    %v11222 = vunpack.c.l.b16 %v10703
    %v11223 = vunpack.c.l.b16 %v10704
    %v11224 = vunpack.c.l.b16 %v10705
    %v11225 = vunpack.c.l.b16 %v10706
    %v11226 = vunpack.c.l.b16 %v10707
    %v11227 = vunpack.c.l.b16 %v10708
    %v11228 = vunpack.c.l.b16 %v10709
    %v11229 = vunpack.c.l.b16 %v10710
    %v11230 = vunpack.c.l.b16 %v10711
    %v11231 = vunpack.c.l.b16 %v10712
    %v11232 = vunpack.c.l.b16 %v10713
    %v11233 = vunpack.c.l.b16 %v10714
    %v11234 = vunpack.c.l.b16 %v10715
    %v11235 = vpack.c.b16 %v10980, %v10979
    %v11236 = vpack.c.b16 %v10982, %v10981
    %v11237 = vpack.c.b16 %v10984, %v10983
    %v11238 = vpack.c.b16 %v10986, %v10985
    %v11239 = vpack.c.b16 %v10988, %v10987
    %v11240 = vpack.c.b16 %v10990, %v10989
    %v11241 = vpack.c.b16 %v10992, %v10991
    %v11242 = vpack.c.b16 %v10994, %v10993
    %v11243 = vpack.c.b16 %v10996, %v10995
    %v11244 = vpack.c.b16 %v10998, %v10997
    %v11245 = vpack.c.b16 %v11000, %v10999
    %v11246 = vpack.c.b16 %v11002, %v11001
    %v11247 = vpack.c.b16 %v11004, %v11003
    %v11248 = vpack.c.b16 %v11006, %v11005
    %v11249 = vpack.c.b16 %v11008, %v11007
    %v11250 = vpack.c.b16 %v11010, %v11009
    %v11251 = vpack.c.b16 %v11012, %v11011
    %v11252 = vpack.c.b16 %v11014, %v11013
    %v11253 = vpack.c.b16 %v11016, %v11015
    %v11254 = vpack.c.b16 %v11018, %v11017
    %v11255 = vpack.c.b16 %v11020, %v11019
    %v11256 = vpack.c.b16 %v11022, %v11021
    %v11257 = vpack.c.b16 %v11024, %v11023
    %v11258 = vpack.c.b16 %v11026, %v11025
    %v11259 = vpack.c.b16 %v11028, %v11027
    %v11260 = vpack.c.b16 %v11030, %v11029
    %v11261 = vpack.c.b16 %v11032, %v11031
    %v11262 = vpack.c.b16 %v11034, %v11033
    %v11263 = vpack.c.b16 %v11036, %v11035
    %v11264 = vpack.c.b16 %v11038, %v11037
    %v11265 = vpack.c.b16 %v11040, %v11039
    %v11266 = vpack.c.b16 %v11042, %v11041
    %v11267 = vpack.c.b16 %v11044, %v11043
    %v11268 = vpack.c.b16 %v11046, %v11045
    %v11269 = vpack.c.b16 %v11048, %v11047
    %v11270 = vpack.c.b16 %v11050, %v11049
    %v11271 = vpack.c.b16 %v11052, %v11051
    %v11272 = vpack.c.b16 %v11054, %v11053
    %v11273 = vpack.c.b16 %v11056, %v11055
    %v11274 = vpack.c.b16 %v11058, %v11057
    %v11275 = vpack.c.b16 %v11060, %v11059
    %v11276 = vpack.c.b16 %v11062, %v11061
    %v11277 = vpack.c.b16 %v11064, %v11063
    %v11278 = vpack.c.b16 %v11066, %v11065
    %v11279 = vpack.c.b16 %v11068, %v11067
    %v11280 = vpack.c.b16 %v11070, %v11069
    %v11281 = vpack.c.b16 %v11072, %v11071
    %v11282 = vpack.c.b16 %v11074, %v11073
    %v11283 = vpack.c.b16 %v11076, %v11075
    %v11284 = vpack.c.b16 %v11078, %v11077
    %v11285 = vpack.c.b16 %v11080, %v11079
    %v11286 = vpack.c.b16 %v11082, %v11081
    %v11287 = vpack.c.b16 %v11084, %v11083
    %v11288 = vpack.c.b16 %v11086, %v11085
    %v11289 = vpack.c.b16 %v11088, %v11087
    %v11290 = vpack.c.b16 %v11090, %v11089
    %v11291 = vpack.c.b16 %v11092, %v11091
    %v11292 = vpack.c.b16 %v11094, %v11093
    %v11293 = vpack.c.b16 %v11096, %v11095
    %v11294 = vpack.c.b16 %v11098, %v11097
    %v11295 = vpack.c.b16 %v11100, %v11099
    %v11296 = vpack.c.b16 %v11102, %v11101
    %v11297 = vpack.c.b16 %v11104, %v11103
    %v11298 = vpack.c.b16 %v11106, %v11105
    %v11299 = vpack.c.b16 %v11108, %v11107
    %v11300 = vpack.c.b16 %v11110, %v11109
    %v11301 = vpack.c.b16 %v11112, %v11111
    %v11302 = vpack.c.b16 %v11114, %v11113
    %v11303 = vpack.c.b16 %v11116, %v11115
    %v11304 = vpack.c.b16 %v11118, %v11117
    %v11305 = vpack.c.b16 %v11120, %v11119
    %v11306 = vpack.c.b16 %v11122, %v11121
    %v11307 = vpack.c.b16 %v11124, %v11123
    %v11308 = vpack.c.b16 %v11126, %v11125
    %v11309 = vpack.c.b16 %v11128, %v11127
    %v11310 = vpack.c.b16 %v11130, %v11129
    %v11311 = vpack.c.b16 %v11132, %v11131
    %v11312 = vpack.c.b16 %v11134, %v11133
    %v11313 = vpack.c.b16 %v11136, %v11135
    %v11314 = vpack.c.b16 %v11138, %v11137
    %v11315 = vpack.c.b16 %v11140, %v11139
    %v11316 = vpack.c.b16 %v11142, %v11141
    %v11317 = vpack.c.b16 %v11144, %v11143
    %v11318 = vpack.c.b16 %v11146, %v11145
    %v11319 = vpack.c.b16 %v11148, %v11147
    %v11320 = vpack.c.b16 %v11150, %v11149
    %v11321 = vpack.c.b16 %v11152, %v11151
    %v11322 = vpack.c.b16 %v11154, %v11153
    %v11323 = vpack.c.b16 %v11156, %v11155
    %v11324 = vpack.c.b16 %v11158, %v11157
    %v11325 = vpack.c.b16 %v11160, %v11159
    %v11326 = vpack.c.b16 %v11162, %v11161
    %v11327 = vpack.c.b16 %v11164, %v11163
    %v11328 = vpack.c.b16 %v11166, %v11165
    %v11329 = vpack.c.b16 %v11168, %v11167
    %v11330 = vpack.c.b16 %v11170, %v11169
    %v11331 = vpack.c.b16 %v11172, %v11171
    %v11332 = vpack.c.b16 %v11174, %v11173
    %v11333 = vpack.c.b16 %v11176, %v11175
    %v11334 = vpack.c.b16 %v11178, %v11177
    %v11335 = vpack.c.b16 %v11180, %v11179
    %v11336 = vpack.c.b16 %v11182, %v11181
    %v11337 = vpack.c.b16 %v11184, %v11183
    %v11338 = vpack.c.b16 %v11186, %v11185
    %v11339 = vpack.c.b16 %v11188, %v11187
    %v11340 = vpack.c.b16 %v11190, %v11189
    %v11341 = vpack.c.b16 %v11192, %v11191
    %v11342 = vpack.c.b16 %v11194, %v11193
    %v11343 = vpack.c.b16 %v11196, %v11195
    %v11344 = vpack.c.b16 %v11198, %v11197
    %v11345 = vpack.c.b16 %v11200, %v11199
    %v11346 = vpack.c.b16 %v11202, %v11201
    %v11347 = vpack.c.b16 %v11204, %v11203
    %v11348 = vpack.c.b16 %v11206, %v11205
    %v11349 = vpack.c.b16 %v11208, %v11207
    %v11350 = vpack.c.b16 %v11210, %v11209
    %v11351 = vpack.c.b16 %v11212, %v11211
    %v11352 = vpack.c.b16 %v11214, %v11213
    %v11353 = vpack.c.b16 %v11216, %v11215
    %v11354 = vpack.c.b16 %v11218, %v11217
    %v11355 = vpack.c.b16 %v11220, %v11219
    %v11356 = vpack.c.b16 %v11222, %v11221
    %v11357 = vpack.c.b16 %v11224, %v11223
    %v11358 = vpack.c.b16 %v11226, %v11225
    %v11359 = vpack.c.b16 %v11228, %v11227
    %v11360 = vpack.c.b16 %v11230, %v11229
    %v11361 = vpack.c.b16 %v11232, %v11231
    %v11362 = vpack.c.b16 %v11234, %v11233
    %11491 = vmatprep.subr.bf16.mxu0 0
    %11492 = vmatpush1.bf16.msra.mxu0 %v11235
    %11493 = vmatprep.subr.bf16.mxu0 0
    %11494 = vmatpush1.bf16.msra.mxu0 %v11236
    %11495 = vmatprep.subr.bf16.mxu0 0
    %11496 = vmatpush1.bf16.msra.mxu0 %v11237
    %11497 = vmatprep.subr.bf16.mxu0 0
    %11498 = vmatpush1.bf16.msra.mxu0 %v11238
    %11499 = vmatprep.subr.bf16.mxu0 0
    %11500 = vmatpush1.bf16.msra.mxu0 %v11239
    %11501 = vmatprep.subr.bf16.mxu0 0
    %11502 = vmatpush1.bf16.msra.mxu0 %v11240
    %11503 = vmatprep.subr.bf16.mxu0 0
    %11504 = vmatpush1.bf16.msra.mxu0 %v11241
    %11505 = vmatprep.subr.bf16.mxu0 0
    %11506 = vmatpush1.bf16.msra.mxu0 %v11242
    %11507 = vmatprep.subr.bf16.mxu0 0
    %11508 = vmatpush1.bf16.msra.mxu0 %v11243
    %11509 = vmatprep.subr.bf16.mxu0 0
    %11510 = vmatpush1.bf16.msra.mxu0 %v11244
    %11511 = vmatprep.subr.bf16.mxu0 0
    %11512 = vmatpush1.bf16.msra.mxu0 %v11245
    %11513 = vmatprep.subr.bf16.mxu0 0
    %11514 = vmatpush1.bf16.msra.mxu0 %v11246
    %11515 = vmatprep.subr.bf16.mxu0 0
    %11516 = vmatpush1.bf16.msra.mxu0 %v11247
    %11517 = vmatprep.subr.bf16.mxu0 0
    %11518 = vmatpush1.bf16.msra.mxu0 %v11248
    %11519 = vmatprep.subr.bf16.mxu0 0
    %11520 = vmatpush1.bf16.msra.mxu0 %v11249
    %11521 = vmatprep.subr.bf16.mxu0 0
    %11522 = vmatpush1.bf16.msra.mxu0 %v11250
    %11523 = vmatprep.mubr.bf16.mxu0 %v10445
    %11524 = vmatmul.mubr.bf16.gmra.mrb[0].mxu0 %v10444
    %v11525 = vpop.f32.mrb[0].mxu0
    %v11526 = vadd.f32 %v10721, %v11525
    %v11527 = vpop.f32.mrb[0].mxu0
    %v11528 = vpop.f32.mrb[0].mxu0
    %v11529 = vpop.f32.mrb[0].mxu0
    %11530 = vdwg.mxu0
    %11531 = vmatprep.subr.bf16.mxu0 0
    %11532 = vmatpush1.bf16.msra.mxu0 %v11251
    %11533 = vmatprep.subr.bf16.mxu0 0
    %11534 = vmatpush1.bf16.msra.mxu0 %v11252
    %11535 = vmatprep.subr.bf16.mxu0 0
    %11536 = vmatpush1.bf16.msra.mxu0 %v11253
    %11537 = vmatprep.subr.bf16.mxu0 0
    %11538 = vmatpush1.bf16.msra.mxu0 %v11254
    %11539 = vmatprep.subr.bf16.mxu0 0
    %11540 = vmatpush1.bf16.msra.mxu0 %v11255
    %11541 = vmatprep.subr.bf16.mxu0 0
    %11542 = vmatpush1.bf16.msra.mxu0 %v11256
    %11543 = vmatprep.subr.bf16.mxu0 0
    %11544 = vmatpush1.bf16.msra.mxu0 %v11257
    %11545 = vmatprep.subr.bf16.mxu0 0
    %11546 = vmatpush1.bf16.msra.mxu0 %v11258
    %11547 = vmatprep.subr.bf16.mxu0 0
    %11548 = vmatpush1.bf16.msra.mxu0 %v11259
    %11549 = vmatprep.subr.bf16.mxu0 0
    %11550 = vmatpush1.bf16.msra.mxu0 %v11260
    %11551 = vmatprep.subr.bf16.mxu0 0
    %11552 = vmatpush1.bf16.msra.mxu0 %v11261
    %11553 = vmatprep.subr.bf16.mxu0 0
    %11554 = vmatpush1.bf16.msra.mxu0 %v11262
    %11555 = vmatprep.subr.bf16.mxu0 0
    %11556 = vmatpush1.bf16.msra.mxu0 %v11263
    %11557 = vmatprep.subr.bf16.mxu0 0
    %11558 = vmatpush1.bf16.msra.mxu0 %v11264
    %11559 = vmatprep.subr.bf16.mxu0 0
    %11560 = vmatpush1.bf16.msra.mxu0 %v11265
    %11561 = vmatprep.subr.bf16.mxu0 0
    %11562 = vmatpush1.bf16.msra.mxu0 %v11266
    %11563 = vmatprep.mubr.bf16.mxu0 %v10447
    %11564 = vmatmul.mubr.bf16.gmra.mrb[0].mxu0 %v10446
    %v11565 = vpop.f32.mrb[0].mxu0
    %v11566 = vadd.f32 %v11526, %v11565
    %v11567 = vpop.f32.mrb[0].mxu0
    %v11568 = vpop.f32.mrb[0].mxu0
    %v11569 = vpop.f32.mrb[0].mxu0
    %11570 = vdwg.mxu0
    %11571 = vmatprep.subr.bf16.mxu0 0
    %11572 = vmatpush1.bf16.msra.mxu0 %v11267
    %11573 = vmatprep.subr.bf16.mxu0 0
    %11574 = vmatpush1.bf16.msra.mxu0 %v11268
    %11575 = vmatprep.subr.bf16.mxu0 0
    %11576 = vmatpush1.bf16.msra.mxu0 %v11269
    %11577 = vmatprep.subr.bf16.mxu0 0
    %11578 = vmatpush1.bf16.msra.mxu0 %v11270
    %11579 = vmatprep.subr.bf16.mxu0 0
    %11580 = vmatpush1.bf16.msra.mxu0 %v11271
    %11581 = vmatprep.subr.bf16.mxu0 0
    %11582 = vmatpush1.bf16.msra.mxu0 %v11272
    %11583 = vmatprep.subr.bf16.mxu0 0
    %11584 = vmatpush1.bf16.msra.mxu0 %v11273
    %11585 = vmatprep.subr.bf16.mxu0 0
    %11586 = vmatpush1.bf16.msra.mxu0 %v11274
    %11587 = vmatprep.subr.bf16.mxu0 0
    %11588 = vmatpush1.bf16.msra.mxu0 %v11275
    %11589 = vmatprep.subr.bf16.mxu0 0
    %11590 = vmatpush1.bf16.msra.mxu0 %v11276
    %11591 = vmatprep.subr.bf16.mxu0 0
    %11592 = vmatpush1.bf16.msra.mxu0 %v11277
    %11593 = vmatprep.subr.bf16.mxu0 0
    %11594 = vmatpush1.bf16.msra.mxu0 %v11278
    %11595 = vmatprep.subr.bf16.mxu0 0
    %11596 = vmatpush1.bf16.msra.mxu0 %v11279
    %11597 = vmatprep.subr.bf16.mxu0 0
    %11598 = vmatpush1.bf16.msra.mxu0 %v11280
    %11599 = vmatprep.subr.bf16.mxu0 0
    %11600 = vmatpush1.bf16.msra.mxu0 %v11281
    %11601 = vmatprep.subr.bf16.mxu0 0
    %11602 = vmatpush1.bf16.msra.mxu0 %v11282
    %11603 = vmatprep.mubr.bf16.mxu0 %v10449
    %11604 = vmatmul.mubr.bf16.gmra.mrb[0].mxu0 %v10448
    %v11605 = vpop.f32.mrb[0].mxu0
    %v11606 = vadd.f32 %v11566, %v11605
    %v11607 = vpop.f32.mrb[0].mxu0
    %v11608 = vpop.f32.mrb[0].mxu0
    %v11609 = vpop.f32.mrb[0].mxu0
    %11610 = vdwg.mxu0
    %11611 = vmatprep.subr.bf16.mxu0 0
    %11612 = vmatpush1.bf16.msra.mxu0 %v11283
    %11613 = vmatprep.subr.bf16.mxu0 0
    %11614 = vmatpush1.bf16.msra.mxu0 %v11284
    %11615 = vmatprep.subr.bf16.mxu0 0
    %11616 = vmatpush1.bf16.msra.mxu0 %v11285
    %11617 = vmatprep.subr.bf16.mxu0 0
    %11618 = vmatpush1.bf16.msra.mxu0 %v11286
    %11619 = vmatprep.subr.bf16.mxu0 0
    %11620 = vmatpush1.bf16.msra.mxu0 %v11287
    %11621 = vmatprep.subr.bf16.mxu0 0
    %11622 = vmatpush1.bf16.msra.mxu0 %v11288
    %11623 = vmatprep.subr.bf16.mxu0 0
    %11624 = vmatpush1.bf16.msra.mxu0 %v11289
    %11625 = vmatprep.subr.bf16.mxu0 0
    %11626 = vmatpush1.bf16.msra.mxu0 %v11290
    %11627 = vmatprep.subr.bf16.mxu0 0
    %11628 = vmatpush1.bf16.msra.mxu0 %v11291
    %11629 = vmatprep.subr.bf16.mxu0 0
    %11630 = vmatpush1.bf16.msra.mxu0 %v11292
    %11631 = vmatprep.subr.bf16.mxu0 0
    %11632 = vmatpush1.bf16.msra.mxu0 %v11293
    %11633 = vmatprep.subr.bf16.mxu0 0
    %11634 = vmatpush1.bf16.msra.mxu0 %v11294
    %11635 = vmatprep.subr.bf16.mxu0 0
    %11636 = vmatpush1.bf16.msra.mxu0 %v11295
    %11637 = vmatprep.subr.bf16.mxu0 0
    %11638 = vmatpush1.bf16.msra.mxu0 %v11296
    %11639 = vmatprep.subr.bf16.mxu0 0
    %11640 = vmatpush1.bf16.msra.mxu0 %v11297
    %11641 = vmatprep.subr.bf16.mxu0 0
    %11642 = vmatpush1.bf16.msra.mxu0 %v11298
    %11643 = vmatprep.mubr.bf16.mxu0 %v10451
    %11644 = vmatmul.mubr.bf16.gmra.mrb[0].mxu0 %v10450
    %v11645 = vpop.f32.mrb[0].mxu0
    %v11646 = vadd.f32 %v11606, %v11645
    %v11647 = vpop.f32.mrb[0].mxu0
    %v11648 = vpop.f32.mrb[0].mxu0
    %v11649 = vpop.f32.mrb[0].mxu0
    %11650 = vdwg.mxu0
    %11651 = vmatprep.subr.bf16.mxu0 0
    %11652 = vmatpush1.bf16.msra.mxu0 %v11299
    %11653 = vmatprep.subr.bf16.mxu0 0
    %11654 = vmatpush1.bf16.msra.mxu0 %v11300
    %11655 = vmatprep.subr.bf16.mxu0 0
    %11656 = vmatpush1.bf16.msra.mxu0 %v11301
    %11657 = vmatprep.subr.bf16.mxu0 0
    %11658 = vmatpush1.bf16.msra.mxu0 %v11302
    %11659 = vmatprep.subr.bf16.mxu0 0
    %11660 = vmatpush1.bf16.msra.mxu0 %v11303
    %11661 = vmatprep.subr.bf16.mxu0 0
    %11662 = vmatpush1.bf16.msra.mxu0 %v11304
    %11663 = vmatprep.subr.bf16.mxu0 0
    %11664 = vmatpush1.bf16.msra.mxu0 %v11305
    %11665 = vmatprep.subr.bf16.mxu0 0
    %11666 = vmatpush1.bf16.msra.mxu0 %v11306
    %11667 = vmatprep.subr.bf16.mxu0 0
    %11668 = vmatpush1.bf16.msra.mxu0 %v11307
    %11669 = vmatprep.subr.bf16.mxu0 0
    %11670 = vmatpush1.bf16.msra.mxu0 %v11308
    %11671 = vmatprep.subr.bf16.mxu0 0
    %11672 = vmatpush1.bf16.msra.mxu0 %v11309
    %11673 = vmatprep.subr.bf16.mxu0 0
    %11674 = vmatpush1.bf16.msra.mxu0 %v11310
    %11675 = vmatprep.subr.bf16.mxu0 0
    %11676 = vmatpush1.bf16.msra.mxu0 %v11311
    %11677 = vmatprep.subr.bf16.mxu0 0
    %11678 = vmatpush1.bf16.msra.mxu0 %v11312
    %11679 = vmatprep.subr.bf16.mxu0 0
    %11680 = vmatpush1.bf16.msra.mxu0 %v11313
    %11681 = vmatprep.subr.bf16.mxu0 0
    %11682 = vmatpush1.bf16.msra.mxu0 %v11314
    %11683 = vmatprep.mubr.bf16.mxu0 %v10453
    %11684 = vmatmul.mubr.bf16.gmra.mrb[0].mxu0 %v10452
    %v11685 = vpop.f32.mrb[0].mxu0
    %v11686 = vadd.f32 %v11646, %v11685
    %v11687 = vpop.f32.mrb[0].mxu0
    %v11688 = vpop.f32.mrb[0].mxu0
    %v11689 = vpop.f32.mrb[0].mxu0
    %11690 = vdwg.mxu0
    %11691 = vmatprep.subr.bf16.mxu0 0
    %11692 = vmatpush1.bf16.msra.mxu0 %v11315
    %11693 = vmatprep.subr.bf16.mxu0 0
    %11694 = vmatpush1.bf16.msra.mxu0 %v11316
    %11695 = vmatprep.subr.bf16.mxu0 0
    %11696 = vmatpush1.bf16.msra.mxu0 %v11317
    %11697 = vmatprep.subr.bf16.mxu0 0
    %11698 = vmatpush1.bf16.msra.mxu0 %v11318
    %11699 = vmatprep.subr.bf16.mxu0 0
    %11700 = vmatpush1.bf16.msra.mxu0 %v11319
    %11701 = vmatprep.subr.bf16.mxu0 0
    %11702 = vmatpush1.bf16.msra.mxu0 %v11320
    %11703 = vmatprep.subr.bf16.mxu0 0
    %11704 = vmatpush1.bf16.msra.mxu0 %v11321
    %11705 = vmatprep.subr.bf16.mxu0 0
    %11706 = vmatpush1.bf16.msra.mxu0 %v11322
    %11707 = vmatprep.subr.bf16.mxu0 0
    %11708 = vmatpush1.bf16.msra.mxu0 %v11323
    %11709 = vmatprep.subr.bf16.mxu0 0
    %11710 = vmatpush1.bf16.msra.mxu0 %v11324
    %11711 = vmatprep.subr.bf16.mxu0 0
    %11712 = vmatpush1.bf16.msra.mxu0 %v11325
    %11713 = vmatprep.subr.bf16.mxu0 0
    %11714 = vmatpush1.bf16.msra.mxu0 %v11326
    %11715 = vmatprep.subr.bf16.mxu0 0
    %11716 = vmatpush1.bf16.msra.mxu0 %v11327
    %11717 = vmatprep.subr.bf16.mxu0 0
    %11718 = vmatpush1.bf16.msra.mxu0 %v11328
    %11719 = vmatprep.subr.bf16.mxu0 0
    %11720 = vmatpush1.bf16.msra.mxu0 %v11329
    %11721 = vmatprep.subr.bf16.mxu0 0
    %11722 = vmatpush1.bf16.msra.mxu0 %v11330
    %11723 = vmatprep.mubr.bf16.mxu0 %v10455
    %11724 = vmatmul.mubr.bf16.gmra.mrb[0].mxu0 %v10454
    %v11725 = vpop.f32.mrb[0].mxu0
    %v11726 = vadd.f32 %v11686, %v11725
    %v11727 = vpop.f32.mrb[0].mxu0
    %v11728 = vpop.f32.mrb[0].mxu0
    %v11729 = vpop.f32.mrb[0].mxu0
    %11730 = vdwg.mxu0
    %11731 = vmatprep.subr.bf16.mxu0 0
    %11732 = vmatpush1.bf16.msra.mxu0 %v11331
    %11733 = vmatprep.subr.bf16.mxu0 0
    %11734 = vmatpush1.bf16.msra.mxu0 %v11332
    %11735 = vmatprep.subr.bf16.mxu0 0
    %11736 = vmatpush1.bf16.msra.mxu0 %v11333
    %11737 = vmatprep.subr.bf16.mxu0 0
    %11738 = vmatpush1.bf16.msra.mxu0 %v11334
    %11739 = vmatprep.subr.bf16.mxu0 0
    %11740 = vmatpush1.bf16.msra.mxu0 %v11335
    %11741 = vmatprep.subr.bf16.mxu0 0
    %11742 = vmatpush1.bf16.msra.mxu0 %v11336
    %11743 = vmatprep.subr.bf16.mxu0 0
    %11744 = vmatpush1.bf16.msra.mxu0 %v11337
    %11745 = vmatprep.subr.bf16.mxu0 0
    %11746 = vmatpush1.bf16.msra.mxu0 %v11338
    %11747 = vmatprep.subr.bf16.mxu0 0
    %11748 = vmatpush1.bf16.msra.mxu0 %v11339
    %11749 = vmatprep.subr.bf16.mxu0 0
    %11750 = vmatpush1.bf16.msra.mxu0 %v11340
    %11751 = vmatprep.subr.bf16.mxu0 0
    %11752 = vmatpush1.bf16.msra.mxu0 %v11341
    %11753 = vmatprep.subr.bf16.mxu0 0
    %11754 = vmatpush1.bf16.msra.mxu0 %v11342
    %11755 = vmatprep.subr.bf16.mxu0 0
    %11756 = vmatpush1.bf16.msra.mxu0 %v11343
    %11757 = vmatprep.subr.bf16.mxu0 0
    %11758 = vmatpush1.bf16.msra.mxu0 %v11344
    %11759 = vmatprep.subr.bf16.mxu0 0
    %11760 = vmatpush1.bf16.msra.mxu0 %v11345
    %11761 = vmatprep.subr.bf16.mxu0 0
    %11762 = vmatpush1.bf16.msra.mxu0 %v11346
    %11763 = vmatprep.mubr.bf16.mxu0 %v10457
    %11764 = vmatmul.mubr.bf16.gmra.mrb[0].mxu0 %v10456
    %v11765 = vpop.f32.mrb[0].mxu0
    %v11766 = vadd.f32 %v11726, %v11765
    %v11767 = vpop.f32.mrb[0].mxu0
    %v11768 = vpop.f32.mrb[0].mxu0
    %v11769 = vpop.f32.mrb[0].mxu0
    %11770 = vdwg.mxu0
    %11771 = vmatprep.subr.bf16.mxu0 0
    %11772 = vmatpush1.bf16.msra.mxu0 %v11347
    %11773 = vmatprep.subr.bf16.mxu0 0
    %11774 = vmatpush1.bf16.msra.mxu0 %v11348
    %11775 = vmatprep.subr.bf16.mxu0 0
    %11776 = vmatpush1.bf16.msra.mxu0 %v11349
    %11777 = vmatprep.subr.bf16.mxu0 0
    %11778 = vmatpush1.bf16.msra.mxu0 %v11350
    %11779 = vmatprep.subr.bf16.mxu0 0
    %11780 = vmatpush1.bf16.msra.mxu0 %v11351
    %11781 = vmatprep.subr.bf16.mxu0 0
    %11782 = vmatpush1.bf16.msra.mxu0 %v11352
    %11783 = vmatprep.subr.bf16.mxu0 0
    %11784 = vmatpush1.bf16.msra.mxu0 %v11353
    %11785 = vmatprep.subr.bf16.mxu0 0
    %11786 = vmatpush1.bf16.msra.mxu0 %v11354
    %11787 = vmatprep.subr.bf16.mxu0 0
    %11788 = vmatpush1.bf16.msra.mxu0 %v11355
    %11789 = vmatprep.subr.bf16.mxu0 0
    %11790 = vmatpush1.bf16.msra.mxu0 %v11356
    %11791 = vmatprep.subr.bf16.mxu0 0
    %11792 = vmatpush1.bf16.msra.mxu0 %v11357
    %11793 = vmatprep.subr.bf16.mxu0 0
    %11794 = vmatpush1.bf16.msra.mxu0 %v11358
    %11795 = vmatprep.subr.bf16.mxu0 0
    %11796 = vmatpush1.bf16.msra.mxu0 %v11359
    %11797 = vmatprep.subr.bf16.mxu0 0
    %11798 = vmatpush1.bf16.msra.mxu0 %v11360
    %11799 = vmatprep.subr.bf16.mxu0 0
    %11800 = vmatpush1.bf16.msra.mxu0 %v11361
    %11801 = vmatprep.subr.bf16.mxu0 0
    %11802 = vmatpush1.bf16.msra.mxu0 %v11362
    %11803 = vmatprep.mubr.bf16.mxu0 %v10459
    %11804 = vmatmul.mubr.bf16.gmra.mrb[0].mxu0 %v10458
    %v11805 = vpop.f32.mrb[0].mxu0
    %v11806 = vadd.f32 %v11766, %v11805
    %v11807 = vpop.f32.mrb[0].mxu0
    %v11808 = vpop.f32.mrb[0].mxu0
    %v11809 = vpop.f32.mrb[0].mxu0
    %11810 = vdwg.mxu0
    %v11811 = vsel %vm880, %v11806, -inf
    %11812 = vmax.xlane.f32.xlu0 %v11811
    %v11813 = vpop.xlane.xlu0 %11812
    %v11814 = vsub.f32 %v11806, %v11813
    %v11815 = vmul.f32 %v11814, 1.442695
    %v11816 = vpow.pop %v11815
    %v11817 = vsel %vm880, %v11816, 0.0
    %11818 = vadd.xlane.f32.xlu0 %v11817
    %v11819 = vpop.xlane.xlu0 %11818
    %v11820 = vlog2.pop %v11819
    %v11821 = vmul.f32 %v11820, 0.6931472
    %v11822 = vsub.f32 %v11814, %v11821
    %11823 = vst [vmem:[#allocation22] sm:$0x3] %v11822
    // Predicated region
    $region86: #{convnet_forward.1} parent=1 // pred_check
      _
    $region87: #{convnet_forward.1} parent=1 // pred_check_branch
      %11825 = sbr.rel (0) target = $region89
    $region88: #{convnet_forward.1} parent=1 // pred_region
      %s11827 = ssub.s32 32, 32
      %11828 = vsyncadd [#allocation7], %s11827
      %s11830 = sshll.u32 [#allocation22], 4
      %s11831 = int_to_ptr.vmem [resolvable:$true] %s11830
      %11833 = dma.vmem_to_hbm [thread:$0]  %s11831, 32, %s11, [#allocation7]
    $region89: #{convnet_forward.1} parent=1 // pred_fallthru
      _
    // Predicated region
    $region90: #{convnet_forward.1} parent=1 // pred_check
      _
    $region91: #{convnet_forward.1} parent=1 // pred_check_branch
      %11835 = sbr.rel (0) target = $region93
    $region92: #{convnet_forward.1} parent=1 // pred_region
      %11836 = dma.done [#allocation7], 32
    $region93: #{convnet_forward.1} parent=1 // pred_fallthru
      _
    %11837 = vsyncpa [#allocation6], 1
    %11838 = vsyncpa [#allocation9], 1
    %11839 = vsyncpa [#allocation12], 1
    %11840 = vsyncpa [#allocation15], 1
    %11841 = vsyncpa [#allocation18], 1
    %11842 = vsyncpa [#allocation21], 1
    %11843 = vsyncpa [#allocation7], 1

</llo_original>
